<compile_context>
chip_gen: v6e
topology: v6e:2x2x1
jax: 0.10.0
libtpu: 0.0.40
codegen_flags: <defaults>
</compile_context>

<pallas_src>
import functools

import jax
import jax.numpy as jnp
from jax.experimental import pallas as pl
from jax.experimental.pallas import tpu as pltpu

_A = 0.7978845608028654          # sqrt(2/pi)
_B = _A * 0.044715


def _gelu_tanh(x):
    # tanh-approximate GELU (tanh lowers to the EUP slot on TPU).
    # Micro-opt form: hx + hx * tanh(x * (a + b*x*x)).
    hx = 0.5 * x
    u = x * (_A + _B * (x * x))
    return hx + hx * jnp.tanh(u)


def _device_kind_lower():
    try:
        return jax.devices()[0].device_kind.lower()
    except Exception:  # pragma: no cover
        return ""


def _make_kernel(num_hidden, num_models, elem_dtype, fuse_mean, split_batch):
    """Build the per-ensemble-member MLP kernel body."""
    inv_e = 1.0 / float(num_models)

    def kernel(x_ref, w_in_ref, b_in_ref, w_hid_ref, b_hid_ref,
               w_out_ref, b_out_ref, o_ref):
        # Shapes seen by the kernel (one ensemble member per grid step):
        #   x_ref:     [B, P]     f32
        #   w_in_ref:  [P, N]     bf16    b_in_ref:  [1, N]     elem_dtype
        #   w_hid_ref: [L, N, N]  bf16    b_hid_ref: [L, N]     elem_dtype
        #   w_out_ref: [N, Opad]  bf16    b_out_ref: [1, Opad]  f32
        #   o_ref:     [B, Opad]  f32  (fused mean) or per-member output
        B = x_ref.shape[0]
        if split_batch:
            xs = (x_ref[0:B // 2, :], x_ref[B // 2:B, :])
        else:
            xs = (x_ref[...],)

        w_in = w_in_ref[...]
        b_in = b_in_ref[...]
        hs = [
            _gelu_tanh(
                jnp.dot(x.astype(jnp.bfloat16), w_in,
                        preferred_element_type=jnp.float32).astype(elem_dtype)
                + b_in)
            for x in xs
        ]

        # Fully unrolled hidden stack (fixed trip count): static weight/bias
        # slices; the two half-batch chains interleave per layer so one
        # chain's GELU hides the other chain's matmul.
        for l in range(num_hidden):
            w = w_hid_ref[l]                       # [N, N]  bf16, static index
            b = b_hid_ref[l:l + 1, :]              # [1, N], static slice
            hs = [
                _gelu_tanh(
                    jnp.dot(h.astype(jnp.bfloat16), w,
                            preferred_element_type=jnp.float32).astype(elem_dtype)
                    + b)
                for h in hs
            ]

        w_out = w_out_ref[...]
        b_out = b_out_ref[...]
        outs = [
            jnp.dot(h.astype(jnp.bfloat16), w_out,
                    preferred_element_type=jnp.float32) + b_out     # f32
            for h in hs
        ]
        out = outs[0] if len(outs) == 1 else jnp.concatenate(outs, axis=0)

        if fuse_mean:
            e = pl.program_id(0)

            @pl.when(e == 0)
            def _():
                o_ref[...] = jnp.zeros_like(o_ref)

            o_ref[...] += out                      # resident f32 accumulator

            @pl.when(e == num_models - 1)
            def _():
                o_ref[...] = o_ref[...] * inv_e
        else:
            o_ref[...] = out                       # lane-dense per-member write

    return kernel


def build_forward(E, B, P, N, L, O, elem_dtype, fuse_mean, split_batch):
    """Build a jitted forward: theta [B, P] -> mean over ensemble, [B, O]."""
    Opad = ((O + 127) // 128) * 128                # lane-dense output
    kernel = _make_kernel(L, E, elem_dtype, fuse_mean, split_batch)

    if fuse_mean:
        out_shape = jax.ShapeDtypeStruct((B, Opad), jnp.float32)
        out_specs = pl.BlockSpec((B, Opad), lambda e: (0, 0))
        dim_sem = ("arbitrary",)                   # output revisited every step
    else:
        out_shape = jax.ShapeDtypeStruct((E, B, Opad), jnp.float32)
        out_specs = pl.BlockSpec((None, B, Opad), lambda e: (e, 0, 0))
        dim_sem = ("parallel",)                    # v7x: 2 TCs split members

    elem_bytes = jnp.dtype(elem_dtype).itemsize
    flops = 2 * E * B * (P * N + L * N * N + N * Opad)
    transcendentals = E * B * N * (L + 1)          # one tanh per GELU
    bytes_accessed = (E * B * P * 4                              # theta per step
                      + E * (P * N + L * N * N + N * Opad) * 2   # bf16 weights
                      + E * (N + L * N) * elem_bytes             # biases
                      + E * Opad * 4                             # out bias
                      + (B * Opad * 4 if fuse_mean else E * B * Opad * 4))

    call = pl.pallas_call(
        kernel,
        out_shape=out_shape,
        grid_spec=pltpu.PrefetchScalarGridSpec(
            num_scalar_prefetch=0,
            grid=(E,),
            in_specs=[
                pl.BlockSpec((B, P), lambda e: (0, 0)),                 # theta (shared)
                pl.BlockSpec((None, P, N), lambda e: (e, 0, 0)),        # w_in
                pl.BlockSpec((None, 1, N), lambda e: (e, 0, 0)),        # b_in
                pl.BlockSpec((None, L, N, N), lambda e: (e, 0, 0, 0)),  # w_hid
                pl.BlockSpec((None, L, N), lambda e: (e, 0, 0)),        # b_hid
                pl.BlockSpec((None, N, Opad), lambda e: (e, 0, 0)),     # w_out (padded)
                pl.BlockSpec((None, 1, Opad), lambda e: (e, 0, 0)),     # b_out (padded)
            ],
            out_specs=out_specs,
        ),
        compiler_params=pltpu.CompilerParams(
            dimension_semantics=dim_sem,
            vmem_limit_bytes=32 * 1024 * 1024,
        ),
        cost_estimate=pl.CostEstimate(flops=flops,
                                      transcendentals=transcendentals,
                                      bytes_accessed=bytes_accessed),
    )

    @jax.jit
    def forward(theta, params):
        w_in, b_in, w_hid, b_hid, w_out, b_out = params
        # Pad the output layer to a multiple of 128 lanes (zeros -> exact).
        w_out_p = jnp.pad(w_out, ((0, 0), (0, 0), (0, Opad - O)))
        b_out_p = jnp.pad(b_out, ((0, 0), (0, 0), (0, Opad - O)))
        pred = call(
            theta,
            w_in.astype(jnp.bfloat16),
            b_in.astype(elem_dtype),
            w_hid.astype(jnp.bfloat16),
            b_hid.astype(elem_dtype),
            w_out_p.astype(jnp.bfloat16),
            b_out_p.astype(jnp.float32),
        )
        if fuse_mean:
            return pred[:, :O]                     # mean already done in-kernel
        return jnp.mean(pred[:, :, :O], axis=0)

    return forward


def init_params(key, num_models, num_pars, output_len, num_layers, nodes):
    """PyTorch-style (uniform +/- 1/sqrt(fan_in)) init, stacked over the ensemble.

    Linear weights are stored pre-transposed as [in, out].
    """
    E, P, N, L, O = num_models, num_pars, nodes, num_layers, output_len
    ks = jax.random.split(key, 6)

    def u(k, shape, fan_in):
        bound = 1.0 / (float(fan_in) ** 0.5)
        return jax.random.uniform(k, shape, jnp.float32, -bound, bound)

    w_in = u(ks[0], (E, P, N), P)
    b_in = u(ks[1], (E, 1, N), P)
    w_hid = u(ks[2], (E, L, N, N), N)
    b_hid = u(ks[3], (E, L, N), N)
    w_out = u(ks[4], (E, N, O), N)
    b_out = u(ks[5], (E, 1, O), N)
    return (w_in, b_in, w_hid, b_hid, w_out, b_out)


def reference_forward(theta, params, elem_dtype):
    """Pure-JAX reference with the same bf16-weight / elem_dtype-GELU numerics."""
    w_in, b_in, w_hid, b_hid, w_out, b_out = params
    E, L = w_in.shape[0], w_hid.shape[1]
    x16 = theta.astype(jnp.bfloat16)
    preds = []
    for e in range(E):
        h = _gelu_tanh(
            jnp.dot(x16, w_in[e].astype(jnp.bfloat16),
                    preferred_element_type=jnp.float32).astype(elem_dtype)
            + b_in[e].astype(elem_dtype))
        for l in range(L):
            h = _gelu_tanh(
                jnp.dot(h.astype(jnp.bfloat16), w_hid[e, l].astype(jnp.bfloat16),
                        preferred_element_type=jnp.float32).astype(elem_dtype)
                + b_hid[e, l].astype(elem_dtype))
        preds.append(
            jnp.dot(h.astype(jnp.bfloat16), w_out[e].astype(jnp.bfloat16),
                    preferred_element_type=jnp.float32) + b_out[e])
    return jnp.mean(jnp.stack(preds, axis=0), axis=0)


if __name__ == "__main__":
    # Shapes from RtdistSpec_ensemble: DynamicNetwork(17, 200, 12, 256), 10 models.
    num_models = 10
    num_pars = 17
    output_len = 200
    num_layers = 12
    nodes = 256
    batch = 64

    kind = _device_kind_lower()
    use_bf16_elem = ("v6" in kind) or ("v7" in kind)   # bf16 VPU/EUP only on v6e/v7x
    elem_dtype = jnp.bfloat16 if use_bf16_elem else jnp.float32
    fuse_mean = "v7" not in kind                        # keep megacore split on v7x
    split_batch = (batch >= 16) and (batch % 16 == 0)   # two sublane-aligned chains

    key = jax.random.PRNGKey(0)
    kx, kp = jax.random.split(key)
    theta = jax.random.normal(kx, (batch, num_pars), jnp.float32)
    params = init_params(kp, num_models, num_pars, output_len, num_layers, nodes)

    fwd = build_forward(num_models, batch, num_pars, nodes, num_layers, output_len,
                        elem_dtype, fuse_mean, split_batch)
    out = jax.block_until_ready(fwd(theta, params))
    assert out.shape == (batch, output_len)

    ref_fn = jax.jit(functools.partial(reference_forward, elem_dtype=elem_dtype))
    ref = jax.block_until_ready(ref_fn(theta, params))

    # Tolerance depends on where the elementwise math runs (bf16 on v6e/v7x).
    atol = 1e-2 if use_bf16_elem else 2e-3
    max_diff = float(jnp.max(jnp.abs(out - ref)))
    assert jnp.allclose(out, ref, atol=atol, rtol=5e-2), (
        f"mismatch vs JAX reference: max abs diff = {max_diff}")

    print("KERNEL_OK")
</pallas_src>

<mosaic_0001>
module attributes {stable_mosaic.version = 11 : i64} {
  func.func @kernel(%arg0: i32, %arg1: memref<64x17xf32, #tpu.memory_space<vmem>>, %arg2: memref<1x17x256xbf16, #tpu.memory_space<vmem>>, %arg3: memref<1x1x256xf32, #tpu.memory_space<vmem>>, %arg4: memref<1x12x256x256xbf16, #tpu.memory_space<vmem>>, %arg5: memref<1x12x256xf32, #tpu.memory_space<vmem>>, %arg6: memref<1x256x256xbf16, #tpu.memory_space<vmem>>, %arg7: memref<1x1x256xf32, #tpu.memory_space<vmem>>, %arg8: memref<64x256xf32, #tpu.memory_space<vmem>>) attributes {dimension_semantics = [#tpu.dimension_semantics<arbitrary>], iteration_bounds = array<i64: 10>, scalar_prefetch = 0 : i64, scratch_operands = 0 : i64, tpu.core_type = #tpu.core_type<tc>, window_params = [{pipeline_mode = #tpu.pipeline_mode<synchronous>, transform_indices = @transform_0, window_bounds = array<i64: 64, 17>}, {transform_indices = @transform_1, window_bounds = array<i64: 1, 17, 256>}, {transform_indices = @transform_2, window_bounds = array<i64: 1, 1, 256>}, {transform_indices = @transform_3, window_bounds = array<i64: 1, 12, 256, 256>}, {transform_indices = @transform_4, window_bounds = array<i64: 1, 12, 256>}, {transform_indices = @transform_5, window_bounds = array<i64: 1, 256, 256>}, {transform_indices = @transform_6, window_bounds = array<i64: 1, 1, 256>}, {pipeline_mode = #tpu.pipeline_mode<synchronous>, transform_indices = @transform_7, window_bounds = array<i64: 64, 256>}]} {
    %c0 = arith.constant 0 : index
    %c0_0 = arith.constant 0 : index
    %0 = vector.load %arg1[%c0, %c0_0] : memref<64x17xf32, #tpu.memory_space<vmem>>, vector<32x17xf32>
    %c32 = arith.constant 32 : index
    %c0_1 = arith.constant 0 : index
    %1 = vector.load %arg1[%c32, %c0_1] : memref<64x17xf32, #tpu.memory_space<vmem>>, vector<32x17xf32>
    %c0_2 = arith.constant 0 : index
    %c0_3 = arith.constant 0 : index
    %c0_4 = arith.constant 0 : index
    %2 = vector.load %arg2[%c0_2, %c0_3, %c0_4] : memref<1x17x256xbf16, #tpu.memory_space<vmem>>, vector<1x17x256xbf16>
    %3 = vector.shape_cast %2 : vector<1x17x256xbf16> to vector<17x256xbf16>
    %c0_5 = arith.constant 0 : index
    %c0_6 = arith.constant 0 : index
    %c0_7 = arith.constant 0 : index
    %4 = vector.load %arg3[%c0_5, %c0_6, %c0_7] : memref<1x1x256xf32, #tpu.memory_space<vmem>>, vector<1x1x256xf32>
    %5 = vector.shape_cast %4 : vector<1x1x256xf32> to vector<1x256xf32>
    %6 = arith.truncf %0 : vector<32x17xf32> to vector<32x17xbf16>
    %cst = arith.constant dense<0.000000e+00> : vector<32x256xf32>
    %7 = tpu.matmul %6, %3, %cst {dimension_numbers = #tpu.dot_dimension_numbers<[1], [0], [0], [1], [0, 0, 1, 1], [], []>} : vector<32x17xbf16>, vector<17x256xbf16>, vector<32x256xf32> -> vector<32x256xf32>
    %8 = vector.broadcast %5 : vector<1x256xf32> to vector<32x256xf32>
    %9 = arith.addf %7, %8 : vector<32x256xf32>
    %cst_8 = arith.constant 5.000000e-01 : f32
    %10 = vector.broadcast %cst_8 : f32 to vector<32x256xf32>
    %11 = arith.mulf %10, %9 : vector<32x256xf32>
    %12 = arith.mulf %9, %9 : vector<32x256xf32>
    %cst_9 = arith.constant 0.0356774069 : f32
    %13 = vector.broadcast %cst_9 : f32 to vector<32x256xf32>
    %14 = arith.mulf %13, %12 : vector<32x256xf32>
    %cst_10 = arith.constant 0.797884583 : f32
    %15 = vector.broadcast %cst_10 : f32 to vector<32x256xf32>
    %16 = arith.addf %15, %14 : vector<32x256xf32>
    %17 = arith.mulf %9, %16 : vector<32x256xf32>
    %18 = math.tanh %17 : vector<32x256xf32>
    %19 = arith.mulf %11, %18 : vector<32x256xf32>
    %20 = arith.addf %11, %19 : vector<32x256xf32>
    %21 = arith.truncf %1 : vector<32x17xf32> to vector<32x17xbf16>
    %cst_11 = arith.constant dense<0.000000e+00> : vector<32x256xf32>
    %22 = tpu.matmul %21, %3, %cst_11 {dimension_numbers = #tpu.dot_dimension_numbers<[1], [0], [0], [1], [0, 0, 1, 1], [], []>} : vector<32x17xbf16>, vector<17x256xbf16>, vector<32x256xf32> -> vector<32x256xf32>
    %23 = vector.broadcast %5 : vector<1x256xf32> to vector<32x256xf32>
    %24 = arith.addf %22, %23 : vector<32x256xf32>
    %cst_12 = arith.constant 5.000000e-01 : f32
    %25 = vector.broadcast %cst_12 : f32 to vector<32x256xf32>
    %26 = arith.mulf %25, %24 : vector<32x256xf32>
    %27 = arith.mulf %24, %24 : vector<32x256xf32>
    %cst_13 = arith.constant 0.0356774069 : f32
    %28 = vector.broadcast %cst_13 : f32 to vector<32x256xf32>
    %29 = arith.mulf %28, %27 : vector<32x256xf32>
    %cst_14 = arith.constant 0.797884583 : f32
    %30 = vector.broadcast %cst_14 : f32 to vector<32x256xf32>
    %31 = arith.addf %30, %29 : vector<32x256xf32>
    %32 = arith.mulf %24, %31 : vector<32x256xf32>
    %33 = math.tanh %32 : vector<32x256xf32>
    %34 = arith.mulf %26, %33 : vector<32x256xf32>
    %35 = arith.addf %26, %34 : vector<32x256xf32>
    %c0_15 = arith.constant 0 : index
    %c0_16 = arith.constant 0 : index
    %c0_17 = arith.constant 0 : index
    %c0_18 = arith.constant 0 : index
    %36 = vector.load %arg4[%c0_15, %c0_16, %c0_17, %c0_18] : memref<1x12x256x256xbf16, #tpu.memory_space<vmem>>, vector<1x1x256x256xbf16>
    %37 = vector.shape_cast %36 : vector<1x1x256x256xbf16> to vector<256x256xbf16>
    %c0_19 = arith.constant 0 : index
    %c0_20 = arith.constant 0 : index
    %c0_21 = arith.constant 0 : index
    %38 = vector.load %arg5[%c0_19, %c0_20, %c0_21] : memref<1x12x256xf32, #tpu.memory_space<vmem>>, vector<1x1x256xf32>
    %39 = vector.shape_cast %38 : vector<1x1x256xf32> to vector<1x256xf32>
    %40 = arith.truncf %20 : vector<32x256xf32> to vector<32x256xbf16>
    %cst_22 = arith.constant dense<0.000000e+00> : vector<32x256xf32>
    %41 = tpu.matmul %40, %37, %cst_22 {dimension_numbers = #tpu.dot_dimension_numbers<[1], [0], [0], [1], [0, 0, 1, 1], [], []>} : vector<32x256xbf16>, vector<256x256xbf16>, vector<32x256xf32> -> vector<32x256xf32>
    %42 = vector.broadcast %39 : vector<1x256xf32> to vector<32x256xf32>
    %43 = arith.addf %41, %42 : vector<32x256xf32>
    %cst_23 = arith.constant 5.000000e-01 : f32
    %44 = vector.broadcast %cst_23 : f32 to vector<32x256xf32>
    %45 = arith.mulf %44, %43 : vector<32x256xf32>
    %46 = arith.mulf %43, %43 : vector<32x256xf32>
    %cst_24 = arith.constant 0.0356774069 : f32
    %47 = vector.broadcast %cst_24 : f32 to vector<32x256xf32>
    %48 = arith.mulf %47, %46 : vector<32x256xf32>
    %cst_25 = arith.constant 0.797884583 : f32
    %49 = vector.broadcast %cst_25 : f32 to vector<32x256xf32>
    %50 = arith.addf %49, %48 : vector<32x256xf32>
    %51 = arith.mulf %43, %50 : vector<32x256xf32>
    %52 = math.tanh %51 : vector<32x256xf32>
    %53 = arith.mulf %45, %52 : vector<32x256xf32>
    %54 = arith.addf %45, %53 : vector<32x256xf32>
    %55 = arith.truncf %35 : vector<32x256xf32> to vector<32x256xbf16>
    %cst_26 = arith.constant dense<0.000000e+00> : vector<32x256xf32>
    %56 = tpu.matmul %55, %37, %cst_26 {dimension_numbers = #tpu.dot_dimension_numbers<[1], [0], [0], [1], [0, 0, 1, 1], [], []>} : vector<32x256xbf16>, vector<256x256xbf16>, vector<32x256xf32> -> vector<32x256xf32>
    %57 = vector.broadcast %39 : vector<1x256xf32> to vector<32x256xf32>
    %58 = arith.addf %56, %57 : vector<32x256xf32>
    %cst_27 = arith.constant 5.000000e-01 : f32
    %59 = vector.broadcast %cst_27 : f32 to vector<32x256xf32>
    %60 = arith.mulf %59, %58 : vector<32x256xf32>
    %61 = arith.mulf %58, %58 : vector<32x256xf32>
    %cst_28 = arith.constant 0.0356774069 : f32
    %62 = vector.broadcast %cst_28 : f32 to vector<32x256xf32>
    %63 = arith.mulf %62, %61 : vector<32x256xf32>
    %cst_29 = arith.constant 0.797884583 : f32
    %64 = vector.broadcast %cst_29 : f32 to vector<32x256xf32>
    %65 = arith.addf %64, %63 : vector<32x256xf32>
    %66 = arith.mulf %58, %65 : vector<32x256xf32>
    %67 = math.tanh %66 : vector<32x256xf32>
    %68 = arith.mulf %60, %67 : vector<32x256xf32>
    %69 = arith.addf %60, %68 : vector<32x256xf32>
    %c0_30 = arith.constant 0 : index
    %c1 = arith.constant 1 : index
    %c0_31 = arith.constant 0 : index
    %c0_32 = arith.constant 0 : index
    %70 = vector.load %arg4[%c0_30, %c1, %c0_31, %c0_32] : memref<1x12x256x256xbf16, #tpu.memory_space<vmem>>, vector<1x1x256x256xbf16>
    %71 = vector.shape_cast %70 : vector<1x1x256x256xbf16> to vector<256x256xbf16>
    %c0_33 = arith.constant 0 : index
    %c1_34 = arith.constant 1 : index
    %c0_35 = arith.constant 0 : index
    %72 = vector.load %arg5[%c0_33, %c1_34, %c0_35] : memref<1x12x256xf32, #tpu.memory_space<vmem>>, vector<1x1x256xf32>
    %73 = vector.shape_cast %72 : vector<1x1x256xf32> to vector<1x256xf32>
    %74 = arith.truncf %54 : vector<32x256xf32> to vector<32x256xbf16>
    %cst_36 = arith.constant dense<0.000000e+00> : vector<32x256xf32>
    %75 = tpu.matmul %74, %71, %cst_36 {dimension_numbers = #tpu.dot_dimension_numbers<[1], [0], [0], [1], [0, 0, 1, 1], [], []>} : vector<32x256xbf16>, vector<256x256xbf16>, vector<32x256xf32> -> vector<32x256xf32>
    %76 = vector.broadcast %73 : vector<1x256xf32> to vector<32x256xf32>
    %77 = arith.addf %75, %76 : vector<32x256xf32>
    %cst_37 = arith.constant 5.000000e-01 : f32
    %78 = vector.broadcast %cst_37 : f32 to vector<32x256xf32>
    %79 = arith.mulf %78, %77 : vector<32x256xf32>
    %80 = arith.mulf %77, %77 : vector<32x256xf32>
    %cst_38 = arith.constant 0.0356774069 : f32
    %81 = vector.broadcast %cst_38 : f32 to vector<32x256xf32>
    %82 = arith.mulf %81, %80 : vector<32x256xf32>
    %cst_39 = arith.constant 0.797884583 : f32
    %83 = vector.broadcast %cst_39 : f32 to vector<32x256xf32>
    %84 = arith.addf %83, %82 : vector<32x256xf32>
    %85 = arith.mulf %77, %84 : vector<32x256xf32>
    %86 = math.tanh %85 : vector<32x256xf32>
    %87 = arith.mulf %79, %86 : vector<32x256xf32>
    %88 = arith.addf %79, %87 : vector<32x256xf32>
    %89 = arith.truncf %69 : vector<32x256xf32> to vector<32x256xbf16>
    %cst_40 = arith.constant dense<0.000000e+00> : vector<32x256xf32>
    %90 = tpu.matmul %89, %71, %cst_40 {dimension_numbers = #tpu.dot_dimension_numbers<[1], [0], [0], [1], [0, 0, 1, 1], [], []>} : vector<32x256xbf16>, vector<256x256xbf16>, vector<32x256xf32> -> vector<32x256xf32>
    %91 = vector.broadcast %73 : vector<1x256xf32> to vector<32x256xf32>
    %92 = arith.addf %90, %91 : vector<32x256xf32>
    %cst_41 = arith.constant 5.000000e-01 : f32
    %93 = vector.broadcast %cst_41 : f32 to vector<32x256xf32>
    %94 = arith.mulf %93, %92 : vector<32x256xf32>
    %95 = arith.mulf %92, %92 : vector<32x256xf32>
    %cst_42 = arith.constant 0.0356774069 : f32
    %96 = vector.broadcast %cst_42 : f32 to vector<32x256xf32>
    %97 = arith.mulf %96, %95 : vector<32x256xf32>
    %cst_43 = arith.constant 0.797884583 : f32
    %98 = vector.broadcast %cst_43 : f32 to vector<32x256xf32>
    %99 = arith.addf %98, %97 : vector<32x256xf32>
    %100 = arith.mulf %92, %99 : vector<32x256xf32>
    %101 = math.tanh %100 : vector<32x256xf32>
    %102 = arith.mulf %94, %101 : vector<32x256xf32>
    %103 = arith.addf %94, %102 : vector<32x256xf32>
    %c0_44 = arith.constant 0 : index
    %c2 = arith.constant 2 : index
    %c0_45 = arith.constant 0 : index
    %c0_46 = arith.constant 0 : index
    %104 = vector.load %arg4[%c0_44, %c2, %c0_45, %c0_46] : memref<1x12x256x256xbf16, #tpu.memory_space<vmem>>, vector<1x1x256x256xbf16>
    %105 = vector.shape_cast %104 : vector<1x1x256x256xbf16> to vector<256x256xbf16>
    %c0_47 = arith.constant 0 : index
    %c2_48 = arith.constant 2 : index
    %c0_49 = arith.constant 0 : index
    %106 = vector.load %arg5[%c0_47, %c2_48, %c0_49] : memref<1x12x256xf32, #tpu.memory_space<vmem>>, vector<1x1x256xf32>
    %107 = vector.shape_cast %106 : vector<1x1x256xf32> to vector<1x256xf32>
    %108 = arith.truncf %88 : vector<32x256xf32> to vector<32x256xbf16>
    %cst_50 = arith.constant dense<0.000000e+00> : vector<32x256xf32>
    %109 = tpu.matmul %108, %105, %cst_50 {dimension_numbers = #tpu.dot_dimension_numbers<[1], [0], [0], [1], [0, 0, 1, 1], [], []>} : vector<32x256xbf16>, vector<256x256xbf16>, vector<32x256xf32> -> vector<32x256xf32>
    %110 = vector.broadcast %107 : vector<1x256xf32> to vector<32x256xf32>
    %111 = arith.addf %109, %110 : vector<32x256xf32>
    %cst_51 = arith.constant 5.000000e-01 : f32
    %112 = vector.broadcast %cst_51 : f32 to vector<32x256xf32>
    %113 = arith.mulf %112, %111 : vector<32x256xf32>
    %114 = arith.mulf %111, %111 : vector<32x256xf32>
    %cst_52 = arith.constant 0.0356774069 : f32
    %115 = vector.broadcast %cst_52 : f32 to vector<32x256xf32>
    %116 = arith.mulf %115, %114 : vector<32x256xf32>
    %cst_53 = arith.constant 0.797884583 : f32
    %117 = vector.broadcast %cst_53 : f32 to vector<32x256xf32>
    %118 = arith.addf %117, %116 : vector<32x256xf32>
    %119 = arith.mulf %111, %118 : vector<32x256xf32>
    %120 = math.tanh %119 : vector<32x256xf32>
    %121 = arith.mulf %113, %120 : vector<32x256xf32>
    %122 = arith.addf %113, %121 : vector<32x256xf32>
    %123 = arith.truncf %103 : vector<32x256xf32> to vector<32x256xbf16>
    %cst_54 = arith.constant dense<0.000000e+00> : vector<32x256xf32>
    %124 = tpu.matmul %123, %105, %cst_54 {dimension_numbers = #tpu.dot_dimension_numbers<[1], [0], [0], [1], [0, 0, 1, 1], [], []>} : vector<32x256xbf16>, vector<256x256xbf16>, vector<32x256xf32> -> vector<32x256xf32>
    %125 = vector.broadcast %107 : vector<1x256xf32> to vector<32x256xf32>
    %126 = arith.addf %124, %125 : vector<32x256xf32>
    %cst_55 = arith.constant 5.000000e-01 : f32
    %127 = vector.broadcast %cst_55 : f32 to vector<32x256xf32>
    %128 = arith.mulf %127, %126 : vector<32x256xf32>
    %129 = arith.mulf %126, %126 : vector<32x256xf32>
    %cst_56 = arith.constant 0.0356774069 : f32
    %130 = vector.broadcast %cst_56 : f32 to vector<32x256xf32>
    %131 = arith.mulf %130, %129 : vector<32x256xf32>
    %cst_57 = arith.constant 0.797884583 : f32
    %132 = vector.broadcast %cst_57 : f32 to vector<32x256xf32>
    %133 = arith.addf %132, %131 : vector<32x256xf32>
    %134 = arith.mulf %126, %133 : vector<32x256xf32>
    %135 = math.tanh %134 : vector<32x256xf32>
    %136 = arith.mulf %128, %135 : vector<32x256xf32>
    %137 = arith.addf %128, %136 : vector<32x256xf32>
    %c0_58 = arith.constant 0 : index
    %c3 = arith.constant 3 : index
    %c0_59 = arith.constant 0 : index
    %c0_60 = arith.constant 0 : index
    %138 = vector.load %arg4[%c0_58, %c3, %c0_59, %c0_60] : memref<1x12x256x256xbf16, #tpu.memory_space<vmem>>, vector<1x1x256x256xbf16>
    %139 = vector.shape_cast %138 : vector<1x1x256x256xbf16> to vector<256x256xbf16>
    %c0_61 = arith.constant 0 : index
    %c3_62 = arith.constant 3 : index
    %c0_63 = arith.constant 0 : index
    %140 = vector.load %arg5[%c0_61, %c3_62, %c0_63] : memref<1x12x256xf32, #tpu.memory_space<vmem>>, vector<1x1x256xf32>
    %141 = vector.shape_cast %140 : vector<1x1x256xf32> to vector<1x256xf32>
    %142 = arith.truncf %122 : vector<32x256xf32> to vector<32x256xbf16>
    %cst_64 = arith.constant dense<0.000000e+00> : vector<32x256xf32>
    %143 = tpu.matmul %142, %139, %cst_64 {dimension_numbers = #tpu.dot_dimension_numbers<[1], [0], [0], [1], [0, 0, 1, 1], [], []>} : vector<32x256xbf16>, vector<256x256xbf16>, vector<32x256xf32> -> vector<32x256xf32>
    %144 = vector.broadcast %141 : vector<1x256xf32> to vector<32x256xf32>
    %145 = arith.addf %143, %144 : vector<32x256xf32>
    %cst_65 = arith.constant 5.000000e-01 : f32
    %146 = vector.broadcast %cst_65 : f32 to vector<32x256xf32>
    %147 = arith.mulf %146, %145 : vector<32x256xf32>
    %148 = arith.mulf %145, %145 : vector<32x256xf32>
    %cst_66 = arith.constant 0.0356774069 : f32
    %149 = vector.broadcast %cst_66 : f32 to vector<32x256xf32>
    %150 = arith.mulf %149, %148 : vector<32x256xf32>
    %cst_67 = arith.constant 0.797884583 : f32
    %151 = vector.broadcast %cst_67 : f32 to vector<32x256xf32>
    %152 = arith.addf %151, %150 : vector<32x256xf32>
    %153 = arith.mulf %145, %152 : vector<32x256xf32>
    %154 = math.tanh %153 : vector<32x256xf32>
    %155 = arith.mulf %147, %154 : vector<32x256xf32>
    %156 = arith.addf %147, %155 : vector<32x256xf32>
    %157 = arith.truncf %137 : vector<32x256xf32> to vector<32x256xbf16>
    %cst_68 = arith.constant dense<0.000000e+00> : vector<32x256xf32>
    %158 = tpu.matmul %157, %139, %cst_68 {dimension_numbers = #tpu.dot_dimension_numbers<[1], [0], [0], [1], [0, 0, 1, 1], [], []>} : vector<32x256xbf16>, vector<256x256xbf16>, vector<32x256xf32> -> vector<32x256xf32>
    %159 = vector.broadcast %141 : vector<1x256xf32> to vector<32x256xf32>
    %160 = arith.addf %158, %159 : vector<32x256xf32>
    %cst_69 = arith.constant 5.000000e-01 : f32
    %161 = vector.broadcast %cst_69 : f32 to vector<32x256xf32>
    %162 = arith.mulf %161, %160 : vector<32x256xf32>
    %163 = arith.mulf %160, %160 : vector<32x256xf32>
    %cst_70 = arith.constant 0.0356774069 : f32
    %164 = vector.broadcast %cst_70 : f32 to vector<32x256xf32>
    %165 = arith.mulf %164, %163 : vector<32x256xf32>
    %cst_71 = arith.constant 0.797884583 : f32
    %166 = vector.broadcast %cst_71 : f32 to vector<32x256xf32>
    %167 = arith.addf %166, %165 : vector<32x256xf32>
    %168 = arith.mulf %160, %167 : vector<32x256xf32>
    %169 = math.tanh %168 : vector<32x256xf32>
    %170 = arith.mulf %162, %169 : vector<32x256xf32>
    %171 = arith.addf %162, %170 : vector<32x256xf32>
    %c0_72 = arith.constant 0 : index
    %c4 = arith.constant 4 : index
    %c0_73 = arith.constant 0 : index
    %c0_74 = arith.constant 0 : index
    %172 = vector.load %arg4[%c0_72, %c4, %c0_73, %c0_74] : memref<1x12x256x256xbf16, #tpu.memory_space<vmem>>, vector<1x1x256x256xbf16>
    %173 = vector.shape_cast %172 : vector<1x1x256x256xbf16> to vector<256x256xbf16>
    %c0_75 = arith.constant 0 : index
    %c4_76 = arith.constant 4 : index
    %c0_77 = arith.constant 0 : index
    %174 = vector.load %arg5[%c0_75, %c4_76, %c0_77] : memref<1x12x256xf32, #tpu.memory_space<vmem>>, vector<1x1x256xf32>
    %175 = vector.shape_cast %174 : vector<1x1x256xf32> to vector<1x256xf32>
    %176 = arith.truncf %156 : vector<32x256xf32> to vector<32x256xbf16>
    %cst_78 = arith.constant dense<0.000000e+00> : vector<32x256xf32>
    %177 = tpu.matmul %176, %173, %cst_78 {dimension_numbers = #tpu.dot_dimension_numbers<[1], [0], [0], [1], [0, 0, 1, 1], [], []>} : vector<32x256xbf16>, vector<256x256xbf16>, vector<32x256xf32> -> vector<32x256xf32>
    %178 = vector.broadcast %175 : vector<1x256xf32> to vector<32x256xf32>
    %179 = arith.addf %177, %178 : vector<32x256xf32>
    %cst_79 = arith.constant 5.000000e-01 : f32
    %180 = vector.broadcast %cst_79 : f32 to vector<32x256xf32>
    %181 = arith.mulf %180, %179 : vector<32x256xf32>
    %182 = arith.mulf %179, %179 : vector<32x256xf32>
    %cst_80 = arith.constant 0.0356774069 : f32
    %183 = vector.broadcast %cst_80 : f32 to vector<32x256xf32>
    %184 = arith.mulf %183, %182 : vector<32x256xf32>
    %cst_81 = arith.constant 0.797884583 : f32
    %185 = vector.broadcast %cst_81 : f32 to vector<32x256xf32>
    %186 = arith.addf %185, %184 : vector<32x256xf32>
    %187 = arith.mulf %179, %186 : vector<32x256xf32>
    %188 = math.tanh %187 : vector<32x256xf32>
    %189 = arith.mulf %181, %188 : vector<32x256xf32>
    %190 = arith.addf %181, %189 : vector<32x256xf32>
    %191 = arith.truncf %171 : vector<32x256xf32> to vector<32x256xbf16>
    %cst_82 = arith.constant dense<0.000000e+00> : vector<32x256xf32>
    %192 = tpu.matmul %191, %173, %cst_82 {dimension_numbers = #tpu.dot_dimension_numbers<[1], [0], [0], [1], [0, 0, 1, 1], [], []>} : vector<32x256xbf16>, vector<256x256xbf16>, vector<32x256xf32> -> vector<32x256xf32>
    %193 = vector.broadcast %175 : vector<1x256xf32> to vector<32x256xf32>
    %194 = arith.addf %192, %193 : vector<32x256xf32>
    %cst_83 = arith.constant 5.000000e-01 : f32
    %195 = vector.broadcast %cst_83 : f32 to vector<32x256xf32>
    %196 = arith.mulf %195, %194 : vector<32x256xf32>
    %197 = arith.mulf %194, %194 : vector<32x256xf32>
    %cst_84 = arith.constant 0.0356774069 : f32
    %198 = vector.broadcast %cst_84 : f32 to vector<32x256xf32>
    %199 = arith.mulf %198, %197 : vector<32x256xf32>
    %cst_85 = arith.constant 0.797884583 : f32
    %200 = vector.broadcast %cst_85 : f32 to vector<32x256xf32>
    %201 = arith.addf %200, %199 : vector<32x256xf32>
    %202 = arith.mulf %194, %201 : vector<32x256xf32>
    %203 = math.tanh %202 : vector<32x256xf32>
    %204 = arith.mulf %196, %203 : vector<32x256xf32>
    %205 = arith.addf %196, %204 : vector<32x256xf32>
    %c0_86 = arith.constant 0 : index
    %c5 = arith.constant 5 : index
    %c0_87 = arith.constant 0 : index
    %c0_88 = arith.constant 0 : index
    %206 = vector.load %arg4[%c0_86, %c5, %c0_87, %c0_88] : memref<1x12x256x256xbf16, #tpu.memory_space<vmem>>, vector<1x1x256x256xbf16>
    %207 = vector.shape_cast %206 : vector<1x1x256x256xbf16> to vector<256x256xbf16>
    %c0_89 = arith.constant 0 : index
    %c5_90 = arith.constant 5 : index
    %c0_91 = arith.constant 0 : index
    %208 = vector.load %arg5[%c0_89, %c5_90, %c0_91] : memref<1x12x256xf32, #tpu.memory_space<vmem>>, vector<1x1x256xf32>
    %209 = vector.shape_cast %208 : vector<1x1x256xf32> to vector<1x256xf32>
    %210 = arith.truncf %190 : vector<32x256xf32> to vector<32x256xbf16>
    %cst_92 = arith.constant dense<0.000000e+00> : vector<32x256xf32>
    %211 = tpu.matmul %210, %207, %cst_92 {dimension_numbers = #tpu.dot_dimension_numbers<[1], [0], [0], [1], [0, 0, 1, 1], [], []>} : vector<32x256xbf16>, vector<256x256xbf16>, vector<32x256xf32> -> vector<32x256xf32>
    %212 = vector.broadcast %209 : vector<1x256xf32> to vector<32x256xf32>
    %213 = arith.addf %211, %212 : vector<32x256xf32>
    %cst_93 = arith.constant 5.000000e-01 : f32
    %214 = vector.broadcast %cst_93 : f32 to vector<32x256xf32>
    %215 = arith.mulf %214, %213 : vector<32x256xf32>
    %216 = arith.mulf %213, %213 : vector<32x256xf32>
    %cst_94 = arith.constant 0.0356774069 : f32
    %217 = vector.broadcast %cst_94 : f32 to vector<32x256xf32>
    %218 = arith.mulf %217, %216 : vector<32x256xf32>
    %cst_95 = arith.constant 0.797884583 : f32
    %219 = vector.broadcast %cst_95 : f32 to vector<32x256xf32>
    %220 = arith.addf %219, %218 : vector<32x256xf32>
    %221 = arith.mulf %213, %220 : vector<32x256xf32>
    %222 = math.tanh %221 : vector<32x256xf32>
    %223 = arith.mulf %215, %222 : vector<32x256xf32>
    %224 = arith.addf %215, %223 : vector<32x256xf32>
    %225 = arith.truncf %205 : vector<32x256xf32> to vector<32x256xbf16>
    %cst_96 = arith.constant dense<0.000000e+00> : vector<32x256xf32>
    %226 = tpu.matmul %225, %207, %cst_96 {dimension_numbers = #tpu.dot_dimension_numbers<[1], [0], [0], [1], [0, 0, 1, 1], [], []>} : vector<32x256xbf16>, vector<256x256xbf16>, vector<32x256xf32> -> vector<32x256xf32>
    %227 = vector.broadcast %209 : vector<1x256xf32> to vector<32x256xf32>
    %228 = arith.addf %226, %227 : vector<32x256xf32>
    %cst_97 = arith.constant 5.000000e-01 : f32
    %229 = vector.broadcast %cst_97 : f32 to vector<32x256xf32>
    %230 = arith.mulf %229, %228 : vector<32x256xf32>
    %231 = arith.mulf %228, %228 : vector<32x256xf32>
    %cst_98 = arith.constant 0.0356774069 : f32
    %232 = vector.broadcast %cst_98 : f32 to vector<32x256xf32>
    %233 = arith.mulf %232, %231 : vector<32x256xf32>
    %cst_99 = arith.constant 0.797884583 : f32
    %234 = vector.broadcast %cst_99 : f32 to vector<32x256xf32>
    %235 = arith.addf %234, %233 : vector<32x256xf32>
    %236 = arith.mulf %228, %235 : vector<32x256xf32>
    %237 = math.tanh %236 : vector<32x256xf32>
    %238 = arith.mulf %230, %237 : vector<32x256xf32>
    %239 = arith.addf %230, %238 : vector<32x256xf32>
    %c0_100 = arith.constant 0 : index
    %c6 = arith.constant 6 : index
    %c0_101 = arith.constant 0 : index
    %c0_102 = arith.constant 0 : index
    %240 = vector.load %arg4[%c0_100, %c6, %c0_101, %c0_102] : memref<1x12x256x256xbf16, #tpu.memory_space<vmem>>, vector<1x1x256x256xbf16>
    %241 = vector.shape_cast %240 : vector<1x1x256x256xbf16> to vector<256x256xbf16>
    %c0_103 = arith.constant 0 : index
    %c6_104 = arith.constant 6 : index
    %c0_105 = arith.constant 0 : index
    %242 = vector.load %arg5[%c0_103, %c6_104, %c0_105] : memref<1x12x256xf32, #tpu.memory_space<vmem>>, vector<1x1x256xf32>
    %243 = vector.shape_cast %242 : vector<1x1x256xf32> to vector<1x256xf32>
    %244 = arith.truncf %224 : vector<32x256xf32> to vector<32x256xbf16>
    %cst_106 = arith.constant dense<0.000000e+00> : vector<32x256xf32>
    %245 = tpu.matmul %244, %241, %cst_106 {dimension_numbers = #tpu.dot_dimension_numbers<[1], [0], [0], [1], [0, 0, 1, 1], [], []>} : vector<32x256xbf16>, vector<256x256xbf16>, vector<32x256xf32> -> vector<32x256xf32>
    %246 = vector.broadcast %243 : vector<1x256xf32> to vector<32x256xf32>
    %247 = arith.addf %245, %246 : vector<32x256xf32>
    %cst_107 = arith.constant 5.000000e-01 : f32
    %248 = vector.broadcast %cst_107 : f32 to vector<32x256xf32>
    %249 = arith.mulf %248, %247 : vector<32x256xf32>
    %250 = arith.mulf %247, %247 : vector<32x256xf32>
    %cst_108 = arith.constant 0.0356774069 : f32
    %251 = vector.broadcast %cst_108 : f32 to vector<32x256xf32>
    %252 = arith.mulf %251, %250 : vector<32x256xf32>
    %cst_109 = arith.constant 0.797884583 : f32
    %253 = vector.broadcast %cst_109 : f32 to vector<32x256xf32>
    %254 = arith.addf %253, %252 : vector<32x256xf32>
    %255 = arith.mulf %247, %254 : vector<32x256xf32>
    %256 = math.tanh %255 : vector<32x256xf32>
    %257 = arith.mulf %249, %256 : vector<32x256xf32>
    %258 = arith.addf %249, %257 : vector<32x256xf32>
    %259 = arith.truncf %239 : vector<32x256xf32> to vector<32x256xbf16>
    %cst_110 = arith.constant dense<0.000000e+00> : vector<32x256xf32>
    %260 = tpu.matmul %259, %241, %cst_110 {dimension_numbers = #tpu.dot_dimension_numbers<[1], [0], [0], [1], [0, 0, 1, 1], [], []>} : vector<32x256xbf16>, vector<256x256xbf16>, vector<32x256xf32> -> vector<32x256xf32>
    %261 = vector.broadcast %243 : vector<1x256xf32> to vector<32x256xf32>
    %262 = arith.addf %260, %261 : vector<32x256xf32>
    %cst_111 = arith.constant 5.000000e-01 : f32
    %263 = vector.broadcast %cst_111 : f32 to vector<32x256xf32>
    %264 = arith.mulf %263, %262 : vector<32x256xf32>
    %265 = arith.mulf %262, %262 : vector<32x256xf32>
    %cst_112 = arith.constant 0.0356774069 : f32
    %266 = vector.broadcast %cst_112 : f32 to vector<32x256xf32>
    %267 = arith.mulf %266, %265 : vector<32x256xf32>
    %cst_113 = arith.constant 0.797884583 : f32
    %268 = vector.broadcast %cst_113 : f32 to vector<32x256xf32>
    %269 = arith.addf %268, %267 : vector<32x256xf32>
    %270 = arith.mulf %262, %269 : vector<32x256xf32>
    %271 = math.tanh %270 : vector<32x256xf32>
    %272 = arith.mulf %264, %271 : vector<32x256xf32>
    %273 = arith.addf %264, %272 : vector<32x256xf32>
    %c0_114 = arith.constant 0 : index
    %c7 = arith.constant 7 : index
    %c0_115 = arith.constant 0 : index
    %c0_116 = arith.constant 0 : index
    %274 = vector.load %arg4[%c0_114, %c7, %c0_115, %c0_116] : memref<1x12x256x256xbf16, #tpu.memory_space<vmem>>, vector<1x1x256x256xbf16>
    %275 = vector.shape_cast %274 : vector<1x1x256x256xbf16> to vector<256x256xbf16>
    %c0_117 = arith.constant 0 : index
    %c7_118 = arith.constant 7 : index
    %c0_119 = arith.constant 0 : index
    %276 = vector.load %arg5[%c0_117, %c7_118, %c0_119] : memref<1x12x256xf32, #tpu.memory_space<vmem>>, vector<1x1x256xf32>
    %277 = vector.shape_cast %276 : vector<1x1x256xf32> to vector<1x256xf32>
    %278 = arith.truncf %258 : vector<32x256xf32> to vector<32x256xbf16>
    %cst_120 = arith.constant dense<0.000000e+00> : vector<32x256xf32>
    %279 = tpu.matmul %278, %275, %cst_120 {dimension_numbers = #tpu.dot_dimension_numbers<[1], [0], [0], [1], [0, 0, 1, 1], [], []>} : vector<32x256xbf16>, vector<256x256xbf16>, vector<32x256xf32> -> vector<32x256xf32>
    %280 = vector.broadcast %277 : vector<1x256xf32> to vector<32x256xf32>
    %281 = arith.addf %279, %280 : vector<32x256xf32>
    %cst_121 = arith.constant 5.000000e-01 : f32
    %282 = vector.broadcast %cst_121 : f32 to vector<32x256xf32>
    %283 = arith.mulf %282, %281 : vector<32x256xf32>
    %284 = arith.mulf %281, %281 : vector<32x256xf32>
    %cst_122 = arith.constant 0.0356774069 : f32
    %285 = vector.broadcast %cst_122 : f32 to vector<32x256xf32>
    %286 = arith.mulf %285, %284 : vector<32x256xf32>
    %cst_123 = arith.constant 0.797884583 : f32
    %287 = vector.broadcast %cst_123 : f32 to vector<32x256xf32>
    %288 = arith.addf %287, %286 : vector<32x256xf32>
    %289 = arith.mulf %281, %288 : vector<32x256xf32>
    %290 = math.tanh %289 : vector<32x256xf32>
    %291 = arith.mulf %283, %290 : vector<32x256xf32>
    %292 = arith.addf %283, %291 : vector<32x256xf32>
    %293 = arith.truncf %273 : vector<32x256xf32> to vector<32x256xbf16>
    %cst_124 = arith.constant dense<0.000000e+00> : vector<32x256xf32>
    %294 = tpu.matmul %293, %275, %cst_124 {dimension_numbers = #tpu.dot_dimension_numbers<[1], [0], [0], [1], [0, 0, 1, 1], [], []>} : vector<32x256xbf16>, vector<256x256xbf16>, vector<32x256xf32> -> vector<32x256xf32>
    %295 = vector.broadcast %277 : vector<1x256xf32> to vector<32x256xf32>
    %296 = arith.addf %294, %295 : vector<32x256xf32>
    %cst_125 = arith.constant 5.000000e-01 : f32
    %297 = vector.broadcast %cst_125 : f32 to vector<32x256xf32>
    %298 = arith.mulf %297, %296 : vector<32x256xf32>
    %299 = arith.mulf %296, %296 : vector<32x256xf32>
    %cst_126 = arith.constant 0.0356774069 : f32
    %300 = vector.broadcast %cst_126 : f32 to vector<32x256xf32>
    %301 = arith.mulf %300, %299 : vector<32x256xf32>
    %cst_127 = arith.constant 0.797884583 : f32
    %302 = vector.broadcast %cst_127 : f32 to vector<32x256xf32>
    %303 = arith.addf %302, %301 : vector<32x256xf32>
    %304 = arith.mulf %296, %303 : vector<32x256xf32>
    %305 = math.tanh %304 : vector<32x256xf32>
    %306 = arith.mulf %298, %305 : vector<32x256xf32>
    %307 = arith.addf %298, %306 : vector<32x256xf32>
    %c0_128 = arith.constant 0 : index
    %c8 = arith.constant 8 : index
    %c0_129 = arith.constant 0 : index
    %c0_130 = arith.constant 0 : index
    %308 = vector.load %arg4[%c0_128, %c8, %c0_129, %c0_130] : memref<1x12x256x256xbf16, #tpu.memory_space<vmem>>, vector<1x1x256x256xbf16>
    %309 = vector.shape_cast %308 : vector<1x1x256x256xbf16> to vector<256x256xbf16>
    %c0_131 = arith.constant 0 : index
    %c8_132 = arith.constant 8 : index
    %c0_133 = arith.constant 0 : index
    %310 = vector.load %arg5[%c0_131, %c8_132, %c0_133] : memref<1x12x256xf32, #tpu.memory_space<vmem>>, vector<1x1x256xf32>
    %311 = vector.shape_cast %310 : vector<1x1x256xf32> to vector<1x256xf32>
    %312 = arith.truncf %292 : vector<32x256xf32> to vector<32x256xbf16>
    %cst_134 = arith.constant dense<0.000000e+00> : vector<32x256xf32>
    %313 = tpu.matmul %312, %309, %cst_134 {dimension_numbers = #tpu.dot_dimension_numbers<[1], [0], [0], [1], [0, 0, 1, 1], [], []>} : vector<32x256xbf16>, vector<256x256xbf16>, vector<32x256xf32> -> vector<32x256xf32>
    %314 = vector.broadcast %311 : vector<1x256xf32> to vector<32x256xf32>
    %315 = arith.addf %313, %314 : vector<32x256xf32>
    %cst_135 = arith.constant 5.000000e-01 : f32
    %316 = vector.broadcast %cst_135 : f32 to vector<32x256xf32>
    %317 = arith.mulf %316, %315 : vector<32x256xf32>
    %318 = arith.mulf %315, %315 : vector<32x256xf32>
    %cst_136 = arith.constant 0.0356774069 : f32
    %319 = vector.broadcast %cst_136 : f32 to vector<32x256xf32>
    %320 = arith.mulf %319, %318 : vector<32x256xf32>
    %cst_137 = arith.constant 0.797884583 : f32
    %321 = vector.broadcast %cst_137 : f32 to vector<32x256xf32>
    %322 = arith.addf %321, %320 : vector<32x256xf32>
    %323 = arith.mulf %315, %322 : vector<32x256xf32>
    %324 = math.tanh %323 : vector<32x256xf32>
    %325 = arith.mulf %317, %324 : vector<32x256xf32>
    %326 = arith.addf %317, %325 : vector<32x256xf32>
    %327 = arith.truncf %307 : vector<32x256xf32> to vector<32x256xbf16>
    %cst_138 = arith.constant dense<0.000000e+00> : vector<32x256xf32>
    %328 = tpu.matmul %327, %309, %cst_138 {dimension_numbers = #tpu.dot_dimension_numbers<[1], [0], [0], [1], [0, 0, 1, 1], [], []>} : vector<32x256xbf16>, vector<256x256xbf16>, vector<32x256xf32> -> vector<32x256xf32>
    %329 = vector.broadcast %311 : vector<1x256xf32> to vector<32x256xf32>
    %330 = arith.addf %328, %329 : vector<32x256xf32>
    %cst_139 = arith.constant 5.000000e-01 : f32
    %331 = vector.broadcast %cst_139 : f32 to vector<32x256xf32>
    %332 = arith.mulf %331, %330 : vector<32x256xf32>
    %333 = arith.mulf %330, %330 : vector<32x256xf32>
    %cst_140 = arith.constant 0.0356774069 : f32
    %334 = vector.broadcast %cst_140 : f32 to vector<32x256xf32>
    %335 = arith.mulf %334, %333 : vector<32x256xf32>
    %cst_141 = arith.constant 0.797884583 : f32
    %336 = vector.broadcast %cst_141 : f32 to vector<32x256xf32>
    %337 = arith.addf %336, %335 : vector<32x256xf32>
    %338 = arith.mulf %330, %337 : vector<32x256xf32>
    %339 = math.tanh %338 : vector<32x256xf32>
    %340 = arith.mulf %332, %339 : vector<32x256xf32>
    %341 = arith.addf %332, %340 : vector<32x256xf32>
    %c0_142 = arith.constant 0 : index
    %c9 = arith.constant 9 : index
    %c0_143 = arith.constant 0 : index
    %c0_144 = arith.constant 0 : index
    %342 = vector.load %arg4[%c0_142, %c9, %c0_143, %c0_144] : memref<1x12x256x256xbf16, #tpu.memory_space<vmem>>, vector<1x1x256x256xbf16>
    %343 = vector.shape_cast %342 : vector<1x1x256x256xbf16> to vector<256x256xbf16>
    %c0_145 = arith.constant 0 : index
    %c9_146 = arith.constant 9 : index
    %c0_147 = arith.constant 0 : index
    %344 = vector.load %arg5[%c0_145, %c9_146, %c0_147] : memref<1x12x256xf32, #tpu.memory_space<vmem>>, vector<1x1x256xf32>
    %345 = vector.shape_cast %344 : vector<1x1x256xf32> to vector<1x256xf32>
    %346 = arith.truncf %326 : vector<32x256xf32> to vector<32x256xbf16>
    %cst_148 = arith.constant dense<0.000000e+00> : vector<32x256xf32>
    %347 = tpu.matmul %346, %343, %cst_148 {dimension_numbers = #tpu.dot_dimension_numbers<[1], [0], [0], [1], [0, 0, 1, 1], [], []>} : vector<32x256xbf16>, vector<256x256xbf16>, vector<32x256xf32> -> vector<32x256xf32>
    %348 = vector.broadcast %345 : vector<1x256xf32> to vector<32x256xf32>
    %349 = arith.addf %347, %348 : vector<32x256xf32>
    %cst_149 = arith.constant 5.000000e-01 : f32
    %350 = vector.broadcast %cst_149 : f32 to vector<32x256xf32>
    %351 = arith.mulf %350, %349 : vector<32x256xf32>
    %352 = arith.mulf %349, %349 : vector<32x256xf32>
    %cst_150 = arith.constant 0.0356774069 : f32
    %353 = vector.broadcast %cst_150 : f32 to vector<32x256xf32>
    %354 = arith.mulf %353, %352 : vector<32x256xf32>
    %cst_151 = arith.constant 0.797884583 : f32
    %355 = vector.broadcast %cst_151 : f32 to vector<32x256xf32>
    %356 = arith.addf %355, %354 : vector<32x256xf32>
    %357 = arith.mulf %349, %356 : vector<32x256xf32>
    %358 = math.tanh %357 : vector<32x256xf32>
    %359 = arith.mulf %351, %358 : vector<32x256xf32>
    %360 = arith.addf %351, %359 : vector<32x256xf32>
    %361 = arith.truncf %341 : vector<32x256xf32> to vector<32x256xbf16>
    %cst_152 = arith.constant dense<0.000000e+00> : vector<32x256xf32>
    %362 = tpu.matmul %361, %343, %cst_152 {dimension_numbers = #tpu.dot_dimension_numbers<[1], [0], [0], [1], [0, 0, 1, 1], [], []>} : vector<32x256xbf16>, vector<256x256xbf16>, vector<32x256xf32> -> vector<32x256xf32>
    %363 = vector.broadcast %345 : vector<1x256xf32> to vector<32x256xf32>
    %364 = arith.addf %362, %363 : vector<32x256xf32>
    %cst_153 = arith.constant 5.000000e-01 : f32
    %365 = vector.broadcast %cst_153 : f32 to vector<32x256xf32>
    %366 = arith.mulf %365, %364 : vector<32x256xf32>
    %367 = arith.mulf %364, %364 : vector<32x256xf32>
    %cst_154 = arith.constant 0.0356774069 : f32
    %368 = vector.broadcast %cst_154 : f32 to vector<32x256xf32>
    %369 = arith.mulf %368, %367 : vector<32x256xf32>
    %cst_155 = arith.constant 0.797884583 : f32
    %370 = vector.broadcast %cst_155 : f32 to vector<32x256xf32>
    %371 = arith.addf %370, %369 : vector<32x256xf32>
    %372 = arith.mulf %364, %371 : vector<32x256xf32>
    %373 = math.tanh %372 : vector<32x256xf32>
    %374 = arith.mulf %366, %373 : vector<32x256xf32>
    %375 = arith.addf %366, %374 : vector<32x256xf32>
    %c0_156 = arith.constant 0 : index
    %c10 = arith.constant 10 : index
    %c0_157 = arith.constant 0 : index
    %c0_158 = arith.constant 0 : index
    %376 = vector.load %arg4[%c0_156, %c10, %c0_157, %c0_158] : memref<1x12x256x256xbf16, #tpu.memory_space<vmem>>, vector<1x1x256x256xbf16>
    %377 = vector.shape_cast %376 : vector<1x1x256x256xbf16> to vector<256x256xbf16>
    %c0_159 = arith.constant 0 : index
    %c10_160 = arith.constant 10 : index
    %c0_161 = arith.constant 0 : index
    %378 = vector.load %arg5[%c0_159, %c10_160, %c0_161] : memref<1x12x256xf32, #tpu.memory_space<vmem>>, vector<1x1x256xf32>
    %379 = vector.shape_cast %378 : vector<1x1x256xf32> to vector<1x256xf32>
    %380 = arith.truncf %360 : vector<32x256xf32> to vector<32x256xbf16>
    %cst_162 = arith.constant dense<0.000000e+00> : vector<32x256xf32>
    %381 = tpu.matmul %380, %377, %cst_162 {dimension_numbers = #tpu.dot_dimension_numbers<[1], [0], [0], [1], [0, 0, 1, 1], [], []>} : vector<32x256xbf16>, vector<256x256xbf16>, vector<32x256xf32> -> vector<32x256xf32>
    %382 = vector.broadcast %379 : vector<1x256xf32> to vector<32x256xf32>
    %383 = arith.addf %381, %382 : vector<32x256xf32>
    %cst_163 = arith.constant 5.000000e-01 : f32
    %384 = vector.broadcast %cst_163 : f32 to vector<32x256xf32>
    %385 = arith.mulf %384, %383 : vector<32x256xf32>
    %386 = arith.mulf %383, %383 : vector<32x256xf32>
    %cst_164 = arith.constant 0.0356774069 : f32
    %387 = vector.broadcast %cst_164 : f32 to vector<32x256xf32>
    %388 = arith.mulf %387, %386 : vector<32x256xf32>
    %cst_165 = arith.constant 0.797884583 : f32
    %389 = vector.broadcast %cst_165 : f32 to vector<32x256xf32>
    %390 = arith.addf %389, %388 : vector<32x256xf32>
    %391 = arith.mulf %383, %390 : vector<32x256xf32>
    %392 = math.tanh %391 : vector<32x256xf32>
    %393 = arith.mulf %385, %392 : vector<32x256xf32>
    %394 = arith.addf %385, %393 : vector<32x256xf32>
    %395 = arith.truncf %375 : vector<32x256xf32> to vector<32x256xbf16>
    %cst_166 = arith.constant dense<0.000000e+00> : vector<32x256xf32>
    %396 = tpu.matmul %395, %377, %cst_166 {dimension_numbers = #tpu.dot_dimension_numbers<[1], [0], [0], [1], [0, 0, 1, 1], [], []>} : vector<32x256xbf16>, vector<256x256xbf16>, vector<32x256xf32> -> vector<32x256xf32>
    %397 = vector.broadcast %379 : vector<1x256xf32> to vector<32x256xf32>
    %398 = arith.addf %396, %397 : vector<32x256xf32>
    %cst_167 = arith.constant 5.000000e-01 : f32
    %399 = vector.broadcast %cst_167 : f32 to vector<32x256xf32>
    %400 = arith.mulf %399, %398 : vector<32x256xf32>
    %401 = arith.mulf %398, %398 : vector<32x256xf32>
    %cst_168 = arith.constant 0.0356774069 : f32
    %402 = vector.broadcast %cst_168 : f32 to vector<32x256xf32>
    %403 = arith.mulf %402, %401 : vector<32x256xf32>
    %cst_169 = arith.constant 0.797884583 : f32
    %404 = vector.broadcast %cst_169 : f32 to vector<32x256xf32>
    %405 = arith.addf %404, %403 : vector<32x256xf32>
    %406 = arith.mulf %398, %405 : vector<32x256xf32>
    %407 = math.tanh %406 : vector<32x256xf32>
    %408 = arith.mulf %400, %407 : vector<32x256xf32>
    %409 = arith.addf %400, %408 : vector<32x256xf32>
    %c0_170 = arith.constant 0 : index
    %c11 = arith.constant 11 : index
    %c0_171 = arith.constant 0 : index
    %c0_172 = arith.constant 0 : index
    %410 = vector.load %arg4[%c0_170, %c11, %c0_171, %c0_172] : memref<1x12x256x256xbf16, #tpu.memory_space<vmem>>, vector<1x1x256x256xbf16>
    %411 = vector.shape_cast %410 : vector<1x1x256x256xbf16> to vector<256x256xbf16>
    %c0_173 = arith.constant 0 : index
    %c11_174 = arith.constant 11 : index
    %c0_175 = arith.constant 0 : index
    %412 = vector.load %arg5[%c0_173, %c11_174, %c0_175] : memref<1x12x256xf32, #tpu.memory_space<vmem>>, vector<1x1x256xf32>
    %413 = vector.shape_cast %412 : vector<1x1x256xf32> to vector<1x256xf32>
    %414 = arith.truncf %394 : vector<32x256xf32> to vector<32x256xbf16>
    %cst_176 = arith.constant dense<0.000000e+00> : vector<32x256xf32>
    %415 = tpu.matmul %414, %411, %cst_176 {dimension_numbers = #tpu.dot_dimension_numbers<[1], [0], [0], [1], [0, 0, 1, 1], [], []>} : vector<32x256xbf16>, vector<256x256xbf16>, vector<32x256xf32> -> vector<32x256xf32>
    %416 = vector.broadcast %413 : vector<1x256xf32> to vector<32x256xf32>
    %417 = arith.addf %415, %416 : vector<32x256xf32>
    %cst_177 = arith.constant 5.000000e-01 : f32
    %418 = vector.broadcast %cst_177 : f32 to vector<32x256xf32>
    %419 = arith.mulf %418, %417 : vector<32x256xf32>
    %420 = arith.mulf %417, %417 : vector<32x256xf32>
    %cst_178 = arith.constant 0.0356774069 : f32
    %421 = vector.broadcast %cst_178 : f32 to vector<32x256xf32>
    %422 = arith.mulf %421, %420 : vector<32x256xf32>
    %cst_179 = arith.constant 0.797884583 : f32
    %423 = vector.broadcast %cst_179 : f32 to vector<32x256xf32>
    %424 = arith.addf %423, %422 : vector<32x256xf32>
    %425 = arith.mulf %417, %424 : vector<32x256xf32>
    %426 = math.tanh %425 : vector<32x256xf32>
    %427 = arith.mulf %419, %426 : vector<32x256xf32>
    %428 = arith.addf %419, %427 : vector<32x256xf32>
    %429 = arith.truncf %409 : vector<32x256xf32> to vector<32x256xbf16>
    %cst_180 = arith.constant dense<0.000000e+00> : vector<32x256xf32>
    %430 = tpu.matmul %429, %411, %cst_180 {dimension_numbers = #tpu.dot_dimension_numbers<[1], [0], [0], [1], [0, 0, 1, 1], [], []>} : vector<32x256xbf16>, vector<256x256xbf16>, vector<32x256xf32> -> vector<32x256xf32>
    %431 = vector.broadcast %413 : vector<1x256xf32> to vector<32x256xf32>
    %432 = arith.addf %430, %431 : vector<32x256xf32>
    %cst_181 = arith.constant 5.000000e-01 : f32
    %433 = vector.broadcast %cst_181 : f32 to vector<32x256xf32>
    %434 = arith.mulf %433, %432 : vector<32x256xf32>
    %435 = arith.mulf %432, %432 : vector<32x256xf32>
    %cst_182 = arith.constant 0.0356774069 : f32
    %436 = vector.broadcast %cst_182 : f32 to vector<32x256xf32>
    %437 = arith.mulf %436, %435 : vector<32x256xf32>
    %cst_183 = arith.constant 0.797884583 : f32
    %438 = vector.broadcast %cst_183 : f32 to vector<32x256xf32>
    %439 = arith.addf %438, %437 : vector<32x256xf32>
    %440 = arith.mulf %432, %439 : vector<32x256xf32>
    %441 = math.tanh %440 : vector<32x256xf32>
    %442 = arith.mulf %434, %441 : vector<32x256xf32>
    %443 = arith.addf %434, %442 : vector<32x256xf32>
    %c0_184 = arith.constant 0 : index
    %c0_185 = arith.constant 0 : index
    %c0_186 = arith.constant 0 : index
    %444 = vector.load %arg6[%c0_184, %c0_185, %c0_186] : memref<1x256x256xbf16, #tpu.memory_space<vmem>>, vector<1x256x256xbf16>
    %445 = vector.shape_cast %444 : vector<1x256x256xbf16> to vector<256x256xbf16>
    %c0_187 = arith.constant 0 : index
    %c0_188 = arith.constant 0 : index
    %c0_189 = arith.constant 0 : index
    %446 = vector.load %arg7[%c0_187, %c0_188, %c0_189] : memref<1x1x256xf32, #tpu.memory_space<vmem>>, vector<1x1x256xf32>
    %447 = vector.shape_cast %446 : vector<1x1x256xf32> to vector<1x256xf32>
    %448 = arith.truncf %428 : vector<32x256xf32> to vector<32x256xbf16>
    %cst_190 = arith.constant dense<0.000000e+00> : vector<32x256xf32>
    %449 = tpu.matmul %448, %445, %cst_190 {dimension_numbers = #tpu.dot_dimension_numbers<[1], [0], [0], [1], [0, 0, 1, 1], [], []>} : vector<32x256xbf16>, vector<256x256xbf16>, vector<32x256xf32> -> vector<32x256xf32>
    %450 = vector.broadcast %447 : vector<1x256xf32> to vector<32x256xf32>
    %451 = arith.addf %449, %450 : vector<32x256xf32>
    %452 = arith.truncf %443 : vector<32x256xf32> to vector<32x256xbf16>
    %cst_191 = arith.constant dense<0.000000e+00> : vector<32x256xf32>
    %453 = tpu.matmul %452, %445, %cst_191 {dimension_numbers = #tpu.dot_dimension_numbers<[1], [0], [0], [1], [0, 0, 1, 1], [], []>} : vector<32x256xbf16>, vector<256x256xbf16>, vector<32x256xf32> -> vector<32x256xf32>
    %454 = vector.broadcast %447 : vector<1x256xf32> to vector<32x256xf32>
    %455 = arith.addf %453, %454 : vector<32x256xf32>
    %456 = tpu.concatenate %451, %455 in 0 : vector<32x256xf32>, vector<32x256xf32> -> vector<64x256xf32>
    %c0_i32 = arith.constant 0 : i32
    %457 = arith.cmpi eq, %arg0, %c0_i32 : i32
    %458 = arith.extui %457 : i1 to i32
    %c0_i32_192 = arith.constant 0 : i32
    %459 = arith.cmpi ne, %458, %c0_i32_192 : i32
    scf.if %459 {
      %cst_198 = arith.constant 0.000000e+00 : f32
      %466 = vector.broadcast %cst_198 : f32 to vector<64x256xf32>
      %c0_199 = arith.constant 0 : index
      %c0_200 = arith.constant 0 : index
      %467 = vector.load %arg8[%c0_199, %c0_200] : memref<64x256xf32, #tpu.memory_space<vmem>>, vector<64x256xf32>
      tpu.vector_store %arg8[%c0_199, %c0_200], %466 {strides = array<i32>} : memref<64x256xf32, #tpu.memory_space<vmem>>, vector<64x256xf32>,
    } else {
    }
    %c0_193 = arith.constant 0 : index
    %c0_194 = arith.constant 0 : index
    %460 = vector.load %arg8[%c0_193, %c0_194] : memref<64x256xf32, #tpu.memory_space<vmem>>, vector<64x256xf32>
    %461 = arith.addf %460, %456 : vector<64x256xf32>
    %c0_195 = arith.constant 0 : index
    %c0_196 = arith.constant 0 : index
    %462 = vector.load %arg8[%c0_195, %c0_196] : memref<64x256xf32, #tpu.memory_space<vmem>>, vector<64x256xf32>
    tpu.vector_store %arg8[%c0_195, %c0_196], %461 {strides = array<i32>} : memref<64x256xf32, #tpu.memory_space<vmem>>, vector<64x256xf32>,
    %c9_i32 = arith.constant 9 : i32
    %463 = arith.cmpi eq, %arg0, %c9_i32 : i32
    %464 = arith.extui %463 : i1 to i32
    %c0_i32_197 = arith.constant 0 : i32
    %465 = arith.cmpi ne, %464, %c0_i32_197 : i32
    scf.if %465 {
      %c0_198 = arith.constant 0 : index
      %c0_199 = arith.constant 0 : index
      %466 = vector.load %arg8[%c0_198, %c0_199] : memref<64x256xf32, #tpu.memory_space<vmem>>, vector<64x256xf32>
      %cst_200 = arith.constant 1.000000e-01 : f32
      %467 = vector.broadcast %cst_200 : f32 to vector<64x256xf32>
      %468 = arith.mulf %466, %467 : vector<64x256xf32>
      %c0_201 = arith.constant 0 : index
      %c0_202 = arith.constant 0 : index
      %469 = vector.load %arg8[%c0_201, %c0_202] : memref<64x256xf32, #tpu.memory_space<vmem>>, vector<64x256xf32>
      tpu.vector_store %arg8[%c0_201, %c0_202], %468 {strides = array<i32>} : memref<64x256xf32, #tpu.memory_space<vmem>>, vector<64x256xf32>,
    } else {
    }
    return
  }
  func.func @transform_0(%arg0: i32) -> (i32, i32) {
    %c0_i32 = arith.constant 0 : i32
    %c0_i32_0 = arith.constant 0 : i32
    %c0_i32_1 = arith.constant 0 : i32
    return %c0_i32, %c0_i32_0 : i32, i32
  }
  func.func @transform_1(%arg0: i32) -> (i32, i32, i32) {
    %c0_i32 = arith.constant 0 : i32
    %c0_i32_0 = arith.constant 0 : i32
    %c0_i32_1 = arith.constant 0 : i32
    return %arg0, %c0_i32, %c0_i32_0 : i32, i32, i32
  }
  func.func @transform_2(%arg0: i32) -> (i32, i32, i32) {
    %c0_i32 = arith.constant 0 : i32
    %c0_i32_0 = arith.constant 0 : i32
    %c0_i32_1 = arith.constant 0 : i32
    return %arg0, %c0_i32, %c0_i32_0 : i32, i32, i32
  }
  func.func @transform_3(%arg0: i32) -> (i32, i32, i32, i32) {
    %c0_i32 = arith.constant 0 : i32
    %c0_i32_0 = arith.constant 0 : i32
    %c0_i32_1 = arith.constant 0 : i32
    %c0_i32_2 = arith.constant 0 : i32
    return %arg0, %c0_i32, %c0_i32_0, %c0_i32_1 : i32, i32, i32, i32
  }
  func.func @transform_4(%arg0: i32) -> (i32, i32, i32) {
    %c0_i32 = arith.constant 0 : i32
    %c0_i32_0 = arith.constant 0 : i32
    %c0_i32_1 = arith.constant 0 : i32
    return %arg0, %c0_i32, %c0_i32_0 : i32, i32, i32
  }
  func.func @transform_5(%arg0: i32) -> (i32, i32, i32) {
    %c0_i32 = arith.constant 0 : i32
    %c0_i32_0 = arith.constant 0 : i32
    %c0_i32_1 = arith.constant 0 : i32
    return %arg0, %c0_i32, %c0_i32_0 : i32, i32, i32
  }
  func.func @transform_6(%arg0: i32) -> (i32, i32, i32) {
    %c0_i32 = arith.constant 0 : i32
    %c0_i32_0 = arith.constant 0 : i32
    %c0_i32_1 = arith.constant 0 : i32
    return %arg0, %c0_i32, %c0_i32_0 : i32, i32, i32
  }
  func.func @transform_7(%arg0: i32) -> (i32, i32) {
    %c0_i32 = arith.constant 0 : i32
    %c0_i32_0 = arith.constant 0 : i32
    %c0_i32_1 = arith.constant 0 : i32
    return %c0_i32, %c0_i32_0 : i32, i32
  }
}

</mosaic_0001>

<llo_original>
// kernel: forward.1
$region0: #{forward.1}
  #allocation0 [shape = 'u32[]', space=smem, size = 0x4, offset = 0x4, fixed_abs, tag = 'smem constant byte address 0x4 - core index']
  #allocation1 [shape = 'u32[144,128]{1,0:T(1,128)}', space=vmem, size = 0x12000, scoped, tag = 'internal scratch']
  %s0 = inlined_call_operand.vmem [shape: f32[64,17], index: 0, kind: input, shape index: {}]
  %s1 = inlined_call_operand.vmem [shape: bf16[10,17,256], index: 1, kind: input, shape index: {}]
  %s2 = inlined_call_operand.vmem [shape: f32[10,1,256], index: 2, kind: input, shape index: {}]
  %s3 = inlined_call_operand.vmem [shape: bf16[10,12,256,256], index: 3, kind: input, shape index: {}]
  %s4 = inlined_call_operand.vmem [shape: f32[10,12,256], index: 4, kind: input, shape index: {}]
  %s5 = inlined_call_operand.vmem [shape: bf16[10,256,256], index: 5, kind: input, shape index: {}]
  %s6 = inlined_call_operand.vmem [shape: f32[10,1,256], index: 6, kind: input, shape index: {}]
  %s7 = inlined_call_operand.hbm [shape: f32[64,256], index: 7, kind: output, shape index: {}]
  %s8 = sld [smem:[#allocation0]]
  $region69: #{forward.1} parent=0
    _
  %s10 = ssub.s32 1, %s8
  %s11 = scalar_select 0, %s10, %s8
  $region1: #{forward.1} parent=0
    #allocation2 [shape = 'u8[65536]{0}', space=vmem, size = 0x10000, scoped, tag = 'output window, operand 0, single buffered']
    #allocation3 [shape = 's32[2]{0}', space=sflag, size = 0x8, scoped, tag = 'scoped memory for forward.1']
    %12 = vsyncpa [#allocation3], 0
    loop: start=0, step=1, limit=12
    $region2: #{forward.1} parent=1 // loop_pre_header
      _
    $region3: #{forward.1} parent=1 // loop_header
      %s14 = sphi 0, %s18
      %p15 = scmp.ge.s32.totalorder %s14, 12
      %s22 = sphi 0, %s22
      %s24 = sphi 0, %s22
      %s25 = sphi 0, %s24
      %s39 = sphi 0, %s25
      %s45 = sphi 0, %s47
      %s48 = sphi 0, %s45
      %s49 = sphi 0, %s48
      %s65 = sphi 0, %s49
      %s71 = sphi 0, %s73
      %s74 = sphi 0, %s71
      %s75 = sphi 0, %s74
      %s91 = sphi 0, %s75
      %s97 = sphi 0, %s99
      %s100 = sphi 0, %s97
      %s101 = sphi 0, %s100
      %s117 = sphi 0, %s101
      %s123 = sphi 0, %s125
      %s126 = sphi 0, %s123
      %s127 = sphi 0, %s126
      %s143 = sphi 0, %s127
      %s149 = sphi 0, %s151
      %s152 = sphi 0, %s149
      %s153 = sphi 0, %s152
      %s169 = sphi 0, %s153
      %s175 = sphi 0, %s177
      %s178 = sphi 0, %s175
      %s179 = sphi 0, %s178
      %s195 = sphi 0, %s179
      %s199 = sphi 0, %s199
      %s201 = sphi 0, %s199
      %s202 = sphi 0, %s201
      %s216 = sphi 0, %s202
    $region4: #{forward.1} parent=1 // loop_header_branch
      %17 = sbr.rel (%p15) target = $region8
    $region5: #{forward.1} parent=1 // loop_body
      %s19 = ssub.s32 %s14, 1
      %s20 = ssub.s32 %s14, 2
      %s21 = sadd.s32 %s14, 1
      %s23 = sadd.s32 %s22, 1
      %p26 = scmp.eq.s32.totalorder %s14, 9
      %p27 = scmp.ne.s32.totalorder %s22, %s24
      %p28 = scmp.eq.s32.totalorder %s14, 0
      %p29 = por %p27, %p28
      %p30 = scmp.ne.s32.totalorder %s22, %s24
      %p31 = scmp.eq.s32.totalorder %s19, 9
      %p32 = por %p30, %p31
      %p33 = scmp.ne.s32.totalorder %s24, %s25
      %p34 = scmp.eq.s32.totalorder %s19, 0
      %p35 = por %p33, %p34
      %p36 = scmp.ne.s32.totalorder %s24, %s25
      %p37 = scmp.eq.s32.totalorder %s20, 9
      %p38 = por %p36, %p37
      %p40 = scmp.ne.s32.totalorder %s25, %s39
      %p41 = scmp.eq.s32.totalorder %s20, 0
      %p42 = por %p40, %p41
      %s43 = ssub.s32 %s14, %s21
      %p44 = scmp.eq.s32.totalorder %s43, 0
      %s46 = sadd.s32 %s45, 1
      %s47 = scalar_select %p44, %s45, %s46
      %p50 = pneg %p44
      %p51 = scmp.eq.s32.totalorder %s14, 9
      %p52 = por %p50, %p51
      %p53 = scmp.ne.s32.totalorder %s45, %s48
      %p54 = scmp.eq.s32.totalorder %s14, 0
      %p55 = por %p53, %p54
      %p56 = scmp.ne.s32.totalorder %s45, %s48
      %p57 = scmp.eq.s32.totalorder %s19, 9
      %p58 = por %p56, %p57
      %p59 = scmp.ne.s32.totalorder %s48, %s49
      %p60 = scmp.eq.s32.totalorder %s19, 0
      %p61 = por %p59, %p60
      %p62 = scmp.ne.s32.totalorder %s48, %s49
      %p63 = scmp.eq.s32.totalorder %s20, 9
      %p64 = por %p62, %p63
      %p66 = scmp.ne.s32.totalorder %s49, %s65
      %p67 = scmp.eq.s32.totalorder %s20, 0
      %p68 = por %p66, %p67
      %s69 = ssub.s32 %s14, %s21
      %p70 = scmp.eq.s32.totalorder %s69, 0
      %s72 = sadd.s32 %s71, 1
      %s73 = scalar_select %p70, %s71, %s72
      %p76 = pneg %p70
      %p77 = scmp.eq.s32.totalorder %s14, 9
      %p78 = por %p76, %p77
      %p79 = scmp.ne.s32.totalorder %s71, %s74
      %p80 = scmp.eq.s32.totalorder %s14, 0
      %p81 = por %p79, %p80
      %p82 = scmp.ne.s32.totalorder %s71, %s74
      %p83 = scmp.eq.s32.totalorder %s19, 9
      %p84 = por %p82, %p83
      %p85 = scmp.ne.s32.totalorder %s74, %s75
      %p86 = scmp.eq.s32.totalorder %s19, 0
      %p87 = por %p85, %p86
      %p88 = scmp.ne.s32.totalorder %s74, %s75
      %p89 = scmp.eq.s32.totalorder %s20, 9
      %p90 = por %p88, %p89
      %p92 = scmp.ne.s32.totalorder %s75, %s91
      %p93 = scmp.eq.s32.totalorder %s20, 0
      %p94 = por %p92, %p93
      %s95 = ssub.s32 %s14, %s21
      %p96 = scmp.eq.s32.totalorder %s95, 0
      %s98 = sadd.s32 %s97, 1
      %s99 = scalar_select %p96, %s97, %s98
      %p102 = pneg %p96
      %p103 = scmp.eq.s32.totalorder %s14, 9
      %p104 = por %p102, %p103
      %p105 = scmp.ne.s32.totalorder %s97, %s100
      %p106 = scmp.eq.s32.totalorder %s14, 0
      %p107 = por %p105, %p106
      %p108 = scmp.ne.s32.totalorder %s97, %s100
      %p109 = scmp.eq.s32.totalorder %s19, 9
      %p110 = por %p108, %p109
      %p111 = scmp.ne.s32.totalorder %s100, %s101
      %p112 = scmp.eq.s32.totalorder %s19, 0
      %p113 = por %p111, %p112
      %p114 = scmp.ne.s32.totalorder %s100, %s101
      %p115 = scmp.eq.s32.totalorder %s20, 9
      %p116 = por %p114, %p115
      %p118 = scmp.ne.s32.totalorder %s101, %s117
      %p119 = scmp.eq.s32.totalorder %s20, 0
      %p120 = por %p118, %p119
      %s121 = ssub.s32 %s14, %s21
      %p122 = scmp.eq.s32.totalorder %s121, 0
      %s124 = sadd.s32 %s123, 1
      %s125 = scalar_select %p122, %s123, %s124
      %p128 = pneg %p122
      %p129 = scmp.eq.s32.totalorder %s14, 9
      %p130 = por %p128, %p129
      %p131 = scmp.ne.s32.totalorder %s123, %s126
      %p132 = scmp.eq.s32.totalorder %s14, 0
      %p133 = por %p131, %p132
      %p134 = scmp.ne.s32.totalorder %s123, %s126
      %p135 = scmp.eq.s32.totalorder %s19, 9
      %p136 = por %p134, %p135
      %p137 = scmp.ne.s32.totalorder %s126, %s127
      %p138 = scmp.eq.s32.totalorder %s19, 0
      %p139 = por %p137, %p138
      %p140 = scmp.ne.s32.totalorder %s126, %s127
      %p141 = scmp.eq.s32.totalorder %s20, 9
      %p142 = por %p140, %p141
      %p144 = scmp.ne.s32.totalorder %s127, %s143
      %p145 = scmp.eq.s32.totalorder %s20, 0
      %p146 = por %p144, %p145
      %s147 = ssub.s32 %s14, %s21
      %p148 = scmp.eq.s32.totalorder %s147, 0
      %s150 = sadd.s32 %s149, 1
      %s151 = scalar_select %p148, %s149, %s150
      %p154 = pneg %p148
      %p155 = scmp.eq.s32.totalorder %s14, 9
      %p156 = por %p154, %p155
      %p157 = scmp.ne.s32.totalorder %s149, %s152
      %p158 = scmp.eq.s32.totalorder %s14, 0
      %p159 = por %p157, %p158
      %p160 = scmp.ne.s32.totalorder %s149, %s152
      %p161 = scmp.eq.s32.totalorder %s19, 9
      %p162 = por %p160, %p161
      %p163 = scmp.ne.s32.totalorder %s152, %s153
      %p164 = scmp.eq.s32.totalorder %s19, 0
      %p165 = por %p163, %p164
      %p166 = scmp.ne.s32.totalorder %s152, %s153
      %p167 = scmp.eq.s32.totalorder %s20, 9
      %p168 = por %p166, %p167
      %p170 = scmp.ne.s32.totalorder %s153, %s169
      %p171 = scmp.eq.s32.totalorder %s20, 0
      %p172 = por %p170, %p171
      %s173 = ssub.s32 %s14, %s21
      %p174 = scmp.eq.s32.totalorder %s173, 0
      %s176 = sadd.s32 %s175, 1
      %s177 = scalar_select %p174, %s175, %s176
      %p180 = pneg %p174
      %p181 = scmp.eq.s32.totalorder %s14, 9
      %p182 = por %p180, %p181
      %p183 = scmp.ne.s32.totalorder %s175, %s178
      %p184 = scmp.eq.s32.totalorder %s14, 0
      %p185 = por %p183, %p184
      %p186 = scmp.ne.s32.totalorder %s175, %s178
      %p187 = scmp.eq.s32.totalorder %s19, 9
      %p188 = por %p186, %p187
      %p189 = scmp.ne.s32.totalorder %s178, %s179
      %p190 = scmp.eq.s32.totalorder %s19, 0
      %p191 = por %p189, %p190
      %p192 = scmp.ne.s32.totalorder %s178, %s179
      %p193 = scmp.eq.s32.totalorder %s20, 9
      %p194 = por %p192, %p193
      %p196 = scmp.ne.s32.totalorder %s179, %s195
      %p197 = scmp.eq.s32.totalorder %s20, 0
      %p198 = por %p196, %p197
      %s200 = sadd.s32 %s199, 1
      %p203 = scmp.eq.s32.totalorder %s14, 9
      %p204 = scmp.ne.s32.totalorder %s199, %s201
      %p205 = scmp.eq.s32.totalorder %s14, 0
      %p206 = por %p204, %p205
      %p207 = scmp.ne.s32.totalorder %s199, %s201
      %p208 = scmp.eq.s32.totalorder %s19, 9
      %p209 = por %p207, %p208
      %p210 = scmp.ne.s32.totalorder %s201, %s202
      %p211 = scmp.eq.s32.totalorder %s19, 0
      %p212 = por %p210, %p211
      %p213 = scmp.ne.s32.totalorder %s201, %s202
      %p214 = scmp.eq.s32.totalorder %s20, 9
      %p215 = por %p213, %p214
      %p217 = scmp.ne.s32.totalorder %s202, %s216
      %p218 = scmp.eq.s32.totalorder %s20, 0
      %p219 = por %p217, %p218
      %p220 = scmp.le.s32.totalorder 1, %s14
      %p221 = scmp.lt.s32.totalorder %s14, 11
      %p222 = pnand %p220, %p221
      %p223 = pneg %p222
      // Predicated region
      $region9: #{forward.1} parent=5 // pred_check
        _
      $region10: #{forward.1} parent=5 // pred_check_branch
        %225 = sbr.rel (%p222) target = $region12
      $region11: #{forward.1} parent=5 // pred_region
        %s226 = ssub.s32 %s14, 1
        // Predicated region
        $region13: #{forward.1} parent=11 // pred_check
          %p227 = pneg %p35
        $region14: #{forward.1} parent=11 // pred_check_branch
          %229 = sbr.rel (%p227) target = $region16
        $region15: #{forward.1} parent=11 // pred_region
          _
        $region16: #{forward.1} parent=11 // pred_fallthru
          _
      $region12: #{forward.1} parent=5 // pred_fallthru
        _
      %p230 = scmp.lt.s32.totalorder %s14, 10
      // Predicated region
      $region17: #{forward.1} parent=5 // pred_check
        %p231 = pneg %p230
      $region18: #{forward.1} parent=5 // pred_check_branch
        %233 = sbr.rel (%p231) target = $region20
      $region19: #{forward.1} parent=5 // pred_region
        // Predicated region
        $region21: #{forward.1} parent=19 // pred_check
          %p234 = pneg %p55
        $region22: #{forward.1} parent=19 // pred_check_branch
          %236 = sbr.rel (%p234) target = $region24
        $region23: #{forward.1} parent=19 // pred_region
          %p237 = scmp.lt.s32.totalorder %s14, 9
          %s238 = scalar_select %p237, %s14, 9
          %s239 = smul.addr %s238, 6
          %s240 = smul.addr %s239, 4
          %s241 = scalar_lea.vmem %s1, %s240
        $region24: #{forward.1} parent=19 // pred_fallthru
          _
        // Predicated region
        $region25: #{forward.1} parent=19 // pred_check
          %p242 = pneg %p81
        $region26: #{forward.1} parent=19 // pred_check_branch
          %244 = sbr.rel (%p242) target = $region28
        $region27: #{forward.1} parent=19 // pred_region
          %p245 = scmp.lt.s32.totalorder %s14, 9
          %s246 = scalar_select %p245, %s14, 9
          %s247 = smul.addr %s246, 2
          %s248 = scalar_lea.vmem %s2, %s247
        $region28: #{forward.1} parent=19 // pred_fallthru
          _
        // Predicated region
        $region29: #{forward.1} parent=19 // pred_check
          %p249 = pneg %p107
        $region30: #{forward.1} parent=19 // pred_check_branch
          %251 = sbr.rel (%p249) target = $region32
        $region31: #{forward.1} parent=19 // pred_region
          %p252 = scmp.lt.s32.totalorder %s14, 9
          %s253 = scalar_select %p252, %s14, 9
          %s254 = smul.addr %s253, 768
          %s255 = smul.addr %s254, 4
          %s256 = scalar_lea.vmem %s3, %s255
        $region32: #{forward.1} parent=19 // pred_fallthru
          _
        // Predicated region
        $region33: #{forward.1} parent=19 // pred_check
          %p257 = pneg %p133
        $region34: #{forward.1} parent=19 // pred_check_branch
          %259 = sbr.rel (%p257) target = $region36
        $region35: #{forward.1} parent=19 // pred_region
          %p260 = scmp.lt.s32.totalorder %s14, 9
          %s261 = scalar_select %p260, %s14, 9
          %s262 = smul.addr %s261, 4
          %s263 = smul.addr %s262, 8
          %s264 = scalar_lea.vmem %s4, %s263
        $region36: #{forward.1} parent=19 // pred_fallthru
          _
        // Predicated region
        $region37: #{forward.1} parent=19 // pred_check
          %p265 = pneg %p159
        $region38: #{forward.1} parent=19 // pred_check_branch
          %267 = sbr.rel (%p265) target = $region40
        $region39: #{forward.1} parent=19 // pred_region
          %p268 = scmp.lt.s32.totalorder %s14, 9
          %s269 = scalar_select %p268, %s14, 9
          %s270 = smul.addr %s269, 64
          %s271 = smul.addr %s270, 4
          %s272 = scalar_lea.vmem %s5, %s271
        $region40: #{forward.1} parent=19 // pred_fallthru
          _
        // Predicated region
        $region41: #{forward.1} parent=19 // pred_check
          %p273 = pneg %p185
        $region42: #{forward.1} parent=19 // pred_check_branch
          %275 = sbr.rel (%p273) target = $region44
        $region43: #{forward.1} parent=19 // pred_region
          %p276 = scmp.lt.s32.totalorder %s14, 9
          %s277 = scalar_select %p276, %s14, 9
          %s278 = smul.addr %s277, 2
          %s279 = scalar_lea.vmem %s6, %s278
        $region44: #{forward.1} parent=19 // pred_fallthru
          _
      $region20: #{forward.1} parent=5 // pred_fallthru
        _
      %p280 = scmp.le.s32.totalorder 1, %s14
      %p281 = scmp.lt.s32.totalorder %s14, 11
      %p282 = pnand %p280, %p281
      %p283 = pneg %p282
      // Predicated region
      $region45: #{forward.1} parent=5 // pred_check
        _
      $region46: #{forward.1} parent=5 // pred_check_branch
        %285 = sbr.rel (%p282) target = $region48
      $region47: #{forward.1} parent=5 // pred_region
        %s286 = ssub.s32 %s14, 1
        %p287 = pneg %p35
        %p288 = pneg %p32
        %p289 = scmp.lt.s32.totalorder %s19, 9
        %s290 = scalar_select %p289, %s19, 9
        %s291 = smul.addr %s290, 6
        %s292 = smul.addr %s291, 4
        %s293 = scalar_lea.vmem %s1, %s292
        %p294 = pneg %p61
        %p295 = pneg %p58
        %p296 = scmp.lt.s32.totalorder %s19, 9
        %s297 = scalar_select %p296, %s19, 9
        %s298 = smul.addr %s297, 2
        %s299 = scalar_lea.vmem %s2, %s298
        %p300 = pneg %p87
        %p301 = pneg %p84
        %p302 = scmp.lt.s32.totalorder %s19, 9
        %s303 = scalar_select %p302, %s19, 9
        %s304 = smul.addr %s303, 768
        %s305 = smul.addr %s304, 4
        %s306 = scalar_lea.vmem %s3, %s305
        %p307 = pneg %p113
        %p308 = pneg %p110
        %p309 = scmp.lt.s32.totalorder %s19, 9
        %s310 = scalar_select %p309, %s19, 9
        %s311 = smul.addr %s310, 4
        %s312 = smul.addr %s311, 8
        %s313 = scalar_lea.vmem %s4, %s312
        %p314 = pneg %p139
        %p315 = pneg %p136
        %p316 = scmp.lt.s32.totalorder %s19, 9
        %s317 = scalar_select %p316, %s19, 9
        %s318 = smul.addr %s317, 64
        %s319 = smul.addr %s318, 4
        %s320 = scalar_lea.vmem %s5, %s319
        %p321 = pneg %p165
        %p322 = pneg %p162
        %p323 = scmp.lt.s32.totalorder %s19, 9
        %s324 = scalar_select %p323, %s19, 9
        %s325 = smul.addr %s324, 2
        %s326 = scalar_lea.vmem %s6, %s325
        %p327 = pneg %p191
        %p328 = pneg %p188
        %p329 = pneg %p212
        %p330 = pneg %p209
        %p331 = scmp.lt.s32.totalorder %s19, 9
        %s332 = scalar_select %p331, %s19, 9
        %s333 = smul.addr %s332, 6
        %s334 = smul.addr %s333, 4
        %s335 = scalar_lea.vmem %s1, %s334
        %p336 = scmp.lt.s32.totalorder %s19, 9
        %s337 = scalar_select %p336, %s19, 9
        %s338 = smul.addr %s337, 2
        %s339 = scalar_lea.vmem %s2, %s338
        %p340 = scmp.lt.s32.totalorder %s19, 9
        %s341 = scalar_select %p340, %s19, 9
        %s342 = smul.addr %s341, 768
        %s343 = smul.addr %s342, 4
        %s344 = scalar_lea.vmem %s3, %s343
        %p345 = scmp.lt.s32.totalorder %s19, 9
        %s346 = scalar_select %p345, %s19, 9
        %s347 = smul.addr %s346, 4
        %s348 = smul.addr %s347, 8
        %s349 = scalar_lea.vmem %s4, %s348
        %p350 = scmp.lt.s32.totalorder %s19, 9
        %s351 = scalar_select %p350, %s19, 9
        %s352 = smul.addr %s351, 64
        %s353 = smul.addr %s352, 4
        %s354 = scalar_lea.vmem %s5, %s353
        %p355 = scmp.lt.s32.totalorder %s19, 9
        %s356 = scalar_select %p355, %s19, 9
        %s357 = smul.addr %s356, 2
        %s358 = scalar_lea.vmem %s6, %s357
        %v360 = vld [vmem:[%s0] sm:$0xff]
        %v361 = vld [vmem:[%s0 + $0x8] sm:$0xff]
        %v362 = vld [vmem:[%s0 + $0x10] sm:$0xff]
        %v363 = vld [vmem:[%s0 + $0x18] sm:$0xff]
        %v364 = vld [vmem:[%s0 + $0x20] sm:$0xff]
        %v365 = vld [vmem:[%s0 + $0x28] sm:$0xff]
        %v366 = vld [vmem:[%s0 + $0x30] sm:$0xff]
        %v367 = vld [vmem:[%s0 + $0x38] sm:$0xff]
        %v368 = vld [vmem:[%s335] sm:$0xff]
        %v369 = vld [vmem:[%s335 + $0x8] sm:$0xff]
        %v370 = vld [vmem:[%s335 + $0x10] sm:$0x11]
        %v371 = vld [vmem:[%s339] sm:$0x3]
        %v372 = vpack.c.bf16 %v361, %v360
        %v373 = vpack.c.bf16 %v363, %v362
        %v375 = vlaneseq
        %v376 = vshrl.u32 %v375, 7
        %v377 = vsub.s32 0, %v376
        %v378 = vrot.slane %v371, %v377
        %v379 = vlaneseq
        %v380 = vshrl.u32 %v379, 7
        %v381 = vsub.s32 1, %v380
        %v382 = vrot.slane %v371, %v381
        %v388 = vunpack.c.l.b16 %v368
        %v389 = vunpack.c.h.b16 %v368
        %v390 = vunpack.c.l.b16 %v369
        %v391 = vunpack.c.h.b16 %v369
        %v392 = vunpack.c.l.b16 %v370
        %v393 = vunpack.c.h.b16 %v370
        %v394 = vpack.c.b16 %v390, %v388
        %v395 = vpack.c.b16 %v391, %v389
        %v396 = vpack.c.b16 %v392, %v392
        %v397 = vpack.c.b16 %v393, %v393
        %vm400 = vcmask 138240
        %v402 = vsel %vm400, %v372, 0
        %v405 = vsel %vm400, %v373, 0
        %vm407 = vcmask 1040384
        %v408 = vsel 0, 4294967295, 65535
        %v409 = vsel %vm407, %v408, 0
        %v411 = vand.u32 %v396, %v409
        %v414 = vand.u32 %v397, %v409
        %416 = vmatprep.subr.bf16.mxu0 0
        %417 = vmatpush1.bf16.msra.mxu0 0
        %418 = vmatprep.subr.bf16.mxu0 0
        %419 = vmatpush1.bf16.msra.mxu0 0
        %420 = vmatprep.subr.bf16.mxu0 0
        %421 = vmatpush1.bf16.msra.mxu0 0
        %422 = vmatprep.subr.bf16.mxu0 0
        %423 = vmatpush1.bf16.msra.mxu0 0
        %424 = vmatprep.subr.bf16.mxu0 0
        %425 = vmatpush1.bf16.msra.mxu0 0
        %426 = vmatprep.subr.bf16.mxu0 0
        %427 = vmatpush1.bf16.msra.mxu0 0
        %428 = vmatprep.subr.bf16.mxu0 %v414
        %429 = vmatpush1.bf16.msra.mxu0 %v411
        %430 = vmatprep.subr.bf16.mxu0 %v395
        %431 = vmatpush1.bf16.msra.mxu0 %v394
        %432 = vmatprep.subr.bf16.mxu0 0
        %433 = vmatpush2.bf16.msra.mxu0 0
        %434 = vmatprep.subr.bf16.mxu0 0
        %435 = vmatpush2.bf16.msra.mxu0 0
        %436 = vmatprep.subr.bf16.mxu0 0
        %437 = vmatpush2.bf16.msra.mxu0 0
        %438 = vmatprep.subr.bf16.mxu0 0
        %439 = vmatpush2.bf16.msra.mxu0 0
        %440 = vmatprep.subr.bf16.mxu0 0
        %441 = vmatpush2.bf16.msra.mxu0 0
        %442 = vmatprep.subr.bf16.mxu0 0
        %443 = vmatpush2.bf16.msra.mxu0 0
        %444 = vmatprep.subr.bf16.mxu0 0
        %445 = vmatpush2.bf16.msra.mxu0 0
        %446 = vmatprep.subr.bf16.mxu0 0
        %447 = vmatpush2.bf16.msra.mxu0 0
        %448 = vmatprep.mubr.bf16.mxu0 0
        %449 = vmatmul.mubr.bf16.gmra.mxu0 %v402
        %v450 = vpop.f32.mrf.mxu0
        %v451 = vadd.f32 %v378, %v450
        %v452 = vpop.f32.mrf.mxu0
        %v453 = vadd.f32 %v382, %v452
        %v454 = vpop.f32.mrf.mxu0
        %v455 = vadd.f32 %v378, %v454
        %v456 = vpop.f32.mrf.mxu0
        %v457 = vadd.f32 %v382, %v456
        %458 = vmatprep.mubr.bf16.mxu0 0
        %459 = vmatmul.mubr.bf16.gmra.mxu0 %v405
        %v460 = vpop.f32.mrf.mxu0
        %v461 = vadd.f32 %v378, %v460
        %v462 = vpop.f32.mrf.mxu0
        %v463 = vadd.f32 %v382, %v462
        %v464 = vpop.f32.mrf.mxu0
        %v465 = vadd.f32 %v378, %v464
        %v466 = vpop.f32.mrf.mxu0
        %v467 = vadd.f32 %v382, %v466
        %468 = vdwg.mxu0
        %v469 = vmul.f32 %v451, 0.5
        %v470 = vmul.f32 %v453, 0.5
        %v471 = vmul.f32 %v455, 0.5
        %v472 = vmul.f32 %v457, 0.5
        %v473 = vmul.f32 %v461, 0.5
        %v474 = vmul.f32 %v463, 0.5
        %v475 = vmul.f32 %v465, 0.5
        %v476 = vmul.f32 %v467, 0.5
        %v477 = vmul.f32 %v451, %v451
        %v478 = vmul.f32 %v453, %v453
        %v479 = vmul.f32 %v455, %v455
        %v480 = vmul.f32 %v457, %v457
        %v481 = vmul.f32 %v461, %v461
        %v482 = vmul.f32 %v463, %v463
        %v483 = vmul.f32 %v465, %v465
        %v484 = vmul.f32 %v467, %v467
        %v485 = vmul.f32 %v477, 0.035677407
        %v486 = vmul.f32 %v478, 0.035677407
        %v487 = vmul.f32 %v479, 0.035677407
        %v488 = vmul.f32 %v480, 0.035677407
        %v489 = vmul.f32 %v481, 0.035677407
        %v490 = vmul.f32 %v482, 0.035677407
        %v491 = vmul.f32 %v483, 0.035677407
        %v492 = vmul.f32 %v484, 0.035677407
        %v493 = vadd.f32 %v485, 0.7978846
        %v494 = vadd.f32 %v486, 0.7978846
        %v495 = vadd.f32 %v487, 0.7978846
        %v496 = vadd.f32 %v488, 0.7978846
        %v497 = vadd.f32 %v489, 0.7978846
        %v498 = vadd.f32 %v490, 0.7978846
        %v499 = vadd.f32 %v491, 0.7978846
        %v500 = vadd.f32 %v492, 0.7978846
        %v501 = vmul.f32 %v451, %v493
        %v502 = vmul.f32 %v453, %v494
        %v503 = vmul.f32 %v455, %v495
        %v504 = vmul.f32 %v457, %v496
        %v505 = vmul.f32 %v461, %v497
        %v506 = vmul.f32 %v463, %v498
        %v507 = vmul.f32 %v465, %v499
        %v508 = vmul.f32 %v467, %v500
        %v509 = vtanh.pop %v501
        %v510 = vtanh.pop %v502
        %v511 = vtanh.pop %v503
        %v512 = vtanh.pop %v504
        %v513 = vtanh.pop %v505
        %v514 = vtanh.pop %v506
        %v515 = vtanh.pop %v507
        %v516 = vtanh.pop %v508
        %v517 = vmul.f32 %v469, %v509
        %v518 = vmul.f32 %v470, %v510
        %v519 = vmul.f32 %v471, %v511
        %v520 = vmul.f32 %v472, %v512
        %v521 = vmul.f32 %v473, %v513
        %v522 = vmul.f32 %v474, %v514
        %v523 = vmul.f32 %v475, %v515
        %v524 = vmul.f32 %v476, %v516
        %v525 = vadd.f32 %v469, %v517
        %v526 = vadd.f32 %v470, %v518
        %v527 = vadd.f32 %v471, %v519
        %v528 = vadd.f32 %v472, %v520
        %v529 = vadd.f32 %v473, %v521
        %v530 = vadd.f32 %v474, %v522
        %v531 = vadd.f32 %v475, %v523
        %v532 = vadd.f32 %v476, %v524
        %v533 = vpack.c.bf16 %v365, %v364
        %v534 = vpack.c.bf16 %v367, %v366
        %v536 = vsel %vm400, %v533, 0
        %v539 = vsel %vm400, %v534, 0
        %541 = vmatprep.subr.bf16.mxu0 0
        %542 = vmatpush1.bf16.msra.mxu0 0
        %543 = vmatprep.subr.bf16.mxu0 0
        %544 = vmatpush1.bf16.msra.mxu0 0
        %545 = vmatprep.subr.bf16.mxu0 0
        %546 = vmatpush1.bf16.msra.mxu0 0
        %547 = vmatprep.subr.bf16.mxu0 0
        %548 = vmatpush1.bf16.msra.mxu0 0
        %549 = vmatprep.subr.bf16.mxu0 0
        %550 = vmatpush1.bf16.msra.mxu0 0
        %551 = vmatprep.subr.bf16.mxu0 0
        %552 = vmatpush1.bf16.msra.mxu0 0
        %553 = vmatprep.subr.bf16.mxu0 %v414
        %554 = vmatpush1.bf16.msra.mxu0 %v411
        %555 = vmatprep.subr.bf16.mxu0 %v395
        %556 = vmatpush1.bf16.msra.mxu0 %v394
        %557 = vmatprep.subr.bf16.mxu0 0
        %558 = vmatpush2.bf16.msra.mxu0 0
        %559 = vmatprep.subr.bf16.mxu0 0
        %560 = vmatpush2.bf16.msra.mxu0 0
        %561 = vmatprep.subr.bf16.mxu0 0
        %562 = vmatpush2.bf16.msra.mxu0 0
        %563 = vmatprep.subr.bf16.mxu0 0
        %564 = vmatpush2.bf16.msra.mxu0 0
        %565 = vmatprep.subr.bf16.mxu0 0
        %566 = vmatpush2.bf16.msra.mxu0 0
        %567 = vmatprep.subr.bf16.mxu0 0
        %568 = vmatpush2.bf16.msra.mxu0 0
        %569 = vmatprep.subr.bf16.mxu0 0
        %570 = vmatpush2.bf16.msra.mxu0 0
        %571 = vmatprep.subr.bf16.mxu0 0
        %572 = vmatpush2.bf16.msra.mxu0 0
        %573 = vmatprep.mubr.bf16.mxu0 0
        %574 = vmatmul.mubr.bf16.gmra.mxu0 %v536
        %v575 = vpop.f32.mrf.mxu0
        %v576 = vadd.f32 %v378, %v575
        %v577 = vpop.f32.mrf.mxu0
        %v578 = vadd.f32 %v382, %v577
        %v579 = vpop.f32.mrf.mxu0
        %v580 = vadd.f32 %v378, %v579
        %v581 = vpop.f32.mrf.mxu0
        %v582 = vadd.f32 %v382, %v581
        %583 = vmatprep.mubr.bf16.mxu0 0
        %584 = vmatmul.mubr.bf16.gmra.mxu0 %v539
        %v585 = vpop.f32.mrf.mxu0
        %v586 = vadd.f32 %v378, %v585
        %v587 = vpop.f32.mrf.mxu0
        %v588 = vadd.f32 %v382, %v587
        %v589 = vpop.f32.mrf.mxu0
        %v590 = vadd.f32 %v378, %v589
        %v591 = vpop.f32.mrf.mxu0
        %v592 = vadd.f32 %v382, %v591
        %593 = vdwg.mxu0
        %v594 = vmul.f32 %v576, 0.5
        %v595 = vmul.f32 %v578, 0.5
        %v596 = vmul.f32 %v580, 0.5
        %v597 = vmul.f32 %v582, 0.5
        %v598 = vmul.f32 %v586, 0.5
        %v599 = vmul.f32 %v588, 0.5
        %v600 = vmul.f32 %v590, 0.5
        %v601 = vmul.f32 %v592, 0.5
        %v602 = vmul.f32 %v576, %v576
        %v603 = vmul.f32 %v578, %v578
        %v604 = vmul.f32 %v580, %v580
        %v605 = vmul.f32 %v582, %v582
        %v606 = vmul.f32 %v586, %v586
        %v607 = vmul.f32 %v588, %v588
        %v608 = vmul.f32 %v590, %v590
        %v609 = vmul.f32 %v592, %v592
        %v610 = vmul.f32 %v602, 0.035677407
        %v611 = vmul.f32 %v603, 0.035677407
        %v612 = vmul.f32 %v604, 0.035677407
        %v613 = vmul.f32 %v605, 0.035677407
        %v614 = vmul.f32 %v606, 0.035677407
        %v615 = vmul.f32 %v607, 0.035677407
        %v616 = vmul.f32 %v608, 0.035677407
        %v617 = vmul.f32 %v609, 0.035677407
        %v618 = vadd.f32 %v610, 0.7978846
        %v619 = vadd.f32 %v611, 0.7978846
        %v620 = vadd.f32 %v612, 0.7978846
        %v621 = vadd.f32 %v613, 0.7978846
        %v622 = vadd.f32 %v614, 0.7978846
        %v623 = vadd.f32 %v615, 0.7978846
        %v624 = vadd.f32 %v616, 0.7978846
        %v625 = vadd.f32 %v617, 0.7978846
        %v626 = vmul.f32 %v576, %v618
        %v627 = vmul.f32 %v578, %v619
        %v628 = vmul.f32 %v580, %v620
        %v629 = vmul.f32 %v582, %v621
        %v630 = vmul.f32 %v586, %v622
        %v631 = vmul.f32 %v588, %v623
        %v632 = vmul.f32 %v590, %v624
        %v633 = vmul.f32 %v592, %v625
        %v634 = vtanh.pop %v626
        %v635 = vtanh.pop %v627
        %v636 = vtanh.pop %v628
        %v637 = vtanh.pop %v629
        %v638 = vtanh.pop %v630
        %v639 = vtanh.pop %v631
        %v640 = vtanh.pop %v632
        %v641 = vtanh.pop %v633
        %v642 = vmul.f32 %v594, %v634
        %v643 = vmul.f32 %v595, %v635
        %v644 = vmul.f32 %v596, %v636
        %v645 = vmul.f32 %v597, %v637
        %v646 = vmul.f32 %v598, %v638
        %v647 = vmul.f32 %v599, %v639
        %v648 = vmul.f32 %v600, %v640
        %v649 = vmul.f32 %v601, %v641
        %v650 = vadd.f32 %v594, %v642
        %v651 = vadd.f32 %v595, %v643
        %v652 = vadd.f32 %v596, %v644
        %v653 = vadd.f32 %v597, %v645
        %v654 = vadd.f32 %v598, %v646
        %v655 = vadd.f32 %v599, %v647
        %v656 = vadd.f32 %v600, %v648
        %v657 = vadd.f32 %v601, %v649
        %v658 = vld [vmem:[%s344] sm:$0xff]
        %v659 = vld [vmem:[%s344 + $0x8] sm:$0xff]
        %v660 = vld [vmem:[%s344 + $0x10] sm:$0xff]
        %v661 = vld [vmem:[%s344 + $0x18] sm:$0xff]
        %v662 = vld [vmem:[%s344 + $0x20] sm:$0xff]
        %v663 = vld [vmem:[%s344 + $0x28] sm:$0xff]
        %v664 = vld [vmem:[%s344 + $0x30] sm:$0xff]
        %v665 = vld [vmem:[%s344 + $0x38] sm:$0xff]
        %v666 = vld [vmem:[%s344 + $0x40] sm:$0xff]
        %v667 = vld [vmem:[%s344 + $0x48] sm:$0xff]
        %v668 = vld [vmem:[%s344 + $0x50] sm:$0xff]
        %v669 = vld [vmem:[%s344 + $0x58] sm:$0xff]
        %v670 = vld [vmem:[%s344 + $0x60] sm:$0xff]
        %v671 = vld [vmem:[%s344 + $0x68] sm:$0xff]
        %v672 = vld [vmem:[%s344 + $0x70] sm:$0xff]
        %v673 = vld [vmem:[%s344 + $0x78] sm:$0xff]
        %v674 = vld [vmem:[%s344 + $0x80] sm:$0xff]
        %v675 = vld [vmem:[%s344 + $0x88] sm:$0xff]
        %v676 = vld [vmem:[%s344 + $0x90] sm:$0xff]
        %v677 = vld [vmem:[%s344 + $0x98] sm:$0xff]
        %v678 = vld [vmem:[%s344 + $0xa0] sm:$0xff]
        %v679 = vld [vmem:[%s344 + $0xa8] sm:$0xff]
        %v680 = vld [vmem:[%s344 + $0xb0] sm:$0xff]
        %v681 = vld [vmem:[%s344 + $0xb8] sm:$0xff]
        %v682 = vld [vmem:[%s344 + $0xc0] sm:$0xff]
        %v683 = vld [vmem:[%s344 + $0xc8] sm:$0xff]
        %v684 = vld [vmem:[%s344 + $0xd0] sm:$0xff]
        %v685 = vld [vmem:[%s344 + $0xd8] sm:$0xff]
        %v686 = vld [vmem:[%s344 + $0xe0] sm:$0xff]
        %v687 = vld [vmem:[%s344 + $0xe8] sm:$0xff]
        %v688 = vld [vmem:[%s344 + $0xf0] sm:$0xff]
        %v689 = vld [vmem:[%s344 + $0xf8] sm:$0xff]
        %v690 = vld [vmem:[%s349] ss:$8 sm:$0x3]
        %v691 = vpack.c.bf16 %v527, %v525
        %v692 = vpack.c.bf16 %v528, %v526
        %v693 = vpack.c.bf16 %v531, %v529
        %v694 = vpack.c.bf16 %v532, %v530
        %v696 = vlaneseq
        %v697 = vshrl.u32 %v696, 7
        %v698 = vsub.s32 0, %v697
        %v699 = vrot.slane %v690, %v698
        %v700 = vlaneseq
        %v701 = vshrl.u32 %v700, 7
        %v702 = vsub.s32 1, %v701
        %v703 = vrot.slane %v690, %v702
        %v738 = vunpack.c.l.b16 %v658
        %v739 = vunpack.c.h.b16 %v658
        %v740 = vunpack.c.l.b16 %v659
        %v741 = vunpack.c.h.b16 %v659
        %v742 = vunpack.c.l.b16 %v660
        %v743 = vunpack.c.h.b16 %v660
        %v744 = vunpack.c.l.b16 %v661
        %v745 = vunpack.c.h.b16 %v661
        %v746 = vunpack.c.l.b16 %v662
        %v747 = vunpack.c.h.b16 %v662
        %v748 = vunpack.c.l.b16 %v663
        %v749 = vunpack.c.h.b16 %v663
        %v750 = vunpack.c.l.b16 %v664
        %v751 = vunpack.c.h.b16 %v664
        %v752 = vunpack.c.l.b16 %v665
        %v753 = vunpack.c.h.b16 %v665
        %v754 = vunpack.c.l.b16 %v666
        %v755 = vunpack.c.h.b16 %v666
        %v756 = vunpack.c.l.b16 %v667
        %v757 = vunpack.c.h.b16 %v667
        %v758 = vunpack.c.l.b16 %v668
        %v759 = vunpack.c.h.b16 %v668
        %v760 = vunpack.c.l.b16 %v669
        %v761 = vunpack.c.h.b16 %v669
        %v762 = vunpack.c.l.b16 %v670
        %v763 = vunpack.c.h.b16 %v670
        %v764 = vunpack.c.l.b16 %v671
        %v765 = vunpack.c.h.b16 %v671
        %v766 = vunpack.c.l.b16 %v672
        %v767 = vunpack.c.h.b16 %v672
        %v768 = vunpack.c.l.b16 %v673
        %v769 = vunpack.c.h.b16 %v673
        %v770 = vunpack.c.l.b16 %v674
        %v771 = vunpack.c.h.b16 %v674
        %v772 = vunpack.c.l.b16 %v675
        %v773 = vunpack.c.h.b16 %v675
        %v774 = vunpack.c.l.b16 %v676
        %v775 = vunpack.c.h.b16 %v676
        %v776 = vunpack.c.l.b16 %v677
        %v777 = vunpack.c.h.b16 %v677
        %v778 = vunpack.c.l.b16 %v678
        %v779 = vunpack.c.h.b16 %v678
        %v780 = vunpack.c.l.b16 %v679
        %v781 = vunpack.c.h.b16 %v679
        %v782 = vunpack.c.l.b16 %v680
        %v783 = vunpack.c.h.b16 %v680
        %v784 = vunpack.c.l.b16 %v681
        %v785 = vunpack.c.h.b16 %v681
        %v786 = vunpack.c.l.b16 %v682
        %v787 = vunpack.c.h.b16 %v682
        %v788 = vunpack.c.l.b16 %v683
        %v789 = vunpack.c.h.b16 %v683
        %v790 = vunpack.c.l.b16 %v684
        %v791 = vunpack.c.h.b16 %v684
        %v792 = vunpack.c.l.b16 %v685
        %v793 = vunpack.c.h.b16 %v685
        %v794 = vunpack.c.l.b16 %v686
        %v795 = vunpack.c.h.b16 %v686
        %v796 = vunpack.c.l.b16 %v687
        %v797 = vunpack.c.h.b16 %v687
        %v798 = vunpack.c.l.b16 %v688
        %v799 = vunpack.c.h.b16 %v688
        %v800 = vunpack.c.l.b16 %v689
        %v801 = vunpack.c.h.b16 %v689
        %v802 = vpack.c.b16 %v740, %v738
        %v803 = vpack.c.b16 %v741, %v739
        %v804 = vpack.c.b16 %v744, %v742
        %v805 = vpack.c.b16 %v745, %v743
        %v806 = vpack.c.b16 %v748, %v746
        %v807 = vpack.c.b16 %v749, %v747
        %v808 = vpack.c.b16 %v752, %v750
        %v809 = vpack.c.b16 %v753, %v751
        %v810 = vpack.c.b16 %v756, %v754
        %v811 = vpack.c.b16 %v757, %v755
        %v812 = vpack.c.b16 %v760, %v758
        %v813 = vpack.c.b16 %v761, %v759
        %v814 = vpack.c.b16 %v764, %v762
        %v815 = vpack.c.b16 %v765, %v763
        %v816 = vpack.c.b16 %v768, %v766
        %v817 = vpack.c.b16 %v769, %v767
        %v818 = vpack.c.b16 %v772, %v770
        %v819 = vpack.c.b16 %v773, %v771
        %v820 = vpack.c.b16 %v776, %v774
        %v821 = vpack.c.b16 %v777, %v775
        %v822 = vpack.c.b16 %v780, %v778
        %v823 = vpack.c.b16 %v781, %v779
        %v824 = vpack.c.b16 %v784, %v782
        %v825 = vpack.c.b16 %v785, %v783
        %v826 = vpack.c.b16 %v788, %v786
        %v827 = vpack.c.b16 %v789, %v787
        %v828 = vpack.c.b16 %v792, %v790
        %v829 = vpack.c.b16 %v793, %v791
        %v830 = vpack.c.b16 %v796, %v794
        %v831 = vpack.c.b16 %v797, %v795
        %v832 = vpack.c.b16 %v800, %v798
        %v833 = vpack.c.b16 %v801, %v799
        %866 = vmatprep.subr.bf16.mxu0 %v817
        %867 = vmatpush1.bf16.msra.mxu0 %v816
        %868 = vmatprep.subr.bf16.mxu0 %v815
        %869 = vmatpush1.bf16.msra.mxu0 %v814
        %870 = vmatprep.subr.bf16.mxu0 %v813
        %871 = vmatpush1.bf16.msra.mxu0 %v812
        %872 = vmatprep.subr.bf16.mxu0 %v811
        %873 = vmatpush1.bf16.msra.mxu0 %v810
        %874 = vmatprep.subr.bf16.mxu0 %v809
        %875 = vmatpush1.bf16.msra.mxu0 %v808
        %876 = vmatprep.subr.bf16.mxu0 %v807
        %877 = vmatpush1.bf16.msra.mxu0 %v806
        %878 = vmatprep.subr.bf16.mxu0 %v805
        %879 = vmatpush1.bf16.msra.mxu0 %v804
        %880 = vmatprep.subr.bf16.mxu0 %v803
        %881 = vmatpush1.bf16.msra.mxu0 %v802
        %882 = vmatprep.subr.bf16.mxu0 %v833
        %883 = vmatpush2.bf16.msra.mxu0 %v832
        %884 = vmatprep.subr.bf16.mxu0 %v831
        %885 = vmatpush2.bf16.msra.mxu0 %v830
        %886 = vmatprep.subr.bf16.mxu0 %v829
        %887 = vmatpush2.bf16.msra.mxu0 %v828
        %888 = vmatprep.subr.bf16.mxu0 %v827
        %889 = vmatpush2.bf16.msra.mxu0 %v826
        %890 = vmatprep.subr.bf16.mxu0 %v825
        %891 = vmatpush2.bf16.msra.mxu0 %v824
        %892 = vmatprep.subr.bf16.mxu0 %v823
        %893 = vmatpush2.bf16.msra.mxu0 %v822
        %894 = vmatprep.subr.bf16.mxu0 %v821
        %895 = vmatpush2.bf16.msra.mxu0 %v820
        %896 = vmatprep.subr.bf16.mxu0 %v819
        %897 = vmatpush2.bf16.msra.mxu0 %v818
        %898 = vmatprep.mubr.bf16.mxu0 %v692
        %899 = vmatmul.mubr.bf16.gmra.mxu0 %v691
        %v900 = vpop.f32.mrf.mxu0
        %v901 = vadd.f32 %v699, %v900
        %v902 = vpop.f32.mrf.mxu0
        %v903 = vadd.f32 %v703, %v902
        %v904 = vpop.f32.mrf.mxu0
        %v905 = vadd.f32 %v699, %v904
        %v906 = vpop.f32.mrf.mxu0
        %v907 = vadd.f32 %v703, %v906
        %908 = vmatprep.mubr.bf16.mxu0 %v694
        %909 = vmatmul.mubr.bf16.gmra.mxu0 %v693
        %v910 = vpop.f32.mrf.mxu0
        %v911 = vadd.f32 %v699, %v910
        %v912 = vpop.f32.mrf.mxu0
        %v913 = vadd.f32 %v703, %v912
        %v914 = vpop.f32.mrf.mxu0
        %v915 = vadd.f32 %v699, %v914
        %v916 = vpop.f32.mrf.mxu0
        %v917 = vadd.f32 %v703, %v916
        %918 = vdwg.mxu0
        %v919 = vmul.f32 %v901, 0.5
        %v920 = vmul.f32 %v903, 0.5
        %v921 = vmul.f32 %v905, 0.5
        %v922 = vmul.f32 %v907, 0.5
        %v923 = vmul.f32 %v911, 0.5
        %v924 = vmul.f32 %v913, 0.5
        %v925 = vmul.f32 %v915, 0.5
        %v926 = vmul.f32 %v917, 0.5
        %v927 = vmul.f32 %v901, %v901
        %v928 = vmul.f32 %v903, %v903
        %v929 = vmul.f32 %v905, %v905
        %v930 = vmul.f32 %v907, %v907
        %v931 = vmul.f32 %v911, %v911
        %v932 = vmul.f32 %v913, %v913
        %v933 = vmul.f32 %v915, %v915
        %v934 = vmul.f32 %v917, %v917
        %v935 = vmul.f32 %v927, 0.035677407
        %v936 = vmul.f32 %v928, 0.035677407
        %v937 = vmul.f32 %v929, 0.035677407
        %v938 = vmul.f32 %v930, 0.035677407
        %v939 = vmul.f32 %v931, 0.035677407
        %v940 = vmul.f32 %v932, 0.035677407
        %v941 = vmul.f32 %v933, 0.035677407
        %v942 = vmul.f32 %v934, 0.035677407
        %v943 = vadd.f32 %v935, 0.7978846
        %v944 = vadd.f32 %v936, 0.7978846
        %v945 = vadd.f32 %v937, 0.7978846
        %v946 = vadd.f32 %v938, 0.7978846
        %v947 = vadd.f32 %v939, 0.7978846
        %v948 = vadd.f32 %v940, 0.7978846
        %v949 = vadd.f32 %v941, 0.7978846
        %v950 = vadd.f32 %v942, 0.7978846
        %v951 = vmul.f32 %v901, %v943
        %v952 = vmul.f32 %v903, %v944
        %v953 = vmul.f32 %v905, %v945
        %v954 = vmul.f32 %v907, %v946
        %v955 = vmul.f32 %v911, %v947
        %v956 = vmul.f32 %v913, %v948
        %v957 = vmul.f32 %v915, %v949
        %v958 = vmul.f32 %v917, %v950
        %v959 = vtanh.pop %v951
        %v960 = vtanh.pop %v952
        %v961 = vtanh.pop %v953
        %v962 = vtanh.pop %v954
        %v963 = vtanh.pop %v955
        %v964 = vtanh.pop %v956
        %v965 = vtanh.pop %v957
        %v966 = vtanh.pop %v958
        %v967 = vmul.f32 %v919, %v959
        %v968 = vmul.f32 %v920, %v960
        %v969 = vmul.f32 %v921, %v961
        %v970 = vmul.f32 %v922, %v962
        %v971 = vmul.f32 %v923, %v963
        %v972 = vmul.f32 %v924, %v964
        %v973 = vmul.f32 %v925, %v965
        %v974 = vmul.f32 %v926, %v966
        %v975 = vadd.f32 %v919, %v967
        %v976 = vadd.f32 %v920, %v968
        %v977 = vadd.f32 %v921, %v969
        %v978 = vadd.f32 %v922, %v970
        %v979 = vadd.f32 %v923, %v971
        %v980 = vadd.f32 %v924, %v972
        %v981 = vadd.f32 %v925, %v973
        %v982 = vadd.f32 %v926, %v974
        %v983 = vpack.c.bf16 %v652, %v650
        %v984 = vpack.c.bf16 %v653, %v651
        %v985 = vpack.c.bf16 %v656, %v654
        %v986 = vpack.c.bf16 %v657, %v655
        %987 = vmatprep.subr.bf16.mxu0 %v817
        %988 = vmatpush1.bf16.msra.mxu0 %v816
        %989 = vmatprep.subr.bf16.mxu0 %v815
        %990 = vmatpush1.bf16.msra.mxu0 %v814
        %991 = vmatprep.subr.bf16.mxu0 %v813
        %992 = vmatpush1.bf16.msra.mxu0 %v812
        %993 = vmatprep.subr.bf16.mxu0 %v811
        %994 = vmatpush1.bf16.msra.mxu0 %v810
        %995 = vmatprep.subr.bf16.mxu0 %v809
        %996 = vmatpush1.bf16.msra.mxu0 %v808
        %997 = vmatprep.subr.bf16.mxu0 %v807
        %998 = vmatpush1.bf16.msra.mxu0 %v806
        %999 = vmatprep.subr.bf16.mxu0 %v805
        %1000 = vmatpush1.bf16.msra.mxu0 %v804
        %1001 = vmatprep.subr.bf16.mxu0 %v803
        %1002 = vmatpush1.bf16.msra.mxu0 %v802
        %1003 = vmatprep.subr.bf16.mxu0 %v833
        %1004 = vmatpush2.bf16.msra.mxu0 %v832
        %1005 = vmatprep.subr.bf16.mxu0 %v831
        %1006 = vmatpush2.bf16.msra.mxu0 %v830
        %1007 = vmatprep.subr.bf16.mxu0 %v829
        %1008 = vmatpush2.bf16.msra.mxu0 %v828
        %1009 = vmatprep.subr.bf16.mxu0 %v827
        %1010 = vmatpush2.bf16.msra.mxu0 %v826
        %1011 = vmatprep.subr.bf16.mxu0 %v825
        %1012 = vmatpush2.bf16.msra.mxu0 %v824
        %1013 = vmatprep.subr.bf16.mxu0 %v823
        %1014 = vmatpush2.bf16.msra.mxu0 %v822
        %1015 = vmatprep.subr.bf16.mxu0 %v821
        %1016 = vmatpush2.bf16.msra.mxu0 %v820
        %1017 = vmatprep.subr.bf16.mxu0 %v819
        %1018 = vmatpush2.bf16.msra.mxu0 %v818
        %1019 = vmatprep.mubr.bf16.mxu0 %v984
        %1020 = vmatmul.mubr.bf16.gmra.mxu0 %v983
        %v1021 = vpop.f32.mrf.mxu0
        %v1022 = vadd.f32 %v699, %v1021
        %v1023 = vpop.f32.mrf.mxu0
        %v1024 = vadd.f32 %v703, %v1023
        %v1025 = vpop.f32.mrf.mxu0
        %v1026 = vadd.f32 %v699, %v1025
        %v1027 = vpop.f32.mrf.mxu0
        %v1028 = vadd.f32 %v703, %v1027
        %1029 = vmatprep.mubr.bf16.mxu0 %v986
        %1030 = vmatmul.mubr.bf16.gmra.mxu0 %v985
        %v1031 = vpop.f32.mrf.mxu0
        %v1032 = vadd.f32 %v699, %v1031
        %v1033 = vpop.f32.mrf.mxu0
        %v1034 = vadd.f32 %v703, %v1033
        %v1035 = vpop.f32.mrf.mxu0
        %v1036 = vadd.f32 %v699, %v1035
        %v1037 = vpop.f32.mrf.mxu0
        %v1038 = vadd.f32 %v703, %v1037
        %1039 = vdwg.mxu0
        %v1040 = vmul.f32 %v1022, 0.5
        %v1041 = vmul.f32 %v1024, 0.5
        %v1042 = vmul.f32 %v1026, 0.5
        %v1043 = vmul.f32 %v1028, 0.5
        %v1044 = vmul.f32 %v1032, 0.5
        %v1045 = vmul.f32 %v1034, 0.5
        %v1046 = vmul.f32 %v1036, 0.5
        %v1047 = vmul.f32 %v1038, 0.5
        %v1048 = vmul.f32 %v1022, %v1022
        %v1049 = vmul.f32 %v1024, %v1024
        %v1050 = vmul.f32 %v1026, %v1026
        %v1051 = vmul.f32 %v1028, %v1028
        %v1052 = vmul.f32 %v1032, %v1032
        %v1053 = vmul.f32 %v1034, %v1034
        %v1054 = vmul.f32 %v1036, %v1036
        %v1055 = vmul.f32 %v1038, %v1038
        %v1056 = vmul.f32 %v1048, 0.035677407
        %v1057 = vmul.f32 %v1049, 0.035677407
        %v1058 = vmul.f32 %v1050, 0.035677407
        %v1059 = vmul.f32 %v1051, 0.035677407
        %v1060 = vmul.f32 %v1052, 0.035677407
        %v1061 = vmul.f32 %v1053, 0.035677407
        %v1062 = vmul.f32 %v1054, 0.035677407
        %v1063 = vmul.f32 %v1055, 0.035677407
        %v1064 = vadd.f32 %v1056, 0.7978846
        %v1065 = vadd.f32 %v1057, 0.7978846
        %v1066 = vadd.f32 %v1058, 0.7978846
        %v1067 = vadd.f32 %v1059, 0.7978846
        %v1068 = vadd.f32 %v1060, 0.7978846
        %v1069 = vadd.f32 %v1061, 0.7978846
        %v1070 = vadd.f32 %v1062, 0.7978846
        %v1071 = vadd.f32 %v1063, 0.7978846
        %v1072 = vmul.f32 %v1022, %v1064
        %v1073 = vmul.f32 %v1024, %v1065
        %v1074 = vmul.f32 %v1026, %v1066
        %v1075 = vmul.f32 %v1028, %v1067
        %v1076 = vmul.f32 %v1032, %v1068
        %v1077 = vmul.f32 %v1034, %v1069
        %v1078 = vmul.f32 %v1036, %v1070
        %v1079 = vmul.f32 %v1038, %v1071
        %v1080 = vtanh.pop %v1072
        %v1081 = vtanh.pop %v1073
        %v1082 = vtanh.pop %v1074
        %v1083 = vtanh.pop %v1075
        %v1084 = vtanh.pop %v1076
        %v1085 = vtanh.pop %v1077
        %v1086 = vtanh.pop %v1078
        %v1087 = vtanh.pop %v1079
        %v1088 = vmul.f32 %v1040, %v1080
        %v1089 = vmul.f32 %v1041, %v1081
        %v1090 = vmul.f32 %v1042, %v1082
        %v1091 = vmul.f32 %v1043, %v1083
        %v1092 = vmul.f32 %v1044, %v1084
        %v1093 = vmul.f32 %v1045, %v1085
        %v1094 = vmul.f32 %v1046, %v1086
        %v1095 = vmul.f32 %v1047, %v1087
        %v1096 = vadd.f32 %v1040, %v1088
        %v1097 = vadd.f32 %v1041, %v1089
        %v1098 = vadd.f32 %v1042, %v1090
        %v1099 = vadd.f32 %v1043, %v1091
        %v1100 = vadd.f32 %v1044, %v1092
        %v1101 = vadd.f32 %v1045, %v1093
        %v1102 = vadd.f32 %v1046, %v1094
        %v1103 = vadd.f32 %v1047, %v1095
        %s1104 = scalar_lea.vmem %s344, 256
        %v1105 = vld [vmem:[%s1104] sm:$0xff]
        %v1106 = vld [vmem:[%s1104 + $0x8] sm:$0xff]
        %v1107 = vld [vmem:[%s1104 + $0x10] sm:$0xff]
        %v1108 = vld [vmem:[%s1104 + $0x18] sm:$0xff]
        %v1109 = vld [vmem:[%s1104 + $0x20] sm:$0xff]
        %v1110 = vld [vmem:[%s1104 + $0x28] sm:$0xff]
        %v1111 = vld [vmem:[%s1104 + $0x30] sm:$0xff]
        %v1112 = vld [vmem:[%s1104 + $0x38] sm:$0xff]
        %v1113 = vld [vmem:[%s1104 + $0x40] sm:$0xff]
        %v1114 = vld [vmem:[%s1104 + $0x48] sm:$0xff]
        %v1115 = vld [vmem:[%s1104 + $0x50] sm:$0xff]
        %v1116 = vld [vmem:[%s1104 + $0x58] sm:$0xff]
        %v1117 = vld [vmem:[%s1104 + $0x60] sm:$0xff]
        %v1118 = vld [vmem:[%s1104 + $0x68] sm:$0xff]
        %v1119 = vld [vmem:[%s1104 + $0x70] sm:$0xff]
        %v1120 = vld [vmem:[%s1104 + $0x78] sm:$0xff]
        %v1121 = vld [vmem:[%s1104 + $0x80] sm:$0xff]
        %v1122 = vld [vmem:[%s1104 + $0x88] sm:$0xff]
        %v1123 = vld [vmem:[%s1104 + $0x90] sm:$0xff]
        %v1124 = vld [vmem:[%s1104 + $0x98] sm:$0xff]
        %v1125 = vld [vmem:[%s1104 + $0xa0] sm:$0xff]
        %v1126 = vld [vmem:[%s1104 + $0xa8] sm:$0xff]
        %v1127 = vld [vmem:[%s1104 + $0xb0] sm:$0xff]
        %v1128 = vld [vmem:[%s1104 + $0xb8] sm:$0xff]
        %v1129 = vld [vmem:[%s1104 + $0xc0] sm:$0xff]
        %v1130 = vld [vmem:[%s1104 + $0xc8] sm:$0xff]
        %v1131 = vld [vmem:[%s1104 + $0xd0] sm:$0xff]
        %v1132 = vld [vmem:[%s1104 + $0xd8] sm:$0xff]
        %v1133 = vld [vmem:[%s1104 + $0xe0] sm:$0xff]
        %v1134 = vld [vmem:[%s1104 + $0xe8] sm:$0xff]
        %v1135 = vld [vmem:[%s1104 + $0xf0] sm:$0xff]
        %v1136 = vld [vmem:[%s1104 + $0xf8] sm:$0xff]
        %s1137 = scalar_lea.vmem %s349, 1
        %v1138 = vld [vmem:[%s1137] ss:$8 sm:$0x3]
        %v1139 = vpack.c.bf16 %v977, %v975
        %v1140 = vpack.c.bf16 %v978, %v976
        %v1141 = vpack.c.bf16 %v981, %v979
        %v1142 = vpack.c.bf16 %v982, %v980
        %v1144 = vlaneseq
        %v1145 = vshrl.u32 %v1144, 7
        %v1146 = vsub.s32 0, %v1145
        %v1147 = vrot.slane %v1138, %v1146
        %v1148 = vlaneseq
        %v1149 = vshrl.u32 %v1148, 7
        %v1150 = vsub.s32 1, %v1149
        %v1151 = vrot.slane %v1138, %v1150
        %v1186 = vunpack.c.l.b16 %v1105
        %v1187 = vunpack.c.h.b16 %v1105
        %v1188 = vunpack.c.l.b16 %v1106
        %v1189 = vunpack.c.h.b16 %v1106
        %v1190 = vunpack.c.l.b16 %v1107
        %v1191 = vunpack.c.h.b16 %v1107
        %v1192 = vunpack.c.l.b16 %v1108
        %v1193 = vunpack.c.h.b16 %v1108
        %v1194 = vunpack.c.l.b16 %v1109
        %v1195 = vunpack.c.h.b16 %v1109
        %v1196 = vunpack.c.l.b16 %v1110
        %v1197 = vunpack.c.h.b16 %v1110
        %v1198 = vunpack.c.l.b16 %v1111
        %v1199 = vunpack.c.h.b16 %v1111
        %v1200 = vunpack.c.l.b16 %v1112
        %v1201 = vunpack.c.h.b16 %v1112
        %v1202 = vunpack.c.l.b16 %v1113
        %v1203 = vunpack.c.h.b16 %v1113
        %v1204 = vunpack.c.l.b16 %v1114
        %v1205 = vunpack.c.h.b16 %v1114
        %v1206 = vunpack.c.l.b16 %v1115
        %v1207 = vunpack.c.h.b16 %v1115
        %v1208 = vunpack.c.l.b16 %v1116
        %v1209 = vunpack.c.h.b16 %v1116
        %v1210 = vunpack.c.l.b16 %v1117
        %v1211 = vunpack.c.h.b16 %v1117
        %v1212 = vunpack.c.l.b16 %v1118
        %v1213 = vunpack.c.h.b16 %v1118
        %v1214 = vunpack.c.l.b16 %v1119
        %v1215 = vunpack.c.h.b16 %v1119
        %v1216 = vunpack.c.l.b16 %v1120
        %v1217 = vunpack.c.h.b16 %v1120
        %v1218 = vunpack.c.l.b16 %v1121
        %v1219 = vunpack.c.h.b16 %v1121
        %v1220 = vunpack.c.l.b16 %v1122
        %v1221 = vunpack.c.h.b16 %v1122
        %v1222 = vunpack.c.l.b16 %v1123
        %v1223 = vunpack.c.h.b16 %v1123
        %v1224 = vunpack.c.l.b16 %v1124
        %v1225 = vunpack.c.h.b16 %v1124
        %v1226 = vunpack.c.l.b16 %v1125
        %v1227 = vunpack.c.h.b16 %v1125
        %v1228 = vunpack.c.l.b16 %v1126
        %v1229 = vunpack.c.h.b16 %v1126
        %v1230 = vunpack.c.l.b16 %v1127
        %v1231 = vunpack.c.h.b16 %v1127
        %v1232 = vunpack.c.l.b16 %v1128
        %v1233 = vunpack.c.h.b16 %v1128
        %v1234 = vunpack.c.l.b16 %v1129
        %v1235 = vunpack.c.h.b16 %v1129
        %v1236 = vunpack.c.l.b16 %v1130
        %v1237 = vunpack.c.h.b16 %v1130
        %v1238 = vunpack.c.l.b16 %v1131
        %v1239 = vunpack.c.h.b16 %v1131
        %v1240 = vunpack.c.l.b16 %v1132
        %v1241 = vunpack.c.h.b16 %v1132
        %v1242 = vunpack.c.l.b16 %v1133
        %v1243 = vunpack.c.h.b16 %v1133
        %v1244 = vunpack.c.l.b16 %v1134
        %v1245 = vunpack.c.h.b16 %v1134
        %v1246 = vunpack.c.l.b16 %v1135
        %v1247 = vunpack.c.h.b16 %v1135
        %v1248 = vunpack.c.l.b16 %v1136
        %v1249 = vunpack.c.h.b16 %v1136
        %v1250 = vpack.c.b16 %v1188, %v1186
        %v1251 = vpack.c.b16 %v1189, %v1187
        %v1252 = vpack.c.b16 %v1192, %v1190
        %v1253 = vpack.c.b16 %v1193, %v1191
        %v1254 = vpack.c.b16 %v1196, %v1194
        %v1255 = vpack.c.b16 %v1197, %v1195
        %v1256 = vpack.c.b16 %v1200, %v1198
        %v1257 = vpack.c.b16 %v1201, %v1199
        %v1258 = vpack.c.b16 %v1204, %v1202
        %v1259 = vpack.c.b16 %v1205, %v1203
        %v1260 = vpack.c.b16 %v1208, %v1206
        %v1261 = vpack.c.b16 %v1209, %v1207
        %v1262 = vpack.c.b16 %v1212, %v1210
        %v1263 = vpack.c.b16 %v1213, %v1211
        %v1264 = vpack.c.b16 %v1216, %v1214
        %v1265 = vpack.c.b16 %v1217, %v1215
        %v1266 = vpack.c.b16 %v1220, %v1218
        %v1267 = vpack.c.b16 %v1221, %v1219
        %v1268 = vpack.c.b16 %v1224, %v1222
        %v1269 = vpack.c.b16 %v1225, %v1223
        %v1270 = vpack.c.b16 %v1228, %v1226
        %v1271 = vpack.c.b16 %v1229, %v1227
        %v1272 = vpack.c.b16 %v1232, %v1230
        %v1273 = vpack.c.b16 %v1233, %v1231
        %v1274 = vpack.c.b16 %v1236, %v1234
        %v1275 = vpack.c.b16 %v1237, %v1235
        %v1276 = vpack.c.b16 %v1240, %v1238
        %v1277 = vpack.c.b16 %v1241, %v1239
        %v1278 = vpack.c.b16 %v1244, %v1242
        %v1279 = vpack.c.b16 %v1245, %v1243
        %v1280 = vpack.c.b16 %v1248, %v1246
        %v1281 = vpack.c.b16 %v1249, %v1247
        %1314 = vmatprep.subr.bf16.mxu0 %v1265
        %1315 = vmatpush1.bf16.msra.mxu0 %v1264
        %1316 = vmatprep.subr.bf16.mxu0 %v1263
        %1317 = vmatpush1.bf16.msra.mxu0 %v1262
        %1318 = vmatprep.subr.bf16.mxu0 %v1261
        %1319 = vmatpush1.bf16.msra.mxu0 %v1260
        %1320 = vmatprep.subr.bf16.mxu0 %v1259
        %1321 = vmatpush1.bf16.msra.mxu0 %v1258
        %1322 = vmatprep.subr.bf16.mxu0 %v1257
        %1323 = vmatpush1.bf16.msra.mxu0 %v1256
        %1324 = vmatprep.subr.bf16.mxu0 %v1255
        %1325 = vmatpush1.bf16.msra.mxu0 %v1254
        %1326 = vmatprep.subr.bf16.mxu0 %v1253
        %1327 = vmatpush1.bf16.msra.mxu0 %v1252
        %1328 = vmatprep.subr.bf16.mxu0 %v1251
        %1329 = vmatpush1.bf16.msra.mxu0 %v1250
        %1330 = vmatprep.subr.bf16.mxu0 %v1281
        %1331 = vmatpush2.bf16.msra.mxu0 %v1280
        %1332 = vmatprep.subr.bf16.mxu0 %v1279
        %1333 = vmatpush2.bf16.msra.mxu0 %v1278
        %1334 = vmatprep.subr.bf16.mxu0 %v1277
        %1335 = vmatpush2.bf16.msra.mxu0 %v1276
        %1336 = vmatprep.subr.bf16.mxu0 %v1275
        %1337 = vmatpush2.bf16.msra.mxu0 %v1274
        %1338 = vmatprep.subr.bf16.mxu0 %v1273
        %1339 = vmatpush2.bf16.msra.mxu0 %v1272
        %1340 = vmatprep.subr.bf16.mxu0 %v1271
        %1341 = vmatpush2.bf16.msra.mxu0 %v1270
        %1342 = vmatprep.subr.bf16.mxu0 %v1269
        %1343 = vmatpush2.bf16.msra.mxu0 %v1268
        %1344 = vmatprep.subr.bf16.mxu0 %v1267
        %1345 = vmatpush2.bf16.msra.mxu0 %v1266
        %1346 = vmatprep.mubr.bf16.mxu0 %v1140
        %1347 = vmatmul.mubr.bf16.gmra.mxu0 %v1139
        %v1348 = vpop.f32.mrf.mxu0
        %v1349 = vadd.f32 %v1147, %v1348
        %v1350 = vpop.f32.mrf.mxu0
        %v1351 = vadd.f32 %v1151, %v1350
        %v1352 = vpop.f32.mrf.mxu0
        %v1353 = vadd.f32 %v1147, %v1352
        %v1354 = vpop.f32.mrf.mxu0
        %v1355 = vadd.f32 %v1151, %v1354
        %1356 = vmatprep.mubr.bf16.mxu0 %v1142
        %1357 = vmatmul.mubr.bf16.gmra.mxu0 %v1141
        %v1358 = vpop.f32.mrf.mxu0
        %v1359 = vadd.f32 %v1147, %v1358
        %v1360 = vpop.f32.mrf.mxu0
        %v1361 = vadd.f32 %v1151, %v1360
        %v1362 = vpop.f32.mrf.mxu0
        %v1363 = vadd.f32 %v1147, %v1362
        %v1364 = vpop.f32.mrf.mxu0
        %v1365 = vadd.f32 %v1151, %v1364
        %1366 = vdwg.mxu0
        %v1367 = vmul.f32 %v1349, 0.5
        %v1368 = vmul.f32 %v1351, 0.5
        %v1369 = vmul.f32 %v1353, 0.5
        %v1370 = vmul.f32 %v1355, 0.5
        %v1371 = vmul.f32 %v1359, 0.5
        %v1372 = vmul.f32 %v1361, 0.5
        %v1373 = vmul.f32 %v1363, 0.5
        %v1374 = vmul.f32 %v1365, 0.5
        %v1375 = vmul.f32 %v1349, %v1349
        %v1376 = vmul.f32 %v1351, %v1351
        %v1377 = vmul.f32 %v1353, %v1353
        %v1378 = vmul.f32 %v1355, %v1355
        %v1379 = vmul.f32 %v1359, %v1359
        %v1380 = vmul.f32 %v1361, %v1361
        %v1381 = vmul.f32 %v1363, %v1363
        %v1382 = vmul.f32 %v1365, %v1365
        %v1383 = vmul.f32 %v1375, 0.035677407
        %v1384 = vmul.f32 %v1376, 0.035677407
        %v1385 = vmul.f32 %v1377, 0.035677407
        %v1386 = vmul.f32 %v1378, 0.035677407
        %v1387 = vmul.f32 %v1379, 0.035677407
        %v1388 = vmul.f32 %v1380, 0.035677407
        %v1389 = vmul.f32 %v1381, 0.035677407
        %v1390 = vmul.f32 %v1382, 0.035677407
        %v1391 = vadd.f32 %v1383, 0.7978846
        %v1392 = vadd.f32 %v1384, 0.7978846
        %v1393 = vadd.f32 %v1385, 0.7978846
        %v1394 = vadd.f32 %v1386, 0.7978846
        %v1395 = vadd.f32 %v1387, 0.7978846
        %v1396 = vadd.f32 %v1388, 0.7978846
        %v1397 = vadd.f32 %v1389, 0.7978846
        %v1398 = vadd.f32 %v1390, 0.7978846
        %v1399 = vmul.f32 %v1349, %v1391
        %v1400 = vmul.f32 %v1351, %v1392
        %v1401 = vmul.f32 %v1353, %v1393
        %v1402 = vmul.f32 %v1355, %v1394
        %v1403 = vmul.f32 %v1359, %v1395
        %v1404 = vmul.f32 %v1361, %v1396
        %v1405 = vmul.f32 %v1363, %v1397
        %v1406 = vmul.f32 %v1365, %v1398
        %v1407 = vtanh.pop %v1399
        %v1408 = vtanh.pop %v1400
        %v1409 = vtanh.pop %v1401
        %v1410 = vtanh.pop %v1402
        %v1411 = vtanh.pop %v1403
        %v1412 = vtanh.pop %v1404
        %v1413 = vtanh.pop %v1405
        %v1414 = vtanh.pop %v1406
        %v1415 = vmul.f32 %v1367, %v1407
        %v1416 = vmul.f32 %v1368, %v1408
        %v1417 = vmul.f32 %v1369, %v1409
        %v1418 = vmul.f32 %v1370, %v1410
        %v1419 = vmul.f32 %v1371, %v1411
        %v1420 = vmul.f32 %v1372, %v1412
        %v1421 = vmul.f32 %v1373, %v1413
        %v1422 = vmul.f32 %v1374, %v1414
        %v1423 = vadd.f32 %v1367, %v1415
        %v1424 = vadd.f32 %v1368, %v1416
        %v1425 = vadd.f32 %v1369, %v1417
        %v1426 = vadd.f32 %v1370, %v1418
        %v1427 = vadd.f32 %v1371, %v1419
        %v1428 = vadd.f32 %v1372, %v1420
        %v1429 = vadd.f32 %v1373, %v1421
        %v1430 = vadd.f32 %v1374, %v1422
        %v1431 = vpack.c.bf16 %v1098, %v1096
        %v1432 = vpack.c.bf16 %v1099, %v1097
        %v1433 = vpack.c.bf16 %v1102, %v1100
        %v1434 = vpack.c.bf16 %v1103, %v1101
        %1435 = vmatprep.subr.bf16.mxu0 %v1265
        %1436 = vmatpush1.bf16.msra.mxu0 %v1264
        %1437 = vmatprep.subr.bf16.mxu0 %v1263
        %1438 = vmatpush1.bf16.msra.mxu0 %v1262
        %1439 = vmatprep.subr.bf16.mxu0 %v1261
        %1440 = vmatpush1.bf16.msra.mxu0 %v1260
        %1441 = vmatprep.subr.bf16.mxu0 %v1259
        %1442 = vmatpush1.bf16.msra.mxu0 %v1258
        %1443 = vmatprep.subr.bf16.mxu0 %v1257
        %1444 = vmatpush1.bf16.msra.mxu0 %v1256
        %1445 = vmatprep.subr.bf16.mxu0 %v1255
        %1446 = vmatpush1.bf16.msra.mxu0 %v1254
        %1447 = vmatprep.subr.bf16.mxu0 %v1253
        %1448 = vmatpush1.bf16.msra.mxu0 %v1252
        %1449 = vmatprep.subr.bf16.mxu0 %v1251
        %1450 = vmatpush1.bf16.msra.mxu0 %v1250
        %1451 = vmatprep.subr.bf16.mxu0 %v1281
        %1452 = vmatpush2.bf16.msra.mxu0 %v1280
        %1453 = vmatprep.subr.bf16.mxu0 %v1279
        %1454 = vmatpush2.bf16.msra.mxu0 %v1278
        %1455 = vmatprep.subr.bf16.mxu0 %v1277
        %1456 = vmatpush2.bf16.msra.mxu0 %v1276
        %1457 = vmatprep.subr.bf16.mxu0 %v1275
        %1458 = vmatpush2.bf16.msra.mxu0 %v1274
        %1459 = vmatprep.subr.bf16.mxu0 %v1273
        %1460 = vmatpush2.bf16.msra.mxu0 %v1272
        %1461 = vmatprep.subr.bf16.mxu0 %v1271
        %1462 = vmatpush2.bf16.msra.mxu0 %v1270
        %1463 = vmatprep.subr.bf16.mxu0 %v1269
        %1464 = vmatpush2.bf16.msra.mxu0 %v1268
        %1465 = vmatprep.subr.bf16.mxu0 %v1267
        %1466 = vmatpush2.bf16.msra.mxu0 %v1266
        %1467 = vmatprep.mubr.bf16.mxu0 %v1432
        %1468 = vmatmul.mubr.bf16.gmra.mxu0 %v1431
        %v1469 = vpop.f32.mrf.mxu0
        %v1470 = vadd.f32 %v1147, %v1469
        %v1471 = vpop.f32.mrf.mxu0
        %v1472 = vadd.f32 %v1151, %v1471
        %v1473 = vpop.f32.mrf.mxu0
        %v1474 = vadd.f32 %v1147, %v1473
        %v1475 = vpop.f32.mrf.mxu0
        %v1476 = vadd.f32 %v1151, %v1475
        %1477 = vmatprep.mubr.bf16.mxu0 %v1434
        %1478 = vmatmul.mubr.bf16.gmra.mxu0 %v1433
        %v1479 = vpop.f32.mrf.mxu0
        %v1480 = vadd.f32 %v1147, %v1479
        %v1481 = vpop.f32.mrf.mxu0
        %v1482 = vadd.f32 %v1151, %v1481
        %v1483 = vpop.f32.mrf.mxu0
        %v1484 = vadd.f32 %v1147, %v1483
        %v1485 = vpop.f32.mrf.mxu0
        %v1486 = vadd.f32 %v1151, %v1485
        %1487 = vdwg.mxu0
        %v1488 = vmul.f32 %v1470, 0.5
        %v1489 = vmul.f32 %v1472, 0.5
        %v1490 = vmul.f32 %v1474, 0.5
        %v1491 = vmul.f32 %v1476, 0.5
        %v1492 = vmul.f32 %v1480, 0.5
        %v1493 = vmul.f32 %v1482, 0.5
        %v1494 = vmul.f32 %v1484, 0.5
        %v1495 = vmul.f32 %v1486, 0.5
        %v1496 = vmul.f32 %v1470, %v1470
        %v1497 = vmul.f32 %v1472, %v1472
        %v1498 = vmul.f32 %v1474, %v1474
        %v1499 = vmul.f32 %v1476, %v1476
        %v1500 = vmul.f32 %v1480, %v1480
        %v1501 = vmul.f32 %v1482, %v1482
        %v1502 = vmul.f32 %v1484, %v1484
        %v1503 = vmul.f32 %v1486, %v1486
        %v1504 = vmul.f32 %v1496, 0.035677407
        %v1505 = vmul.f32 %v1497, 0.035677407
        %v1506 = vmul.f32 %v1498, 0.035677407
        %v1507 = vmul.f32 %v1499, 0.035677407
        %v1508 = vmul.f32 %v1500, 0.035677407
        %v1509 = vmul.f32 %v1501, 0.035677407
        %v1510 = vmul.f32 %v1502, 0.035677407
        %v1511 = vmul.f32 %v1503, 0.035677407
        %v1512 = vadd.f32 %v1504, 0.7978846
        %v1513 = vadd.f32 %v1505, 0.7978846
        %v1514 = vadd.f32 %v1506, 0.7978846
        %v1515 = vadd.f32 %v1507, 0.7978846
        %v1516 = vadd.f32 %v1508, 0.7978846
        %v1517 = vadd.f32 %v1509, 0.7978846
        %v1518 = vadd.f32 %v1510, 0.7978846
        %v1519 = vadd.f32 %v1511, 0.7978846
        %v1520 = vmul.f32 %v1470, %v1512
        %v1521 = vmul.f32 %v1472, %v1513
        %v1522 = vmul.f32 %v1474, %v1514
        %v1523 = vmul.f32 %v1476, %v1515
        %v1524 = vmul.f32 %v1480, %v1516
        %v1525 = vmul.f32 %v1482, %v1517
        %v1526 = vmul.f32 %v1484, %v1518
        %v1527 = vmul.f32 %v1486, %v1519
        %v1528 = vtanh.pop %v1520
        %v1529 = vtanh.pop %v1521
        %v1530 = vtanh.pop %v1522
        %v1531 = vtanh.pop %v1523
        %v1532 = vtanh.pop %v1524
        %v1533 = vtanh.pop %v1525
        %v1534 = vtanh.pop %v1526
        %v1535 = vtanh.pop %v1527
        %v1536 = vmul.f32 %v1488, %v1528
        %v1537 = vmul.f32 %v1489, %v1529
        %v1538 = vmul.f32 %v1490, %v1530
        %v1539 = vmul.f32 %v1491, %v1531
        %v1540 = vmul.f32 %v1492, %v1532
        %v1541 = vmul.f32 %v1493, %v1533
        %v1542 = vmul.f32 %v1494, %v1534
        %v1543 = vmul.f32 %v1495, %v1535
        %v1544 = vadd.f32 %v1488, %v1536
        %v1545 = vadd.f32 %v1489, %v1537
        %v1546 = vadd.f32 %v1490, %v1538
        %v1547 = vadd.f32 %v1491, %v1539
        %v1548 = vadd.f32 %v1492, %v1540
        %v1549 = vadd.f32 %v1493, %v1541
        %v1550 = vadd.f32 %v1494, %v1542
        %v1551 = vadd.f32 %v1495, %v1543
        %s1552 = scalar_lea.vmem %s344, 512
        %v1553 = vld [vmem:[%s1552] sm:$0xff]
        %v1554 = vld [vmem:[%s1552 + $0x8] sm:$0xff]
        %v1555 = vld [vmem:[%s1552 + $0x10] sm:$0xff]
        %v1556 = vld [vmem:[%s1552 + $0x18] sm:$0xff]
        %v1557 = vld [vmem:[%s1552 + $0x20] sm:$0xff]
        %v1558 = vld [vmem:[%s1552 + $0x28] sm:$0xff]
        %v1559 = vld [vmem:[%s1552 + $0x30] sm:$0xff]
        %v1560 = vld [vmem:[%s1552 + $0x38] sm:$0xff]
        %v1561 = vld [vmem:[%s1552 + $0x40] sm:$0xff]
        %v1562 = vld [vmem:[%s1552 + $0x48] sm:$0xff]
        %v1563 = vld [vmem:[%s1552 + $0x50] sm:$0xff]
        %v1564 = vld [vmem:[%s1552 + $0x58] sm:$0xff]
        %v1565 = vld [vmem:[%s1552 + $0x60] sm:$0xff]
        %v1566 = vld [vmem:[%s1552 + $0x68] sm:$0xff]
        %v1567 = vld [vmem:[%s1552 + $0x70] sm:$0xff]
        %v1568 = vld [vmem:[%s1552 + $0x78] sm:$0xff]
        %v1569 = vld [vmem:[%s1552 + $0x80] sm:$0xff]
        %v1570 = vld [vmem:[%s1552 + $0x88] sm:$0xff]
        %v1571 = vld [vmem:[%s1552 + $0x90] sm:$0xff]
        %v1572 = vld [vmem:[%s1552 + $0x98] sm:$0xff]
        %v1573 = vld [vmem:[%s1552 + $0xa0] sm:$0xff]
        %v1574 = vld [vmem:[%s1552 + $0xa8] sm:$0xff]
        %v1575 = vld [vmem:[%s1552 + $0xb0] sm:$0xff]
        %v1576 = vld [vmem:[%s1552 + $0xb8] sm:$0xff]
        %v1577 = vld [vmem:[%s1552 + $0xc0] sm:$0xff]
        %v1578 = vld [vmem:[%s1552 + $0xc8] sm:$0xff]
        %v1579 = vld [vmem:[%s1552 + $0xd0] sm:$0xff]
        %v1580 = vld [vmem:[%s1552 + $0xd8] sm:$0xff]
        %v1581 = vld [vmem:[%s1552 + $0xe0] sm:$0xff]
        %v1582 = vld [vmem:[%s1552 + $0xe8] sm:$0xff]
        %v1583 = vld [vmem:[%s1552 + $0xf0] sm:$0xff]
        %v1584 = vld [vmem:[%s1552 + $0xf8] sm:$0xff]
        %s1585 = scalar_lea.vmem %s349, 2
        %v1586 = vld [vmem:[%s1585] ss:$8 sm:$0x3]
        %v1587 = vpack.c.bf16 %v1425, %v1423
        %v1588 = vpack.c.bf16 %v1426, %v1424
        %v1589 = vpack.c.bf16 %v1429, %v1427
        %v1590 = vpack.c.bf16 %v1430, %v1428
        %v1592 = vlaneseq
        %v1593 = vshrl.u32 %v1592, 7
        %v1594 = vsub.s32 0, %v1593
        %v1595 = vrot.slane %v1586, %v1594
        %v1596 = vlaneseq
        %v1597 = vshrl.u32 %v1596, 7
        %v1598 = vsub.s32 1, %v1597
        %v1599 = vrot.slane %v1586, %v1598
        %v1634 = vunpack.c.l.b16 %v1553
        %v1635 = vunpack.c.h.b16 %v1553
        %v1636 = vunpack.c.l.b16 %v1554
        %v1637 = vunpack.c.h.b16 %v1554
        %v1638 = vunpack.c.l.b16 %v1555
        %v1639 = vunpack.c.h.b16 %v1555
        %v1640 = vunpack.c.l.b16 %v1556
        %v1641 = vunpack.c.h.b16 %v1556
        %v1642 = vunpack.c.l.b16 %v1557
        %v1643 = vunpack.c.h.b16 %v1557
        %v1644 = vunpack.c.l.b16 %v1558
        %v1645 = vunpack.c.h.b16 %v1558
        %v1646 = vunpack.c.l.b16 %v1559
        %v1647 = vunpack.c.h.b16 %v1559
        %v1648 = vunpack.c.l.b16 %v1560
        %v1649 = vunpack.c.h.b16 %v1560
        %v1650 = vunpack.c.l.b16 %v1561
        %v1651 = vunpack.c.h.b16 %v1561
        %v1652 = vunpack.c.l.b16 %v1562
        %v1653 = vunpack.c.h.b16 %v1562
        %v1654 = vunpack.c.l.b16 %v1563
        %v1655 = vunpack.c.h.b16 %v1563
        %v1656 = vunpack.c.l.b16 %v1564
        %v1657 = vunpack.c.h.b16 %v1564
        %v1658 = vunpack.c.l.b16 %v1565
        %v1659 = vunpack.c.h.b16 %v1565
        %v1660 = vunpack.c.l.b16 %v1566
        %v1661 = vunpack.c.h.b16 %v1566
        %v1662 = vunpack.c.l.b16 %v1567
        %v1663 = vunpack.c.h.b16 %v1567
        %v1664 = vunpack.c.l.b16 %v1568
        %v1665 = vunpack.c.h.b16 %v1568
        %v1666 = vunpack.c.l.b16 %v1569
        %v1667 = vunpack.c.h.b16 %v1569
        %v1668 = vunpack.c.l.b16 %v1570
        %v1669 = vunpack.c.h.b16 %v1570
        %v1670 = vunpack.c.l.b16 %v1571
        %v1671 = vunpack.c.h.b16 %v1571
        %v1672 = vunpack.c.l.b16 %v1572
        %v1673 = vunpack.c.h.b16 %v1572
        %v1674 = vunpack.c.l.b16 %v1573
        %v1675 = vunpack.c.h.b16 %v1573
        %v1676 = vunpack.c.l.b16 %v1574
        %v1677 = vunpack.c.h.b16 %v1574
        %v1678 = vunpack.c.l.b16 %v1575
        %v1679 = vunpack.c.h.b16 %v1575
        %v1680 = vunpack.c.l.b16 %v1576
        %v1681 = vunpack.c.h.b16 %v1576
        %v1682 = vunpack.c.l.b16 %v1577
        %v1683 = vunpack.c.h.b16 %v1577
        %v1684 = vunpack.c.l.b16 %v1578
        %v1685 = vunpack.c.h.b16 %v1578
        %v1686 = vunpack.c.l.b16 %v1579
        %v1687 = vunpack.c.h.b16 %v1579
        %v1688 = vunpack.c.l.b16 %v1580
        %v1689 = vunpack.c.h.b16 %v1580
        %v1690 = vunpack.c.l.b16 %v1581
        %v1691 = vunpack.c.h.b16 %v1581
        %v1692 = vunpack.c.l.b16 %v1582
        %v1693 = vunpack.c.h.b16 %v1582
        %v1694 = vunpack.c.l.b16 %v1583
        %v1695 = vunpack.c.h.b16 %v1583
        %v1696 = vunpack.c.l.b16 %v1584
        %v1697 = vunpack.c.h.b16 %v1584
        %v1698 = vpack.c.b16 %v1636, %v1634
        %v1699 = vpack.c.b16 %v1637, %v1635
        %v1700 = vpack.c.b16 %v1640, %v1638
        %v1701 = vpack.c.b16 %v1641, %v1639
        %v1702 = vpack.c.b16 %v1644, %v1642
        %v1703 = vpack.c.b16 %v1645, %v1643
        %v1704 = vpack.c.b16 %v1648, %v1646
        %v1705 = vpack.c.b16 %v1649, %v1647
        %v1706 = vpack.c.b16 %v1652, %v1650
        %v1707 = vpack.c.b16 %v1653, %v1651
        %v1708 = vpack.c.b16 %v1656, %v1654
        %v1709 = vpack.c.b16 %v1657, %v1655
        %v1710 = vpack.c.b16 %v1660, %v1658
        %v1711 = vpack.c.b16 %v1661, %v1659
        %v1712 = vpack.c.b16 %v1664, %v1662
        %v1713 = vpack.c.b16 %v1665, %v1663
        %v1714 = vpack.c.b16 %v1668, %v1666
        %v1715 = vpack.c.b16 %v1669, %v1667
        %v1716 = vpack.c.b16 %v1672, %v1670
        %v1717 = vpack.c.b16 %v1673, %v1671
        %v1718 = vpack.c.b16 %v1676, %v1674
        %v1719 = vpack.c.b16 %v1677, %v1675
        %v1720 = vpack.c.b16 %v1680, %v1678
        %v1721 = vpack.c.b16 %v1681, %v1679
        %v1722 = vpack.c.b16 %v1684, %v1682
        %v1723 = vpack.c.b16 %v1685, %v1683
        %v1724 = vpack.c.b16 %v1688, %v1686
        %v1725 = vpack.c.b16 %v1689, %v1687
        %v1726 = vpack.c.b16 %v1692, %v1690
        %v1727 = vpack.c.b16 %v1693, %v1691
        %v1728 = vpack.c.b16 %v1696, %v1694
        %v1729 = vpack.c.b16 %v1697, %v1695
        %1762 = vmatprep.subr.bf16.mxu0 %v1713
        %1763 = vmatpush1.bf16.msra.mxu0 %v1712
        %1764 = vmatprep.subr.bf16.mxu0 %v1711
        %1765 = vmatpush1.bf16.msra.mxu0 %v1710
        %1766 = vmatprep.subr.bf16.mxu0 %v1709
        %1767 = vmatpush1.bf16.msra.mxu0 %v1708
        %1768 = vmatprep.subr.bf16.mxu0 %v1707
        %1769 = vmatpush1.bf16.msra.mxu0 %v1706
        %1770 = vmatprep.subr.bf16.mxu0 %v1705
        %1771 = vmatpush1.bf16.msra.mxu0 %v1704
        %1772 = vmatprep.subr.bf16.mxu0 %v1703
        %1773 = vmatpush1.bf16.msra.mxu0 %v1702
        %1774 = vmatprep.subr.bf16.mxu0 %v1701
        %1775 = vmatpush1.bf16.msra.mxu0 %v1700
        %1776 = vmatprep.subr.bf16.mxu0 %v1699
        %1777 = vmatpush1.bf16.msra.mxu0 %v1698
        %1778 = vmatprep.subr.bf16.mxu0 %v1729
        %1779 = vmatpush2.bf16.msra.mxu0 %v1728
        %1780 = vmatprep.subr.bf16.mxu0 %v1727
        %1781 = vmatpush2.bf16.msra.mxu0 %v1726
        %1782 = vmatprep.subr.bf16.mxu0 %v1725
        %1783 = vmatpush2.bf16.msra.mxu0 %v1724
        %1784 = vmatprep.subr.bf16.mxu0 %v1723
        %1785 = vmatpush2.bf16.msra.mxu0 %v1722
        %1786 = vmatprep.subr.bf16.mxu0 %v1721
        %1787 = vmatpush2.bf16.msra.mxu0 %v1720
        %1788 = vmatprep.subr.bf16.mxu0 %v1719
        %1789 = vmatpush2.bf16.msra.mxu0 %v1718
        %1790 = vmatprep.subr.bf16.mxu0 %v1717
        %1791 = vmatpush2.bf16.msra.mxu0 %v1716
        %1792 = vmatprep.subr.bf16.mxu0 %v1715
        %1793 = vmatpush2.bf16.msra.mxu0 %v1714
        %1794 = vmatprep.mubr.bf16.mxu0 %v1588
        %1795 = vmatmul.mubr.bf16.gmra.mxu0 %v1587
        %v1796 = vpop.f32.mrf.mxu0
        %v1797 = vadd.f32 %v1595, %v1796
        %v1798 = vpop.f32.mrf.mxu0
        %v1799 = vadd.f32 %v1599, %v1798
        %v1800 = vpop.f32.mrf.mxu0
        %v1801 = vadd.f32 %v1595, %v1800
        %v1802 = vpop.f32.mrf.mxu0
        %v1803 = vadd.f32 %v1599, %v1802
        %1804 = vmatprep.mubr.bf16.mxu0 %v1590
        %1805 = vmatmul.mubr.bf16.gmra.mxu0 %v1589
        %v1806 = vpop.f32.mrf.mxu0
        %v1807 = vadd.f32 %v1595, %v1806
        %v1808 = vpop.f32.mrf.mxu0
        %v1809 = vadd.f32 %v1599, %v1808
        %v1810 = vpop.f32.mrf.mxu0
        %v1811 = vadd.f32 %v1595, %v1810
        %v1812 = vpop.f32.mrf.mxu0
        %v1813 = vadd.f32 %v1599, %v1812
        %1814 = vdwg.mxu0
        %v1815 = vmul.f32 %v1797, 0.5
        %v1816 = vmul.f32 %v1799, 0.5
        %v1817 = vmul.f32 %v1801, 0.5
        %v1818 = vmul.f32 %v1803, 0.5
        %v1819 = vmul.f32 %v1807, 0.5
        %v1820 = vmul.f32 %v1809, 0.5
        %v1821 = vmul.f32 %v1811, 0.5
        %v1822 = vmul.f32 %v1813, 0.5
        %v1823 = vmul.f32 %v1797, %v1797
        %v1824 = vmul.f32 %v1799, %v1799
        %v1825 = vmul.f32 %v1801, %v1801
        %v1826 = vmul.f32 %v1803, %v1803
        %v1827 = vmul.f32 %v1807, %v1807
        %v1828 = vmul.f32 %v1809, %v1809
        %v1829 = vmul.f32 %v1811, %v1811
        %v1830 = vmul.f32 %v1813, %v1813
        %v1831 = vmul.f32 %v1823, 0.035677407
        %v1832 = vmul.f32 %v1824, 0.035677407
        %v1833 = vmul.f32 %v1825, 0.035677407
        %v1834 = vmul.f32 %v1826, 0.035677407
        %v1835 = vmul.f32 %v1827, 0.035677407
        %v1836 = vmul.f32 %v1828, 0.035677407
        %v1837 = vmul.f32 %v1829, 0.035677407
        %v1838 = vmul.f32 %v1830, 0.035677407
        %v1839 = vadd.f32 %v1831, 0.7978846
        %v1840 = vadd.f32 %v1832, 0.7978846
        %v1841 = vadd.f32 %v1833, 0.7978846
        %v1842 = vadd.f32 %v1834, 0.7978846
        %v1843 = vadd.f32 %v1835, 0.7978846
        %v1844 = vadd.f32 %v1836, 0.7978846
        %v1845 = vadd.f32 %v1837, 0.7978846
        %v1846 = vadd.f32 %v1838, 0.7978846
        %v1847 = vmul.f32 %v1797, %v1839
        %v1848 = vmul.f32 %v1799, %v1840
        %v1849 = vmul.f32 %v1801, %v1841
        %v1850 = vmul.f32 %v1803, %v1842
        %v1851 = vmul.f32 %v1807, %v1843
        %v1852 = vmul.f32 %v1809, %v1844
        %v1853 = vmul.f32 %v1811, %v1845
        %v1854 = vmul.f32 %v1813, %v1846
        %v1855 = vtanh.pop %v1847
        %v1856 = vtanh.pop %v1848
        %v1857 = vtanh.pop %v1849
        %v1858 = vtanh.pop %v1850
        %v1859 = vtanh.pop %v1851
        %v1860 = vtanh.pop %v1852
        %v1861 = vtanh.pop %v1853
        %v1862 = vtanh.pop %v1854
        %v1863 = vmul.f32 %v1815, %v1855
        %v1864 = vmul.f32 %v1816, %v1856
        %v1865 = vmul.f32 %v1817, %v1857
        %v1866 = vmul.f32 %v1818, %v1858
        %v1867 = vmul.f32 %v1819, %v1859
        %v1868 = vmul.f32 %v1820, %v1860
        %v1869 = vmul.f32 %v1821, %v1861
        %v1870 = vmul.f32 %v1822, %v1862
        %v1871 = vadd.f32 %v1815, %v1863
        %v1872 = vadd.f32 %v1816, %v1864
        %v1873 = vadd.f32 %v1817, %v1865
        %v1874 = vadd.f32 %v1818, %v1866
        %v1875 = vadd.f32 %v1819, %v1867
        %v1876 = vadd.f32 %v1820, %v1868
        %v1877 = vadd.f32 %v1821, %v1869
        %v1878 = vadd.f32 %v1822, %v1870
        %v1879 = vpack.c.bf16 %v1546, %v1544
        %v1880 = vpack.c.bf16 %v1547, %v1545
        %v1881 = vpack.c.bf16 %v1550, %v1548
        %v1882 = vpack.c.bf16 %v1551, %v1549
        %1883 = vmatprep.subr.bf16.mxu0 %v1713
        %1884 = vmatpush1.bf16.msra.mxu0 %v1712
        %1885 = vmatprep.subr.bf16.mxu0 %v1711
        %1886 = vmatpush1.bf16.msra.mxu0 %v1710
        %1887 = vmatprep.subr.bf16.mxu0 %v1709
        %1888 = vmatpush1.bf16.msra.mxu0 %v1708
        %1889 = vmatprep.subr.bf16.mxu0 %v1707
        %1890 = vmatpush1.bf16.msra.mxu0 %v1706
        %1891 = vmatprep.subr.bf16.mxu0 %v1705
        %1892 = vmatpush1.bf16.msra.mxu0 %v1704
        %1893 = vmatprep.subr.bf16.mxu0 %v1703
        %1894 = vmatpush1.bf16.msra.mxu0 %v1702
        %1895 = vmatprep.subr.bf16.mxu0 %v1701
        %1896 = vmatpush1.bf16.msra.mxu0 %v1700
        %1897 = vmatprep.subr.bf16.mxu0 %v1699
        %1898 = vmatpush1.bf16.msra.mxu0 %v1698
        %1899 = vmatprep.subr.bf16.mxu0 %v1729
        %1900 = vmatpush2.bf16.msra.mxu0 %v1728
        %1901 = vmatprep.subr.bf16.mxu0 %v1727
        %1902 = vmatpush2.bf16.msra.mxu0 %v1726
        %1903 = vmatprep.subr.bf16.mxu0 %v1725
        %1904 = vmatpush2.bf16.msra.mxu0 %v1724
        %1905 = vmatprep.subr.bf16.mxu0 %v1723
        %1906 = vmatpush2.bf16.msra.mxu0 %v1722
        %1907 = vmatprep.subr.bf16.mxu0 %v1721
        %1908 = vmatpush2.bf16.msra.mxu0 %v1720
        %1909 = vmatprep.subr.bf16.mxu0 %v1719
        %1910 = vmatpush2.bf16.msra.mxu0 %v1718
        %1911 = vmatprep.subr.bf16.mxu0 %v1717
        %1912 = vmatpush2.bf16.msra.mxu0 %v1716
        %1913 = vmatprep.subr.bf16.mxu0 %v1715
        %1914 = vmatpush2.bf16.msra.mxu0 %v1714
        %1915 = vmatprep.mubr.bf16.mxu0 %v1880
        %1916 = vmatmul.mubr.bf16.gmra.mxu0 %v1879
        %v1917 = vpop.f32.mrf.mxu0
        %v1918 = vadd.f32 %v1595, %v1917
        %v1919 = vpop.f32.mrf.mxu0
        %v1920 = vadd.f32 %v1599, %v1919
        %v1921 = vpop.f32.mrf.mxu0
        %v1922 = vadd.f32 %v1595, %v1921
        %v1923 = vpop.f32.mrf.mxu0
        %v1924 = vadd.f32 %v1599, %v1923
        %1925 = vmatprep.mubr.bf16.mxu0 %v1882
        %1926 = vmatmul.mubr.bf16.gmra.mxu0 %v1881
        %v1927 = vpop.f32.mrf.mxu0
        %v1928 = vadd.f32 %v1595, %v1927
        %v1929 = vpop.f32.mrf.mxu0
        %v1930 = vadd.f32 %v1599, %v1929
        %v1931 = vpop.f32.mrf.mxu0
        %v1932 = vadd.f32 %v1595, %v1931
        %v1933 = vpop.f32.mrf.mxu0
        %v1934 = vadd.f32 %v1599, %v1933
        %1935 = vdwg.mxu0
        %v1936 = vmul.f32 %v1918, 0.5
        %v1937 = vmul.f32 %v1920, 0.5
        %v1938 = vmul.f32 %v1922, 0.5
        %v1939 = vmul.f32 %v1924, 0.5
        %v1940 = vmul.f32 %v1928, 0.5
        %v1941 = vmul.f32 %v1930, 0.5
        %v1942 = vmul.f32 %v1932, 0.5
        %v1943 = vmul.f32 %v1934, 0.5
        %v1944 = vmul.f32 %v1918, %v1918
        %v1945 = vmul.f32 %v1920, %v1920
        %v1946 = vmul.f32 %v1922, %v1922
        %v1947 = vmul.f32 %v1924, %v1924
        %v1948 = vmul.f32 %v1928, %v1928
        %v1949 = vmul.f32 %v1930, %v1930
        %v1950 = vmul.f32 %v1932, %v1932
        %v1951 = vmul.f32 %v1934, %v1934
        %v1952 = vmul.f32 %v1944, 0.035677407
        %v1953 = vmul.f32 %v1945, 0.035677407
        %v1954 = vmul.f32 %v1946, 0.035677407
        %v1955 = vmul.f32 %v1947, 0.035677407
        %v1956 = vmul.f32 %v1948, 0.035677407
        %v1957 = vmul.f32 %v1949, 0.035677407
        %v1958 = vmul.f32 %v1950, 0.035677407
        %v1959 = vmul.f32 %v1951, 0.035677407
        %v1960 = vadd.f32 %v1952, 0.7978846
        %v1961 = vadd.f32 %v1953, 0.7978846
        %v1962 = vadd.f32 %v1954, 0.7978846
        %v1963 = vadd.f32 %v1955, 0.7978846
        %v1964 = vadd.f32 %v1956, 0.7978846
        %v1965 = vadd.f32 %v1957, 0.7978846
        %v1966 = vadd.f32 %v1958, 0.7978846
        %v1967 = vadd.f32 %v1959, 0.7978846
        %v1968 = vmul.f32 %v1918, %v1960
        %v1969 = vmul.f32 %v1920, %v1961
        %v1970 = vmul.f32 %v1922, %v1962
        %v1971 = vmul.f32 %v1924, %v1963
        %v1972 = vmul.f32 %v1928, %v1964
        %v1973 = vmul.f32 %v1930, %v1965
        %v1974 = vmul.f32 %v1932, %v1966
        %v1975 = vmul.f32 %v1934, %v1967
        %v1976 = vtanh.pop %v1968
        %v1977 = vtanh.pop %v1969
        %v1978 = vtanh.pop %v1970
        %v1979 = vtanh.pop %v1971
        %v1980 = vtanh.pop %v1972
        %v1981 = vtanh.pop %v1973
        %v1982 = vtanh.pop %v1974
        %v1983 = vtanh.pop %v1975
        %v1984 = vmul.f32 %v1936, %v1976
        %v1985 = vmul.f32 %v1937, %v1977
        %v1986 = vmul.f32 %v1938, %v1978
        %v1987 = vmul.f32 %v1939, %v1979
        %v1988 = vmul.f32 %v1940, %v1980
        %v1989 = vmul.f32 %v1941, %v1981
        %v1990 = vmul.f32 %v1942, %v1982
        %v1991 = vmul.f32 %v1943, %v1983
        %v1992 = vadd.f32 %v1936, %v1984
        %v1993 = vadd.f32 %v1937, %v1985
        %v1994 = vadd.f32 %v1938, %v1986
        %v1995 = vadd.f32 %v1939, %v1987
        %v1996 = vadd.f32 %v1940, %v1988
        %v1997 = vadd.f32 %v1941, %v1989
        %v1998 = vadd.f32 %v1942, %v1990
        %v1999 = vadd.f32 %v1943, %v1991
        %s2000 = scalar_lea.vmem %s344, 768
        %v2001 = vld [vmem:[%s2000] sm:$0xff]
        %v2002 = vld [vmem:[%s2000 + $0x8] sm:$0xff]
        %v2003 = vld [vmem:[%s2000 + $0x10] sm:$0xff]
        %v2004 = vld [vmem:[%s2000 + $0x18] sm:$0xff]
        %v2005 = vld [vmem:[%s2000 + $0x20] sm:$0xff]
        %v2006 = vld [vmem:[%s2000 + $0x28] sm:$0xff]
        %v2007 = vld [vmem:[%s2000 + $0x30] sm:$0xff]
        %v2008 = vld [vmem:[%s2000 + $0x38] sm:$0xff]
        %v2009 = vld [vmem:[%s2000 + $0x40] sm:$0xff]
        %v2010 = vld [vmem:[%s2000 + $0x48] sm:$0xff]
        %v2011 = vld [vmem:[%s2000 + $0x50] sm:$0xff]
        %v2012 = vld [vmem:[%s2000 + $0x58] sm:$0xff]
        %v2013 = vld [vmem:[%s2000 + $0x60] sm:$0xff]
        %v2014 = vld [vmem:[%s2000 + $0x68] sm:$0xff]
        %v2015 = vld [vmem:[%s2000 + $0x70] sm:$0xff]
        %v2016 = vld [vmem:[%s2000 + $0x78] sm:$0xff]
        %v2017 = vld [vmem:[%s2000 + $0x80] sm:$0xff]
        %v2018 = vld [vmem:[%s2000 + $0x88] sm:$0xff]
        %v2019 = vld [vmem:[%s2000 + $0x90] sm:$0xff]
        %v2020 = vld [vmem:[%s2000 + $0x98] sm:$0xff]
        %v2021 = vld [vmem:[%s2000 + $0xa0] sm:$0xff]
        %v2022 = vld [vmem:[%s2000 + $0xa8] sm:$0xff]
        %v2023 = vld [vmem:[%s2000 + $0xb0] sm:$0xff]
        %v2024 = vld [vmem:[%s2000 + $0xb8] sm:$0xff]
        %v2025 = vld [vmem:[%s2000 + $0xc0] sm:$0xff]
        %v2026 = vld [vmem:[%s2000 + $0xc8] sm:$0xff]
        %v2027 = vld [vmem:[%s2000 + $0xd0] sm:$0xff]
        %v2028 = vld [vmem:[%s2000 + $0xd8] sm:$0xff]
        %v2029 = vld [vmem:[%s2000 + $0xe0] sm:$0xff]
        %v2030 = vld [vmem:[%s2000 + $0xe8] sm:$0xff]
        %v2031 = vld [vmem:[%s2000 + $0xf0] sm:$0xff]
        %v2032 = vld [vmem:[%s2000 + $0xf8] sm:$0xff]
        %s2033 = scalar_lea.vmem %s349, 3
        %v2034 = vld [vmem:[%s2033] ss:$8 sm:$0x3]
        %v2035 = vpack.c.bf16 %v1873, %v1871
        %v2036 = vpack.c.bf16 %v1874, %v1872
        %v2037 = vpack.c.bf16 %v1877, %v1875
        %v2038 = vpack.c.bf16 %v1878, %v1876
        %v2040 = vlaneseq
        %v2041 = vshrl.u32 %v2040, 7
        %v2042 = vsub.s32 0, %v2041
        %v2043 = vrot.slane %v2034, %v2042
        %v2044 = vlaneseq
        %v2045 = vshrl.u32 %v2044, 7
        %v2046 = vsub.s32 1, %v2045
        %v2047 = vrot.slane %v2034, %v2046
        %v2082 = vunpack.c.l.b16 %v2001
        %v2083 = vunpack.c.h.b16 %v2001
        %v2084 = vunpack.c.l.b16 %v2002
        %v2085 = vunpack.c.h.b16 %v2002
        %v2086 = vunpack.c.l.b16 %v2003
        %v2087 = vunpack.c.h.b16 %v2003
        %v2088 = vunpack.c.l.b16 %v2004
        %v2089 = vunpack.c.h.b16 %v2004
        %v2090 = vunpack.c.l.b16 %v2005
        %v2091 = vunpack.c.h.b16 %v2005
        %v2092 = vunpack.c.l.b16 %v2006
        %v2093 = vunpack.c.h.b16 %v2006
        %v2094 = vunpack.c.l.b16 %v2007
        %v2095 = vunpack.c.h.b16 %v2007
        %v2096 = vunpack.c.l.b16 %v2008
        %v2097 = vunpack.c.h.b16 %v2008
        %v2098 = vunpack.c.l.b16 %v2009
        %v2099 = vunpack.c.h.b16 %v2009
        %v2100 = vunpack.c.l.b16 %v2010
        %v2101 = vunpack.c.h.b16 %v2010
        %v2102 = vunpack.c.l.b16 %v2011
        %v2103 = vunpack.c.h.b16 %v2011
        %v2104 = vunpack.c.l.b16 %v2012
        %v2105 = vunpack.c.h.b16 %v2012
        %v2106 = vunpack.c.l.b16 %v2013
        %v2107 = vunpack.c.h.b16 %v2013
        %v2108 = vunpack.c.l.b16 %v2014
        %v2109 = vunpack.c.h.b16 %v2014
        %v2110 = vunpack.c.l.b16 %v2015
        %v2111 = vunpack.c.h.b16 %v2015
        %v2112 = vunpack.c.l.b16 %v2016
        %v2113 = vunpack.c.h.b16 %v2016
        %v2114 = vunpack.c.l.b16 %v2017
        %v2115 = vunpack.c.h.b16 %v2017
        %v2116 = vunpack.c.l.b16 %v2018
        %v2117 = vunpack.c.h.b16 %v2018
        %v2118 = vunpack.c.l.b16 %v2019
        %v2119 = vunpack.c.h.b16 %v2019
        %v2120 = vunpack.c.l.b16 %v2020
        %v2121 = vunpack.c.h.b16 %v2020
        %v2122 = vunpack.c.l.b16 %v2021
        %v2123 = vunpack.c.h.b16 %v2021
        %v2124 = vunpack.c.l.b16 %v2022
        %v2125 = vunpack.c.h.b16 %v2022
        %v2126 = vunpack.c.l.b16 %v2023
        %v2127 = vunpack.c.h.b16 %v2023
        %v2128 = vunpack.c.l.b16 %v2024
        %v2129 = vunpack.c.h.b16 %v2024
        %v2130 = vunpack.c.l.b16 %v2025
        %v2131 = vunpack.c.h.b16 %v2025
        %v2132 = vunpack.c.l.b16 %v2026
        %v2133 = vunpack.c.h.b16 %v2026
        %v2134 = vunpack.c.l.b16 %v2027
        %v2135 = vunpack.c.h.b16 %v2027
        %v2136 = vunpack.c.l.b16 %v2028
        %v2137 = vunpack.c.h.b16 %v2028
        %v2138 = vunpack.c.l.b16 %v2029
        %v2139 = vunpack.c.h.b16 %v2029
        %v2140 = vunpack.c.l.b16 %v2030
        %v2141 = vunpack.c.h.b16 %v2030
        %v2142 = vunpack.c.l.b16 %v2031
        %v2143 = vunpack.c.h.b16 %v2031
        %v2144 = vunpack.c.l.b16 %v2032
        %v2145 = vunpack.c.h.b16 %v2032
        %v2146 = vpack.c.b16 %v2084, %v2082
        %v2147 = vpack.c.b16 %v2085, %v2083
        %v2148 = vpack.c.b16 %v2088, %v2086
        %v2149 = vpack.c.b16 %v2089, %v2087
        %v2150 = vpack.c.b16 %v2092, %v2090
        %v2151 = vpack.c.b16 %v2093, %v2091
        %v2152 = vpack.c.b16 %v2096, %v2094
        %v2153 = vpack.c.b16 %v2097, %v2095
        %v2154 = vpack.c.b16 %v2100, %v2098
        %v2155 = vpack.c.b16 %v2101, %v2099
        %v2156 = vpack.c.b16 %v2104, %v2102
        %v2157 = vpack.c.b16 %v2105, %v2103
        %v2158 = vpack.c.b16 %v2108, %v2106
        %v2159 = vpack.c.b16 %v2109, %v2107
        %v2160 = vpack.c.b16 %v2112, %v2110
        %v2161 = vpack.c.b16 %v2113, %v2111
        %v2162 = vpack.c.b16 %v2116, %v2114
        %v2163 = vpack.c.b16 %v2117, %v2115
        %v2164 = vpack.c.b16 %v2120, %v2118
        %v2165 = vpack.c.b16 %v2121, %v2119
        %v2166 = vpack.c.b16 %v2124, %v2122
        %v2167 = vpack.c.b16 %v2125, %v2123
        %v2168 = vpack.c.b16 %v2128, %v2126
        %v2169 = vpack.c.b16 %v2129, %v2127
        %v2170 = vpack.c.b16 %v2132, %v2130
        %v2171 = vpack.c.b16 %v2133, %v2131
        %v2172 = vpack.c.b16 %v2136, %v2134
        %v2173 = vpack.c.b16 %v2137, %v2135
        %v2174 = vpack.c.b16 %v2140, %v2138
        %v2175 = vpack.c.b16 %v2141, %v2139
        %v2176 = vpack.c.b16 %v2144, %v2142
        %v2177 = vpack.c.b16 %v2145, %v2143
        %2210 = vmatprep.subr.bf16.mxu0 %v2161
        %2211 = vmatpush1.bf16.msra.mxu0 %v2160
        %2212 = vmatprep.subr.bf16.mxu0 %v2159
        %2213 = vmatpush1.bf16.msra.mxu0 %v2158
        %2214 = vmatprep.subr.bf16.mxu0 %v2157
        %2215 = vmatpush1.bf16.msra.mxu0 %v2156
        %2216 = vmatprep.subr.bf16.mxu0 %v2155
        %2217 = vmatpush1.bf16.msra.mxu0 %v2154
        %2218 = vmatprep.subr.bf16.mxu0 %v2153
        %2219 = vmatpush1.bf16.msra.mxu0 %v2152
        %2220 = vmatprep.subr.bf16.mxu0 %v2151
        %2221 = vmatpush1.bf16.msra.mxu0 %v2150
        %2222 = vmatprep.subr.bf16.mxu0 %v2149
        %2223 = vmatpush1.bf16.msra.mxu0 %v2148
        %2224 = vmatprep.subr.bf16.mxu0 %v2147
        %2225 = vmatpush1.bf16.msra.mxu0 %v2146
        %2226 = vmatprep.subr.bf16.mxu0 %v2177
        %2227 = vmatpush2.bf16.msra.mxu0 %v2176
        %2228 = vmatprep.subr.bf16.mxu0 %v2175
        %2229 = vmatpush2.bf16.msra.mxu0 %v2174
        %2230 = vmatprep.subr.bf16.mxu0 %v2173
        %2231 = vmatpush2.bf16.msra.mxu0 %v2172
        %2232 = vmatprep.subr.bf16.mxu0 %v2171
        %2233 = vmatpush2.bf16.msra.mxu0 %v2170
        %2234 = vmatprep.subr.bf16.mxu0 %v2169
        %2235 = vmatpush2.bf16.msra.mxu0 %v2168
        %2236 = vmatprep.subr.bf16.mxu0 %v2167
        %2237 = vmatpush2.bf16.msra.mxu0 %v2166
        %2238 = vmatprep.subr.bf16.mxu0 %v2165
        %2239 = vmatpush2.bf16.msra.mxu0 %v2164
        %2240 = vmatprep.subr.bf16.mxu0 %v2163
        %2241 = vmatpush2.bf16.msra.mxu0 %v2162
        %2242 = vmatprep.mubr.bf16.mxu0 %v2036
        %2243 = vmatmul.mubr.bf16.gmra.mxu0 %v2035
        %v2244 = vpop.f32.mrf.mxu0
        %v2245 = vadd.f32 %v2043, %v2244
        %v2246 = vpop.f32.mrf.mxu0
        %v2247 = vadd.f32 %v2047, %v2246
        %v2248 = vpop.f32.mrf.mxu0
        %v2249 = vadd.f32 %v2043, %v2248
        %v2250 = vpop.f32.mrf.mxu0
        %v2251 = vadd.f32 %v2047, %v2250
        %2252 = vmatprep.mubr.bf16.mxu0 %v2038
        %2253 = vmatmul.mubr.bf16.gmra.mxu0 %v2037
        %v2254 = vpop.f32.mrf.mxu0
        %v2255 = vadd.f32 %v2043, %v2254
        %v2256 = vpop.f32.mrf.mxu0
        %v2257 = vadd.f32 %v2047, %v2256
        %v2258 = vpop.f32.mrf.mxu0
        %v2259 = vadd.f32 %v2043, %v2258
        %v2260 = vpop.f32.mrf.mxu0
        %v2261 = vadd.f32 %v2047, %v2260
        %2262 = vdwg.mxu0
        %v2263 = vmul.f32 %v2245, 0.5
        %v2264 = vmul.f32 %v2247, 0.5
        %v2265 = vmul.f32 %v2249, 0.5
        %v2266 = vmul.f32 %v2251, 0.5
        %v2267 = vmul.f32 %v2255, 0.5
        %v2268 = vmul.f32 %v2257, 0.5
        %v2269 = vmul.f32 %v2259, 0.5
        %v2270 = vmul.f32 %v2261, 0.5
        %v2271 = vmul.f32 %v2245, %v2245
        %v2272 = vmul.f32 %v2247, %v2247
        %v2273 = vmul.f32 %v2249, %v2249
        %v2274 = vmul.f32 %v2251, %v2251
        %v2275 = vmul.f32 %v2255, %v2255
        %v2276 = vmul.f32 %v2257, %v2257
        %v2277 = vmul.f32 %v2259, %v2259
        %v2278 = vmul.f32 %v2261, %v2261
        %v2279 = vmul.f32 %v2271, 0.035677407
        %v2280 = vmul.f32 %v2272, 0.035677407
        %v2281 = vmul.f32 %v2273, 0.035677407
        %v2282 = vmul.f32 %v2274, 0.035677407
        %v2283 = vmul.f32 %v2275, 0.035677407
        %v2284 = vmul.f32 %v2276, 0.035677407
        %v2285 = vmul.f32 %v2277, 0.035677407
        %v2286 = vmul.f32 %v2278, 0.035677407
        %v2287 = vadd.f32 %v2279, 0.7978846
        %v2288 = vadd.f32 %v2280, 0.7978846
        %v2289 = vadd.f32 %v2281, 0.7978846
        %v2290 = vadd.f32 %v2282, 0.7978846
        %v2291 = vadd.f32 %v2283, 0.7978846
        %v2292 = vadd.f32 %v2284, 0.7978846
        %v2293 = vadd.f32 %v2285, 0.7978846
        %v2294 = vadd.f32 %v2286, 0.7978846
        %v2295 = vmul.f32 %v2245, %v2287
        %v2296 = vmul.f32 %v2247, %v2288
        %v2297 = vmul.f32 %v2249, %v2289
        %v2298 = vmul.f32 %v2251, %v2290
        %v2299 = vmul.f32 %v2255, %v2291
        %v2300 = vmul.f32 %v2257, %v2292
        %v2301 = vmul.f32 %v2259, %v2293
        %v2302 = vmul.f32 %v2261, %v2294
        %v2303 = vtanh.pop %v2295
        %v2304 = vtanh.pop %v2296
        %v2305 = vtanh.pop %v2297
        %v2306 = vtanh.pop %v2298
        %v2307 = vtanh.pop %v2299
        %v2308 = vtanh.pop %v2300
        %v2309 = vtanh.pop %v2301
        %v2310 = vtanh.pop %v2302
        %v2311 = vmul.f32 %v2263, %v2303
        %v2312 = vmul.f32 %v2264, %v2304
        %v2313 = vmul.f32 %v2265, %v2305
        %v2314 = vmul.f32 %v2266, %v2306
        %v2315 = vmul.f32 %v2267, %v2307
        %v2316 = vmul.f32 %v2268, %v2308
        %v2317 = vmul.f32 %v2269, %v2309
        %v2318 = vmul.f32 %v2270, %v2310
        %v2319 = vadd.f32 %v2263, %v2311
        %v2320 = vadd.f32 %v2264, %v2312
        %v2321 = vadd.f32 %v2265, %v2313
        %v2322 = vadd.f32 %v2266, %v2314
        %v2323 = vadd.f32 %v2267, %v2315
        %v2324 = vadd.f32 %v2268, %v2316
        %v2325 = vadd.f32 %v2269, %v2317
        %v2326 = vadd.f32 %v2270, %v2318
        %v2327 = vpack.c.bf16 %v1994, %v1992
        %v2328 = vpack.c.bf16 %v1995, %v1993
        %v2329 = vpack.c.bf16 %v1998, %v1996
        %v2330 = vpack.c.bf16 %v1999, %v1997
        %2331 = vmatprep.subr.bf16.mxu0 %v2161
        %2332 = vmatpush1.bf16.msra.mxu0 %v2160
        %2333 = vmatprep.subr.bf16.mxu0 %v2159
        %2334 = vmatpush1.bf16.msra.mxu0 %v2158
        %2335 = vmatprep.subr.bf16.mxu0 %v2157
        %2336 = vmatpush1.bf16.msra.mxu0 %v2156
        %2337 = vmatprep.subr.bf16.mxu0 %v2155
        %2338 = vmatpush1.bf16.msra.mxu0 %v2154
        %2339 = vmatprep.subr.bf16.mxu0 %v2153
        %2340 = vmatpush1.bf16.msra.mxu0 %v2152
        %2341 = vmatprep.subr.bf16.mxu0 %v2151
        %2342 = vmatpush1.bf16.msra.mxu0 %v2150
        %2343 = vmatprep.subr.bf16.mxu0 %v2149
        %2344 = vmatpush1.bf16.msra.mxu0 %v2148
        %2345 = vmatprep.subr.bf16.mxu0 %v2147
        %2346 = vmatpush1.bf16.msra.mxu0 %v2146
        %2347 = vmatprep.subr.bf16.mxu0 %v2177
        %2348 = vmatpush2.bf16.msra.mxu0 %v2176
        %2349 = vmatprep.subr.bf16.mxu0 %v2175
        %2350 = vmatpush2.bf16.msra.mxu0 %v2174
        %2351 = vmatprep.subr.bf16.mxu0 %v2173
        %2352 = vmatpush2.bf16.msra.mxu0 %v2172
        %2353 = vmatprep.subr.bf16.mxu0 %v2171
        %2354 = vmatpush2.bf16.msra.mxu0 %v2170
        %2355 = vmatprep.subr.bf16.mxu0 %v2169
        %2356 = vmatpush2.bf16.msra.mxu0 %v2168
        %2357 = vmatprep.subr.bf16.mxu0 %v2167
        %2358 = vmatpush2.bf16.msra.mxu0 %v2166
        %2359 = vmatprep.subr.bf16.mxu0 %v2165
        %2360 = vmatpush2.bf16.msra.mxu0 %v2164
        %2361 = vmatprep.subr.bf16.mxu0 %v2163
        %2362 = vmatpush2.bf16.msra.mxu0 %v2162
        %2363 = vmatprep.mubr.bf16.mxu0 %v2328
        %2364 = vmatmul.mubr.bf16.gmra.mxu0 %v2327
        %v2365 = vpop.f32.mrf.mxu0
        %v2366 = vadd.f32 %v2043, %v2365
        %v2367 = vpop.f32.mrf.mxu0
        %v2368 = vadd.f32 %v2047, %v2367
        %v2369 = vpop.f32.mrf.mxu0
        %v2370 = vadd.f32 %v2043, %v2369
        %v2371 = vpop.f32.mrf.mxu0
        %v2372 = vadd.f32 %v2047, %v2371
        %2373 = vmatprep.mubr.bf16.mxu0 %v2330
        %2374 = vmatmul.mubr.bf16.gmra.mxu0 %v2329
        %v2375 = vpop.f32.mrf.mxu0
        %v2376 = vadd.f32 %v2043, %v2375
        %v2377 = vpop.f32.mrf.mxu0
        %v2378 = vadd.f32 %v2047, %v2377
        %v2379 = vpop.f32.mrf.mxu0
        %v2380 = vadd.f32 %v2043, %v2379
        %v2381 = vpop.f32.mrf.mxu0
        %v2382 = vadd.f32 %v2047, %v2381
        %2383 = vdwg.mxu0
        %v2384 = vmul.f32 %v2366, 0.5
        %v2385 = vmul.f32 %v2368, 0.5
        %v2386 = vmul.f32 %v2370, 0.5
        %v2387 = vmul.f32 %v2372, 0.5
        %v2388 = vmul.f32 %v2376, 0.5
        %v2389 = vmul.f32 %v2378, 0.5
        %v2390 = vmul.f32 %v2380, 0.5
        %v2391 = vmul.f32 %v2382, 0.5
        %v2392 = vmul.f32 %v2366, %v2366
        %v2393 = vmul.f32 %v2368, %v2368
        %v2394 = vmul.f32 %v2370, %v2370
        %v2395 = vmul.f32 %v2372, %v2372
        %v2396 = vmul.f32 %v2376, %v2376
        %v2397 = vmul.f32 %v2378, %v2378
        %v2398 = vmul.f32 %v2380, %v2380
        %v2399 = vmul.f32 %v2382, %v2382
        %v2400 = vmul.f32 %v2392, 0.035677407
        %v2401 = vmul.f32 %v2393, 0.035677407
        %v2402 = vmul.f32 %v2394, 0.035677407
        %v2403 = vmul.f32 %v2395, 0.035677407
        %v2404 = vmul.f32 %v2396, 0.035677407
        %v2405 = vmul.f32 %v2397, 0.035677407
        %v2406 = vmul.f32 %v2398, 0.035677407
        %v2407 = vmul.f32 %v2399, 0.035677407
        %v2408 = vadd.f32 %v2400, 0.7978846
        %v2409 = vadd.f32 %v2401, 0.7978846
        %v2410 = vadd.f32 %v2402, 0.7978846
        %v2411 = vadd.f32 %v2403, 0.7978846
        %v2412 = vadd.f32 %v2404, 0.7978846
        %v2413 = vadd.f32 %v2405, 0.7978846
        %v2414 = vadd.f32 %v2406, 0.7978846
        %v2415 = vadd.f32 %v2407, 0.7978846
        %v2416 = vmul.f32 %v2366, %v2408
        %v2417 = vmul.f32 %v2368, %v2409
        %v2418 = vmul.f32 %v2370, %v2410
        %v2419 = vmul.f32 %v2372, %v2411
        %v2420 = vmul.f32 %v2376, %v2412
        %v2421 = vmul.f32 %v2378, %v2413
        %v2422 = vmul.f32 %v2380, %v2414
        %v2423 = vmul.f32 %v2382, %v2415
        %v2424 = vtanh.pop %v2416
        %v2425 = vtanh.pop %v2417
        %v2426 = vtanh.pop %v2418
        %v2427 = vtanh.pop %v2419
        %v2428 = vtanh.pop %v2420
        %v2429 = vtanh.pop %v2421
        %v2430 = vtanh.pop %v2422
        %v2431 = vtanh.pop %v2423
        %v2432 = vmul.f32 %v2384, %v2424
        %v2433 = vmul.f32 %v2385, %v2425
        %v2434 = vmul.f32 %v2386, %v2426
        %v2435 = vmul.f32 %v2387, %v2427
        %v2436 = vmul.f32 %v2388, %v2428
        %v2437 = vmul.f32 %v2389, %v2429
        %v2438 = vmul.f32 %v2390, %v2430
        %v2439 = vmul.f32 %v2391, %v2431
        %v2440 = vadd.f32 %v2384, %v2432
        %v2441 = vadd.f32 %v2385, %v2433
        %v2442 = vadd.f32 %v2386, %v2434
        %v2443 = vadd.f32 %v2387, %v2435
        %v2444 = vadd.f32 %v2388, %v2436
        %v2445 = vadd.f32 %v2389, %v2437
        %v2446 = vadd.f32 %v2390, %v2438
        %v2447 = vadd.f32 %v2391, %v2439
        %s2448 = scalar_lea.vmem %s344, 1024
        %v2449 = vld [vmem:[%s2448] sm:$0xff]
        %v2450 = vld [vmem:[%s2448 + $0x8] sm:$0xff]
        %v2451 = vld [vmem:[%s2448 + $0x10] sm:$0xff]
        %v2452 = vld [vmem:[%s2448 + $0x18] sm:$0xff]
        %v2453 = vld [vmem:[%s2448 + $0x20] sm:$0xff]
        %v2454 = vld [vmem:[%s2448 + $0x28] sm:$0xff]
        %v2455 = vld [vmem:[%s2448 + $0x30] sm:$0xff]
        %v2456 = vld [vmem:[%s2448 + $0x38] sm:$0xff]
        %v2457 = vld [vmem:[%s2448 + $0x40] sm:$0xff]
        %v2458 = vld [vmem:[%s2448 + $0x48] sm:$0xff]
        %v2459 = vld [vmem:[%s2448 + $0x50] sm:$0xff]
        %v2460 = vld [vmem:[%s2448 + $0x58] sm:$0xff]
        %v2461 = vld [vmem:[%s2448 + $0x60] sm:$0xff]
        %v2462 = vld [vmem:[%s2448 + $0x68] sm:$0xff]
        %v2463 = vld [vmem:[%s2448 + $0x70] sm:$0xff]
        %v2464 = vld [vmem:[%s2448 + $0x78] sm:$0xff]
        %v2465 = vld [vmem:[%s2448 + $0x80] sm:$0xff]
        %v2466 = vld [vmem:[%s2448 + $0x88] sm:$0xff]
        %v2467 = vld [vmem:[%s2448 + $0x90] sm:$0xff]
        %v2468 = vld [vmem:[%s2448 + $0x98] sm:$0xff]
        %v2469 = vld [vmem:[%s2448 + $0xa0] sm:$0xff]
        %v2470 = vld [vmem:[%s2448 + $0xa8] sm:$0xff]
        %v2471 = vld [vmem:[%s2448 + $0xb0] sm:$0xff]
        %v2472 = vld [vmem:[%s2448 + $0xb8] sm:$0xff]
        %v2473 = vld [vmem:[%s2448 + $0xc0] sm:$0xff]
        %v2474 = vld [vmem:[%s2448 + $0xc8] sm:$0xff]
        %v2475 = vld [vmem:[%s2448 + $0xd0] sm:$0xff]
        %v2476 = vld [vmem:[%s2448 + $0xd8] sm:$0xff]
        %v2477 = vld [vmem:[%s2448 + $0xe0] sm:$0xff]
        %v2478 = vld [vmem:[%s2448 + $0xe8] sm:$0xff]
        %v2479 = vld [vmem:[%s2448 + $0xf0] sm:$0xff]
        %v2480 = vld [vmem:[%s2448 + $0xf8] sm:$0xff]
        %s2481 = scalar_lea.vmem %s349, 4
        %v2482 = vld [vmem:[%s2481] ss:$8 sm:$0x3]
        %v2483 = vpack.c.bf16 %v2321, %v2319
        %v2484 = vpack.c.bf16 %v2322, %v2320
        %v2485 = vpack.c.bf16 %v2325, %v2323
        %v2486 = vpack.c.bf16 %v2326, %v2324
        %v2488 = vlaneseq
        %v2489 = vshrl.u32 %v2488, 7
        %v2490 = vsub.s32 0, %v2489
        %v2491 = vrot.slane %v2482, %v2490
        %v2492 = vlaneseq
        %v2493 = vshrl.u32 %v2492, 7
        %v2494 = vsub.s32 1, %v2493
        %v2495 = vrot.slane %v2482, %v2494
        %v2530 = vunpack.c.l.b16 %v2449
        %v2531 = vunpack.c.h.b16 %v2449
        %v2532 = vunpack.c.l.b16 %v2450
        %v2533 = vunpack.c.h.b16 %v2450
        %v2534 = vunpack.c.l.b16 %v2451
        %v2535 = vunpack.c.h.b16 %v2451
        %v2536 = vunpack.c.l.b16 %v2452
        %v2537 = vunpack.c.h.b16 %v2452
        %v2538 = vunpack.c.l.b16 %v2453
        %v2539 = vunpack.c.h.b16 %v2453
        %v2540 = vunpack.c.l.b16 %v2454
        %v2541 = vunpack.c.h.b16 %v2454
        %v2542 = vunpack.c.l.b16 %v2455
        %v2543 = vunpack.c.h.b16 %v2455
        %v2544 = vunpack.c.l.b16 %v2456
        %v2545 = vunpack.c.h.b16 %v2456
        %v2546 = vunpack.c.l.b16 %v2457
        %v2547 = vunpack.c.h.b16 %v2457
        %v2548 = vunpack.c.l.b16 %v2458
        %v2549 = vunpack.c.h.b16 %v2458
        %v2550 = vunpack.c.l.b16 %v2459
        %v2551 = vunpack.c.h.b16 %v2459
        %v2552 = vunpack.c.l.b16 %v2460
        %v2553 = vunpack.c.h.b16 %v2460
        %v2554 = vunpack.c.l.b16 %v2461
        %v2555 = vunpack.c.h.b16 %v2461
        %v2556 = vunpack.c.l.b16 %v2462
        %v2557 = vunpack.c.h.b16 %v2462
        %v2558 = vunpack.c.l.b16 %v2463
        %v2559 = vunpack.c.h.b16 %v2463
        %v2560 = vunpack.c.l.b16 %v2464
        %v2561 = vunpack.c.h.b16 %v2464
        %v2562 = vunpack.c.l.b16 %v2465
        %v2563 = vunpack.c.h.b16 %v2465
        %v2564 = vunpack.c.l.b16 %v2466
        %v2565 = vunpack.c.h.b16 %v2466
        %v2566 = vunpack.c.l.b16 %v2467
        %v2567 = vunpack.c.h.b16 %v2467
        %v2568 = vunpack.c.l.b16 %v2468
        %v2569 = vunpack.c.h.b16 %v2468
        %v2570 = vunpack.c.l.b16 %v2469
        %v2571 = vunpack.c.h.b16 %v2469
        %v2572 = vunpack.c.l.b16 %v2470
        %v2573 = vunpack.c.h.b16 %v2470
        %v2574 = vunpack.c.l.b16 %v2471
        %v2575 = vunpack.c.h.b16 %v2471
        %v2576 = vunpack.c.l.b16 %v2472
        %v2577 = vunpack.c.h.b16 %v2472
        %v2578 = vunpack.c.l.b16 %v2473
        %v2579 = vunpack.c.h.b16 %v2473
        %v2580 = vunpack.c.l.b16 %v2474
        %v2581 = vunpack.c.h.b16 %v2474
        %v2582 = vunpack.c.l.b16 %v2475
        %v2583 = vunpack.c.h.b16 %v2475
        %v2584 = vunpack.c.l.b16 %v2476
        %v2585 = vunpack.c.h.b16 %v2476
        %v2586 = vunpack.c.l.b16 %v2477
        %v2587 = vunpack.c.h.b16 %v2477
        %v2588 = vunpack.c.l.b16 %v2478
        %v2589 = vunpack.c.h.b16 %v2478
        %v2590 = vunpack.c.l.b16 %v2479
        %v2591 = vunpack.c.h.b16 %v2479
        %v2592 = vunpack.c.l.b16 %v2480
        %v2593 = vunpack.c.h.b16 %v2480
        %v2594 = vpack.c.b16 %v2532, %v2530
        %v2595 = vpack.c.b16 %v2533, %v2531
        %v2596 = vpack.c.b16 %v2536, %v2534
        %v2597 = vpack.c.b16 %v2537, %v2535
        %v2598 = vpack.c.b16 %v2540, %v2538
        %v2599 = vpack.c.b16 %v2541, %v2539
        %v2600 = vpack.c.b16 %v2544, %v2542
        %v2601 = vpack.c.b16 %v2545, %v2543
        %v2602 = vpack.c.b16 %v2548, %v2546
        %v2603 = vpack.c.b16 %v2549, %v2547
        %v2604 = vpack.c.b16 %v2552, %v2550
        %v2605 = vpack.c.b16 %v2553, %v2551
        %v2606 = vpack.c.b16 %v2556, %v2554
        %v2607 = vpack.c.b16 %v2557, %v2555
        %v2608 = vpack.c.b16 %v2560, %v2558
        %v2609 = vpack.c.b16 %v2561, %v2559
        %v2610 = vpack.c.b16 %v2564, %v2562
        %v2611 = vpack.c.b16 %v2565, %v2563
        %v2612 = vpack.c.b16 %v2568, %v2566
        %v2613 = vpack.c.b16 %v2569, %v2567
        %v2614 = vpack.c.b16 %v2572, %v2570
        %v2615 = vpack.c.b16 %v2573, %v2571
        %v2616 = vpack.c.b16 %v2576, %v2574
        %v2617 = vpack.c.b16 %v2577, %v2575
        %v2618 = vpack.c.b16 %v2580, %v2578
        %v2619 = vpack.c.b16 %v2581, %v2579
        %v2620 = vpack.c.b16 %v2584, %v2582
        %v2621 = vpack.c.b16 %v2585, %v2583
        %v2622 = vpack.c.b16 %v2588, %v2586
        %v2623 = vpack.c.b16 %v2589, %v2587
        %v2624 = vpack.c.b16 %v2592, %v2590
        %v2625 = vpack.c.b16 %v2593, %v2591
        %2658 = vmatprep.subr.bf16.mxu0 %v2609
        %2659 = vmatpush1.bf16.msra.mxu0 %v2608
        %2660 = vmatprep.subr.bf16.mxu0 %v2607
        %2661 = vmatpush1.bf16.msra.mxu0 %v2606
        %2662 = vmatprep.subr.bf16.mxu0 %v2605
        %2663 = vmatpush1.bf16.msra.mxu0 %v2604
        %2664 = vmatprep.subr.bf16.mxu0 %v2603
        %2665 = vmatpush1.bf16.msra.mxu0 %v2602
        %2666 = vmatprep.subr.bf16.mxu0 %v2601
        %2667 = vmatpush1.bf16.msra.mxu0 %v2600
        %2668 = vmatprep.subr.bf16.mxu0 %v2599
        %2669 = vmatpush1.bf16.msra.mxu0 %v2598
        %2670 = vmatprep.subr.bf16.mxu0 %v2597
        %2671 = vmatpush1.bf16.msra.mxu0 %v2596
        %2672 = vmatprep.subr.bf16.mxu0 %v2595
        %2673 = vmatpush1.bf16.msra.mxu0 %v2594
        %2674 = vmatprep.subr.bf16.mxu0 %v2625
        %2675 = vmatpush2.bf16.msra.mxu0 %v2624
        %2676 = vmatprep.subr.bf16.mxu0 %v2623
        %2677 = vmatpush2.bf16.msra.mxu0 %v2622
        %2678 = vmatprep.subr.bf16.mxu0 %v2621
        %2679 = vmatpush2.bf16.msra.mxu0 %v2620
        %2680 = vmatprep.subr.bf16.mxu0 %v2619
        %2681 = vmatpush2.bf16.msra.mxu0 %v2618
        %2682 = vmatprep.subr.bf16.mxu0 %v2617
        %2683 = vmatpush2.bf16.msra.mxu0 %v2616
        %2684 = vmatprep.subr.bf16.mxu0 %v2615
        %2685 = vmatpush2.bf16.msra.mxu0 %v2614
        %2686 = vmatprep.subr.bf16.mxu0 %v2613
        %2687 = vmatpush2.bf16.msra.mxu0 %v2612
        %2688 = vmatprep.subr.bf16.mxu0 %v2611
        %2689 = vmatpush2.bf16.msra.mxu0 %v2610
        %2690 = vmatprep.mubr.bf16.mxu0 %v2484
        %2691 = vmatmul.mubr.bf16.gmra.mxu0 %v2483
        %v2692 = vpop.f32.mrf.mxu0
        %v2693 = vadd.f32 %v2491, %v2692
        %v2694 = vpop.f32.mrf.mxu0
        %v2695 = vadd.f32 %v2495, %v2694
        %v2696 = vpop.f32.mrf.mxu0
        %v2697 = vadd.f32 %v2491, %v2696
        %v2698 = vpop.f32.mrf.mxu0
        %v2699 = vadd.f32 %v2495, %v2698
        %2700 = vmatprep.mubr.bf16.mxu0 %v2486
        %2701 = vmatmul.mubr.bf16.gmra.mxu0 %v2485
        %v2702 = vpop.f32.mrf.mxu0
        %v2703 = vadd.f32 %v2491, %v2702
        %v2704 = vpop.f32.mrf.mxu0
        %v2705 = vadd.f32 %v2495, %v2704
        %v2706 = vpop.f32.mrf.mxu0
        %v2707 = vadd.f32 %v2491, %v2706
        %v2708 = vpop.f32.mrf.mxu0
        %v2709 = vadd.f32 %v2495, %v2708
        %2710 = vdwg.mxu0
        %v2711 = vmul.f32 %v2693, 0.5
        %v2712 = vmul.f32 %v2695, 0.5
        %v2713 = vmul.f32 %v2697, 0.5
        %v2714 = vmul.f32 %v2699, 0.5
        %v2715 = vmul.f32 %v2703, 0.5
        %v2716 = vmul.f32 %v2705, 0.5
        %v2717 = vmul.f32 %v2707, 0.5
        %v2718 = vmul.f32 %v2709, 0.5
        %v2719 = vmul.f32 %v2693, %v2693
        %v2720 = vmul.f32 %v2695, %v2695
        %v2721 = vmul.f32 %v2697, %v2697
        %v2722 = vmul.f32 %v2699, %v2699
        %v2723 = vmul.f32 %v2703, %v2703
        %v2724 = vmul.f32 %v2705, %v2705
        %v2725 = vmul.f32 %v2707, %v2707
        %v2726 = vmul.f32 %v2709, %v2709
        %v2727 = vmul.f32 %v2719, 0.035677407
        %v2728 = vmul.f32 %v2720, 0.035677407
        %v2729 = vmul.f32 %v2721, 0.035677407
        %v2730 = vmul.f32 %v2722, 0.035677407
        %v2731 = vmul.f32 %v2723, 0.035677407
        %v2732 = vmul.f32 %v2724, 0.035677407
        %v2733 = vmul.f32 %v2725, 0.035677407
        %v2734 = vmul.f32 %v2726, 0.035677407
        %v2735 = vadd.f32 %v2727, 0.7978846
        %v2736 = vadd.f32 %v2728, 0.7978846
        %v2737 = vadd.f32 %v2729, 0.7978846
        %v2738 = vadd.f32 %v2730, 0.7978846
        %v2739 = vadd.f32 %v2731, 0.7978846
        %v2740 = vadd.f32 %v2732, 0.7978846
        %v2741 = vadd.f32 %v2733, 0.7978846
        %v2742 = vadd.f32 %v2734, 0.7978846
        %v2743 = vmul.f32 %v2693, %v2735
        %v2744 = vmul.f32 %v2695, %v2736
        %v2745 = vmul.f32 %v2697, %v2737
        %v2746 = vmul.f32 %v2699, %v2738
        %v2747 = vmul.f32 %v2703, %v2739
        %v2748 = vmul.f32 %v2705, %v2740
        %v2749 = vmul.f32 %v2707, %v2741
        %v2750 = vmul.f32 %v2709, %v2742
        %v2751 = vtanh.pop %v2743
        %v2752 = vtanh.pop %v2744
        %v2753 = vtanh.pop %v2745
        %v2754 = vtanh.pop %v2746
        %v2755 = vtanh.pop %v2747
        %v2756 = vtanh.pop %v2748
        %v2757 = vtanh.pop %v2749
        %v2758 = vtanh.pop %v2750
        %v2759 = vmul.f32 %v2711, %v2751
        %v2760 = vmul.f32 %v2712, %v2752
        %v2761 = vmul.f32 %v2713, %v2753
        %v2762 = vmul.f32 %v2714, %v2754
        %v2763 = vmul.f32 %v2715, %v2755
        %v2764 = vmul.f32 %v2716, %v2756
        %v2765 = vmul.f32 %v2717, %v2757
        %v2766 = vmul.f32 %v2718, %v2758
        %v2767 = vadd.f32 %v2711, %v2759
        %v2768 = vadd.f32 %v2712, %v2760
        %v2769 = vadd.f32 %v2713, %v2761
        %v2770 = vadd.f32 %v2714, %v2762
        %v2771 = vadd.f32 %v2715, %v2763
        %v2772 = vadd.f32 %v2716, %v2764
        %v2773 = vadd.f32 %v2717, %v2765
        %v2774 = vadd.f32 %v2718, %v2766
        %v2775 = vpack.c.bf16 %v2442, %v2440
        %v2776 = vpack.c.bf16 %v2443, %v2441
        %v2777 = vpack.c.bf16 %v2446, %v2444
        %v2778 = vpack.c.bf16 %v2447, %v2445
        %2779 = vmatprep.subr.bf16.mxu0 %v2609
        %2780 = vmatpush1.bf16.msra.mxu0 %v2608
        %2781 = vmatprep.subr.bf16.mxu0 %v2607
        %2782 = vmatpush1.bf16.msra.mxu0 %v2606
        %2783 = vmatprep.subr.bf16.mxu0 %v2605
        %2784 = vmatpush1.bf16.msra.mxu0 %v2604
        %2785 = vmatprep.subr.bf16.mxu0 %v2603
        %2786 = vmatpush1.bf16.msra.mxu0 %v2602
        %2787 = vmatprep.subr.bf16.mxu0 %v2601
        %2788 = vmatpush1.bf16.msra.mxu0 %v2600
        %2789 = vmatprep.subr.bf16.mxu0 %v2599
        %2790 = vmatpush1.bf16.msra.mxu0 %v2598
        %2791 = vmatprep.subr.bf16.mxu0 %v2597
        %2792 = vmatpush1.bf16.msra.mxu0 %v2596
        %2793 = vmatprep.subr.bf16.mxu0 %v2595
        %2794 = vmatpush1.bf16.msra.mxu0 %v2594
        %2795 = vmatprep.subr.bf16.mxu0 %v2625
        %2796 = vmatpush2.bf16.msra.mxu0 %v2624
        %2797 = vmatprep.subr.bf16.mxu0 %v2623
        %2798 = vmatpush2.bf16.msra.mxu0 %v2622
        %2799 = vmatprep.subr.bf16.mxu0 %v2621
        %2800 = vmatpush2.bf16.msra.mxu0 %v2620
        %2801 = vmatprep.subr.bf16.mxu0 %v2619
        %2802 = vmatpush2.bf16.msra.mxu0 %v2618
        %2803 = vmatprep.subr.bf16.mxu0 %v2617
        %2804 = vmatpush2.bf16.msra.mxu0 %v2616
        %2805 = vmatprep.subr.bf16.mxu0 %v2615
        %2806 = vmatpush2.bf16.msra.mxu0 %v2614
        %2807 = vmatprep.subr.bf16.mxu0 %v2613
        %2808 = vmatpush2.bf16.msra.mxu0 %v2612
        %2809 = vmatprep.subr.bf16.mxu0 %v2611
        %2810 = vmatpush2.bf16.msra.mxu0 %v2610
        %2811 = vmatprep.mubr.bf16.mxu0 %v2776
        %2812 = vmatmul.mubr.bf16.gmra.mxu0 %v2775
        %v2813 = vpop.f32.mrf.mxu0
        %v2814 = vadd.f32 %v2491, %v2813
        %v2815 = vpop.f32.mrf.mxu0
        %v2816 = vadd.f32 %v2495, %v2815
        %v2817 = vpop.f32.mrf.mxu0
        %v2818 = vadd.f32 %v2491, %v2817
        %v2819 = vpop.f32.mrf.mxu0
        %v2820 = vadd.f32 %v2495, %v2819
        %2821 = vmatprep.mubr.bf16.mxu0 %v2778
        %2822 = vmatmul.mubr.bf16.gmra.mxu0 %v2777
        %v2823 = vpop.f32.mrf.mxu0
        %v2824 = vadd.f32 %v2491, %v2823
        %v2825 = vpop.f32.mrf.mxu0
        %v2826 = vadd.f32 %v2495, %v2825
        %v2827 = vpop.f32.mrf.mxu0
        %v2828 = vadd.f32 %v2491, %v2827
        %v2829 = vpop.f32.mrf.mxu0
        %v2830 = vadd.f32 %v2495, %v2829
        %2831 = vdwg.mxu0
        %v2832 = vmul.f32 %v2814, 0.5
        %v2833 = vmul.f32 %v2816, 0.5
        %v2834 = vmul.f32 %v2818, 0.5
        %v2835 = vmul.f32 %v2820, 0.5
        %v2836 = vmul.f32 %v2824, 0.5
        %v2837 = vmul.f32 %v2826, 0.5
        %v2838 = vmul.f32 %v2828, 0.5
        %v2839 = vmul.f32 %v2830, 0.5
        %v2840 = vmul.f32 %v2814, %v2814
        %v2841 = vmul.f32 %v2816, %v2816
        %v2842 = vmul.f32 %v2818, %v2818
        %v2843 = vmul.f32 %v2820, %v2820
        %v2844 = vmul.f32 %v2824, %v2824
        %v2845 = vmul.f32 %v2826, %v2826
        %v2846 = vmul.f32 %v2828, %v2828
        %v2847 = vmul.f32 %v2830, %v2830
        %v2848 = vmul.f32 %v2840, 0.035677407
        %v2849 = vmul.f32 %v2841, 0.035677407
        %v2850 = vmul.f32 %v2842, 0.035677407
        %v2851 = vmul.f32 %v2843, 0.035677407
        %v2852 = vmul.f32 %v2844, 0.035677407
        %v2853 = vmul.f32 %v2845, 0.035677407
        %v2854 = vmul.f32 %v2846, 0.035677407
        %v2855 = vmul.f32 %v2847, 0.035677407
        %v2856 = vadd.f32 %v2848, 0.7978846
        %v2857 = vadd.f32 %v2849, 0.7978846
        %v2858 = vadd.f32 %v2850, 0.7978846
        %v2859 = vadd.f32 %v2851, 0.7978846
        %v2860 = vadd.f32 %v2852, 0.7978846
        %v2861 = vadd.f32 %v2853, 0.7978846
        %v2862 = vadd.f32 %v2854, 0.7978846
        %v2863 = vadd.f32 %v2855, 0.7978846
        %v2864 = vmul.f32 %v2814, %v2856
        %v2865 = vmul.f32 %v2816, %v2857
        %v2866 = vmul.f32 %v2818, %v2858
        %v2867 = vmul.f32 %v2820, %v2859
        %v2868 = vmul.f32 %v2824, %v2860
        %v2869 = vmul.f32 %v2826, %v2861
        %v2870 = vmul.f32 %v2828, %v2862
        %v2871 = vmul.f32 %v2830, %v2863
        %v2872 = vtanh.pop %v2864
        %v2873 = vtanh.pop %v2865
        %v2874 = vtanh.pop %v2866
        %v2875 = vtanh.pop %v2867
        %v2876 = vtanh.pop %v2868
        %v2877 = vtanh.pop %v2869
        %v2878 = vtanh.pop %v2870
        %v2879 = vtanh.pop %v2871
        %v2880 = vmul.f32 %v2832, %v2872
        %v2881 = vmul.f32 %v2833, %v2873
        %v2882 = vmul.f32 %v2834, %v2874
        %v2883 = vmul.f32 %v2835, %v2875
        %v2884 = vmul.f32 %v2836, %v2876
        %v2885 = vmul.f32 %v2837, %v2877
        %v2886 = vmul.f32 %v2838, %v2878
        %v2887 = vmul.f32 %v2839, %v2879
        %v2888 = vadd.f32 %v2832, %v2880
        %v2889 = vadd.f32 %v2833, %v2881
        %v2890 = vadd.f32 %v2834, %v2882
        %v2891 = vadd.f32 %v2835, %v2883
        %v2892 = vadd.f32 %v2836, %v2884
        %v2893 = vadd.f32 %v2837, %v2885
        %v2894 = vadd.f32 %v2838, %v2886
        %v2895 = vadd.f32 %v2839, %v2887
        %s2896 = scalar_lea.vmem %s344, 1280
        %v2897 = vld [vmem:[%s2896] sm:$0xff]
        %v2898 = vld [vmem:[%s2896 + $0x8] sm:$0xff]
        %v2899 = vld [vmem:[%s2896 + $0x10] sm:$0xff]
        %v2900 = vld [vmem:[%s2896 + $0x18] sm:$0xff]
        %v2901 = vld [vmem:[%s2896 + $0x20] sm:$0xff]
        %v2902 = vld [vmem:[%s2896 + $0x28] sm:$0xff]
        %v2903 = vld [vmem:[%s2896 + $0x30] sm:$0xff]
        %v2904 = vld [vmem:[%s2896 + $0x38] sm:$0xff]
        %v2905 = vld [vmem:[%s2896 + $0x40] sm:$0xff]
        %v2906 = vld [vmem:[%s2896 + $0x48] sm:$0xff]
        %v2907 = vld [vmem:[%s2896 + $0x50] sm:$0xff]
        %v2908 = vld [vmem:[%s2896 + $0x58] sm:$0xff]
        %v2909 = vld [vmem:[%s2896 + $0x60] sm:$0xff]
        %v2910 = vld [vmem:[%s2896 + $0x68] sm:$0xff]
        %v2911 = vld [vmem:[%s2896 + $0x70] sm:$0xff]
        %v2912 = vld [vmem:[%s2896 + $0x78] sm:$0xff]
        %v2913 = vld [vmem:[%s2896 + $0x80] sm:$0xff]
        %v2914 = vld [vmem:[%s2896 + $0x88] sm:$0xff]
        %v2915 = vld [vmem:[%s2896 + $0x90] sm:$0xff]
        %v2916 = vld [vmem:[%s2896 + $0x98] sm:$0xff]
        %v2917 = vld [vmem:[%s2896 + $0xa0] sm:$0xff]
        %v2918 = vld [vmem:[%s2896 + $0xa8] sm:$0xff]
        %v2919 = vld [vmem:[%s2896 + $0xb0] sm:$0xff]
        %v2920 = vld [vmem:[%s2896 + $0xb8] sm:$0xff]
        %v2921 = vld [vmem:[%s2896 + $0xc0] sm:$0xff]
        %v2922 = vld [vmem:[%s2896 + $0xc8] sm:$0xff]
        %v2923 = vld [vmem:[%s2896 + $0xd0] sm:$0xff]
        %v2924 = vld [vmem:[%s2896 + $0xd8] sm:$0xff]
        %v2925 = vld [vmem:[%s2896 + $0xe0] sm:$0xff]
        %v2926 = vld [vmem:[%s2896 + $0xe8] sm:$0xff]
        %v2927 = vld [vmem:[%s2896 + $0xf0] sm:$0xff]
        %v2928 = vld [vmem:[%s2896 + $0xf8] sm:$0xff]
        %s2929 = scalar_lea.vmem %s349, 5
        %v2930 = vld [vmem:[%s2929] ss:$8 sm:$0x3]
        %v2931 = vpack.c.bf16 %v2769, %v2767
        %v2932 = vpack.c.bf16 %v2770, %v2768
        %v2933 = vpack.c.bf16 %v2773, %v2771
        %v2934 = vpack.c.bf16 %v2774, %v2772
        %v2936 = vlaneseq
        %v2937 = vshrl.u32 %v2936, 7
        %v2938 = vsub.s32 0, %v2937
        %v2939 = vrot.slane %v2930, %v2938
        %v2940 = vlaneseq
        %v2941 = vshrl.u32 %v2940, 7
        %v2942 = vsub.s32 1, %v2941
        %v2943 = vrot.slane %v2930, %v2942
        %v2978 = vunpack.c.l.b16 %v2897
        %v2979 = vunpack.c.h.b16 %v2897
        %v2980 = vunpack.c.l.b16 %v2898
        %v2981 = vunpack.c.h.b16 %v2898
        %v2982 = vunpack.c.l.b16 %v2899
        %v2983 = vunpack.c.h.b16 %v2899
        %v2984 = vunpack.c.l.b16 %v2900
        %v2985 = vunpack.c.h.b16 %v2900
        %v2986 = vunpack.c.l.b16 %v2901
        %v2987 = vunpack.c.h.b16 %v2901
        %v2988 = vunpack.c.l.b16 %v2902
        %v2989 = vunpack.c.h.b16 %v2902
        %v2990 = vunpack.c.l.b16 %v2903
        %v2991 = vunpack.c.h.b16 %v2903
        %v2992 = vunpack.c.l.b16 %v2904
        %v2993 = vunpack.c.h.b16 %v2904
        %v2994 = vunpack.c.l.b16 %v2905
        %v2995 = vunpack.c.h.b16 %v2905
        %v2996 = vunpack.c.l.b16 %v2906
        %v2997 = vunpack.c.h.b16 %v2906
        %v2998 = vunpack.c.l.b16 %v2907
        %v2999 = vunpack.c.h.b16 %v2907
        %v3000 = vunpack.c.l.b16 %v2908
        %v3001 = vunpack.c.h.b16 %v2908
        %v3002 = vunpack.c.l.b16 %v2909
        %v3003 = vunpack.c.h.b16 %v2909
        %v3004 = vunpack.c.l.b16 %v2910
        %v3005 = vunpack.c.h.b16 %v2910
        %v3006 = vunpack.c.l.b16 %v2911
        %v3007 = vunpack.c.h.b16 %v2911
        %v3008 = vunpack.c.l.b16 %v2912
        %v3009 = vunpack.c.h.b16 %v2912
        %v3010 = vunpack.c.l.b16 %v2913
        %v3011 = vunpack.c.h.b16 %v2913
        %v3012 = vunpack.c.l.b16 %v2914
        %v3013 = vunpack.c.h.b16 %v2914
        %v3014 = vunpack.c.l.b16 %v2915
        %v3015 = vunpack.c.h.b16 %v2915
        %v3016 = vunpack.c.l.b16 %v2916
        %v3017 = vunpack.c.h.b16 %v2916
        %v3018 = vunpack.c.l.b16 %v2917
        %v3019 = vunpack.c.h.b16 %v2917
        %v3020 = vunpack.c.l.b16 %v2918
        %v3021 = vunpack.c.h.b16 %v2918
        %v3022 = vunpack.c.l.b16 %v2919
        %v3023 = vunpack.c.h.b16 %v2919
        %v3024 = vunpack.c.l.b16 %v2920
        %v3025 = vunpack.c.h.b16 %v2920
        %v3026 = vunpack.c.l.b16 %v2921
        %v3027 = vunpack.c.h.b16 %v2921
        %v3028 = vunpack.c.l.b16 %v2922
        %v3029 = vunpack.c.h.b16 %v2922
        %v3030 = vunpack.c.l.b16 %v2923
        %v3031 = vunpack.c.h.b16 %v2923
        %v3032 = vunpack.c.l.b16 %v2924
        %v3033 = vunpack.c.h.b16 %v2924
        %v3034 = vunpack.c.l.b16 %v2925
        %v3035 = vunpack.c.h.b16 %v2925
        %v3036 = vunpack.c.l.b16 %v2926
        %v3037 = vunpack.c.h.b16 %v2926
        %v3038 = vunpack.c.l.b16 %v2927
        %v3039 = vunpack.c.h.b16 %v2927
        %v3040 = vunpack.c.l.b16 %v2928
        %v3041 = vunpack.c.h.b16 %v2928
        %v3042 = vpack.c.b16 %v2980, %v2978
        %v3043 = vpack.c.b16 %v2981, %v2979
        %v3044 = vpack.c.b16 %v2984, %v2982
        %v3045 = vpack.c.b16 %v2985, %v2983
        %v3046 = vpack.c.b16 %v2988, %v2986
        %v3047 = vpack.c.b16 %v2989, %v2987
        %v3048 = vpack.c.b16 %v2992, %v2990
        %v3049 = vpack.c.b16 %v2993, %v2991
        %v3050 = vpack.c.b16 %v2996, %v2994
        %v3051 = vpack.c.b16 %v2997, %v2995
        %v3052 = vpack.c.b16 %v3000, %v2998
        %v3053 = vpack.c.b16 %v3001, %v2999
        %v3054 = vpack.c.b16 %v3004, %v3002
        %v3055 = vpack.c.b16 %v3005, %v3003
        %v3056 = vpack.c.b16 %v3008, %v3006
        %v3057 = vpack.c.b16 %v3009, %v3007
        %v3058 = vpack.c.b16 %v3012, %v3010
        %v3059 = vpack.c.b16 %v3013, %v3011
        %v3060 = vpack.c.b16 %v3016, %v3014
        %v3061 = vpack.c.b16 %v3017, %v3015
        %v3062 = vpack.c.b16 %v3020, %v3018
        %v3063 = vpack.c.b16 %v3021, %v3019
        %v3064 = vpack.c.b16 %v3024, %v3022
        %v3065 = vpack.c.b16 %v3025, %v3023
        %v3066 = vpack.c.b16 %v3028, %v3026
        %v3067 = vpack.c.b16 %v3029, %v3027
        %v3068 = vpack.c.b16 %v3032, %v3030
        %v3069 = vpack.c.b16 %v3033, %v3031
        %v3070 = vpack.c.b16 %v3036, %v3034
        %v3071 = vpack.c.b16 %v3037, %v3035
        %v3072 = vpack.c.b16 %v3040, %v3038
        %v3073 = vpack.c.b16 %v3041, %v3039
        %3106 = vmatprep.subr.bf16.mxu0 %v3057
        %3107 = vmatpush1.bf16.msra.mxu0 %v3056
        %3108 = vmatprep.subr.bf16.mxu0 %v3055
        %3109 = vmatpush1.bf16.msra.mxu0 %v3054
        %3110 = vmatprep.subr.bf16.mxu0 %v3053
        %3111 = vmatpush1.bf16.msra.mxu0 %v3052
        %3112 = vmatprep.subr.bf16.mxu0 %v3051
        %3113 = vmatpush1.bf16.msra.mxu0 %v3050
        %3114 = vmatprep.subr.bf16.mxu0 %v3049
        %3115 = vmatpush1.bf16.msra.mxu0 %v3048
        %3116 = vmatprep.subr.bf16.mxu0 %v3047
        %3117 = vmatpush1.bf16.msra.mxu0 %v3046
        %3118 = vmatprep.subr.bf16.mxu0 %v3045
        %3119 = vmatpush1.bf16.msra.mxu0 %v3044
        %3120 = vmatprep.subr.bf16.mxu0 %v3043
        %3121 = vmatpush1.bf16.msra.mxu0 %v3042
        %3122 = vmatprep.subr.bf16.mxu0 %v3073
        %3123 = vmatpush2.bf16.msra.mxu0 %v3072
        %3124 = vmatprep.subr.bf16.mxu0 %v3071
        %3125 = vmatpush2.bf16.msra.mxu0 %v3070
        %3126 = vmatprep.subr.bf16.mxu0 %v3069
        %3127 = vmatpush2.bf16.msra.mxu0 %v3068
        %3128 = vmatprep.subr.bf16.mxu0 %v3067
        %3129 = vmatpush2.bf16.msra.mxu0 %v3066
        %3130 = vmatprep.subr.bf16.mxu0 %v3065
        %3131 = vmatpush2.bf16.msra.mxu0 %v3064
        %3132 = vmatprep.subr.bf16.mxu0 %v3063
        %3133 = vmatpush2.bf16.msra.mxu0 %v3062
        %3134 = vmatprep.subr.bf16.mxu0 %v3061
        %3135 = vmatpush2.bf16.msra.mxu0 %v3060
        %3136 = vmatprep.subr.bf16.mxu0 %v3059
        %3137 = vmatpush2.bf16.msra.mxu0 %v3058
        %3138 = vmatprep.mubr.bf16.mxu0 %v2932
        %3139 = vmatmul.mubr.bf16.gmra.mxu0 %v2931
        %v3140 = vpop.f32.mrf.mxu0
        %v3141 = vadd.f32 %v2939, %v3140
        %v3142 = vpop.f32.mrf.mxu0
        %v3143 = vadd.f32 %v2943, %v3142
        %v3144 = vpop.f32.mrf.mxu0
        %v3145 = vadd.f32 %v2939, %v3144
        %v3146 = vpop.f32.mrf.mxu0
        %v3147 = vadd.f32 %v2943, %v3146
        %3148 = vmatprep.mubr.bf16.mxu0 %v2934
        %3149 = vmatmul.mubr.bf16.gmra.mxu0 %v2933
        %v3150 = vpop.f32.mrf.mxu0
        %v3151 = vadd.f32 %v2939, %v3150
        %v3152 = vpop.f32.mrf.mxu0
        %v3153 = vadd.f32 %v2943, %v3152
        %v3154 = vpop.f32.mrf.mxu0
        %v3155 = vadd.f32 %v2939, %v3154
        %v3156 = vpop.f32.mrf.mxu0
        %v3157 = vadd.f32 %v2943, %v3156
        %3158 = vdwg.mxu0
        %v3159 = vmul.f32 %v3141, 0.5
        %v3160 = vmul.f32 %v3143, 0.5
        %v3161 = vmul.f32 %v3145, 0.5
        %v3162 = vmul.f32 %v3147, 0.5
        %v3163 = vmul.f32 %v3151, 0.5
        %v3164 = vmul.f32 %v3153, 0.5
        %v3165 = vmul.f32 %v3155, 0.5
        %v3166 = vmul.f32 %v3157, 0.5
        %v3167 = vmul.f32 %v3141, %v3141
        %v3168 = vmul.f32 %v3143, %v3143
        %v3169 = vmul.f32 %v3145, %v3145
        %v3170 = vmul.f32 %v3147, %v3147
        %v3171 = vmul.f32 %v3151, %v3151
        %v3172 = vmul.f32 %v3153, %v3153
        %v3173 = vmul.f32 %v3155, %v3155
        %v3174 = vmul.f32 %v3157, %v3157
        %v3175 = vmul.f32 %v3167, 0.035677407
        %v3176 = vmul.f32 %v3168, 0.035677407
        %v3177 = vmul.f32 %v3169, 0.035677407
        %v3178 = vmul.f32 %v3170, 0.035677407
        %v3179 = vmul.f32 %v3171, 0.035677407
        %v3180 = vmul.f32 %v3172, 0.035677407
        %v3181 = vmul.f32 %v3173, 0.035677407
        %v3182 = vmul.f32 %v3174, 0.035677407
        %v3183 = vadd.f32 %v3175, 0.7978846
        %v3184 = vadd.f32 %v3176, 0.7978846
        %v3185 = vadd.f32 %v3177, 0.7978846
        %v3186 = vadd.f32 %v3178, 0.7978846
        %v3187 = vadd.f32 %v3179, 0.7978846
        %v3188 = vadd.f32 %v3180, 0.7978846
        %v3189 = vadd.f32 %v3181, 0.7978846
        %v3190 = vadd.f32 %v3182, 0.7978846
        %v3191 = vmul.f32 %v3141, %v3183
        %v3192 = vmul.f32 %v3143, %v3184
        %v3193 = vmul.f32 %v3145, %v3185
        %v3194 = vmul.f32 %v3147, %v3186
        %v3195 = vmul.f32 %v3151, %v3187
        %v3196 = vmul.f32 %v3153, %v3188
        %v3197 = vmul.f32 %v3155, %v3189
        %v3198 = vmul.f32 %v3157, %v3190
        %v3199 = vtanh.pop %v3191
        %v3200 = vtanh.pop %v3192
        %v3201 = vtanh.pop %v3193
        %v3202 = vtanh.pop %v3194
        %v3203 = vtanh.pop %v3195
        %v3204 = vtanh.pop %v3196
        %v3205 = vtanh.pop %v3197
        %v3206 = vtanh.pop %v3198
        %v3207 = vmul.f32 %v3159, %v3199
        %v3208 = vmul.f32 %v3160, %v3200
        %v3209 = vmul.f32 %v3161, %v3201
        %v3210 = vmul.f32 %v3162, %v3202
        %v3211 = vmul.f32 %v3163, %v3203
        %v3212 = vmul.f32 %v3164, %v3204
        %v3213 = vmul.f32 %v3165, %v3205
        %v3214 = vmul.f32 %v3166, %v3206
        %v3215 = vadd.f32 %v3159, %v3207
        %v3216 = vadd.f32 %v3160, %v3208
        %v3217 = vadd.f32 %v3161, %v3209
        %v3218 = vadd.f32 %v3162, %v3210
        %v3219 = vadd.f32 %v3163, %v3211
        %v3220 = vadd.f32 %v3164, %v3212
        %v3221 = vadd.f32 %v3165, %v3213
        %v3222 = vadd.f32 %v3166, %v3214
        %v3223 = vpack.c.bf16 %v2890, %v2888
        %v3224 = vpack.c.bf16 %v2891, %v2889
        %v3225 = vpack.c.bf16 %v2894, %v2892
        %v3226 = vpack.c.bf16 %v2895, %v2893
        %3227 = vmatprep.subr.bf16.mxu0 %v3057
        %3228 = vmatpush1.bf16.msra.mxu0 %v3056
        %3229 = vmatprep.subr.bf16.mxu0 %v3055
        %3230 = vmatpush1.bf16.msra.mxu0 %v3054
        %3231 = vmatprep.subr.bf16.mxu0 %v3053
        %3232 = vmatpush1.bf16.msra.mxu0 %v3052
        %3233 = vmatprep.subr.bf16.mxu0 %v3051
        %3234 = vmatpush1.bf16.msra.mxu0 %v3050
        %3235 = vmatprep.subr.bf16.mxu0 %v3049
        %3236 = vmatpush1.bf16.msra.mxu0 %v3048
        %3237 = vmatprep.subr.bf16.mxu0 %v3047
        %3238 = vmatpush1.bf16.msra.mxu0 %v3046
        %3239 = vmatprep.subr.bf16.mxu0 %v3045
        %3240 = vmatpush1.bf16.msra.mxu0 %v3044
        %3241 = vmatprep.subr.bf16.mxu0 %v3043
        %3242 = vmatpush1.bf16.msra.mxu0 %v3042
        %3243 = vmatprep.subr.bf16.mxu0 %v3073
        %3244 = vmatpush2.bf16.msra.mxu0 %v3072
        %3245 = vmatprep.subr.bf16.mxu0 %v3071
        %3246 = vmatpush2.bf16.msra.mxu0 %v3070
        %3247 = vmatprep.subr.bf16.mxu0 %v3069
        %3248 = vmatpush2.bf16.msra.mxu0 %v3068
        %3249 = vmatprep.subr.bf16.mxu0 %v3067
        %3250 = vmatpush2.bf16.msra.mxu0 %v3066
        %3251 = vmatprep.subr.bf16.mxu0 %v3065
        %3252 = vmatpush2.bf16.msra.mxu0 %v3064
        %3253 = vmatprep.subr.bf16.mxu0 %v3063
        %3254 = vmatpush2.bf16.msra.mxu0 %v3062
        %3255 = vmatprep.subr.bf16.mxu0 %v3061
        %3256 = vmatpush2.bf16.msra.mxu0 %v3060
        %3257 = vmatprep.subr.bf16.mxu0 %v3059
        %3258 = vmatpush2.bf16.msra.mxu0 %v3058
        %3259 = vmatprep.mubr.bf16.mxu0 %v3224
        %3260 = vmatmul.mubr.bf16.gmra.mxu0 %v3223
        %v3261 = vpop.f32.mrf.mxu0
        %v3262 = vadd.f32 %v2939, %v3261
        %v3263 = vpop.f32.mrf.mxu0
        %v3264 = vadd.f32 %v2943, %v3263
        %v3265 = vpop.f32.mrf.mxu0
        %v3266 = vadd.f32 %v2939, %v3265
        %v3267 = vpop.f32.mrf.mxu0
        %v3268 = vadd.f32 %v2943, %v3267
        %3269 = vmatprep.mubr.bf16.mxu0 %v3226
        %3270 = vmatmul.mubr.bf16.gmra.mxu0 %v3225
        %v3271 = vpop.f32.mrf.mxu0
        %v3272 = vadd.f32 %v2939, %v3271
        %v3273 = vpop.f32.mrf.mxu0
        %v3274 = vadd.f32 %v2943, %v3273
        %v3275 = vpop.f32.mrf.mxu0
        %v3276 = vadd.f32 %v2939, %v3275
        %v3277 = vpop.f32.mrf.mxu0
        %v3278 = vadd.f32 %v2943, %v3277
        %3279 = vdwg.mxu0
        %v3280 = vmul.f32 %v3262, 0.5
        %v3281 = vmul.f32 %v3264, 0.5
        %v3282 = vmul.f32 %v3266, 0.5
        %v3283 = vmul.f32 %v3268, 0.5
        %v3284 = vmul.f32 %v3272, 0.5
        %v3285 = vmul.f32 %v3274, 0.5
        %v3286 = vmul.f32 %v3276, 0.5
        %v3287 = vmul.f32 %v3278, 0.5
        %v3288 = vmul.f32 %v3262, %v3262
        %v3289 = vmul.f32 %v3264, %v3264
        %v3290 = vmul.f32 %v3266, %v3266
        %v3291 = vmul.f32 %v3268, %v3268
        %v3292 = vmul.f32 %v3272, %v3272
        %v3293 = vmul.f32 %v3274, %v3274
        %v3294 = vmul.f32 %v3276, %v3276
        %v3295 = vmul.f32 %v3278, %v3278
        %v3296 = vmul.f32 %v3288, 0.035677407
        %v3297 = vmul.f32 %v3289, 0.035677407
        %v3298 = vmul.f32 %v3290, 0.035677407
        %v3299 = vmul.f32 %v3291, 0.035677407
        %v3300 = vmul.f32 %v3292, 0.035677407
        %v3301 = vmul.f32 %v3293, 0.035677407
        %v3302 = vmul.f32 %v3294, 0.035677407
        %v3303 = vmul.f32 %v3295, 0.035677407
        %v3304 = vadd.f32 %v3296, 0.7978846
        %v3305 = vadd.f32 %v3297, 0.7978846
        %v3306 = vadd.f32 %v3298, 0.7978846
        %v3307 = vadd.f32 %v3299, 0.7978846
        %v3308 = vadd.f32 %v3300, 0.7978846
        %v3309 = vadd.f32 %v3301, 0.7978846
        %v3310 = vadd.f32 %v3302, 0.7978846
        %v3311 = vadd.f32 %v3303, 0.7978846
        %v3312 = vmul.f32 %v3262, %v3304
        %v3313 = vmul.f32 %v3264, %v3305
        %v3314 = vmul.f32 %v3266, %v3306
        %v3315 = vmul.f32 %v3268, %v3307
        %v3316 = vmul.f32 %v3272, %v3308
        %v3317 = vmul.f32 %v3274, %v3309
        %v3318 = vmul.f32 %v3276, %v3310
        %v3319 = vmul.f32 %v3278, %v3311
        %v3320 = vtanh.pop %v3312
        %v3321 = vtanh.pop %v3313
        %v3322 = vtanh.pop %v3314
        %v3323 = vtanh.pop %v3315
        %v3324 = vtanh.pop %v3316
        %v3325 = vtanh.pop %v3317
        %v3326 = vtanh.pop %v3318
        %v3327 = vtanh.pop %v3319
        %v3328 = vmul.f32 %v3280, %v3320
        %v3329 = vmul.f32 %v3281, %v3321
        %v3330 = vmul.f32 %v3282, %v3322
        %v3331 = vmul.f32 %v3283, %v3323
        %v3332 = vmul.f32 %v3284, %v3324
        %v3333 = vmul.f32 %v3285, %v3325
        %v3334 = vmul.f32 %v3286, %v3326
        %v3335 = vmul.f32 %v3287, %v3327
        %v3336 = vadd.f32 %v3280, %v3328
        %v3337 = vadd.f32 %v3281, %v3329
        %v3338 = vadd.f32 %v3282, %v3330
        %v3339 = vadd.f32 %v3283, %v3331
        %v3340 = vadd.f32 %v3284, %v3332
        %v3341 = vadd.f32 %v3285, %v3333
        %v3342 = vadd.f32 %v3286, %v3334
        %v3343 = vadd.f32 %v3287, %v3335
        %s3344 = scalar_lea.vmem %s344, 1536
        %v3345 = vld [vmem:[%s3344] sm:$0xff]
        %v3346 = vld [vmem:[%s3344 + $0x8] sm:$0xff]
        %v3347 = vld [vmem:[%s3344 + $0x10] sm:$0xff]
        %v3348 = vld [vmem:[%s3344 + $0x18] sm:$0xff]
        %v3349 = vld [vmem:[%s3344 + $0x20] sm:$0xff]
        %v3350 = vld [vmem:[%s3344 + $0x28] sm:$0xff]
        %v3351 = vld [vmem:[%s3344 + $0x30] sm:$0xff]
        %v3352 = vld [vmem:[%s3344 + $0x38] sm:$0xff]
        %v3353 = vld [vmem:[%s3344 + $0x40] sm:$0xff]
        %v3354 = vld [vmem:[%s3344 + $0x48] sm:$0xff]
        %v3355 = vld [vmem:[%s3344 + $0x50] sm:$0xff]
        %v3356 = vld [vmem:[%s3344 + $0x58] sm:$0xff]
        %v3357 = vld [vmem:[%s3344 + $0x60] sm:$0xff]
        %v3358 = vld [vmem:[%s3344 + $0x68] sm:$0xff]
        %v3359 = vld [vmem:[%s3344 + $0x70] sm:$0xff]
        %v3360 = vld [vmem:[%s3344 + $0x78] sm:$0xff]
        %v3361 = vld [vmem:[%s3344 + $0x80] sm:$0xff]
        %v3362 = vld [vmem:[%s3344 + $0x88] sm:$0xff]
        %v3363 = vld [vmem:[%s3344 + $0x90] sm:$0xff]
        %v3364 = vld [vmem:[%s3344 + $0x98] sm:$0xff]
        %v3365 = vld [vmem:[%s3344 + $0xa0] sm:$0xff]
        %v3366 = vld [vmem:[%s3344 + $0xa8] sm:$0xff]
        %v3367 = vld [vmem:[%s3344 + $0xb0] sm:$0xff]
        %v3368 = vld [vmem:[%s3344 + $0xb8] sm:$0xff]
        %v3369 = vld [vmem:[%s3344 + $0xc0] sm:$0xff]
        %v3370 = vld [vmem:[%s3344 + $0xc8] sm:$0xff]
        %v3371 = vld [vmem:[%s3344 + $0xd0] sm:$0xff]
        %v3372 = vld [vmem:[%s3344 + $0xd8] sm:$0xff]
        %v3373 = vld [vmem:[%s3344 + $0xe0] sm:$0xff]
        %v3374 = vld [vmem:[%s3344 + $0xe8] sm:$0xff]
        %v3375 = vld [vmem:[%s3344 + $0xf0] sm:$0xff]
        %v3376 = vld [vmem:[%s3344 + $0xf8] sm:$0xff]
        %s3377 = scalar_lea.vmem %s349, 6
        %v3378 = vld [vmem:[%s3377] ss:$8 sm:$0x3]
        %v3379 = vpack.c.bf16 %v3217, %v3215
        %v3380 = vpack.c.bf16 %v3218, %v3216
        %v3381 = vpack.c.bf16 %v3221, %v3219
        %v3382 = vpack.c.bf16 %v3222, %v3220
        %v3384 = vlaneseq
        %v3385 = vshrl.u32 %v3384, 7
        %v3386 = vsub.s32 0, %v3385
        %v3387 = vrot.slane %v3378, %v3386
        %v3388 = vlaneseq
        %v3389 = vshrl.u32 %v3388, 7
        %v3390 = vsub.s32 1, %v3389
        %v3391 = vrot.slane %v3378, %v3390
        %v3426 = vunpack.c.l.b16 %v3345
        %v3427 = vunpack.c.h.b16 %v3345
        %v3428 = vunpack.c.l.b16 %v3346
        %v3429 = vunpack.c.h.b16 %v3346
        %v3430 = vunpack.c.l.b16 %v3347
        %v3431 = vunpack.c.h.b16 %v3347
        %v3432 = vunpack.c.l.b16 %v3348
        %v3433 = vunpack.c.h.b16 %v3348
        %v3434 = vunpack.c.l.b16 %v3349
        %v3435 = vunpack.c.h.b16 %v3349
        %v3436 = vunpack.c.l.b16 %v3350
        %v3437 = vunpack.c.h.b16 %v3350
        %v3438 = vunpack.c.l.b16 %v3351
        %v3439 = vunpack.c.h.b16 %v3351
        %v3440 = vunpack.c.l.b16 %v3352
        %v3441 = vunpack.c.h.b16 %v3352
        %v3442 = vunpack.c.l.b16 %v3353
        %v3443 = vunpack.c.h.b16 %v3353
        %v3444 = vunpack.c.l.b16 %v3354
        %v3445 = vunpack.c.h.b16 %v3354
        %v3446 = vunpack.c.l.b16 %v3355
        %v3447 = vunpack.c.h.b16 %v3355
        %v3448 = vunpack.c.l.b16 %v3356
        %v3449 = vunpack.c.h.b16 %v3356
        %v3450 = vunpack.c.l.b16 %v3357
        %v3451 = vunpack.c.h.b16 %v3357
        %v3452 = vunpack.c.l.b16 %v3358
        %v3453 = vunpack.c.h.b16 %v3358
        %v3454 = vunpack.c.l.b16 %v3359
        %v3455 = vunpack.c.h.b16 %v3359
        %v3456 = vunpack.c.l.b16 %v3360
        %v3457 = vunpack.c.h.b16 %v3360
        %v3458 = vunpack.c.l.b16 %v3361
        %v3459 = vunpack.c.h.b16 %v3361
        %v3460 = vunpack.c.l.b16 %v3362
        %v3461 = vunpack.c.h.b16 %v3362
        %v3462 = vunpack.c.l.b16 %v3363
        %v3463 = vunpack.c.h.b16 %v3363
        %v3464 = vunpack.c.l.b16 %v3364
        %v3465 = vunpack.c.h.b16 %v3364
        %v3466 = vunpack.c.l.b16 %v3365
        %v3467 = vunpack.c.h.b16 %v3365
        %v3468 = vunpack.c.l.b16 %v3366
        %v3469 = vunpack.c.h.b16 %v3366
        %v3470 = vunpack.c.l.b16 %v3367
        %v3471 = vunpack.c.h.b16 %v3367
        %v3472 = vunpack.c.l.b16 %v3368
        %v3473 = vunpack.c.h.b16 %v3368
        %v3474 = vunpack.c.l.b16 %v3369
        %v3475 = vunpack.c.h.b16 %v3369
        %v3476 = vunpack.c.l.b16 %v3370
        %v3477 = vunpack.c.h.b16 %v3370
        %v3478 = vunpack.c.l.b16 %v3371
        %v3479 = vunpack.c.h.b16 %v3371
        %v3480 = vunpack.c.l.b16 %v3372
        %v3481 = vunpack.c.h.b16 %v3372
        %v3482 = vunpack.c.l.b16 %v3373
        %v3483 = vunpack.c.h.b16 %v3373
        %v3484 = vunpack.c.l.b16 %v3374
        %v3485 = vunpack.c.h.b16 %v3374
        %v3486 = vunpack.c.l.b16 %v3375
        %v3487 = vunpack.c.h.b16 %v3375
        %v3488 = vunpack.c.l.b16 %v3376
        %v3489 = vunpack.c.h.b16 %v3376
        %v3490 = vpack.c.b16 %v3428, %v3426
        %v3491 = vpack.c.b16 %v3429, %v3427
        %v3492 = vpack.c.b16 %v3432, %v3430
        %v3493 = vpack.c.b16 %v3433, %v3431
        %v3494 = vpack.c.b16 %v3436, %v3434
        %v3495 = vpack.c.b16 %v3437, %v3435
        %v3496 = vpack.c.b16 %v3440, %v3438
        %v3497 = vpack.c.b16 %v3441, %v3439
        %v3498 = vpack.c.b16 %v3444, %v3442
        %v3499 = vpack.c.b16 %v3445, %v3443
        %v3500 = vpack.c.b16 %v3448, %v3446
        %v3501 = vpack.c.b16 %v3449, %v3447
        %v3502 = vpack.c.b16 %v3452, %v3450
        %v3503 = vpack.c.b16 %v3453, %v3451
        %v3504 = vpack.c.b16 %v3456, %v3454
        %v3505 = vpack.c.b16 %v3457, %v3455
        %v3506 = vpack.c.b16 %v3460, %v3458
        %v3507 = vpack.c.b16 %v3461, %v3459
        %v3508 = vpack.c.b16 %v3464, %v3462
        %v3509 = vpack.c.b16 %v3465, %v3463
        %v3510 = vpack.c.b16 %v3468, %v3466
        %v3511 = vpack.c.b16 %v3469, %v3467
        %v3512 = vpack.c.b16 %v3472, %v3470
        %v3513 = vpack.c.b16 %v3473, %v3471
        %v3514 = vpack.c.b16 %v3476, %v3474
        %v3515 = vpack.c.b16 %v3477, %v3475
        %v3516 = vpack.c.b16 %v3480, %v3478
        %v3517 = vpack.c.b16 %v3481, %v3479
        %v3518 = vpack.c.b16 %v3484, %v3482
        %v3519 = vpack.c.b16 %v3485, %v3483
        %v3520 = vpack.c.b16 %v3488, %v3486
        %v3521 = vpack.c.b16 %v3489, %v3487
        %3554 = vmatprep.subr.bf16.mxu0 %v3505
        %3555 = vmatpush1.bf16.msra.mxu0 %v3504
        %3556 = vmatprep.subr.bf16.mxu0 %v3503
        %3557 = vmatpush1.bf16.msra.mxu0 %v3502
        %3558 = vmatprep.subr.bf16.mxu0 %v3501
        %3559 = vmatpush1.bf16.msra.mxu0 %v3500
        %3560 = vmatprep.subr.bf16.mxu0 %v3499
        %3561 = vmatpush1.bf16.msra.mxu0 %v3498
        %3562 = vmatprep.subr.bf16.mxu0 %v3497
        %3563 = vmatpush1.bf16.msra.mxu0 %v3496
        %3564 = vmatprep.subr.bf16.mxu0 %v3495
        %3565 = vmatpush1.bf16.msra.mxu0 %v3494
        %3566 = vmatprep.subr.bf16.mxu0 %v3493
        %3567 = vmatpush1.bf16.msra.mxu0 %v3492
        %3568 = vmatprep.subr.bf16.mxu0 %v3491
        %3569 = vmatpush1.bf16.msra.mxu0 %v3490
        %3570 = vmatprep.subr.bf16.mxu0 %v3521
        %3571 = vmatpush2.bf16.msra.mxu0 %v3520
        %3572 = vmatprep.subr.bf16.mxu0 %v3519
        %3573 = vmatpush2.bf16.msra.mxu0 %v3518
        %3574 = vmatprep.subr.bf16.mxu0 %v3517
        %3575 = vmatpush2.bf16.msra.mxu0 %v3516
        %3576 = vmatprep.subr.bf16.mxu0 %v3515
        %3577 = vmatpush2.bf16.msra.mxu0 %v3514
        %3578 = vmatprep.subr.bf16.mxu0 %v3513
        %3579 = vmatpush2.bf16.msra.mxu0 %v3512
        %3580 = vmatprep.subr.bf16.mxu0 %v3511
        %3581 = vmatpush2.bf16.msra.mxu0 %v3510
        %3582 = vmatprep.subr.bf16.mxu0 %v3509
        %3583 = vmatpush2.bf16.msra.mxu0 %v3508
        %3584 = vmatprep.subr.bf16.mxu0 %v3507
        %3585 = vmatpush2.bf16.msra.mxu0 %v3506
        %3586 = vmatprep.mubr.bf16.mxu0 %v3380
        %3587 = vmatmul.mubr.bf16.gmra.mxu0 %v3379
        %v3588 = vpop.f32.mrf.mxu0
        %v3589 = vadd.f32 %v3387, %v3588
        %v3590 = vpop.f32.mrf.mxu0
        %v3591 = vadd.f32 %v3391, %v3590
        %v3592 = vpop.f32.mrf.mxu0
        %v3593 = vadd.f32 %v3387, %v3592
        %v3594 = vpop.f32.mrf.mxu0
        %v3595 = vadd.f32 %v3391, %v3594
        %3596 = vmatprep.mubr.bf16.mxu0 %v3382
        %3597 = vmatmul.mubr.bf16.gmra.mxu0 %v3381
        %v3598 = vpop.f32.mrf.mxu0
        %v3599 = vadd.f32 %v3387, %v3598
        %v3600 = vpop.f32.mrf.mxu0
        %v3601 = vadd.f32 %v3391, %v3600
        %v3602 = vpop.f32.mrf.mxu0
        %v3603 = vadd.f32 %v3387, %v3602
        %v3604 = vpop.f32.mrf.mxu0
        %v3605 = vadd.f32 %v3391, %v3604
        %3606 = vdwg.mxu0
        %v3607 = vmul.f32 %v3589, 0.5
        %v3608 = vmul.f32 %v3591, 0.5
        %v3609 = vmul.f32 %v3593, 0.5
        %v3610 = vmul.f32 %v3595, 0.5
        %v3611 = vmul.f32 %v3599, 0.5
        %v3612 = vmul.f32 %v3601, 0.5
        %v3613 = vmul.f32 %v3603, 0.5
        %v3614 = vmul.f32 %v3605, 0.5
        %v3615 = vmul.f32 %v3589, %v3589
        %v3616 = vmul.f32 %v3591, %v3591
        %v3617 = vmul.f32 %v3593, %v3593
        %v3618 = vmul.f32 %v3595, %v3595
        %v3619 = vmul.f32 %v3599, %v3599
        %v3620 = vmul.f32 %v3601, %v3601
        %v3621 = vmul.f32 %v3603, %v3603
        %v3622 = vmul.f32 %v3605, %v3605
        %v3623 = vmul.f32 %v3615, 0.035677407
        %v3624 = vmul.f32 %v3616, 0.035677407
        %v3625 = vmul.f32 %v3617, 0.035677407
        %v3626 = vmul.f32 %v3618, 0.035677407
        %v3627 = vmul.f32 %v3619, 0.035677407
        %v3628 = vmul.f32 %v3620, 0.035677407
        %v3629 = vmul.f32 %v3621, 0.035677407
        %v3630 = vmul.f32 %v3622, 0.035677407
        %v3631 = vadd.f32 %v3623, 0.7978846
        %v3632 = vadd.f32 %v3624, 0.7978846
        %v3633 = vadd.f32 %v3625, 0.7978846
        %v3634 = vadd.f32 %v3626, 0.7978846
        %v3635 = vadd.f32 %v3627, 0.7978846
        %v3636 = vadd.f32 %v3628, 0.7978846
        %v3637 = vadd.f32 %v3629, 0.7978846
        %v3638 = vadd.f32 %v3630, 0.7978846
        %v3639 = vmul.f32 %v3589, %v3631
        %v3640 = vmul.f32 %v3591, %v3632
        %v3641 = vmul.f32 %v3593, %v3633
        %v3642 = vmul.f32 %v3595, %v3634
        %v3643 = vmul.f32 %v3599, %v3635
        %v3644 = vmul.f32 %v3601, %v3636
        %v3645 = vmul.f32 %v3603, %v3637
        %v3646 = vmul.f32 %v3605, %v3638
        %v3647 = vtanh.pop %v3639
        %v3648 = vtanh.pop %v3640
        %v3649 = vtanh.pop %v3641
        %v3650 = vtanh.pop %v3642
        %v3651 = vtanh.pop %v3643
        %v3652 = vtanh.pop %v3644
        %v3653 = vtanh.pop %v3645
        %v3654 = vtanh.pop %v3646
        %v3655 = vmul.f32 %v3607, %v3647
        %v3656 = vmul.f32 %v3608, %v3648
        %v3657 = vmul.f32 %v3609, %v3649
        %v3658 = vmul.f32 %v3610, %v3650
        %v3659 = vmul.f32 %v3611, %v3651
        %v3660 = vmul.f32 %v3612, %v3652
        %v3661 = vmul.f32 %v3613, %v3653
        %v3662 = vmul.f32 %v3614, %v3654
        %v3663 = vadd.f32 %v3607, %v3655
        %v3664 = vadd.f32 %v3608, %v3656
        %v3665 = vadd.f32 %v3609, %v3657
        %v3666 = vadd.f32 %v3610, %v3658
        %v3667 = vadd.f32 %v3611, %v3659
        %v3668 = vadd.f32 %v3612, %v3660
        %v3669 = vadd.f32 %v3613, %v3661
        %v3670 = vadd.f32 %v3614, %v3662
        %v3671 = vpack.c.bf16 %v3338, %v3336
        %v3672 = vpack.c.bf16 %v3339, %v3337
        %v3673 = vpack.c.bf16 %v3342, %v3340
        %v3674 = vpack.c.bf16 %v3343, %v3341
        %3675 = vmatprep.subr.bf16.mxu0 %v3505
        %3676 = vmatpush1.bf16.msra.mxu0 %v3504
        %3677 = vmatprep.subr.bf16.mxu0 %v3503
        %3678 = vmatpush1.bf16.msra.mxu0 %v3502
        %3679 = vmatprep.subr.bf16.mxu0 %v3501
        %3680 = vmatpush1.bf16.msra.mxu0 %v3500
        %3681 = vmatprep.subr.bf16.mxu0 %v3499
        %3682 = vmatpush1.bf16.msra.mxu0 %v3498
        %3683 = vmatprep.subr.bf16.mxu0 %v3497
        %3684 = vmatpush1.bf16.msra.mxu0 %v3496
        %3685 = vmatprep.subr.bf16.mxu0 %v3495
        %3686 = vmatpush1.bf16.msra.mxu0 %v3494
        %3687 = vmatprep.subr.bf16.mxu0 %v3493
        %3688 = vmatpush1.bf16.msra.mxu0 %v3492
        %3689 = vmatprep.subr.bf16.mxu0 %v3491
        %3690 = vmatpush1.bf16.msra.mxu0 %v3490
        %3691 = vmatprep.subr.bf16.mxu0 %v3521
        %3692 = vmatpush2.bf16.msra.mxu0 %v3520
        %3693 = vmatprep.subr.bf16.mxu0 %v3519
        %3694 = vmatpush2.bf16.msra.mxu0 %v3518
        %3695 = vmatprep.subr.bf16.mxu0 %v3517
        %3696 = vmatpush2.bf16.msra.mxu0 %v3516
        %3697 = vmatprep.subr.bf16.mxu0 %v3515
        %3698 = vmatpush2.bf16.msra.mxu0 %v3514
        %3699 = vmatprep.subr.bf16.mxu0 %v3513
        %3700 = vmatpush2.bf16.msra.mxu0 %v3512
        %3701 = vmatprep.subr.bf16.mxu0 %v3511
        %3702 = vmatpush2.bf16.msra.mxu0 %v3510
        %3703 = vmatprep.subr.bf16.mxu0 %v3509
        %3704 = vmatpush2.bf16.msra.mxu0 %v3508
        %3705 = vmatprep.subr.bf16.mxu0 %v3507
        %3706 = vmatpush2.bf16.msra.mxu0 %v3506
        %3707 = vmatprep.mubr.bf16.mxu0 %v3672
        %3708 = vmatmul.mubr.bf16.gmra.mxu0 %v3671
        %v3709 = vpop.f32.mrf.mxu0
        %v3710 = vadd.f32 %v3387, %v3709
        %v3711 = vpop.f32.mrf.mxu0
        %v3712 = vadd.f32 %v3391, %v3711
        %v3713 = vpop.f32.mrf.mxu0
        %v3714 = vadd.f32 %v3387, %v3713
        %v3715 = vpop.f32.mrf.mxu0
        %v3716 = vadd.f32 %v3391, %v3715
        %3717 = vmatprep.mubr.bf16.mxu0 %v3674
        %3718 = vmatmul.mubr.bf16.gmra.mxu0 %v3673
        %v3719 = vpop.f32.mrf.mxu0
        %v3720 = vadd.f32 %v3387, %v3719
        %v3721 = vpop.f32.mrf.mxu0
        %v3722 = vadd.f32 %v3391, %v3721
        %v3723 = vpop.f32.mrf.mxu0
        %v3724 = vadd.f32 %v3387, %v3723
        %v3725 = vpop.f32.mrf.mxu0
        %v3726 = vadd.f32 %v3391, %v3725
        %3727 = vdwg.mxu0
        %v3728 = vmul.f32 %v3710, 0.5
        %v3729 = vmul.f32 %v3712, 0.5
        %v3730 = vmul.f32 %v3714, 0.5
        %v3731 = vmul.f32 %v3716, 0.5
        %v3732 = vmul.f32 %v3720, 0.5
        %v3733 = vmul.f32 %v3722, 0.5
        %v3734 = vmul.f32 %v3724, 0.5
        %v3735 = vmul.f32 %v3726, 0.5
        %v3736 = vmul.f32 %v3710, %v3710
        %v3737 = vmul.f32 %v3712, %v3712
        %v3738 = vmul.f32 %v3714, %v3714
        %v3739 = vmul.f32 %v3716, %v3716
        %v3740 = vmul.f32 %v3720, %v3720
        %v3741 = vmul.f32 %v3722, %v3722
        %v3742 = vmul.f32 %v3724, %v3724
        %v3743 = vmul.f32 %v3726, %v3726
        %v3744 = vmul.f32 %v3736, 0.035677407
        %v3745 = vmul.f32 %v3737, 0.035677407
        %v3746 = vmul.f32 %v3738, 0.035677407
        %v3747 = vmul.f32 %v3739, 0.035677407
        %v3748 = vmul.f32 %v3740, 0.035677407
        %v3749 = vmul.f32 %v3741, 0.035677407
        %v3750 = vmul.f32 %v3742, 0.035677407
        %v3751 = vmul.f32 %v3743, 0.035677407
        %v3752 = vadd.f32 %v3744, 0.7978846
        %v3753 = vadd.f32 %v3745, 0.7978846
        %v3754 = vadd.f32 %v3746, 0.7978846
        %v3755 = vadd.f32 %v3747, 0.7978846
        %v3756 = vadd.f32 %v3748, 0.7978846
        %v3757 = vadd.f32 %v3749, 0.7978846
        %v3758 = vadd.f32 %v3750, 0.7978846
        %v3759 = vadd.f32 %v3751, 0.7978846
        %v3760 = vmul.f32 %v3710, %v3752
        %v3761 = vmul.f32 %v3712, %v3753
        %v3762 = vmul.f32 %v3714, %v3754
        %v3763 = vmul.f32 %v3716, %v3755
        %v3764 = vmul.f32 %v3720, %v3756
        %v3765 = vmul.f32 %v3722, %v3757
        %v3766 = vmul.f32 %v3724, %v3758
        %v3767 = vmul.f32 %v3726, %v3759
        %v3768 = vtanh.pop %v3760
        %v3769 = vtanh.pop %v3761
        %v3770 = vtanh.pop %v3762
        %v3771 = vtanh.pop %v3763
        %v3772 = vtanh.pop %v3764
        %v3773 = vtanh.pop %v3765
        %v3774 = vtanh.pop %v3766
        %v3775 = vtanh.pop %v3767
        %v3776 = vmul.f32 %v3728, %v3768
        %v3777 = vmul.f32 %v3729, %v3769
        %v3778 = vmul.f32 %v3730, %v3770
        %v3779 = vmul.f32 %v3731, %v3771
        %v3780 = vmul.f32 %v3732, %v3772
        %v3781 = vmul.f32 %v3733, %v3773
        %v3782 = vmul.f32 %v3734, %v3774
        %v3783 = vmul.f32 %v3735, %v3775
        %v3784 = vadd.f32 %v3728, %v3776
        %v3785 = vadd.f32 %v3729, %v3777
        %v3786 = vadd.f32 %v3730, %v3778
        %v3787 = vadd.f32 %v3731, %v3779
        %v3788 = vadd.f32 %v3732, %v3780
        %v3789 = vadd.f32 %v3733, %v3781
        %v3790 = vadd.f32 %v3734, %v3782
        %v3791 = vadd.f32 %v3735, %v3783
        %s3792 = scalar_lea.vmem %s344, 1792
        %v3793 = vld [vmem:[%s3792] sm:$0xff]
        %v3794 = vld [vmem:[%s3792 + $0x8] sm:$0xff]
        %v3795 = vld [vmem:[%s3792 + $0x10] sm:$0xff]
        %v3796 = vld [vmem:[%s3792 + $0x18] sm:$0xff]
        %v3797 = vld [vmem:[%s3792 + $0x20] sm:$0xff]
        %v3798 = vld [vmem:[%s3792 + $0x28] sm:$0xff]
        %v3799 = vld [vmem:[%s3792 + $0x30] sm:$0xff]
        %v3800 = vld [vmem:[%s3792 + $0x38] sm:$0xff]
        %v3801 = vld [vmem:[%s3792 + $0x40] sm:$0xff]
        %v3802 = vld [vmem:[%s3792 + $0x48] sm:$0xff]
        %v3803 = vld [vmem:[%s3792 + $0x50] sm:$0xff]
        %v3804 = vld [vmem:[%s3792 + $0x58] sm:$0xff]
        %v3805 = vld [vmem:[%s3792 + $0x60] sm:$0xff]
        %v3806 = vld [vmem:[%s3792 + $0x68] sm:$0xff]
        %v3807 = vld [vmem:[%s3792 + $0x70] sm:$0xff]
        %v3808 = vld [vmem:[%s3792 + $0x78] sm:$0xff]
        %v3809 = vld [vmem:[%s3792 + $0x80] sm:$0xff]
        %v3810 = vld [vmem:[%s3792 + $0x88] sm:$0xff]
        %v3811 = vld [vmem:[%s3792 + $0x90] sm:$0xff]
        %v3812 = vld [vmem:[%s3792 + $0x98] sm:$0xff]
        %v3813 = vld [vmem:[%s3792 + $0xa0] sm:$0xff]
        %v3814 = vld [vmem:[%s3792 + $0xa8] sm:$0xff]
        %v3815 = vld [vmem:[%s3792 + $0xb0] sm:$0xff]
        %v3816 = vld [vmem:[%s3792 + $0xb8] sm:$0xff]
        %v3817 = vld [vmem:[%s3792 + $0xc0] sm:$0xff]
        %v3818 = vld [vmem:[%s3792 + $0xc8] sm:$0xff]
        %v3819 = vld [vmem:[%s3792 + $0xd0] sm:$0xff]
        %v3820 = vld [vmem:[%s3792 + $0xd8] sm:$0xff]
        %v3821 = vld [vmem:[%s3792 + $0xe0] sm:$0xff]
        %v3822 = vld [vmem:[%s3792 + $0xe8] sm:$0xff]
        %v3823 = vld [vmem:[%s3792 + $0xf0] sm:$0xff]
        %v3824 = vld [vmem:[%s3792 + $0xf8] sm:$0xff]
        %s3825 = scalar_lea.vmem %s349, 7
        %v3826 = vld [vmem:[%s3825] ss:$8 sm:$0x3]
        %v3827 = vpack.c.bf16 %v3665, %v3663
        %v3828 = vpack.c.bf16 %v3666, %v3664
        %v3829 = vpack.c.bf16 %v3669, %v3667
        %v3830 = vpack.c.bf16 %v3670, %v3668
        %v3832 = vlaneseq
        %v3833 = vshrl.u32 %v3832, 7
        %v3834 = vsub.s32 0, %v3833
        %v3835 = vrot.slane %v3826, %v3834
        %v3836 = vlaneseq
        %v3837 = vshrl.u32 %v3836, 7
        %v3838 = vsub.s32 1, %v3837
        %v3839 = vrot.slane %v3826, %v3838
        %v3874 = vunpack.c.l.b16 %v3793
        %v3875 = vunpack.c.h.b16 %v3793
        %v3876 = vunpack.c.l.b16 %v3794
        %v3877 = vunpack.c.h.b16 %v3794
        %v3878 = vunpack.c.l.b16 %v3795
        %v3879 = vunpack.c.h.b16 %v3795
        %v3880 = vunpack.c.l.b16 %v3796
        %v3881 = vunpack.c.h.b16 %v3796
        %v3882 = vunpack.c.l.b16 %v3797
        %v3883 = vunpack.c.h.b16 %v3797
        %v3884 = vunpack.c.l.b16 %v3798
        %v3885 = vunpack.c.h.b16 %v3798
        %v3886 = vunpack.c.l.b16 %v3799
        %v3887 = vunpack.c.h.b16 %v3799
        %v3888 = vunpack.c.l.b16 %v3800
        %v3889 = vunpack.c.h.b16 %v3800
        %v3890 = vunpack.c.l.b16 %v3801
        %v3891 = vunpack.c.h.b16 %v3801
        %v3892 = vunpack.c.l.b16 %v3802
        %v3893 = vunpack.c.h.b16 %v3802
        %v3894 = vunpack.c.l.b16 %v3803
        %v3895 = vunpack.c.h.b16 %v3803
        %v3896 = vunpack.c.l.b16 %v3804
        %v3897 = vunpack.c.h.b16 %v3804
        %v3898 = vunpack.c.l.b16 %v3805
        %v3899 = vunpack.c.h.b16 %v3805
        %v3900 = vunpack.c.l.b16 %v3806
        %v3901 = vunpack.c.h.b16 %v3806
        %v3902 = vunpack.c.l.b16 %v3807
        %v3903 = vunpack.c.h.b16 %v3807
        %v3904 = vunpack.c.l.b16 %v3808
        %v3905 = vunpack.c.h.b16 %v3808
        %v3906 = vunpack.c.l.b16 %v3809
        %v3907 = vunpack.c.h.b16 %v3809
        %v3908 = vunpack.c.l.b16 %v3810
        %v3909 = vunpack.c.h.b16 %v3810
        %v3910 = vunpack.c.l.b16 %v3811
        %v3911 = vunpack.c.h.b16 %v3811
        %v3912 = vunpack.c.l.b16 %v3812
        %v3913 = vunpack.c.h.b16 %v3812
        %v3914 = vunpack.c.l.b16 %v3813
        %v3915 = vunpack.c.h.b16 %v3813
        %v3916 = vunpack.c.l.b16 %v3814
        %v3917 = vunpack.c.h.b16 %v3814
        %v3918 = vunpack.c.l.b16 %v3815
        %v3919 = vunpack.c.h.b16 %v3815
        %v3920 = vunpack.c.l.b16 %v3816
        %v3921 = vunpack.c.h.b16 %v3816
        %v3922 = vunpack.c.l.b16 %v3817
        %v3923 = vunpack.c.h.b16 %v3817
        %v3924 = vunpack.c.l.b16 %v3818
        %v3925 = vunpack.c.h.b16 %v3818
        %v3926 = vunpack.c.l.b16 %v3819
        %v3927 = vunpack.c.h.b16 %v3819
        %v3928 = vunpack.c.l.b16 %v3820
        %v3929 = vunpack.c.h.b16 %v3820
        %v3930 = vunpack.c.l.b16 %v3821
        %v3931 = vunpack.c.h.b16 %v3821
        %v3932 = vunpack.c.l.b16 %v3822
        %v3933 = vunpack.c.h.b16 %v3822
        %v3934 = vunpack.c.l.b16 %v3823
        %v3935 = vunpack.c.h.b16 %v3823
        %v3936 = vunpack.c.l.b16 %v3824
        %v3937 = vunpack.c.h.b16 %v3824
        %v3938 = vpack.c.b16 %v3876, %v3874
        %v3939 = vpack.c.b16 %v3877, %v3875
        %v3940 = vpack.c.b16 %v3880, %v3878
        %v3941 = vpack.c.b16 %v3881, %v3879
        %v3942 = vpack.c.b16 %v3884, %v3882
        %v3943 = vpack.c.b16 %v3885, %v3883
        %v3944 = vpack.c.b16 %v3888, %v3886
        %v3945 = vpack.c.b16 %v3889, %v3887
        %v3946 = vpack.c.b16 %v3892, %v3890
        %v3947 = vpack.c.b16 %v3893, %v3891
        %v3948 = vpack.c.b16 %v3896, %v3894
        %v3949 = vpack.c.b16 %v3897, %v3895
        %v3950 = vpack.c.b16 %v3900, %v3898
        %v3951 = vpack.c.b16 %v3901, %v3899
        %v3952 = vpack.c.b16 %v3904, %v3902
        %v3953 = vpack.c.b16 %v3905, %v3903
        %v3954 = vpack.c.b16 %v3908, %v3906
        %v3955 = vpack.c.b16 %v3909, %v3907
        %v3956 = vpack.c.b16 %v3912, %v3910
        %v3957 = vpack.c.b16 %v3913, %v3911
        %v3958 = vpack.c.b16 %v3916, %v3914
        %v3959 = vpack.c.b16 %v3917, %v3915
        %v3960 = vpack.c.b16 %v3920, %v3918
        %v3961 = vpack.c.b16 %v3921, %v3919
        %v3962 = vpack.c.b16 %v3924, %v3922
        %v3963 = vpack.c.b16 %v3925, %v3923
        %v3964 = vpack.c.b16 %v3928, %v3926
        %v3965 = vpack.c.b16 %v3929, %v3927
        %v3966 = vpack.c.b16 %v3932, %v3930
        %v3967 = vpack.c.b16 %v3933, %v3931
        %v3968 = vpack.c.b16 %v3936, %v3934
        %v3969 = vpack.c.b16 %v3937, %v3935
        %4002 = vmatprep.subr.bf16.mxu0 %v3953
        %4003 = vmatpush1.bf16.msra.mxu0 %v3952
        %4004 = vmatprep.subr.bf16.mxu0 %v3951
        %4005 = vmatpush1.bf16.msra.mxu0 %v3950
        %4006 = vmatprep.subr.bf16.mxu0 %v3949
        %4007 = vmatpush1.bf16.msra.mxu0 %v3948
        %4008 = vmatprep.subr.bf16.mxu0 %v3947
        %4009 = vmatpush1.bf16.msra.mxu0 %v3946
        %4010 = vmatprep.subr.bf16.mxu0 %v3945
        %4011 = vmatpush1.bf16.msra.mxu0 %v3944
        %4012 = vmatprep.subr.bf16.mxu0 %v3943
        %4013 = vmatpush1.bf16.msra.mxu0 %v3942
        %4014 = vmatprep.subr.bf16.mxu0 %v3941
        %4015 = vmatpush1.bf16.msra.mxu0 %v3940
        %4016 = vmatprep.subr.bf16.mxu0 %v3939
        %4017 = vmatpush1.bf16.msra.mxu0 %v3938
        %4018 = vmatprep.subr.bf16.mxu0 %v3969
        %4019 = vmatpush2.bf16.msra.mxu0 %v3968
        %4020 = vmatprep.subr.bf16.mxu0 %v3967
        %4021 = vmatpush2.bf16.msra.mxu0 %v3966
        %4022 = vmatprep.subr.bf16.mxu0 %v3965
        %4023 = vmatpush2.bf16.msra.mxu0 %v3964
        %4024 = vmatprep.subr.bf16.mxu0 %v3963
        %4025 = vmatpush2.bf16.msra.mxu0 %v3962
        %4026 = vmatprep.subr.bf16.mxu0 %v3961
        %4027 = vmatpush2.bf16.msra.mxu0 %v3960
        %4028 = vmatprep.subr.bf16.mxu0 %v3959
        %4029 = vmatpush2.bf16.msra.mxu0 %v3958
        %4030 = vmatprep.subr.bf16.mxu0 %v3957
        %4031 = vmatpush2.bf16.msra.mxu0 %v3956
        %4032 = vmatprep.subr.bf16.mxu0 %v3955
        %4033 = vmatpush2.bf16.msra.mxu0 %v3954
        %4034 = vmatprep.mubr.bf16.mxu0 %v3828
        %4035 = vmatmul.mubr.bf16.gmra.mxu0 %v3827
        %v4036 = vpop.f32.mrf.mxu0
        %v4037 = vadd.f32 %v3835, %v4036
        %v4038 = vpop.f32.mrf.mxu0
        %v4039 = vadd.f32 %v3839, %v4038
        %v4040 = vpop.f32.mrf.mxu0
        %v4041 = vadd.f32 %v3835, %v4040
        %v4042 = vpop.f32.mrf.mxu0
        %v4043 = vadd.f32 %v3839, %v4042
        %4044 = vmatprep.mubr.bf16.mxu0 %v3830
        %4045 = vmatmul.mubr.bf16.gmra.mxu0 %v3829
        %v4046 = vpop.f32.mrf.mxu0
        %v4047 = vadd.f32 %v3835, %v4046
        %v4048 = vpop.f32.mrf.mxu0
        %v4049 = vadd.f32 %v3839, %v4048
        %v4050 = vpop.f32.mrf.mxu0
        %v4051 = vadd.f32 %v3835, %v4050
        %v4052 = vpop.f32.mrf.mxu0
        %v4053 = vadd.f32 %v3839, %v4052
        %4054 = vdwg.mxu0
        %v4055 = vmul.f32 %v4037, 0.5
        %v4056 = vmul.f32 %v4039, 0.5
        %v4057 = vmul.f32 %v4041, 0.5
        %v4058 = vmul.f32 %v4043, 0.5
        %v4059 = vmul.f32 %v4047, 0.5
        %v4060 = vmul.f32 %v4049, 0.5
        %v4061 = vmul.f32 %v4051, 0.5
        %v4062 = vmul.f32 %v4053, 0.5
        %v4063 = vmul.f32 %v4037, %v4037
        %v4064 = vmul.f32 %v4039, %v4039
        %v4065 = vmul.f32 %v4041, %v4041
        %v4066 = vmul.f32 %v4043, %v4043
        %v4067 = vmul.f32 %v4047, %v4047
        %v4068 = vmul.f32 %v4049, %v4049
        %v4069 = vmul.f32 %v4051, %v4051
        %v4070 = vmul.f32 %v4053, %v4053
        %v4071 = vmul.f32 %v4063, 0.035677407
        %v4072 = vmul.f32 %v4064, 0.035677407
        %v4073 = vmul.f32 %v4065, 0.035677407
        %v4074 = vmul.f32 %v4066, 0.035677407
        %v4075 = vmul.f32 %v4067, 0.035677407
        %v4076 = vmul.f32 %v4068, 0.035677407
        %v4077 = vmul.f32 %v4069, 0.035677407
        %v4078 = vmul.f32 %v4070, 0.035677407
        %v4079 = vadd.f32 %v4071, 0.7978846
        %v4080 = vadd.f32 %v4072, 0.7978846
        %v4081 = vadd.f32 %v4073, 0.7978846
        %v4082 = vadd.f32 %v4074, 0.7978846
        %v4083 = vadd.f32 %v4075, 0.7978846
        %v4084 = vadd.f32 %v4076, 0.7978846
        %v4085 = vadd.f32 %v4077, 0.7978846
        %v4086 = vadd.f32 %v4078, 0.7978846
        %v4087 = vmul.f32 %v4037, %v4079
        %v4088 = vmul.f32 %v4039, %v4080
        %v4089 = vmul.f32 %v4041, %v4081
        %v4090 = vmul.f32 %v4043, %v4082
        %v4091 = vmul.f32 %v4047, %v4083
        %v4092 = vmul.f32 %v4049, %v4084
        %v4093 = vmul.f32 %v4051, %v4085
        %v4094 = vmul.f32 %v4053, %v4086
        %v4095 = vtanh.pop %v4087
        %v4096 = vtanh.pop %v4088
        %v4097 = vtanh.pop %v4089
        %v4098 = vtanh.pop %v4090
        %v4099 = vtanh.pop %v4091
        %v4100 = vtanh.pop %v4092
        %v4101 = vtanh.pop %v4093
        %v4102 = vtanh.pop %v4094
        %v4103 = vmul.f32 %v4055, %v4095
        %v4104 = vmul.f32 %v4056, %v4096
        %v4105 = vmul.f32 %v4057, %v4097
        %v4106 = vmul.f32 %v4058, %v4098
        %v4107 = vmul.f32 %v4059, %v4099
        %v4108 = vmul.f32 %v4060, %v4100
        %v4109 = vmul.f32 %v4061, %v4101
        %v4110 = vmul.f32 %v4062, %v4102
        %v4111 = vadd.f32 %v4055, %v4103
        %v4112 = vadd.f32 %v4056, %v4104
        %v4113 = vadd.f32 %v4057, %v4105
        %v4114 = vadd.f32 %v4058, %v4106
        %v4115 = vadd.f32 %v4059, %v4107
        %v4116 = vadd.f32 %v4060, %v4108
        %v4117 = vadd.f32 %v4061, %v4109
        %v4118 = vadd.f32 %v4062, %v4110
        %v4119 = vpack.c.bf16 %v3786, %v3784
        %v4120 = vpack.c.bf16 %v3787, %v3785
        %v4121 = vpack.c.bf16 %v3790, %v3788
        %v4122 = vpack.c.bf16 %v3791, %v3789
        %4123 = vmatprep.subr.bf16.mxu0 %v3953
        %4124 = vmatpush1.bf16.msra.mxu0 %v3952
        %4125 = vmatprep.subr.bf16.mxu0 %v3951
        %4126 = vmatpush1.bf16.msra.mxu0 %v3950
        %4127 = vmatprep.subr.bf16.mxu0 %v3949
        %4128 = vmatpush1.bf16.msra.mxu0 %v3948
        %4129 = vmatprep.subr.bf16.mxu0 %v3947
        %4130 = vmatpush1.bf16.msra.mxu0 %v3946
        %4131 = vmatprep.subr.bf16.mxu0 %v3945
        %4132 = vmatpush1.bf16.msra.mxu0 %v3944
        %4133 = vmatprep.subr.bf16.mxu0 %v3943
        %4134 = vmatpush1.bf16.msra.mxu0 %v3942
        %4135 = vmatprep.subr.bf16.mxu0 %v3941
        %4136 = vmatpush1.bf16.msra.mxu0 %v3940
        %4137 = vmatprep.subr.bf16.mxu0 %v3939
        %4138 = vmatpush1.bf16.msra.mxu0 %v3938
        %4139 = vmatprep.subr.bf16.mxu0 %v3969
        %4140 = vmatpush2.bf16.msra.mxu0 %v3968
        %4141 = vmatprep.subr.bf16.mxu0 %v3967
        %4142 = vmatpush2.bf16.msra.mxu0 %v3966
        %4143 = vmatprep.subr.bf16.mxu0 %v3965
        %4144 = vmatpush2.bf16.msra.mxu0 %v3964
        %4145 = vmatprep.subr.bf16.mxu0 %v3963
        %4146 = vmatpush2.bf16.msra.mxu0 %v3962
        %4147 = vmatprep.subr.bf16.mxu0 %v3961
        %4148 = vmatpush2.bf16.msra.mxu0 %v3960
        %4149 = vmatprep.subr.bf16.mxu0 %v3959
        %4150 = vmatpush2.bf16.msra.mxu0 %v3958
        %4151 = vmatprep.subr.bf16.mxu0 %v3957
        %4152 = vmatpush2.bf16.msra.mxu0 %v3956
        %4153 = vmatprep.subr.bf16.mxu0 %v3955
        %4154 = vmatpush2.bf16.msra.mxu0 %v3954
        %4155 = vmatprep.mubr.bf16.mxu0 %v4120
        %4156 = vmatmul.mubr.bf16.gmra.mxu0 %v4119
        %v4157 = vpop.f32.mrf.mxu0
        %v4158 = vadd.f32 %v3835, %v4157
        %v4159 = vpop.f32.mrf.mxu0
        %v4160 = vadd.f32 %v3839, %v4159
        %v4161 = vpop.f32.mrf.mxu0
        %v4162 = vadd.f32 %v3835, %v4161
        %v4163 = vpop.f32.mrf.mxu0
        %v4164 = vadd.f32 %v3839, %v4163
        %4165 = vmatprep.mubr.bf16.mxu0 %v4122
        %4166 = vmatmul.mubr.bf16.gmra.mxu0 %v4121
        %v4167 = vpop.f32.mrf.mxu0
        %v4168 = vadd.f32 %v3835, %v4167
        %v4169 = vpop.f32.mrf.mxu0
        %v4170 = vadd.f32 %v3839, %v4169
        %v4171 = vpop.f32.mrf.mxu0
        %v4172 = vadd.f32 %v3835, %v4171
        %v4173 = vpop.f32.mrf.mxu0
        %v4174 = vadd.f32 %v3839, %v4173
        %4175 = vdwg.mxu0
        %v4176 = vmul.f32 %v4158, 0.5
        %v4177 = vmul.f32 %v4160, 0.5
        %v4178 = vmul.f32 %v4162, 0.5
        %v4179 = vmul.f32 %v4164, 0.5
        %v4180 = vmul.f32 %v4168, 0.5
        %v4181 = vmul.f32 %v4170, 0.5
        %v4182 = vmul.f32 %v4172, 0.5
        %v4183 = vmul.f32 %v4174, 0.5
        %v4184 = vmul.f32 %v4158, %v4158
        %v4185 = vmul.f32 %v4160, %v4160
        %v4186 = vmul.f32 %v4162, %v4162
        %v4187 = vmul.f32 %v4164, %v4164
        %v4188 = vmul.f32 %v4168, %v4168
        %v4189 = vmul.f32 %v4170, %v4170
        %v4190 = vmul.f32 %v4172, %v4172
        %v4191 = vmul.f32 %v4174, %v4174
        %v4192 = vmul.f32 %v4184, 0.035677407
        %v4193 = vmul.f32 %v4185, 0.035677407
        %v4194 = vmul.f32 %v4186, 0.035677407
        %v4195 = vmul.f32 %v4187, 0.035677407
        %v4196 = vmul.f32 %v4188, 0.035677407
        %v4197 = vmul.f32 %v4189, 0.035677407
        %v4198 = vmul.f32 %v4190, 0.035677407
        %v4199 = vmul.f32 %v4191, 0.035677407
        %v4200 = vadd.f32 %v4192, 0.7978846
        %v4201 = vadd.f32 %v4193, 0.7978846
        %v4202 = vadd.f32 %v4194, 0.7978846
        %v4203 = vadd.f32 %v4195, 0.7978846
        %v4204 = vadd.f32 %v4196, 0.7978846
        %v4205 = vadd.f32 %v4197, 0.7978846
        %v4206 = vadd.f32 %v4198, 0.7978846
        %v4207 = vadd.f32 %v4199, 0.7978846
        %v4208 = vmul.f32 %v4158, %v4200
        %v4209 = vmul.f32 %v4160, %v4201
        %v4210 = vmul.f32 %v4162, %v4202
        %v4211 = vmul.f32 %v4164, %v4203
        %v4212 = vmul.f32 %v4168, %v4204
        %v4213 = vmul.f32 %v4170, %v4205
        %v4214 = vmul.f32 %v4172, %v4206
        %v4215 = vmul.f32 %v4174, %v4207
        %v4216 = vtanh.pop %v4208
        %v4217 = vtanh.pop %v4209
        %v4218 = vtanh.pop %v4210
        %v4219 = vtanh.pop %v4211
        %v4220 = vtanh.pop %v4212
        %v4221 = vtanh.pop %v4213
        %v4222 = vtanh.pop %v4214
        %v4223 = vtanh.pop %v4215
        %v4224 = vmul.f32 %v4176, %v4216
        %v4225 = vmul.f32 %v4177, %v4217
        %v4226 = vmul.f32 %v4178, %v4218
        %v4227 = vmul.f32 %v4179, %v4219
        %v4228 = vmul.f32 %v4180, %v4220
        %v4229 = vmul.f32 %v4181, %v4221
        %v4230 = vmul.f32 %v4182, %v4222
        %v4231 = vmul.f32 %v4183, %v4223
        %v4232 = vadd.f32 %v4176, %v4224
        %v4233 = vadd.f32 %v4177, %v4225
        %v4234 = vadd.f32 %v4178, %v4226
        %v4235 = vadd.f32 %v4179, %v4227
        %v4236 = vadd.f32 %v4180, %v4228
        %v4237 = vadd.f32 %v4181, %v4229
        %v4238 = vadd.f32 %v4182, %v4230
        %v4239 = vadd.f32 %v4183, %v4231
        %s4240 = scalar_lea.vmem %s344, 2048
        %v4241 = vld [vmem:[%s4240] sm:$0xff]
        %v4242 = vld [vmem:[%s4240 + $0x8] sm:$0xff]
        %v4243 = vld [vmem:[%s4240 + $0x10] sm:$0xff]
        %v4244 = vld [vmem:[%s4240 + $0x18] sm:$0xff]
        %v4245 = vld [vmem:[%s4240 + $0x20] sm:$0xff]
        %v4246 = vld [vmem:[%s4240 + $0x28] sm:$0xff]
        %v4247 = vld [vmem:[%s4240 + $0x30] sm:$0xff]
        %v4248 = vld [vmem:[%s4240 + $0x38] sm:$0xff]
        %v4249 = vld [vmem:[%s4240 + $0x40] sm:$0xff]
        %v4250 = vld [vmem:[%s4240 + $0x48] sm:$0xff]
        %v4251 = vld [vmem:[%s4240 + $0x50] sm:$0xff]
        %v4252 = vld [vmem:[%s4240 + $0x58] sm:$0xff]
        %v4253 = vld [vmem:[%s4240 + $0x60] sm:$0xff]
        %v4254 = vld [vmem:[%s4240 + $0x68] sm:$0xff]
        %v4255 = vld [vmem:[%s4240 + $0x70] sm:$0xff]
        %v4256 = vld [vmem:[%s4240 + $0x78] sm:$0xff]
        %v4257 = vld [vmem:[%s4240 + $0x80] sm:$0xff]
        %v4258 = vld [vmem:[%s4240 + $0x88] sm:$0xff]
        %v4259 = vld [vmem:[%s4240 + $0x90] sm:$0xff]
        %v4260 = vld [vmem:[%s4240 + $0x98] sm:$0xff]
        %v4261 = vld [vmem:[%s4240 + $0xa0] sm:$0xff]
        %v4262 = vld [vmem:[%s4240 + $0xa8] sm:$0xff]
        %v4263 = vld [vmem:[%s4240 + $0xb0] sm:$0xff]
        %v4264 = vld [vmem:[%s4240 + $0xb8] sm:$0xff]
        %v4265 = vld [vmem:[%s4240 + $0xc0] sm:$0xff]
        %v4266 = vld [vmem:[%s4240 + $0xc8] sm:$0xff]
        %v4267 = vld [vmem:[%s4240 + $0xd0] sm:$0xff]
        %v4268 = vld [vmem:[%s4240 + $0xd8] sm:$0xff]
        %v4269 = vld [vmem:[%s4240 + $0xe0] sm:$0xff]
        %v4270 = vld [vmem:[%s4240 + $0xe8] sm:$0xff]
        %v4271 = vld [vmem:[%s4240 + $0xf0] sm:$0xff]
        %v4272 = vld [vmem:[%s4240 + $0xf8] sm:$0xff]
        %s4273 = scalar_lea.vmem %s349, 16
        %v4274 = vld [vmem:[%s4273] ss:$8 sm:$0x3]
        %v4275 = vpack.c.bf16 %v4113, %v4111
        %v4276 = vpack.c.bf16 %v4114, %v4112
        %v4277 = vpack.c.bf16 %v4117, %v4115
        %v4278 = vpack.c.bf16 %v4118, %v4116
        %v4280 = vlaneseq
        %v4281 = vshrl.u32 %v4280, 7
        %v4282 = vsub.s32 0, %v4281
        %v4283 = vrot.slane %v4274, %v4282
        %v4284 = vlaneseq
        %v4285 = vshrl.u32 %v4284, 7
        %v4286 = vsub.s32 1, %v4285
        %v4287 = vrot.slane %v4274, %v4286
        %v4322 = vunpack.c.l.b16 %v4241
        %v4323 = vunpack.c.h.b16 %v4241
        %v4324 = vunpack.c.l.b16 %v4242
        %v4325 = vunpack.c.h.b16 %v4242
        %v4326 = vunpack.c.l.b16 %v4243
        %v4327 = vunpack.c.h.b16 %v4243
        %v4328 = vunpack.c.l.b16 %v4244
        %v4329 = vunpack.c.h.b16 %v4244
        %v4330 = vunpack.c.l.b16 %v4245
        %v4331 = vunpack.c.h.b16 %v4245
        %v4332 = vunpack.c.l.b16 %v4246
        %v4333 = vunpack.c.h.b16 %v4246
        %v4334 = vunpack.c.l.b16 %v4247
        %v4335 = vunpack.c.h.b16 %v4247
        %v4336 = vunpack.c.l.b16 %v4248
        %v4337 = vunpack.c.h.b16 %v4248
        %v4338 = vunpack.c.l.b16 %v4249
        %v4339 = vunpack.c.h.b16 %v4249
        %v4340 = vunpack.c.l.b16 %v4250
        %v4341 = vunpack.c.h.b16 %v4250
        %v4342 = vunpack.c.l.b16 %v4251
        %v4343 = vunpack.c.h.b16 %v4251
        %v4344 = vunpack.c.l.b16 %v4252
        %v4345 = vunpack.c.h.b16 %v4252
        %v4346 = vunpack.c.l.b16 %v4253
        %v4347 = vunpack.c.h.b16 %v4253
        %v4348 = vunpack.c.l.b16 %v4254
        %v4349 = vunpack.c.h.b16 %v4254
        %v4350 = vunpack.c.l.b16 %v4255
        %v4351 = vunpack.c.h.b16 %v4255
        %v4352 = vunpack.c.l.b16 %v4256
        %v4353 = vunpack.c.h.b16 %v4256
        %v4354 = vunpack.c.l.b16 %v4257
        %v4355 = vunpack.c.h.b16 %v4257
        %v4356 = vunpack.c.l.b16 %v4258
        %v4357 = vunpack.c.h.b16 %v4258
        %v4358 = vunpack.c.l.b16 %v4259
        %v4359 = vunpack.c.h.b16 %v4259
        %v4360 = vunpack.c.l.b16 %v4260
        %v4361 = vunpack.c.h.b16 %v4260
        %v4362 = vunpack.c.l.b16 %v4261
        %v4363 = vunpack.c.h.b16 %v4261
        %v4364 = vunpack.c.l.b16 %v4262
        %v4365 = vunpack.c.h.b16 %v4262
        %v4366 = vunpack.c.l.b16 %v4263
        %v4367 = vunpack.c.h.b16 %v4263
        %v4368 = vunpack.c.l.b16 %v4264
        %v4369 = vunpack.c.h.b16 %v4264
        %v4370 = vunpack.c.l.b16 %v4265
        %v4371 = vunpack.c.h.b16 %v4265
        %v4372 = vunpack.c.l.b16 %v4266
        %v4373 = vunpack.c.h.b16 %v4266
        %v4374 = vunpack.c.l.b16 %v4267
        %v4375 = vunpack.c.h.b16 %v4267
        %v4376 = vunpack.c.l.b16 %v4268
        %v4377 = vunpack.c.h.b16 %v4268
        %v4378 = vunpack.c.l.b16 %v4269
        %v4379 = vunpack.c.h.b16 %v4269
        %v4380 = vunpack.c.l.b16 %v4270
        %v4381 = vunpack.c.h.b16 %v4270
        %v4382 = vunpack.c.l.b16 %v4271
        %v4383 = vunpack.c.h.b16 %v4271
        %v4384 = vunpack.c.l.b16 %v4272
        %v4385 = vunpack.c.h.b16 %v4272
        %v4386 = vpack.c.b16 %v4324, %v4322
        %v4387 = vpack.c.b16 %v4325, %v4323
        %v4388 = vpack.c.b16 %v4328, %v4326
        %v4389 = vpack.c.b16 %v4329, %v4327
        %v4390 = vpack.c.b16 %v4332, %v4330
        %v4391 = vpack.c.b16 %v4333, %v4331
        %v4392 = vpack.c.b16 %v4336, %v4334
        %v4393 = vpack.c.b16 %v4337, %v4335
        %v4394 = vpack.c.b16 %v4340, %v4338
        %v4395 = vpack.c.b16 %v4341, %v4339
        %v4396 = vpack.c.b16 %v4344, %v4342
        %v4397 = vpack.c.b16 %v4345, %v4343
        %v4398 = vpack.c.b16 %v4348, %v4346
        %v4399 = vpack.c.b16 %v4349, %v4347
        %v4400 = vpack.c.b16 %v4352, %v4350
        %v4401 = vpack.c.b16 %v4353, %v4351
        %v4402 = vpack.c.b16 %v4356, %v4354
        %v4403 = vpack.c.b16 %v4357, %v4355
        %v4404 = vpack.c.b16 %v4360, %v4358
        %v4405 = vpack.c.b16 %v4361, %v4359
        %v4406 = vpack.c.b16 %v4364, %v4362
        %v4407 = vpack.c.b16 %v4365, %v4363
        %v4408 = vpack.c.b16 %v4368, %v4366
        %v4409 = vpack.c.b16 %v4369, %v4367
        %v4410 = vpack.c.b16 %v4372, %v4370
        %v4411 = vpack.c.b16 %v4373, %v4371
        %v4412 = vpack.c.b16 %v4376, %v4374
        %v4413 = vpack.c.b16 %v4377, %v4375
        %v4414 = vpack.c.b16 %v4380, %v4378
        %v4415 = vpack.c.b16 %v4381, %v4379
        %v4416 = vpack.c.b16 %v4384, %v4382
        %v4417 = vpack.c.b16 %v4385, %v4383
        %4450 = vmatprep.subr.bf16.mxu0 %v4401
        %4451 = vmatpush1.bf16.msra.mxu0 %v4400
        %4452 = vmatprep.subr.bf16.mxu0 %v4399
        %4453 = vmatpush1.bf16.msra.mxu0 %v4398
        %4454 = vmatprep.subr.bf16.mxu0 %v4397
        %4455 = vmatpush1.bf16.msra.mxu0 %v4396
        %4456 = vmatprep.subr.bf16.mxu0 %v4395
        %4457 = vmatpush1.bf16.msra.mxu0 %v4394
        %4458 = vmatprep.subr.bf16.mxu0 %v4393
        %4459 = vmatpush1.bf16.msra.mxu0 %v4392
        %4460 = vmatprep.subr.bf16.mxu0 %v4391
        %4461 = vmatpush1.bf16.msra.mxu0 %v4390
        %4462 = vmatprep.subr.bf16.mxu0 %v4389
        %4463 = vmatpush1.bf16.msra.mxu0 %v4388
        %4464 = vmatprep.subr.bf16.mxu0 %v4387
        %4465 = vmatpush1.bf16.msra.mxu0 %v4386
        %4466 = vmatprep.subr.bf16.mxu0 %v4417
        %4467 = vmatpush2.bf16.msra.mxu0 %v4416
        %4468 = vmatprep.subr.bf16.mxu0 %v4415
        %4469 = vmatpush2.bf16.msra.mxu0 %v4414
        %4470 = vmatprep.subr.bf16.mxu0 %v4413
        %4471 = vmatpush2.bf16.msra.mxu0 %v4412
        %4472 = vmatprep.subr.bf16.mxu0 %v4411
        %4473 = vmatpush2.bf16.msra.mxu0 %v4410
        %4474 = vmatprep.subr.bf16.mxu0 %v4409
        %4475 = vmatpush2.bf16.msra.mxu0 %v4408
        %4476 = vmatprep.subr.bf16.mxu0 %v4407
        %4477 = vmatpush2.bf16.msra.mxu0 %v4406
        %4478 = vmatprep.subr.bf16.mxu0 %v4405
        %4479 = vmatpush2.bf16.msra.mxu0 %v4404
        %4480 = vmatprep.subr.bf16.mxu0 %v4403
        %4481 = vmatpush2.bf16.msra.mxu0 %v4402
        %4482 = vmatprep.mubr.bf16.mxu0 %v4276
        %4483 = vmatmul.mubr.bf16.gmra.mxu0 %v4275
        %v4484 = vpop.f32.mrf.mxu0
        %v4485 = vadd.f32 %v4283, %v4484
        %v4486 = vpop.f32.mrf.mxu0
        %v4487 = vadd.f32 %v4287, %v4486
        %v4488 = vpop.f32.mrf.mxu0
        %v4489 = vadd.f32 %v4283, %v4488
        %v4490 = vpop.f32.mrf.mxu0
        %v4491 = vadd.f32 %v4287, %v4490
        %4492 = vmatprep.mubr.bf16.mxu0 %v4278
        %4493 = vmatmul.mubr.bf16.gmra.mxu0 %v4277
        %v4494 = vpop.f32.mrf.mxu0
        %v4495 = vadd.f32 %v4283, %v4494
        %v4496 = vpop.f32.mrf.mxu0
        %v4497 = vadd.f32 %v4287, %v4496
        %v4498 = vpop.f32.mrf.mxu0
        %v4499 = vadd.f32 %v4283, %v4498
        %v4500 = vpop.f32.mrf.mxu0
        %v4501 = vadd.f32 %v4287, %v4500
        %4502 = vdwg.mxu0
        %v4503 = vmul.f32 %v4485, 0.5
        %v4504 = vmul.f32 %v4487, 0.5
        %v4505 = vmul.f32 %v4489, 0.5
        %v4506 = vmul.f32 %v4491, 0.5
        %v4507 = vmul.f32 %v4495, 0.5
        %v4508 = vmul.f32 %v4497, 0.5
        %v4509 = vmul.f32 %v4499, 0.5
        %v4510 = vmul.f32 %v4501, 0.5
        %v4511 = vmul.f32 %v4485, %v4485
        %v4512 = vmul.f32 %v4487, %v4487
        %v4513 = vmul.f32 %v4489, %v4489
        %v4514 = vmul.f32 %v4491, %v4491
        %v4515 = vmul.f32 %v4495, %v4495
        %v4516 = vmul.f32 %v4497, %v4497
        %v4517 = vmul.f32 %v4499, %v4499
        %v4518 = vmul.f32 %v4501, %v4501
        %v4519 = vmul.f32 %v4511, 0.035677407
        %v4520 = vmul.f32 %v4512, 0.035677407
        %v4521 = vmul.f32 %v4513, 0.035677407
        %v4522 = vmul.f32 %v4514, 0.035677407
        %v4523 = vmul.f32 %v4515, 0.035677407
        %v4524 = vmul.f32 %v4516, 0.035677407
        %v4525 = vmul.f32 %v4517, 0.035677407
        %v4526 = vmul.f32 %v4518, 0.035677407
        %v4527 = vadd.f32 %v4519, 0.7978846
        %v4528 = vadd.f32 %v4520, 0.7978846
        %v4529 = vadd.f32 %v4521, 0.7978846
        %v4530 = vadd.f32 %v4522, 0.7978846
        %v4531 = vadd.f32 %v4523, 0.7978846
        %v4532 = vadd.f32 %v4524, 0.7978846
        %v4533 = vadd.f32 %v4525, 0.7978846
        %v4534 = vadd.f32 %v4526, 0.7978846
        %v4535 = vmul.f32 %v4485, %v4527
        %v4536 = vmul.f32 %v4487, %v4528
        %v4537 = vmul.f32 %v4489, %v4529
        %v4538 = vmul.f32 %v4491, %v4530
        %v4539 = vmul.f32 %v4495, %v4531
        %v4540 = vmul.f32 %v4497, %v4532
        %v4541 = vmul.f32 %v4499, %v4533
        %v4542 = vmul.f32 %v4501, %v4534
        %v4543 = vtanh.pop %v4535
        %v4544 = vtanh.pop %v4536
        %v4545 = vtanh.pop %v4537
        %v4546 = vtanh.pop %v4538
        %v4547 = vtanh.pop %v4539
        %v4548 = vtanh.pop %v4540
        %v4549 = vtanh.pop %v4541
        %v4550 = vtanh.pop %v4542
        %v4551 = vmul.f32 %v4503, %v4543
        %v4552 = vmul.f32 %v4504, %v4544
        %v4553 = vmul.f32 %v4505, %v4545
        %v4554 = vmul.f32 %v4506, %v4546
        %v4555 = vmul.f32 %v4507, %v4547
        %v4556 = vmul.f32 %v4508, %v4548
        %v4557 = vmul.f32 %v4509, %v4549
        %v4558 = vmul.f32 %v4510, %v4550
        %v4559 = vadd.f32 %v4503, %v4551
        %v4560 = vadd.f32 %v4504, %v4552
        %v4561 = vadd.f32 %v4505, %v4553
        %v4562 = vadd.f32 %v4506, %v4554
        %v4563 = vadd.f32 %v4507, %v4555
        %v4564 = vadd.f32 %v4508, %v4556
        %v4565 = vadd.f32 %v4509, %v4557
        %v4566 = vadd.f32 %v4510, %v4558
        %v4567 = vpack.c.bf16 %v4234, %v4232
        %v4568 = vpack.c.bf16 %v4235, %v4233
        %v4569 = vpack.c.bf16 %v4238, %v4236
        %v4570 = vpack.c.bf16 %v4239, %v4237
        %4571 = vmatprep.subr.bf16.mxu0 %v4401
        %4572 = vmatpush1.bf16.msra.mxu0 %v4400
        %4573 = vmatprep.subr.bf16.mxu0 %v4399
        %4574 = vmatpush1.bf16.msra.mxu0 %v4398
        %4575 = vmatprep.subr.bf16.mxu0 %v4397
        %4576 = vmatpush1.bf16.msra.mxu0 %v4396
        %4577 = vmatprep.subr.bf16.mxu0 %v4395
        %4578 = vmatpush1.bf16.msra.mxu0 %v4394
        %4579 = vmatprep.subr.bf16.mxu0 %v4393
        %4580 = vmatpush1.bf16.msra.mxu0 %v4392
        %4581 = vmatprep.subr.bf16.mxu0 %v4391
        %4582 = vmatpush1.bf16.msra.mxu0 %v4390
        %4583 = vmatprep.subr.bf16.mxu0 %v4389
        %4584 = vmatpush1.bf16.msra.mxu0 %v4388
        %4585 = vmatprep.subr.bf16.mxu0 %v4387
        %4586 = vmatpush1.bf16.msra.mxu0 %v4386
        %4587 = vmatprep.subr.bf16.mxu0 %v4417
        %4588 = vmatpush2.bf16.msra.mxu0 %v4416
        %4589 = vmatprep.subr.bf16.mxu0 %v4415
        %4590 = vmatpush2.bf16.msra.mxu0 %v4414
        %4591 = vmatprep.subr.bf16.mxu0 %v4413
        %4592 = vmatpush2.bf16.msra.mxu0 %v4412
        %4593 = vmatprep.subr.bf16.mxu0 %v4411
        %4594 = vmatpush2.bf16.msra.mxu0 %v4410
        %4595 = vmatprep.subr.bf16.mxu0 %v4409
        %4596 = vmatpush2.bf16.msra.mxu0 %v4408
        %4597 = vmatprep.subr.bf16.mxu0 %v4407
        %4598 = vmatpush2.bf16.msra.mxu0 %v4406
        %4599 = vmatprep.subr.bf16.mxu0 %v4405
        %4600 = vmatpush2.bf16.msra.mxu0 %v4404
        %4601 = vmatprep.subr.bf16.mxu0 %v4403
        %4602 = vmatpush2.bf16.msra.mxu0 %v4402
        %4603 = vmatprep.mubr.bf16.mxu0 %v4568
        %4604 = vmatmul.mubr.bf16.gmra.mxu0 %v4567
        %v4605 = vpop.f32.mrf.mxu0
        %v4606 = vadd.f32 %v4283, %v4605
        %v4607 = vpop.f32.mrf.mxu0
        %v4608 = vadd.f32 %v4287, %v4607
        %v4609 = vpop.f32.mrf.mxu0
        %v4610 = vadd.f32 %v4283, %v4609
        %v4611 = vpop.f32.mrf.mxu0
        %v4612 = vadd.f32 %v4287, %v4611
        %4613 = vmatprep.mubr.bf16.mxu0 %v4570
        %4614 = vmatmul.mubr.bf16.gmra.mxu0 %v4569
        %v4615 = vpop.f32.mrf.mxu0
        %v4616 = vadd.f32 %v4283, %v4615
        %v4617 = vpop.f32.mrf.mxu0
        %v4618 = vadd.f32 %v4287, %v4617
        %v4619 = vpop.f32.mrf.mxu0
        %v4620 = vadd.f32 %v4283, %v4619
        %v4621 = vpop.f32.mrf.mxu0
        %v4622 = vadd.f32 %v4287, %v4621
        %4623 = vdwg.mxu0
        %v4624 = vmul.f32 %v4606, 0.5
        %v4625 = vmul.f32 %v4608, 0.5
        %v4626 = vmul.f32 %v4610, 0.5
        %v4627 = vmul.f32 %v4612, 0.5
        %v4628 = vmul.f32 %v4616, 0.5
        %v4629 = vmul.f32 %v4618, 0.5
        %v4630 = vmul.f32 %v4620, 0.5
        %v4631 = vmul.f32 %v4622, 0.5
        %v4632 = vmul.f32 %v4606, %v4606
        %v4633 = vmul.f32 %v4608, %v4608
        %v4634 = vmul.f32 %v4610, %v4610
        %v4635 = vmul.f32 %v4612, %v4612
        %v4636 = vmul.f32 %v4616, %v4616
        %v4637 = vmul.f32 %v4618, %v4618
        %v4638 = vmul.f32 %v4620, %v4620
        %v4639 = vmul.f32 %v4622, %v4622
        %v4640 = vmul.f32 %v4632, 0.035677407
        %v4641 = vmul.f32 %v4633, 0.035677407
        %v4642 = vmul.f32 %v4634, 0.035677407
        %v4643 = vmul.f32 %v4635, 0.035677407
        %v4644 = vmul.f32 %v4636, 0.035677407
        %v4645 = vmul.f32 %v4637, 0.035677407
        %v4646 = vmul.f32 %v4638, 0.035677407
        %v4647 = vmul.f32 %v4639, 0.035677407
        %v4648 = vadd.f32 %v4640, 0.7978846
        %v4649 = vadd.f32 %v4641, 0.7978846
        %v4650 = vadd.f32 %v4642, 0.7978846
        %v4651 = vadd.f32 %v4643, 0.7978846
        %v4652 = vadd.f32 %v4644, 0.7978846
        %v4653 = vadd.f32 %v4645, 0.7978846
        %v4654 = vadd.f32 %v4646, 0.7978846
        %v4655 = vadd.f32 %v4647, 0.7978846
        %v4656 = vmul.f32 %v4606, %v4648
        %v4657 = vmul.f32 %v4608, %v4649
        %v4658 = vmul.f32 %v4610, %v4650
        %v4659 = vmul.f32 %v4612, %v4651
        %v4660 = vmul.f32 %v4616, %v4652
        %v4661 = vmul.f32 %v4618, %v4653
        %v4662 = vmul.f32 %v4620, %v4654
        %v4663 = vmul.f32 %v4622, %v4655
        %v4664 = vtanh.pop %v4656
        %v4665 = vtanh.pop %v4657
        %v4666 = vtanh.pop %v4658
        %v4667 = vtanh.pop %v4659
        %v4668 = vtanh.pop %v4660
        %v4669 = vtanh.pop %v4661
        %v4670 = vtanh.pop %v4662
        %v4671 = vtanh.pop %v4663
        %v4672 = vmul.f32 %v4624, %v4664
        %v4673 = vmul.f32 %v4625, %v4665
        %v4674 = vmul.f32 %v4626, %v4666
        %v4675 = vmul.f32 %v4627, %v4667
        %v4676 = vmul.f32 %v4628, %v4668
        %v4677 = vmul.f32 %v4629, %v4669
        %v4678 = vmul.f32 %v4630, %v4670
        %v4679 = vmul.f32 %v4631, %v4671
        %v4680 = vadd.f32 %v4624, %v4672
        %v4681 = vadd.f32 %v4625, %v4673
        %v4682 = vadd.f32 %v4626, %v4674
        %v4683 = vadd.f32 %v4627, %v4675
        %v4684 = vadd.f32 %v4628, %v4676
        %v4685 = vadd.f32 %v4629, %v4677
        %v4686 = vadd.f32 %v4630, %v4678
        %v4687 = vadd.f32 %v4631, %v4679
        %s4688 = scalar_lea.vmem %s344, 2304
        %v4689 = vld [vmem:[%s4688] sm:$0xff]
        %v4690 = vld [vmem:[%s4688 + $0x8] sm:$0xff]
        %v4691 = vld [vmem:[%s4688 + $0x10] sm:$0xff]
        %v4692 = vld [vmem:[%s4688 + $0x18] sm:$0xff]
        %v4693 = vld [vmem:[%s4688 + $0x20] sm:$0xff]
        %v4694 = vld [vmem:[%s4688 + $0x28] sm:$0xff]
        %v4695 = vld [vmem:[%s4688 + $0x30] sm:$0xff]
        %v4696 = vld [vmem:[%s4688 + $0x38] sm:$0xff]
        %v4697 = vld [vmem:[%s4688 + $0x40] sm:$0xff]
        %v4698 = vld [vmem:[%s4688 + $0x48] sm:$0xff]
        %v4699 = vld [vmem:[%s4688 + $0x50] sm:$0xff]
        %v4700 = vld [vmem:[%s4688 + $0x58] sm:$0xff]
        %v4701 = vld [vmem:[%s4688 + $0x60] sm:$0xff]
        %v4702 = vld [vmem:[%s4688 + $0x68] sm:$0xff]
        %v4703 = vld [vmem:[%s4688 + $0x70] sm:$0xff]
        %v4704 = vld [vmem:[%s4688 + $0x78] sm:$0xff]
        %v4705 = vld [vmem:[%s4688 + $0x80] sm:$0xff]
        %v4706 = vld [vmem:[%s4688 + $0x88] sm:$0xff]
        %v4707 = vld [vmem:[%s4688 + $0x90] sm:$0xff]
        %v4708 = vld [vmem:[%s4688 + $0x98] sm:$0xff]
        %v4709 = vld [vmem:[%s4688 + $0xa0] sm:$0xff]
        %v4710 = vld [vmem:[%s4688 + $0xa8] sm:$0xff]
        %v4711 = vld [vmem:[%s4688 + $0xb0] sm:$0xff]
        %v4712 = vld [vmem:[%s4688 + $0xb8] sm:$0xff]
        %v4713 = vld [vmem:[%s4688 + $0xc0] sm:$0xff]
        %v4714 = vld [vmem:[%s4688 + $0xc8] sm:$0xff]
        %v4715 = vld [vmem:[%s4688 + $0xd0] sm:$0xff]
        %v4716 = vld [vmem:[%s4688 + $0xd8] sm:$0xff]
        %v4717 = vld [vmem:[%s4688 + $0xe0] sm:$0xff]
        %v4718 = vld [vmem:[%s4688 + $0xe8] sm:$0xff]
        %v4719 = vld [vmem:[%s4688 + $0xf0] sm:$0xff]
        %v4720 = vld [vmem:[%s4688 + $0xf8] sm:$0xff]
        %s4721 = scalar_lea.vmem %s349, 17
        %v4722 = vld [vmem:[%s4721] ss:$8 sm:$0x3]
        %v4723 = vpack.c.bf16 %v4561, %v4559
        %v4724 = vpack.c.bf16 %v4562, %v4560
        %v4725 = vpack.c.bf16 %v4565, %v4563
        %v4726 = vpack.c.bf16 %v4566, %v4564
        %v4728 = vlaneseq
        %v4729 = vshrl.u32 %v4728, 7
        %v4730 = vsub.s32 0, %v4729
        %v4731 = vrot.slane %v4722, %v4730
        %v4732 = vlaneseq
        %v4733 = vshrl.u32 %v4732, 7
        %v4734 = vsub.s32 1, %v4733
        %v4735 = vrot.slane %v4722, %v4734
        %v4770 = vunpack.c.l.b16 %v4689
        %v4771 = vunpack.c.h.b16 %v4689
        %v4772 = vunpack.c.l.b16 %v4690
        %v4773 = vunpack.c.h.b16 %v4690
        %v4774 = vunpack.c.l.b16 %v4691
        %v4775 = vunpack.c.h.b16 %v4691
        %v4776 = vunpack.c.l.b16 %v4692
        %v4777 = vunpack.c.h.b16 %v4692
        %v4778 = vunpack.c.l.b16 %v4693
        %v4779 = vunpack.c.h.b16 %v4693
        %v4780 = vunpack.c.l.b16 %v4694
        %v4781 = vunpack.c.h.b16 %v4694
        %v4782 = vunpack.c.l.b16 %v4695
        %v4783 = vunpack.c.h.b16 %v4695
        %v4784 = vunpack.c.l.b16 %v4696
        %v4785 = vunpack.c.h.b16 %v4696
        %v4786 = vunpack.c.l.b16 %v4697
        %v4787 = vunpack.c.h.b16 %v4697
        %v4788 = vunpack.c.l.b16 %v4698
        %v4789 = vunpack.c.h.b16 %v4698
        %v4790 = vunpack.c.l.b16 %v4699
        %v4791 = vunpack.c.h.b16 %v4699
        %v4792 = vunpack.c.l.b16 %v4700
        %v4793 = vunpack.c.h.b16 %v4700
        %v4794 = vunpack.c.l.b16 %v4701
        %v4795 = vunpack.c.h.b16 %v4701
        %v4796 = vunpack.c.l.b16 %v4702
        %v4797 = vunpack.c.h.b16 %v4702
        %v4798 = vunpack.c.l.b16 %v4703
        %v4799 = vunpack.c.h.b16 %v4703
        %v4800 = vunpack.c.l.b16 %v4704
        %v4801 = vunpack.c.h.b16 %v4704
        %v4802 = vunpack.c.l.b16 %v4705
        %v4803 = vunpack.c.h.b16 %v4705
        %v4804 = vunpack.c.l.b16 %v4706
        %v4805 = vunpack.c.h.b16 %v4706
        %v4806 = vunpack.c.l.b16 %v4707
        %v4807 = vunpack.c.h.b16 %v4707
        %v4808 = vunpack.c.l.b16 %v4708
        %v4809 = vunpack.c.h.b16 %v4708
        %v4810 = vunpack.c.l.b16 %v4709
        %v4811 = vunpack.c.h.b16 %v4709
        %v4812 = vunpack.c.l.b16 %v4710
        %v4813 = vunpack.c.h.b16 %v4710
        %v4814 = vunpack.c.l.b16 %v4711
        %v4815 = vunpack.c.h.b16 %v4711
        %v4816 = vunpack.c.l.b16 %v4712
        %v4817 = vunpack.c.h.b16 %v4712
        %v4818 = vunpack.c.l.b16 %v4713
        %v4819 = vunpack.c.h.b16 %v4713
        %v4820 = vunpack.c.l.b16 %v4714
        %v4821 = vunpack.c.h.b16 %v4714
        %v4822 = vunpack.c.l.b16 %v4715
        %v4823 = vunpack.c.h.b16 %v4715
        %v4824 = vunpack.c.l.b16 %v4716
        %v4825 = vunpack.c.h.b16 %v4716
        %v4826 = vunpack.c.l.b16 %v4717
        %v4827 = vunpack.c.h.b16 %v4717
        %v4828 = vunpack.c.l.b16 %v4718
        %v4829 = vunpack.c.h.b16 %v4718
        %v4830 = vunpack.c.l.b16 %v4719
        %v4831 = vunpack.c.h.b16 %v4719
        %v4832 = vunpack.c.l.b16 %v4720
        %v4833 = vunpack.c.h.b16 %v4720
        %v4834 = vpack.c.b16 %v4772, %v4770
        %v4835 = vpack.c.b16 %v4773, %v4771
        %v4836 = vpack.c.b16 %v4776, %v4774
        %v4837 = vpack.c.b16 %v4777, %v4775
        %v4838 = vpack.c.b16 %v4780, %v4778
        %v4839 = vpack.c.b16 %v4781, %v4779
        %v4840 = vpack.c.b16 %v4784, %v4782
        %v4841 = vpack.c.b16 %v4785, %v4783
        %v4842 = vpack.c.b16 %v4788, %v4786
        %v4843 = vpack.c.b16 %v4789, %v4787
        %v4844 = vpack.c.b16 %v4792, %v4790
        %v4845 = vpack.c.b16 %v4793, %v4791
        %v4846 = vpack.c.b16 %v4796, %v4794
        %v4847 = vpack.c.b16 %v4797, %v4795
        %v4848 = vpack.c.b16 %v4800, %v4798
        %v4849 = vpack.c.b16 %v4801, %v4799
        %v4850 = vpack.c.b16 %v4804, %v4802
        %v4851 = vpack.c.b16 %v4805, %v4803
        %v4852 = vpack.c.b16 %v4808, %v4806
        %v4853 = vpack.c.b16 %v4809, %v4807
        %v4854 = vpack.c.b16 %v4812, %v4810
        %v4855 = vpack.c.b16 %v4813, %v4811
        %v4856 = vpack.c.b16 %v4816, %v4814
        %v4857 = vpack.c.b16 %v4817, %v4815
        %v4858 = vpack.c.b16 %v4820, %v4818
        %v4859 = vpack.c.b16 %v4821, %v4819
        %v4860 = vpack.c.b16 %v4824, %v4822
        %v4861 = vpack.c.b16 %v4825, %v4823
        %v4862 = vpack.c.b16 %v4828, %v4826
        %v4863 = vpack.c.b16 %v4829, %v4827
        %v4864 = vpack.c.b16 %v4832, %v4830
        %v4865 = vpack.c.b16 %v4833, %v4831
        %4898 = vmatprep.subr.bf16.mxu0 %v4849
        %4899 = vmatpush1.bf16.msra.mxu0 %v4848
        %4900 = vmatprep.subr.bf16.mxu0 %v4847
        %4901 = vmatpush1.bf16.msra.mxu0 %v4846
        %4902 = vmatprep.subr.bf16.mxu0 %v4845
        %4903 = vmatpush1.bf16.msra.mxu0 %v4844
        %4904 = vmatprep.subr.bf16.mxu0 %v4843
        %4905 = vmatpush1.bf16.msra.mxu0 %v4842
        %4906 = vmatprep.subr.bf16.mxu0 %v4841
        %4907 = vmatpush1.bf16.msra.mxu0 %v4840
        %4908 = vmatprep.subr.bf16.mxu0 %v4839
        %4909 = vmatpush1.bf16.msra.mxu0 %v4838
        %4910 = vmatprep.subr.bf16.mxu0 %v4837
        %4911 = vmatpush1.bf16.msra.mxu0 %v4836
        %4912 = vmatprep.subr.bf16.mxu0 %v4835
        %4913 = vmatpush1.bf16.msra.mxu0 %v4834
        %4914 = vmatprep.subr.bf16.mxu0 %v4865
        %4915 = vmatpush2.bf16.msra.mxu0 %v4864
        %4916 = vmatprep.subr.bf16.mxu0 %v4863
        %4917 = vmatpush2.bf16.msra.mxu0 %v4862
        %4918 = vmatprep.subr.bf16.mxu0 %v4861
        %4919 = vmatpush2.bf16.msra.mxu0 %v4860
        %4920 = vmatprep.subr.bf16.mxu0 %v4859
        %4921 = vmatpush2.bf16.msra.mxu0 %v4858
        %4922 = vmatprep.subr.bf16.mxu0 %v4857
        %4923 = vmatpush2.bf16.msra.mxu0 %v4856
        %4924 = vmatprep.subr.bf16.mxu0 %v4855
        %4925 = vmatpush2.bf16.msra.mxu0 %v4854
        %4926 = vmatprep.subr.bf16.mxu0 %v4853
        %4927 = vmatpush2.bf16.msra.mxu0 %v4852
        %4928 = vmatprep.subr.bf16.mxu0 %v4851
        %4929 = vmatpush2.bf16.msra.mxu0 %v4850
        %4930 = vmatprep.mubr.bf16.mxu0 %v4724
        %4931 = vmatmul.mubr.bf16.gmra.mxu0 %v4723
        %v4932 = vpop.f32.mrf.mxu0
        %v4933 = vadd.f32 %v4731, %v4932
        %v4934 = vpop.f32.mrf.mxu0
        %v4935 = vadd.f32 %v4735, %v4934
        %v4936 = vpop.f32.mrf.mxu0
        %v4937 = vadd.f32 %v4731, %v4936
        %v4938 = vpop.f32.mrf.mxu0
        %v4939 = vadd.f32 %v4735, %v4938
        %4940 = vmatprep.mubr.bf16.mxu0 %v4726
        %4941 = vmatmul.mubr.bf16.gmra.mxu0 %v4725
        %v4942 = vpop.f32.mrf.mxu0
        %v4943 = vadd.f32 %v4731, %v4942
        %v4944 = vpop.f32.mrf.mxu0
        %v4945 = vadd.f32 %v4735, %v4944
        %v4946 = vpop.f32.mrf.mxu0
        %v4947 = vadd.f32 %v4731, %v4946
        %v4948 = vpop.f32.mrf.mxu0
        %v4949 = vadd.f32 %v4735, %v4948
        %4950 = vdwg.mxu0
        %v4951 = vmul.f32 %v4933, 0.5
        %v4952 = vmul.f32 %v4935, 0.5
        %v4953 = vmul.f32 %v4937, 0.5
        %v4954 = vmul.f32 %v4939, 0.5
        %v4955 = vmul.f32 %v4943, 0.5
        %v4956 = vmul.f32 %v4945, 0.5
        %v4957 = vmul.f32 %v4947, 0.5
        %v4958 = vmul.f32 %v4949, 0.5
        %v4959 = vmul.f32 %v4933, %v4933
        %v4960 = vmul.f32 %v4935, %v4935
        %v4961 = vmul.f32 %v4937, %v4937
        %v4962 = vmul.f32 %v4939, %v4939
        %v4963 = vmul.f32 %v4943, %v4943
        %v4964 = vmul.f32 %v4945, %v4945
        %v4965 = vmul.f32 %v4947, %v4947
        %v4966 = vmul.f32 %v4949, %v4949
        %v4967 = vmul.f32 %v4959, 0.035677407
        %v4968 = vmul.f32 %v4960, 0.035677407
        %v4969 = vmul.f32 %v4961, 0.035677407
        %v4970 = vmul.f32 %v4962, 0.035677407
        %v4971 = vmul.f32 %v4963, 0.035677407
        %v4972 = vmul.f32 %v4964, 0.035677407
        %v4973 = vmul.f32 %v4965, 0.035677407
        %v4974 = vmul.f32 %v4966, 0.035677407
        %v4975 = vadd.f32 %v4967, 0.7978846
        %v4976 = vadd.f32 %v4968, 0.7978846
        %v4977 = vadd.f32 %v4969, 0.7978846
        %v4978 = vadd.f32 %v4970, 0.7978846
        %v4979 = vadd.f32 %v4971, 0.7978846
        %v4980 = vadd.f32 %v4972, 0.7978846
        %v4981 = vadd.f32 %v4973, 0.7978846
        %v4982 = vadd.f32 %v4974, 0.7978846
        %v4983 = vmul.f32 %v4933, %v4975
        %v4984 = vmul.f32 %v4935, %v4976
        %v4985 = vmul.f32 %v4937, %v4977
        %v4986 = vmul.f32 %v4939, %v4978
        %v4987 = vmul.f32 %v4943, %v4979
        %v4988 = vmul.f32 %v4945, %v4980
        %v4989 = vmul.f32 %v4947, %v4981
        %v4990 = vmul.f32 %v4949, %v4982
        %v4991 = vtanh.pop %v4983
        %v4992 = vtanh.pop %v4984
        %v4993 = vtanh.pop %v4985
        %v4994 = vtanh.pop %v4986
        %v4995 = vtanh.pop %v4987
        %v4996 = vtanh.pop %v4988
        %v4997 = vtanh.pop %v4989
        %v4998 = vtanh.pop %v4990
        %v4999 = vmul.f32 %v4951, %v4991
        %v5000 = vmul.f32 %v4952, %v4992
        %v5001 = vmul.f32 %v4953, %v4993
        %v5002 = vmul.f32 %v4954, %v4994
        %v5003 = vmul.f32 %v4955, %v4995
        %v5004 = vmul.f32 %v4956, %v4996
        %v5005 = vmul.f32 %v4957, %v4997
        %v5006 = vmul.f32 %v4958, %v4998
        %v5007 = vadd.f32 %v4951, %v4999
        %v5008 = vadd.f32 %v4952, %v5000
        %v5009 = vadd.f32 %v4953, %v5001
        %v5010 = vadd.f32 %v4954, %v5002
        %v5011 = vadd.f32 %v4955, %v5003
        %v5012 = vadd.f32 %v4956, %v5004
        %v5013 = vadd.f32 %v4957, %v5005
        %v5014 = vadd.f32 %v4958, %v5006
        %v5015 = vpack.c.bf16 %v4682, %v4680
        %v5016 = vpack.c.bf16 %v4683, %v4681
        %v5017 = vpack.c.bf16 %v4686, %v4684
        %v5018 = vpack.c.bf16 %v4687, %v4685
        %5019 = vmatprep.subr.bf16.mxu0 %v4849
        %5020 = vmatpush1.bf16.msra.mxu0 %v4848
        %5021 = vmatprep.subr.bf16.mxu0 %v4847
        %5022 = vmatpush1.bf16.msra.mxu0 %v4846
        %5023 = vmatprep.subr.bf16.mxu0 %v4845
        %5024 = vmatpush1.bf16.msra.mxu0 %v4844
        %5025 = vmatprep.subr.bf16.mxu0 %v4843
        %5026 = vmatpush1.bf16.msra.mxu0 %v4842
        %5027 = vmatprep.subr.bf16.mxu0 %v4841
        %5028 = vmatpush1.bf16.msra.mxu0 %v4840
        %5029 = vmatprep.subr.bf16.mxu0 %v4839
        %5030 = vmatpush1.bf16.msra.mxu0 %v4838
        %5031 = vmatprep.subr.bf16.mxu0 %v4837
        %5032 = vmatpush1.bf16.msra.mxu0 %v4836
        %5033 = vmatprep.subr.bf16.mxu0 %v4835
        %5034 = vmatpush1.bf16.msra.mxu0 %v4834
        %5035 = vmatprep.subr.bf16.mxu0 %v4865
        %5036 = vmatpush2.bf16.msra.mxu0 %v4864
        %5037 = vmatprep.subr.bf16.mxu0 %v4863
        %5038 = vmatpush2.bf16.msra.mxu0 %v4862
        %5039 = vmatprep.subr.bf16.mxu0 %v4861
        %5040 = vmatpush2.bf16.msra.mxu0 %v4860
        %5041 = vmatprep.subr.bf16.mxu0 %v4859
        %5042 = vmatpush2.bf16.msra.mxu0 %v4858
        %5043 = vmatprep.subr.bf16.mxu0 %v4857
        %5044 = vmatpush2.bf16.msra.mxu0 %v4856
        %5045 = vmatprep.subr.bf16.mxu0 %v4855
        %5046 = vmatpush2.bf16.msra.mxu0 %v4854
        %5047 = vmatprep.subr.bf16.mxu0 %v4853
        %5048 = vmatpush2.bf16.msra.mxu0 %v4852
        %5049 = vmatprep.subr.bf16.mxu0 %v4851
        %5050 = vmatpush2.bf16.msra.mxu0 %v4850
        %5051 = vmatprep.mubr.bf16.mxu0 %v5016
        %5052 = vmatmul.mubr.bf16.gmra.mxu0 %v5015
        %v5053 = vpop.f32.mrf.mxu0
        %v5054 = vadd.f32 %v4731, %v5053
        %v5055 = vpop.f32.mrf.mxu0
        %v5056 = vadd.f32 %v4735, %v5055
        %v5057 = vpop.f32.mrf.mxu0
        %v5058 = vadd.f32 %v4731, %v5057
        %v5059 = vpop.f32.mrf.mxu0
        %v5060 = vadd.f32 %v4735, %v5059
        %5061 = vmatprep.mubr.bf16.mxu0 %v5018
        %5062 = vmatmul.mubr.bf16.gmra.mxu0 %v5017
        %v5063 = vpop.f32.mrf.mxu0
        %v5064 = vadd.f32 %v4731, %v5063
        %v5065 = vpop.f32.mrf.mxu0
        %v5066 = vadd.f32 %v4735, %v5065
        %v5067 = vpop.f32.mrf.mxu0
        %v5068 = vadd.f32 %v4731, %v5067
        %v5069 = vpop.f32.mrf.mxu0
        %v5070 = vadd.f32 %v4735, %v5069
        %5071 = vdwg.mxu0
        %v5072 = vmul.f32 %v5054, 0.5
        %v5073 = vmul.f32 %v5056, 0.5
        %v5074 = vmul.f32 %v5058, 0.5
        %v5075 = vmul.f32 %v5060, 0.5
        %v5076 = vmul.f32 %v5064, 0.5
        %v5077 = vmul.f32 %v5066, 0.5
        %v5078 = vmul.f32 %v5068, 0.5
        %v5079 = vmul.f32 %v5070, 0.5
        %v5080 = vmul.f32 %v5054, %v5054
        %v5081 = vmul.f32 %v5056, %v5056
        %v5082 = vmul.f32 %v5058, %v5058
        %v5083 = vmul.f32 %v5060, %v5060
        %v5084 = vmul.f32 %v5064, %v5064
        %v5085 = vmul.f32 %v5066, %v5066
        %v5086 = vmul.f32 %v5068, %v5068
        %v5087 = vmul.f32 %v5070, %v5070
        %v5088 = vmul.f32 %v5080, 0.035677407
        %v5089 = vmul.f32 %v5081, 0.035677407
        %v5090 = vmul.f32 %v5082, 0.035677407
        %v5091 = vmul.f32 %v5083, 0.035677407
        %v5092 = vmul.f32 %v5084, 0.035677407
        %v5093 = vmul.f32 %v5085, 0.035677407
        %v5094 = vmul.f32 %v5086, 0.035677407
        %v5095 = vmul.f32 %v5087, 0.035677407
        %v5096 = vadd.f32 %v5088, 0.7978846
        %v5097 = vadd.f32 %v5089, 0.7978846
        %v5098 = vadd.f32 %v5090, 0.7978846
        %v5099 = vadd.f32 %v5091, 0.7978846
        %v5100 = vadd.f32 %v5092, 0.7978846
        %v5101 = vadd.f32 %v5093, 0.7978846
        %v5102 = vadd.f32 %v5094, 0.7978846
        %v5103 = vadd.f32 %v5095, 0.7978846
        %v5104 = vmul.f32 %v5054, %v5096
        %v5105 = vmul.f32 %v5056, %v5097
        %v5106 = vmul.f32 %v5058, %v5098
        %v5107 = vmul.f32 %v5060, %v5099
        %v5108 = vmul.f32 %v5064, %v5100
        %v5109 = vmul.f32 %v5066, %v5101
        %v5110 = vmul.f32 %v5068, %v5102
        %v5111 = vmul.f32 %v5070, %v5103
        %v5112 = vtanh.pop %v5104
        %v5113 = vtanh.pop %v5105
        %v5114 = vtanh.pop %v5106
        %v5115 = vtanh.pop %v5107
        %v5116 = vtanh.pop %v5108
        %v5117 = vtanh.pop %v5109
        %v5118 = vtanh.pop %v5110
        %v5119 = vtanh.pop %v5111
        %v5120 = vmul.f32 %v5072, %v5112
        %v5121 = vmul.f32 %v5073, %v5113
        %v5122 = vmul.f32 %v5074, %v5114
        %v5123 = vmul.f32 %v5075, %v5115
        %v5124 = vmul.f32 %v5076, %v5116
        %v5125 = vmul.f32 %v5077, %v5117
        %v5126 = vmul.f32 %v5078, %v5118
        %v5127 = vmul.f32 %v5079, %v5119
        %v5128 = vadd.f32 %v5072, %v5120
        %v5129 = vadd.f32 %v5073, %v5121
        %v5130 = vadd.f32 %v5074, %v5122
        %v5131 = vadd.f32 %v5075, %v5123
        %v5132 = vadd.f32 %v5076, %v5124
        %v5133 = vadd.f32 %v5077, %v5125
        %v5134 = vadd.f32 %v5078, %v5126
        %v5135 = vadd.f32 %v5079, %v5127
        %s5136 = scalar_lea.vmem %s344, 2560
        %v5137 = vld [vmem:[%s5136] sm:$0xff]
        %v5138 = vld [vmem:[%s5136 + $0x8] sm:$0xff]
        %v5139 = vld [vmem:[%s5136 + $0x10] sm:$0xff]
        %v5140 = vld [vmem:[%s5136 + $0x18] sm:$0xff]
        %v5141 = vld [vmem:[%s5136 + $0x20] sm:$0xff]
        %v5142 = vld [vmem:[%s5136 + $0x28] sm:$0xff]
        %v5143 = vld [vmem:[%s5136 + $0x30] sm:$0xff]
        %v5144 = vld [vmem:[%s5136 + $0x38] sm:$0xff]
        %v5145 = vld [vmem:[%s5136 + $0x40] sm:$0xff]
        %v5146 = vld [vmem:[%s5136 + $0x48] sm:$0xff]
        %v5147 = vld [vmem:[%s5136 + $0x50] sm:$0xff]
        %v5148 = vld [vmem:[%s5136 + $0x58] sm:$0xff]
        %v5149 = vld [vmem:[%s5136 + $0x60] sm:$0xff]
        %v5150 = vld [vmem:[%s5136 + $0x68] sm:$0xff]
        %v5151 = vld [vmem:[%s5136 + $0x70] sm:$0xff]
        %v5152 = vld [vmem:[%s5136 + $0x78] sm:$0xff]
        %v5153 = vld [vmem:[%s5136 + $0x80] sm:$0xff]
        %v5154 = vld [vmem:[%s5136 + $0x88] sm:$0xff]
        %v5155 = vld [vmem:[%s5136 + $0x90] sm:$0xff]
        %v5156 = vld [vmem:[%s5136 + $0x98] sm:$0xff]
        %v5157 = vld [vmem:[%s5136 + $0xa0] sm:$0xff]
        %v5158 = vld [vmem:[%s5136 + $0xa8] sm:$0xff]
        %v5159 = vld [vmem:[%s5136 + $0xb0] sm:$0xff]
        %v5160 = vld [vmem:[%s5136 + $0xb8] sm:$0xff]
        %v5161 = vld [vmem:[%s5136 + $0xc0] sm:$0xff]
        %v5162 = vld [vmem:[%s5136 + $0xc8] sm:$0xff]
        %v5163 = vld [vmem:[%s5136 + $0xd0] sm:$0xff]
        %v5164 = vld [vmem:[%s5136 + $0xd8] sm:$0xff]
        %v5165 = vld [vmem:[%s5136 + $0xe0] sm:$0xff]
        %v5166 = vld [vmem:[%s5136 + $0xe8] sm:$0xff]
        %v5167 = vld [vmem:[%s5136 + $0xf0] sm:$0xff]
        %v5168 = vld [vmem:[%s5136 + $0xf8] sm:$0xff]
        %s5169 = scalar_lea.vmem %s349, 18
        %v5170 = vld [vmem:[%s5169] ss:$8 sm:$0x3]
        %v5171 = vpack.c.bf16 %v5009, %v5007
        %v5172 = vpack.c.bf16 %v5010, %v5008
        %v5173 = vpack.c.bf16 %v5013, %v5011
        %v5174 = vpack.c.bf16 %v5014, %v5012
        %v5176 = vlaneseq
        %v5177 = vshrl.u32 %v5176, 7
        %v5178 = vsub.s32 0, %v5177
        %v5179 = vrot.slane %v5170, %v5178
        %v5180 = vlaneseq
        %v5181 = vshrl.u32 %v5180, 7
        %v5182 = vsub.s32 1, %v5181
        %v5183 = vrot.slane %v5170, %v5182
        %v5218 = vunpack.c.l.b16 %v5137
        %v5219 = vunpack.c.h.b16 %v5137
        %v5220 = vunpack.c.l.b16 %v5138
        %v5221 = vunpack.c.h.b16 %v5138
        %v5222 = vunpack.c.l.b16 %v5139
        %v5223 = vunpack.c.h.b16 %v5139
        %v5224 = vunpack.c.l.b16 %v5140
        %v5225 = vunpack.c.h.b16 %v5140
        %v5226 = vunpack.c.l.b16 %v5141
        %v5227 = vunpack.c.h.b16 %v5141
        %v5228 = vunpack.c.l.b16 %v5142
        %v5229 = vunpack.c.h.b16 %v5142
        %v5230 = vunpack.c.l.b16 %v5143
        %v5231 = vunpack.c.h.b16 %v5143
        %v5232 = vunpack.c.l.b16 %v5144
        %v5233 = vunpack.c.h.b16 %v5144
        %v5234 = vunpack.c.l.b16 %v5145
        %v5235 = vunpack.c.h.b16 %v5145
        %v5236 = vunpack.c.l.b16 %v5146
        %v5237 = vunpack.c.h.b16 %v5146
        %v5238 = vunpack.c.l.b16 %v5147
        %v5239 = vunpack.c.h.b16 %v5147
        %v5240 = vunpack.c.l.b16 %v5148
        %v5241 = vunpack.c.h.b16 %v5148
        %v5242 = vunpack.c.l.b16 %v5149
        %v5243 = vunpack.c.h.b16 %v5149
        %v5244 = vunpack.c.l.b16 %v5150
        %v5245 = vunpack.c.h.b16 %v5150
        %v5246 = vunpack.c.l.b16 %v5151
        %v5247 = vunpack.c.h.b16 %v5151
        %v5248 = vunpack.c.l.b16 %v5152
        %v5249 = vunpack.c.h.b16 %v5152
        %v5250 = vunpack.c.l.b16 %v5153
        %v5251 = vunpack.c.h.b16 %v5153
        %v5252 = vunpack.c.l.b16 %v5154
        %v5253 = vunpack.c.h.b16 %v5154
        %v5254 = vunpack.c.l.b16 %v5155
        %v5255 = vunpack.c.h.b16 %v5155
        %v5256 = vunpack.c.l.b16 %v5156
        %v5257 = vunpack.c.h.b16 %v5156
        %v5258 = vunpack.c.l.b16 %v5157
        %v5259 = vunpack.c.h.b16 %v5157
        %v5260 = vunpack.c.l.b16 %v5158
        %v5261 = vunpack.c.h.b16 %v5158
        %v5262 = vunpack.c.l.b16 %v5159
        %v5263 = vunpack.c.h.b16 %v5159
        %v5264 = vunpack.c.l.b16 %v5160
        %v5265 = vunpack.c.h.b16 %v5160
        %v5266 = vunpack.c.l.b16 %v5161
        %v5267 = vunpack.c.h.b16 %v5161
        %v5268 = vunpack.c.l.b16 %v5162
        %v5269 = vunpack.c.h.b16 %v5162
        %v5270 = vunpack.c.l.b16 %v5163
        %v5271 = vunpack.c.h.b16 %v5163
        %v5272 = vunpack.c.l.b16 %v5164
        %v5273 = vunpack.c.h.b16 %v5164
        %v5274 = vunpack.c.l.b16 %v5165
        %v5275 = vunpack.c.h.b16 %v5165
        %v5276 = vunpack.c.l.b16 %v5166
        %v5277 = vunpack.c.h.b16 %v5166
        %v5278 = vunpack.c.l.b16 %v5167
        %v5279 = vunpack.c.h.b16 %v5167
        %v5280 = vunpack.c.l.b16 %v5168
        %v5281 = vunpack.c.h.b16 %v5168
        %v5282 = vpack.c.b16 %v5220, %v5218
        %v5283 = vpack.c.b16 %v5221, %v5219
        %v5284 = vpack.c.b16 %v5224, %v5222
        %v5285 = vpack.c.b16 %v5225, %v5223
        %v5286 = vpack.c.b16 %v5228, %v5226
        %v5287 = vpack.c.b16 %v5229, %v5227
        %v5288 = vpack.c.b16 %v5232, %v5230
        %v5289 = vpack.c.b16 %v5233, %v5231
        %v5290 = vpack.c.b16 %v5236, %v5234
        %v5291 = vpack.c.b16 %v5237, %v5235
        %v5292 = vpack.c.b16 %v5240, %v5238
        %v5293 = vpack.c.b16 %v5241, %v5239
        %v5294 = vpack.c.b16 %v5244, %v5242
        %v5295 = vpack.c.b16 %v5245, %v5243
        %v5296 = vpack.c.b16 %v5248, %v5246
        %v5297 = vpack.c.b16 %v5249, %v5247
        %v5298 = vpack.c.b16 %v5252, %v5250
        %v5299 = vpack.c.b16 %v5253, %v5251
        %v5300 = vpack.c.b16 %v5256, %v5254
        %v5301 = vpack.c.b16 %v5257, %v5255
        %v5302 = vpack.c.b16 %v5260, %v5258
        %v5303 = vpack.c.b16 %v5261, %v5259
        %v5304 = vpack.c.b16 %v5264, %v5262
        %v5305 = vpack.c.b16 %v5265, %v5263
        %v5306 = vpack.c.b16 %v5268, %v5266
        %v5307 = vpack.c.b16 %v5269, %v5267
        %v5308 = vpack.c.b16 %v5272, %v5270
        %v5309 = vpack.c.b16 %v5273, %v5271
        %v5310 = vpack.c.b16 %v5276, %v5274
        %v5311 = vpack.c.b16 %v5277, %v5275
        %v5312 = vpack.c.b16 %v5280, %v5278
        %v5313 = vpack.c.b16 %v5281, %v5279
        %5346 = vmatprep.subr.bf16.mxu0 %v5297
        %5347 = vmatpush1.bf16.msra.mxu0 %v5296
        %5348 = vmatprep.subr.bf16.mxu0 %v5295
        %5349 = vmatpush1.bf16.msra.mxu0 %v5294
        %5350 = vmatprep.subr.bf16.mxu0 %v5293
        %5351 = vmatpush1.bf16.msra.mxu0 %v5292
        %5352 = vmatprep.subr.bf16.mxu0 %v5291
        %5353 = vmatpush1.bf16.msra.mxu0 %v5290
        %5354 = vmatprep.subr.bf16.mxu0 %v5289
        %5355 = vmatpush1.bf16.msra.mxu0 %v5288
        %5356 = vmatprep.subr.bf16.mxu0 %v5287
        %5357 = vmatpush1.bf16.msra.mxu0 %v5286
        %5358 = vmatprep.subr.bf16.mxu0 %v5285
        %5359 = vmatpush1.bf16.msra.mxu0 %v5284
        %5360 = vmatprep.subr.bf16.mxu0 %v5283
        %5361 = vmatpush1.bf16.msra.mxu0 %v5282
        %5362 = vmatprep.subr.bf16.mxu0 %v5313
        %5363 = vmatpush2.bf16.msra.mxu0 %v5312
        %5364 = vmatprep.subr.bf16.mxu0 %v5311
        %5365 = vmatpush2.bf16.msra.mxu0 %v5310
        %5366 = vmatprep.subr.bf16.mxu0 %v5309
        %5367 = vmatpush2.bf16.msra.mxu0 %v5308
        %5368 = vmatprep.subr.bf16.mxu0 %v5307
        %5369 = vmatpush2.bf16.msra.mxu0 %v5306
        %5370 = vmatprep.subr.bf16.mxu0 %v5305
        %5371 = vmatpush2.bf16.msra.mxu0 %v5304
        %5372 = vmatprep.subr.bf16.mxu0 %v5303
        %5373 = vmatpush2.bf16.msra.mxu0 %v5302
        %5374 = vmatprep.subr.bf16.mxu0 %v5301
        %5375 = vmatpush2.bf16.msra.mxu0 %v5300
        %5376 = vmatprep.subr.bf16.mxu0 %v5299
        %5377 = vmatpush2.bf16.msra.mxu0 %v5298
        %5378 = vmatprep.mubr.bf16.mxu0 %v5172
        %5379 = vmatmul.mubr.bf16.gmra.mxu0 %v5171
        %v5380 = vpop.f32.mrf.mxu0
        %v5381 = vadd.f32 %v5179, %v5380
        %v5382 = vpop.f32.mrf.mxu0
        %v5383 = vadd.f32 %v5183, %v5382
        %v5384 = vpop.f32.mrf.mxu0
        %v5385 = vadd.f32 %v5179, %v5384
        %v5386 = vpop.f32.mrf.mxu0
        %v5387 = vadd.f32 %v5183, %v5386
        %5388 = vmatprep.mubr.bf16.mxu0 %v5174
        %5389 = vmatmul.mubr.bf16.gmra.mxu0 %v5173
        %v5390 = vpop.f32.mrf.mxu0
        %v5391 = vadd.f32 %v5179, %v5390
        %v5392 = vpop.f32.mrf.mxu0
        %v5393 = vadd.f32 %v5183, %v5392
        %v5394 = vpop.f32.mrf.mxu0
        %v5395 = vadd.f32 %v5179, %v5394
        %v5396 = vpop.f32.mrf.mxu0
        %v5397 = vadd.f32 %v5183, %v5396
        %5398 = vdwg.mxu0
        %v5399 = vmul.f32 %v5381, 0.5
        %v5400 = vmul.f32 %v5383, 0.5
        %v5401 = vmul.f32 %v5385, 0.5
        %v5402 = vmul.f32 %v5387, 0.5
        %v5403 = vmul.f32 %v5391, 0.5
        %v5404 = vmul.f32 %v5393, 0.5
        %v5405 = vmul.f32 %v5395, 0.5
        %v5406 = vmul.f32 %v5397, 0.5
        %v5407 = vmul.f32 %v5381, %v5381
        %v5408 = vmul.f32 %v5383, %v5383
        %v5409 = vmul.f32 %v5385, %v5385
        %v5410 = vmul.f32 %v5387, %v5387
        %v5411 = vmul.f32 %v5391, %v5391
        %v5412 = vmul.f32 %v5393, %v5393
        %v5413 = vmul.f32 %v5395, %v5395
        %v5414 = vmul.f32 %v5397, %v5397
        %v5415 = vmul.f32 %v5407, 0.035677407
        %v5416 = vmul.f32 %v5408, 0.035677407
        %v5417 = vmul.f32 %v5409, 0.035677407
        %v5418 = vmul.f32 %v5410, 0.035677407
        %v5419 = vmul.f32 %v5411, 0.035677407
        %v5420 = vmul.f32 %v5412, 0.035677407
        %v5421 = vmul.f32 %v5413, 0.035677407
        %v5422 = vmul.f32 %v5414, 0.035677407
        %v5423 = vadd.f32 %v5415, 0.7978846
        %v5424 = vadd.f32 %v5416, 0.7978846
        %v5425 = vadd.f32 %v5417, 0.7978846
        %v5426 = vadd.f32 %v5418, 0.7978846
        %v5427 = vadd.f32 %v5419, 0.7978846
        %v5428 = vadd.f32 %v5420, 0.7978846
        %v5429 = vadd.f32 %v5421, 0.7978846
        %v5430 = vadd.f32 %v5422, 0.7978846
        %v5431 = vmul.f32 %v5381, %v5423
        %v5432 = vmul.f32 %v5383, %v5424
        %v5433 = vmul.f32 %v5385, %v5425
        %v5434 = vmul.f32 %v5387, %v5426
        %v5435 = vmul.f32 %v5391, %v5427
        %v5436 = vmul.f32 %v5393, %v5428
        %v5437 = vmul.f32 %v5395, %v5429
        %v5438 = vmul.f32 %v5397, %v5430
        %v5439 = vtanh.pop %v5431
        %v5440 = vtanh.pop %v5432
        %v5441 = vtanh.pop %v5433
        %v5442 = vtanh.pop %v5434
        %v5443 = vtanh.pop %v5435
        %v5444 = vtanh.pop %v5436
        %v5445 = vtanh.pop %v5437
        %v5446 = vtanh.pop %v5438
        %v5447 = vmul.f32 %v5399, %v5439
        %v5448 = vmul.f32 %v5400, %v5440
        %v5449 = vmul.f32 %v5401, %v5441
        %v5450 = vmul.f32 %v5402, %v5442
        %v5451 = vmul.f32 %v5403, %v5443
        %v5452 = vmul.f32 %v5404, %v5444
        %v5453 = vmul.f32 %v5405, %v5445
        %v5454 = vmul.f32 %v5406, %v5446
        %v5455 = vadd.f32 %v5399, %v5447
        %v5456 = vadd.f32 %v5400, %v5448
        %v5457 = vadd.f32 %v5401, %v5449
        %v5458 = vadd.f32 %v5402, %v5450
        %v5459 = vadd.f32 %v5403, %v5451
        %v5460 = vadd.f32 %v5404, %v5452
        %v5461 = vadd.f32 %v5405, %v5453
        %v5462 = vadd.f32 %v5406, %v5454
        %v5463 = vpack.c.bf16 %v5130, %v5128
        %v5464 = vpack.c.bf16 %v5131, %v5129
        %v5465 = vpack.c.bf16 %v5134, %v5132
        %v5466 = vpack.c.bf16 %v5135, %v5133
        %5467 = vmatprep.subr.bf16.mxu0 %v5297
        %5468 = vmatpush1.bf16.msra.mxu0 %v5296
        %5469 = vmatprep.subr.bf16.mxu0 %v5295
        %5470 = vmatpush1.bf16.msra.mxu0 %v5294
        %5471 = vmatprep.subr.bf16.mxu0 %v5293
        %5472 = vmatpush1.bf16.msra.mxu0 %v5292
        %5473 = vmatprep.subr.bf16.mxu0 %v5291
        %5474 = vmatpush1.bf16.msra.mxu0 %v5290
        %5475 = vmatprep.subr.bf16.mxu0 %v5289
        %5476 = vmatpush1.bf16.msra.mxu0 %v5288
        %5477 = vmatprep.subr.bf16.mxu0 %v5287
        %5478 = vmatpush1.bf16.msra.mxu0 %v5286
        %5479 = vmatprep.subr.bf16.mxu0 %v5285
        %5480 = vmatpush1.bf16.msra.mxu0 %v5284
        %5481 = vmatprep.subr.bf16.mxu0 %v5283
        %5482 = vmatpush1.bf16.msra.mxu0 %v5282
        %5483 = vmatprep.subr.bf16.mxu0 %v5313
        %5484 = vmatpush2.bf16.msra.mxu0 %v5312
        %5485 = vmatprep.subr.bf16.mxu0 %v5311
        %5486 = vmatpush2.bf16.msra.mxu0 %v5310
        %5487 = vmatprep.subr.bf16.mxu0 %v5309
        %5488 = vmatpush2.bf16.msra.mxu0 %v5308
        %5489 = vmatprep.subr.bf16.mxu0 %v5307
        %5490 = vmatpush2.bf16.msra.mxu0 %v5306
        %5491 = vmatprep.subr.bf16.mxu0 %v5305
        %5492 = vmatpush2.bf16.msra.mxu0 %v5304
        %5493 = vmatprep.subr.bf16.mxu0 %v5303
        %5494 = vmatpush2.bf16.msra.mxu0 %v5302
        %5495 = vmatprep.subr.bf16.mxu0 %v5301
        %5496 = vmatpush2.bf16.msra.mxu0 %v5300
        %5497 = vmatprep.subr.bf16.mxu0 %v5299
        %5498 = vmatpush2.bf16.msra.mxu0 %v5298
        %5499 = vmatprep.mubr.bf16.mxu0 %v5464
        %5500 = vmatmul.mubr.bf16.gmra.mxu0 %v5463
        %v5501 = vpop.f32.mrf.mxu0
        %v5502 = vadd.f32 %v5179, %v5501
        %v5503 = vpop.f32.mrf.mxu0
        %v5504 = vadd.f32 %v5183, %v5503
        %v5505 = vpop.f32.mrf.mxu0
        %v5506 = vadd.f32 %v5179, %v5505
        %v5507 = vpop.f32.mrf.mxu0
        %v5508 = vadd.f32 %v5183, %v5507
        %5509 = vmatprep.mubr.bf16.mxu0 %v5466
        %5510 = vmatmul.mubr.bf16.gmra.mxu0 %v5465
        %v5511 = vpop.f32.mrf.mxu0
        %v5512 = vadd.f32 %v5179, %v5511
        %v5513 = vpop.f32.mrf.mxu0
        %v5514 = vadd.f32 %v5183, %v5513
        %v5515 = vpop.f32.mrf.mxu0
        %v5516 = vadd.f32 %v5179, %v5515
        %v5517 = vpop.f32.mrf.mxu0
        %v5518 = vadd.f32 %v5183, %v5517
        %5519 = vdwg.mxu0
        %v5520 = vmul.f32 %v5502, 0.5
        %v5521 = vmul.f32 %v5504, 0.5
        %v5522 = vmul.f32 %v5506, 0.5
        %v5523 = vmul.f32 %v5508, 0.5
        %v5524 = vmul.f32 %v5512, 0.5
        %v5525 = vmul.f32 %v5514, 0.5
        %v5526 = vmul.f32 %v5516, 0.5
        %v5527 = vmul.f32 %v5518, 0.5
        %v5528 = vmul.f32 %v5502, %v5502
        %v5529 = vmul.f32 %v5504, %v5504
        %v5530 = vmul.f32 %v5506, %v5506
        %v5531 = vmul.f32 %v5508, %v5508
        %v5532 = vmul.f32 %v5512, %v5512
        %v5533 = vmul.f32 %v5514, %v5514
        %v5534 = vmul.f32 %v5516, %v5516
        %v5535 = vmul.f32 %v5518, %v5518
        %v5536 = vmul.f32 %v5528, 0.035677407
        %v5537 = vmul.f32 %v5529, 0.035677407
        %v5538 = vmul.f32 %v5530, 0.035677407
        %v5539 = vmul.f32 %v5531, 0.035677407
        %v5540 = vmul.f32 %v5532, 0.035677407
        %v5541 = vmul.f32 %v5533, 0.035677407
        %v5542 = vmul.f32 %v5534, 0.035677407
        %v5543 = vmul.f32 %v5535, 0.035677407
        %v5544 = vadd.f32 %v5536, 0.7978846
        %v5545 = vadd.f32 %v5537, 0.7978846
        %v5546 = vadd.f32 %v5538, 0.7978846
        %v5547 = vadd.f32 %v5539, 0.7978846
        %v5548 = vadd.f32 %v5540, 0.7978846
        %v5549 = vadd.f32 %v5541, 0.7978846
        %v5550 = vadd.f32 %v5542, 0.7978846
        %v5551 = vadd.f32 %v5543, 0.7978846
        %v5552 = vmul.f32 %v5502, %v5544
        %v5553 = vmul.f32 %v5504, %v5545
        %v5554 = vmul.f32 %v5506, %v5546
        %v5555 = vmul.f32 %v5508, %v5547
        %v5556 = vmul.f32 %v5512, %v5548
        %v5557 = vmul.f32 %v5514, %v5549
        %v5558 = vmul.f32 %v5516, %v5550
        %v5559 = vmul.f32 %v5518, %v5551
        %v5560 = vtanh.pop %v5552
        %v5561 = vtanh.pop %v5553
        %v5562 = vtanh.pop %v5554
        %v5563 = vtanh.pop %v5555
        %v5564 = vtanh.pop %v5556
        %v5565 = vtanh.pop %v5557
        %v5566 = vtanh.pop %v5558
        %v5567 = vtanh.pop %v5559
        %v5568 = vmul.f32 %v5520, %v5560
        %v5569 = vmul.f32 %v5521, %v5561
        %v5570 = vmul.f32 %v5522, %v5562
        %v5571 = vmul.f32 %v5523, %v5563
        %v5572 = vmul.f32 %v5524, %v5564
        %v5573 = vmul.f32 %v5525, %v5565
        %v5574 = vmul.f32 %v5526, %v5566
        %v5575 = vmul.f32 %v5527, %v5567
        %v5576 = vadd.f32 %v5520, %v5568
        %v5577 = vadd.f32 %v5521, %v5569
        %v5578 = vadd.f32 %v5522, %v5570
        %v5579 = vadd.f32 %v5523, %v5571
        %v5580 = vadd.f32 %v5524, %v5572
        %v5581 = vadd.f32 %v5525, %v5573
        %v5582 = vadd.f32 %v5526, %v5574
        %v5583 = vadd.f32 %v5527, %v5575
        %s5584 = scalar_lea.vmem %s344, 2816
        %v5585 = vld [vmem:[%s5584] sm:$0xff]
        %v5586 = vld [vmem:[%s5584 + $0x8] sm:$0xff]
        %v5587 = vld [vmem:[%s5584 + $0x10] sm:$0xff]
        %v5588 = vld [vmem:[%s5584 + $0x18] sm:$0xff]
        %v5589 = vld [vmem:[%s5584 + $0x20] sm:$0xff]
        %v5590 = vld [vmem:[%s5584 + $0x28] sm:$0xff]
        %v5591 = vld [vmem:[%s5584 + $0x30] sm:$0xff]
        %v5592 = vld [vmem:[%s5584 + $0x38] sm:$0xff]
        %v5593 = vld [vmem:[%s5584 + $0x40] sm:$0xff]
        %v5594 = vld [vmem:[%s5584 + $0x48] sm:$0xff]
        %v5595 = vld [vmem:[%s5584 + $0x50] sm:$0xff]
        %v5596 = vld [vmem:[%s5584 + $0x58] sm:$0xff]
        %v5597 = vld [vmem:[%s5584 + $0x60] sm:$0xff]
        %v5598 = vld [vmem:[%s5584 + $0x68] sm:$0xff]
        %v5599 = vld [vmem:[%s5584 + $0x70] sm:$0xff]
        %v5600 = vld [vmem:[%s5584 + $0x78] sm:$0xff]
        %v5601 = vld [vmem:[%s5584 + $0x80] sm:$0xff]
        %v5602 = vld [vmem:[%s5584 + $0x88] sm:$0xff]
        %v5603 = vld [vmem:[%s5584 + $0x90] sm:$0xff]
        %v5604 = vld [vmem:[%s5584 + $0x98] sm:$0xff]
        %v5605 = vld [vmem:[%s5584 + $0xa0] sm:$0xff]
        %v5606 = vld [vmem:[%s5584 + $0xa8] sm:$0xff]
        %v5607 = vld [vmem:[%s5584 + $0xb0] sm:$0xff]
        %v5608 = vld [vmem:[%s5584 + $0xb8] sm:$0xff]
        %v5609 = vld [vmem:[%s5584 + $0xc0] sm:$0xff]
        %v5610 = vld [vmem:[%s5584 + $0xc8] sm:$0xff]
        %v5611 = vld [vmem:[%s5584 + $0xd0] sm:$0xff]
        %v5612 = vld [vmem:[%s5584 + $0xd8] sm:$0xff]
        %v5613 = vld [vmem:[%s5584 + $0xe0] sm:$0xff]
        %v5614 = vld [vmem:[%s5584 + $0xe8] sm:$0xff]
        %v5615 = vld [vmem:[%s5584 + $0xf0] sm:$0xff]
        %v5616 = vld [vmem:[%s5584 + $0xf8] sm:$0xff]
        %s5617 = scalar_lea.vmem %s349, 19
        %v5618 = vld [vmem:[%s5617] ss:$8 sm:$0x3]
        %v5619 = vpack.c.bf16 %v5457, %v5455
        %v5620 = vpack.c.bf16 %v5458, %v5456
        %v5621 = vpack.c.bf16 %v5461, %v5459
        %v5622 = vpack.c.bf16 %v5462, %v5460
        %v5624 = vlaneseq
        %v5625 = vshrl.u32 %v5624, 7
        %v5626 = vsub.s32 0, %v5625
        %v5627 = vrot.slane %v5618, %v5626
        %v5628 = vlaneseq
        %v5629 = vshrl.u32 %v5628, 7
        %v5630 = vsub.s32 1, %v5629
        %v5631 = vrot.slane %v5618, %v5630
        %v5666 = vunpack.c.l.b16 %v5585
        %v5667 = vunpack.c.h.b16 %v5585
        %v5668 = vunpack.c.l.b16 %v5586
        %v5669 = vunpack.c.h.b16 %v5586
        %v5670 = vunpack.c.l.b16 %v5587
        %v5671 = vunpack.c.h.b16 %v5587
        %v5672 = vunpack.c.l.b16 %v5588
        %v5673 = vunpack.c.h.b16 %v5588
        %v5674 = vunpack.c.l.b16 %v5589
        %v5675 = vunpack.c.h.b16 %v5589
        %v5676 = vunpack.c.l.b16 %v5590
        %v5677 = vunpack.c.h.b16 %v5590
        %v5678 = vunpack.c.l.b16 %v5591
        %v5679 = vunpack.c.h.b16 %v5591
        %v5680 = vunpack.c.l.b16 %v5592
        %v5681 = vunpack.c.h.b16 %v5592
        %v5682 = vunpack.c.l.b16 %v5593
        %v5683 = vunpack.c.h.b16 %v5593
        %v5684 = vunpack.c.l.b16 %v5594
        %v5685 = vunpack.c.h.b16 %v5594
        %v5686 = vunpack.c.l.b16 %v5595
        %v5687 = vunpack.c.h.b16 %v5595
        %v5688 = vunpack.c.l.b16 %v5596
        %v5689 = vunpack.c.h.b16 %v5596
        %v5690 = vunpack.c.l.b16 %v5597
        %v5691 = vunpack.c.h.b16 %v5597
        %v5692 = vunpack.c.l.b16 %v5598
        %v5693 = vunpack.c.h.b16 %v5598
        %v5694 = vunpack.c.l.b16 %v5599
        %v5695 = vunpack.c.h.b16 %v5599
        %v5696 = vunpack.c.l.b16 %v5600
        %v5697 = vunpack.c.h.b16 %v5600
        %v5698 = vunpack.c.l.b16 %v5601
        %v5699 = vunpack.c.h.b16 %v5601
        %v5700 = vunpack.c.l.b16 %v5602
        %v5701 = vunpack.c.h.b16 %v5602
        %v5702 = vunpack.c.l.b16 %v5603
        %v5703 = vunpack.c.h.b16 %v5603
        %v5704 = vunpack.c.l.b16 %v5604
        %v5705 = vunpack.c.h.b16 %v5604
        %v5706 = vunpack.c.l.b16 %v5605
        %v5707 = vunpack.c.h.b16 %v5605
        %v5708 = vunpack.c.l.b16 %v5606
        %v5709 = vunpack.c.h.b16 %v5606
        %v5710 = vunpack.c.l.b16 %v5607
        %v5711 = vunpack.c.h.b16 %v5607
        %v5712 = vunpack.c.l.b16 %v5608
        %v5713 = vunpack.c.h.b16 %v5608
        %v5714 = vunpack.c.l.b16 %v5609
        %v5715 = vunpack.c.h.b16 %v5609
        %v5716 = vunpack.c.l.b16 %v5610
        %v5717 = vunpack.c.h.b16 %v5610
        %v5718 = vunpack.c.l.b16 %v5611
        %v5719 = vunpack.c.h.b16 %v5611
        %v5720 = vunpack.c.l.b16 %v5612
        %v5721 = vunpack.c.h.b16 %v5612
        %v5722 = vunpack.c.l.b16 %v5613
        %v5723 = vunpack.c.h.b16 %v5613
        %v5724 = vunpack.c.l.b16 %v5614
        %v5725 = vunpack.c.h.b16 %v5614
        %v5726 = vunpack.c.l.b16 %v5615
        %v5727 = vunpack.c.h.b16 %v5615
        %v5728 = vunpack.c.l.b16 %v5616
        %v5729 = vunpack.c.h.b16 %v5616
        %v5730 = vpack.c.b16 %v5668, %v5666
        %v5731 = vpack.c.b16 %v5669, %v5667
        %v5732 = vpack.c.b16 %v5672, %v5670
        %v5733 = vpack.c.b16 %v5673, %v5671
        %v5734 = vpack.c.b16 %v5676, %v5674
        %v5735 = vpack.c.b16 %v5677, %v5675
        %v5736 = vpack.c.b16 %v5680, %v5678
        %v5737 = vpack.c.b16 %v5681, %v5679
        %v5738 = vpack.c.b16 %v5684, %v5682
        %v5739 = vpack.c.b16 %v5685, %v5683
        %v5740 = vpack.c.b16 %v5688, %v5686
        %v5741 = vpack.c.b16 %v5689, %v5687
        %v5742 = vpack.c.b16 %v5692, %v5690
        %v5743 = vpack.c.b16 %v5693, %v5691
        %v5744 = vpack.c.b16 %v5696, %v5694
        %v5745 = vpack.c.b16 %v5697, %v5695
        %v5746 = vpack.c.b16 %v5700, %v5698
        %v5747 = vpack.c.b16 %v5701, %v5699
        %v5748 = vpack.c.b16 %v5704, %v5702
        %v5749 = vpack.c.b16 %v5705, %v5703
        %v5750 = vpack.c.b16 %v5708, %v5706
        %v5751 = vpack.c.b16 %v5709, %v5707
        %v5752 = vpack.c.b16 %v5712, %v5710
        %v5753 = vpack.c.b16 %v5713, %v5711
        %v5754 = vpack.c.b16 %v5716, %v5714
        %v5755 = vpack.c.b16 %v5717, %v5715
        %v5756 = vpack.c.b16 %v5720, %v5718
        %v5757 = vpack.c.b16 %v5721, %v5719
        %v5758 = vpack.c.b16 %v5724, %v5722
        %v5759 = vpack.c.b16 %v5725, %v5723
        %v5760 = vpack.c.b16 %v5728, %v5726
        %v5761 = vpack.c.b16 %v5729, %v5727
        %5794 = vmatprep.subr.bf16.mxu0 %v5745
        %5795 = vmatpush1.bf16.msra.mxu0 %v5744
        %5796 = vmatprep.subr.bf16.mxu0 %v5743
        %5797 = vmatpush1.bf16.msra.mxu0 %v5742
        %5798 = vmatprep.subr.bf16.mxu0 %v5741
        %5799 = vmatpush1.bf16.msra.mxu0 %v5740
        %5800 = vmatprep.subr.bf16.mxu0 %v5739
        %5801 = vmatpush1.bf16.msra.mxu0 %v5738
        %5802 = vmatprep.subr.bf16.mxu0 %v5737
        %5803 = vmatpush1.bf16.msra.mxu0 %v5736
        %5804 = vmatprep.subr.bf16.mxu0 %v5735
        %5805 = vmatpush1.bf16.msra.mxu0 %v5734
        %5806 = vmatprep.subr.bf16.mxu0 %v5733
        %5807 = vmatpush1.bf16.msra.mxu0 %v5732
        %5808 = vmatprep.subr.bf16.mxu0 %v5731
        %5809 = vmatpush1.bf16.msra.mxu0 %v5730
        %5810 = vmatprep.subr.bf16.mxu0 %v5761
        %5811 = vmatpush2.bf16.msra.mxu0 %v5760
        %5812 = vmatprep.subr.bf16.mxu0 %v5759
        %5813 = vmatpush2.bf16.msra.mxu0 %v5758
        %5814 = vmatprep.subr.bf16.mxu0 %v5757
        %5815 = vmatpush2.bf16.msra.mxu0 %v5756
        %5816 = vmatprep.subr.bf16.mxu0 %v5755
        %5817 = vmatpush2.bf16.msra.mxu0 %v5754
        %5818 = vmatprep.subr.bf16.mxu0 %v5753
        %5819 = vmatpush2.bf16.msra.mxu0 %v5752
        %5820 = vmatprep.subr.bf16.mxu0 %v5751
        %5821 = vmatpush2.bf16.msra.mxu0 %v5750
        %5822 = vmatprep.subr.bf16.mxu0 %v5749
        %5823 = vmatpush2.bf16.msra.mxu0 %v5748
        %5824 = vmatprep.subr.bf16.mxu0 %v5747
        %5825 = vmatpush2.bf16.msra.mxu0 %v5746
        %5826 = vmatprep.mubr.bf16.mxu0 %v5620
        %5827 = vmatmul.mubr.bf16.gmra.mxu0 %v5619
        %v5828 = vpop.f32.mrf.mxu0
        %v5829 = vadd.f32 %v5627, %v5828
        %v5830 = vpop.f32.mrf.mxu0
        %v5831 = vadd.f32 %v5631, %v5830
        %v5832 = vpop.f32.mrf.mxu0
        %v5833 = vadd.f32 %v5627, %v5832
        %v5834 = vpop.f32.mrf.mxu0
        %v5835 = vadd.f32 %v5631, %v5834
        %5836 = vmatprep.mubr.bf16.mxu0 %v5622
        %5837 = vmatmul.mubr.bf16.gmra.mxu0 %v5621
        %v5838 = vpop.f32.mrf.mxu0
        %v5839 = vadd.f32 %v5627, %v5838
        %v5840 = vpop.f32.mrf.mxu0
        %v5841 = vadd.f32 %v5631, %v5840
        %v5842 = vpop.f32.mrf.mxu0
        %v5843 = vadd.f32 %v5627, %v5842
        %v5844 = vpop.f32.mrf.mxu0
        %v5845 = vadd.f32 %v5631, %v5844
        %5846 = vdwg.mxu0
        %v5847 = vmul.f32 %v5829, 0.5
        %v5848 = vmul.f32 %v5831, 0.5
        %v5849 = vmul.f32 %v5833, 0.5
        %v5850 = vmul.f32 %v5835, 0.5
        %v5851 = vmul.f32 %v5839, 0.5
        %v5852 = vmul.f32 %v5841, 0.5
        %v5853 = vmul.f32 %v5843, 0.5
        %v5854 = vmul.f32 %v5845, 0.5
        %v5855 = vmul.f32 %v5829, %v5829
        %v5856 = vmul.f32 %v5831, %v5831
        %v5857 = vmul.f32 %v5833, %v5833
        %v5858 = vmul.f32 %v5835, %v5835
        %v5859 = vmul.f32 %v5839, %v5839
        %v5860 = vmul.f32 %v5841, %v5841
        %v5861 = vmul.f32 %v5843, %v5843
        %v5862 = vmul.f32 %v5845, %v5845
        %v5863 = vmul.f32 %v5855, 0.035677407
        %v5864 = vmul.f32 %v5856, 0.035677407
        %v5865 = vmul.f32 %v5857, 0.035677407
        %v5866 = vmul.f32 %v5858, 0.035677407
        %v5867 = vmul.f32 %v5859, 0.035677407
        %v5868 = vmul.f32 %v5860, 0.035677407
        %v5869 = vmul.f32 %v5861, 0.035677407
        %v5870 = vmul.f32 %v5862, 0.035677407
        %v5871 = vadd.f32 %v5863, 0.7978846
        %v5872 = vadd.f32 %v5864, 0.7978846
        %v5873 = vadd.f32 %v5865, 0.7978846
        %v5874 = vadd.f32 %v5866, 0.7978846
        %v5875 = vadd.f32 %v5867, 0.7978846
        %v5876 = vadd.f32 %v5868, 0.7978846
        %v5877 = vadd.f32 %v5869, 0.7978846
        %v5878 = vadd.f32 %v5870, 0.7978846
        %v5879 = vmul.f32 %v5829, %v5871
        %v5880 = vmul.f32 %v5831, %v5872
        %v5881 = vmul.f32 %v5833, %v5873
        %v5882 = vmul.f32 %v5835, %v5874
        %v5883 = vmul.f32 %v5839, %v5875
        %v5884 = vmul.f32 %v5841, %v5876
        %v5885 = vmul.f32 %v5843, %v5877
        %v5886 = vmul.f32 %v5845, %v5878
        %v5887 = vtanh.pop %v5879
        %v5888 = vtanh.pop %v5880
        %v5889 = vtanh.pop %v5881
        %v5890 = vtanh.pop %v5882
        %v5891 = vtanh.pop %v5883
        %v5892 = vtanh.pop %v5884
        %v5893 = vtanh.pop %v5885
        %v5894 = vtanh.pop %v5886
        %v5895 = vmul.f32 %v5847, %v5887
        %v5896 = vmul.f32 %v5848, %v5888
        %v5897 = vmul.f32 %v5849, %v5889
        %v5898 = vmul.f32 %v5850, %v5890
        %v5899 = vmul.f32 %v5851, %v5891
        %v5900 = vmul.f32 %v5852, %v5892
        %v5901 = vmul.f32 %v5853, %v5893
        %v5902 = vmul.f32 %v5854, %v5894
        %v5903 = vadd.f32 %v5847, %v5895
        %v5904 = vadd.f32 %v5848, %v5896
        %v5905 = vadd.f32 %v5849, %v5897
        %v5906 = vadd.f32 %v5850, %v5898
        %v5907 = vadd.f32 %v5851, %v5899
        %v5908 = vadd.f32 %v5852, %v5900
        %v5909 = vadd.f32 %v5853, %v5901
        %v5910 = vadd.f32 %v5854, %v5902
        %v5911 = vpack.c.bf16 %v5578, %v5576
        %v5912 = vpack.c.bf16 %v5579, %v5577
        %v5913 = vpack.c.bf16 %v5582, %v5580
        %v5914 = vpack.c.bf16 %v5583, %v5581
        %5915 = vmatprep.subr.bf16.mxu0 %v5745
        %5916 = vmatpush1.bf16.msra.mxu0 %v5744
        %5917 = vmatprep.subr.bf16.mxu0 %v5743
        %5918 = vmatpush1.bf16.msra.mxu0 %v5742
        %5919 = vmatprep.subr.bf16.mxu0 %v5741
        %5920 = vmatpush1.bf16.msra.mxu0 %v5740
        %5921 = vmatprep.subr.bf16.mxu0 %v5739
        %5922 = vmatpush1.bf16.msra.mxu0 %v5738
        %5923 = vmatprep.subr.bf16.mxu0 %v5737
        %5924 = vmatpush1.bf16.msra.mxu0 %v5736
        %5925 = vmatprep.subr.bf16.mxu0 %v5735
        %5926 = vmatpush1.bf16.msra.mxu0 %v5734
        %5927 = vmatprep.subr.bf16.mxu0 %v5733
        %5928 = vmatpush1.bf16.msra.mxu0 %v5732
        %5929 = vmatprep.subr.bf16.mxu0 %v5731
        %5930 = vmatpush1.bf16.msra.mxu0 %v5730
        %5931 = vmatprep.subr.bf16.mxu0 %v5761
        %5932 = vmatpush2.bf16.msra.mxu0 %v5760
        %5933 = vmatprep.subr.bf16.mxu0 %v5759
        %5934 = vmatpush2.bf16.msra.mxu0 %v5758
        %5935 = vmatprep.subr.bf16.mxu0 %v5757
        %5936 = vmatpush2.bf16.msra.mxu0 %v5756
        %5937 = vmatprep.subr.bf16.mxu0 %v5755
        %5938 = vmatpush2.bf16.msra.mxu0 %v5754
        %5939 = vmatprep.subr.bf16.mxu0 %v5753
        %5940 = vmatpush2.bf16.msra.mxu0 %v5752
        %5941 = vmatprep.subr.bf16.mxu0 %v5751
        %5942 = vmatpush2.bf16.msra.mxu0 %v5750
        %5943 = vmatprep.subr.bf16.mxu0 %v5749
        %5944 = vmatpush2.bf16.msra.mxu0 %v5748
        %5945 = vmatprep.subr.bf16.mxu0 %v5747
        %5946 = vmatpush2.bf16.msra.mxu0 %v5746
        %5947 = vmatprep.mubr.bf16.mxu0 %v5912
        %5948 = vmatmul.mubr.bf16.gmra.mxu0 %v5911
        %v5949 = vpop.f32.mrf.mxu0
        %v5950 = vadd.f32 %v5627, %v5949
        %v5951 = vpop.f32.mrf.mxu0
        %v5952 = vadd.f32 %v5631, %v5951
        %v5953 = vpop.f32.mrf.mxu0
        %v5954 = vadd.f32 %v5627, %v5953
        %v5955 = vpop.f32.mrf.mxu0
        %v5956 = vadd.f32 %v5631, %v5955
        %5957 = vmatprep.mubr.bf16.mxu0 %v5914
        %5958 = vmatmul.mubr.bf16.gmra.mxu0 %v5913
        %v5959 = vpop.f32.mrf.mxu0
        %v5960 = vadd.f32 %v5627, %v5959
        %v5961 = vpop.f32.mrf.mxu0
        %v5962 = vadd.f32 %v5631, %v5961
        %v5963 = vpop.f32.mrf.mxu0
        %v5964 = vadd.f32 %v5627, %v5963
        %v5965 = vpop.f32.mrf.mxu0
        %v5966 = vadd.f32 %v5631, %v5965
        %5967 = vdwg.mxu0
        %v5968 = vmul.f32 %v5950, 0.5
        %v5969 = vmul.f32 %v5952, 0.5
        %v5970 = vmul.f32 %v5954, 0.5
        %v5971 = vmul.f32 %v5956, 0.5
        %v5972 = vmul.f32 %v5960, 0.5
        %v5973 = vmul.f32 %v5962, 0.5
        %v5974 = vmul.f32 %v5964, 0.5
        %v5975 = vmul.f32 %v5966, 0.5
        %v5976 = vmul.f32 %v5950, %v5950
        %v5977 = vmul.f32 %v5952, %v5952
        %v5978 = vmul.f32 %v5954, %v5954
        %v5979 = vmul.f32 %v5956, %v5956
        %v5980 = vmul.f32 %v5960, %v5960
        %v5981 = vmul.f32 %v5962, %v5962
        %v5982 = vmul.f32 %v5964, %v5964
        %v5983 = vmul.f32 %v5966, %v5966
        %v5984 = vmul.f32 %v5976, 0.035677407
        %v5985 = vmul.f32 %v5977, 0.035677407
        %v5986 = vmul.f32 %v5978, 0.035677407
        %v5987 = vmul.f32 %v5979, 0.035677407
        %v5988 = vmul.f32 %v5980, 0.035677407
        %v5989 = vmul.f32 %v5981, 0.035677407
        %v5990 = vmul.f32 %v5982, 0.035677407
        %v5991 = vmul.f32 %v5983, 0.035677407
        %v5992 = vadd.f32 %v5984, 0.7978846
        %v5993 = vadd.f32 %v5985, 0.7978846
        %v5994 = vadd.f32 %v5986, 0.7978846
        %v5995 = vadd.f32 %v5987, 0.7978846
        %v5996 = vadd.f32 %v5988, 0.7978846
        %v5997 = vadd.f32 %v5989, 0.7978846
        %v5998 = vadd.f32 %v5990, 0.7978846
        %v5999 = vadd.f32 %v5991, 0.7978846
        %v6000 = vmul.f32 %v5950, %v5992
        %v6001 = vmul.f32 %v5952, %v5993
        %v6002 = vmul.f32 %v5954, %v5994
        %v6003 = vmul.f32 %v5956, %v5995
        %v6004 = vmul.f32 %v5960, %v5996
        %v6005 = vmul.f32 %v5962, %v5997
        %v6006 = vmul.f32 %v5964, %v5998
        %v6007 = vmul.f32 %v5966, %v5999
        %v6008 = vtanh.pop %v6000
        %v6009 = vtanh.pop %v6001
        %v6010 = vtanh.pop %v6002
        %v6011 = vtanh.pop %v6003
        %v6012 = vtanh.pop %v6004
        %v6013 = vtanh.pop %v6005
        %v6014 = vtanh.pop %v6006
        %v6015 = vtanh.pop %v6007
        %v6016 = vmul.f32 %v5968, %v6008
        %v6017 = vmul.f32 %v5969, %v6009
        %v6018 = vmul.f32 %v5970, %v6010
        %v6019 = vmul.f32 %v5971, %v6011
        %v6020 = vmul.f32 %v5972, %v6012
        %v6021 = vmul.f32 %v5973, %v6013
        %v6022 = vmul.f32 %v5974, %v6014
        %v6023 = vmul.f32 %v5975, %v6015
        %v6024 = vadd.f32 %v5968, %v6016
        %v6025 = vadd.f32 %v5969, %v6017
        %v6026 = vadd.f32 %v5970, %v6018
        %v6027 = vadd.f32 %v5971, %v6019
        %v6028 = vadd.f32 %v5972, %v6020
        %v6029 = vadd.f32 %v5973, %v6021
        %v6030 = vadd.f32 %v5974, %v6022
        %v6031 = vadd.f32 %v5975, %v6023
        %v6032 = vld [vmem:[%s354] sm:$0xff]
        %v6033 = vld [vmem:[%s354 + $0x8] sm:$0xff]
        %v6034 = vld [vmem:[%s354 + $0x10] sm:$0xff]
        %v6035 = vld [vmem:[%s354 + $0x18] sm:$0xff]
        %v6036 = vld [vmem:[%s354 + $0x20] sm:$0xff]
        %v6037 = vld [vmem:[%s354 + $0x28] sm:$0xff]
        %v6038 = vld [vmem:[%s354 + $0x30] sm:$0xff]
        %v6039 = vld [vmem:[%s354 + $0x38] sm:$0xff]
        %v6040 = vld [vmem:[%s354 + $0x40] sm:$0xff]
        %v6041 = vld [vmem:[%s354 + $0x48] sm:$0xff]
        %v6042 = vld [vmem:[%s354 + $0x50] sm:$0xff]
        %v6043 = vld [vmem:[%s354 + $0x58] sm:$0xff]
        %v6044 = vld [vmem:[%s354 + $0x60] sm:$0xff]
        %v6045 = vld [vmem:[%s354 + $0x68] sm:$0xff]
        %v6046 = vld [vmem:[%s354 + $0x70] sm:$0xff]
        %v6047 = vld [vmem:[%s354 + $0x78] sm:$0xff]
        %v6048 = vld [vmem:[%s354 + $0x80] sm:$0xff]
        %v6049 = vld [vmem:[%s354 + $0x88] sm:$0xff]
        %v6050 = vld [vmem:[%s354 + $0x90] sm:$0xff]
        %v6051 = vld [vmem:[%s354 + $0x98] sm:$0xff]
        %v6052 = vld [vmem:[%s354 + $0xa0] sm:$0xff]
        %v6053 = vld [vmem:[%s354 + $0xa8] sm:$0xff]
        %v6054 = vld [vmem:[%s354 + $0xb0] sm:$0xff]
        %v6055 = vld [vmem:[%s354 + $0xb8] sm:$0xff]
        %v6056 = vld [vmem:[%s354 + $0xc0] sm:$0xff]
        %v6057 = vld [vmem:[%s354 + $0xc8] sm:$0xff]
        %v6058 = vld [vmem:[%s354 + $0xd0] sm:$0xff]
        %v6059 = vld [vmem:[%s354 + $0xd8] sm:$0xff]
        %v6060 = vld [vmem:[%s354 + $0xe0] sm:$0xff]
        %v6061 = vld [vmem:[%s354 + $0xe8] sm:$0xff]
        %v6062 = vld [vmem:[%s354 + $0xf0] sm:$0xff]
        %v6063 = vld [vmem:[%s354 + $0xf8] sm:$0xff]
        %v6064 = vld [vmem:[%s358] sm:$0x3]
        %v6065 = vpack.c.bf16 %v5905, %v5903
        %v6066 = vpack.c.bf16 %v5906, %v5904
        %v6067 = vpack.c.bf16 %v5909, %v5907
        %v6068 = vpack.c.bf16 %v5910, %v5908
        %v6070 = vlaneseq
        %v6071 = vshrl.u32 %v6070, 7
        %v6072 = vsub.s32 0, %v6071
        %v6073 = vrot.slane %v6064, %v6072
        %v6074 = vlaneseq
        %v6075 = vshrl.u32 %v6074, 7
        %v6076 = vsub.s32 1, %v6075
        %v6077 = vrot.slane %v6064, %v6076
        %v6112 = vunpack.c.l.b16 %v6032
        %v6113 = vunpack.c.h.b16 %v6032
        %v6114 = vunpack.c.l.b16 %v6033
        %v6115 = vunpack.c.h.b16 %v6033
        %v6116 = vunpack.c.l.b16 %v6034
        %v6117 = vunpack.c.h.b16 %v6034
        %v6118 = vunpack.c.l.b16 %v6035
        %v6119 = vunpack.c.h.b16 %v6035
        %v6120 = vunpack.c.l.b16 %v6036
        %v6121 = vunpack.c.h.b16 %v6036
        %v6122 = vunpack.c.l.b16 %v6037
        %v6123 = vunpack.c.h.b16 %v6037
        %v6124 = vunpack.c.l.b16 %v6038
        %v6125 = vunpack.c.h.b16 %v6038
        %v6126 = vunpack.c.l.b16 %v6039
        %v6127 = vunpack.c.h.b16 %v6039
        %v6128 = vunpack.c.l.b16 %v6040
        %v6129 = vunpack.c.h.b16 %v6040
        %v6130 = vunpack.c.l.b16 %v6041
        %v6131 = vunpack.c.h.b16 %v6041
        %v6132 = vunpack.c.l.b16 %v6042
        %v6133 = vunpack.c.h.b16 %v6042
        %v6134 = vunpack.c.l.b16 %v6043
        %v6135 = vunpack.c.h.b16 %v6043
        %v6136 = vunpack.c.l.b16 %v6044
        %v6137 = vunpack.c.h.b16 %v6044
        %v6138 = vunpack.c.l.b16 %v6045
        %v6139 = vunpack.c.h.b16 %v6045
        %v6140 = vunpack.c.l.b16 %v6046
        %v6141 = vunpack.c.h.b16 %v6046
        %v6142 = vunpack.c.l.b16 %v6047
        %v6143 = vunpack.c.h.b16 %v6047
        %v6144 = vunpack.c.l.b16 %v6048
        %v6145 = vunpack.c.h.b16 %v6048
        %v6146 = vunpack.c.l.b16 %v6049
        %v6147 = vunpack.c.h.b16 %v6049
        %v6148 = vunpack.c.l.b16 %v6050
        %v6149 = vunpack.c.h.b16 %v6050
        %v6150 = vunpack.c.l.b16 %v6051
        %v6151 = vunpack.c.h.b16 %v6051
        %v6152 = vunpack.c.l.b16 %v6052
        %v6153 = vunpack.c.h.b16 %v6052
        %v6154 = vunpack.c.l.b16 %v6053
        %v6155 = vunpack.c.h.b16 %v6053
        %v6156 = vunpack.c.l.b16 %v6054
        %v6157 = vunpack.c.h.b16 %v6054
        %v6158 = vunpack.c.l.b16 %v6055
        %v6159 = vunpack.c.h.b16 %v6055
        %v6160 = vunpack.c.l.b16 %v6056
        %v6161 = vunpack.c.h.b16 %v6056
        %v6162 = vunpack.c.l.b16 %v6057
        %v6163 = vunpack.c.h.b16 %v6057
        %v6164 = vunpack.c.l.b16 %v6058
        %v6165 = vunpack.c.h.b16 %v6058
        %v6166 = vunpack.c.l.b16 %v6059
        %v6167 = vunpack.c.h.b16 %v6059
        %v6168 = vunpack.c.l.b16 %v6060
        %v6169 = vunpack.c.h.b16 %v6060
        %v6170 = vunpack.c.l.b16 %v6061
        %v6171 = vunpack.c.h.b16 %v6061
        %v6172 = vunpack.c.l.b16 %v6062
        %v6173 = vunpack.c.h.b16 %v6062
        %v6174 = vunpack.c.l.b16 %v6063
        %v6175 = vunpack.c.h.b16 %v6063
        %v6176 = vpack.c.b16 %v6114, %v6112
        %v6177 = vpack.c.b16 %v6115, %v6113
        %v6178 = vpack.c.b16 %v6118, %v6116
        %v6179 = vpack.c.b16 %v6119, %v6117
        %v6180 = vpack.c.b16 %v6122, %v6120
        %v6181 = vpack.c.b16 %v6123, %v6121
        %v6182 = vpack.c.b16 %v6126, %v6124
        %v6183 = vpack.c.b16 %v6127, %v6125
        %v6184 = vpack.c.b16 %v6130, %v6128
        %v6185 = vpack.c.b16 %v6131, %v6129
        %v6186 = vpack.c.b16 %v6134, %v6132
        %v6187 = vpack.c.b16 %v6135, %v6133
        %v6188 = vpack.c.b16 %v6138, %v6136
        %v6189 = vpack.c.b16 %v6139, %v6137
        %v6190 = vpack.c.b16 %v6142, %v6140
        %v6191 = vpack.c.b16 %v6143, %v6141
        %v6192 = vpack.c.b16 %v6146, %v6144
        %v6193 = vpack.c.b16 %v6147, %v6145
        %v6194 = vpack.c.b16 %v6150, %v6148
        %v6195 = vpack.c.b16 %v6151, %v6149
        %v6196 = vpack.c.b16 %v6154, %v6152
        %v6197 = vpack.c.b16 %v6155, %v6153
        %v6198 = vpack.c.b16 %v6158, %v6156
        %v6199 = vpack.c.b16 %v6159, %v6157
        %v6200 = vpack.c.b16 %v6162, %v6160
        %v6201 = vpack.c.b16 %v6163, %v6161
        %v6202 = vpack.c.b16 %v6166, %v6164
        %v6203 = vpack.c.b16 %v6167, %v6165
        %v6204 = vpack.c.b16 %v6170, %v6168
        %v6205 = vpack.c.b16 %v6171, %v6169
        %v6206 = vpack.c.b16 %v6174, %v6172
        %v6207 = vpack.c.b16 %v6175, %v6173
        %6240 = vmatprep.subr.bf16.mxu0 %v6191
        %6241 = vmatpush1.bf16.msra.mxu0 %v6190
        %6242 = vmatprep.subr.bf16.mxu0 %v6189
        %6243 = vmatpush1.bf16.msra.mxu0 %v6188
        %6244 = vmatprep.subr.bf16.mxu0 %v6187
        %6245 = vmatpush1.bf16.msra.mxu0 %v6186
        %6246 = vmatprep.subr.bf16.mxu0 %v6185
        %6247 = vmatpush1.bf16.msra.mxu0 %v6184
        %6248 = vmatprep.subr.bf16.mxu0 %v6183
        %6249 = vmatpush1.bf16.msra.mxu0 %v6182
        %6250 = vmatprep.subr.bf16.mxu0 %v6181
        %6251 = vmatpush1.bf16.msra.mxu0 %v6180
        %6252 = vmatprep.subr.bf16.mxu0 %v6179
        %6253 = vmatpush1.bf16.msra.mxu0 %v6178
        %6254 = vmatprep.subr.bf16.mxu0 %v6177
        %6255 = vmatpush1.bf16.msra.mxu0 %v6176
        %6256 = vmatprep.subr.bf16.mxu0 %v6207
        %6257 = vmatpush2.bf16.msra.mxu0 %v6206
        %6258 = vmatprep.subr.bf16.mxu0 %v6205
        %6259 = vmatpush2.bf16.msra.mxu0 %v6204
        %6260 = vmatprep.subr.bf16.mxu0 %v6203
        %6261 = vmatpush2.bf16.msra.mxu0 %v6202
        %6262 = vmatprep.subr.bf16.mxu0 %v6201
        %6263 = vmatpush2.bf16.msra.mxu0 %v6200
        %6264 = vmatprep.subr.bf16.mxu0 %v6199
        %6265 = vmatpush2.bf16.msra.mxu0 %v6198
        %6266 = vmatprep.subr.bf16.mxu0 %v6197
        %6267 = vmatpush2.bf16.msra.mxu0 %v6196
        %6268 = vmatprep.subr.bf16.mxu0 %v6195
        %6269 = vmatpush2.bf16.msra.mxu0 %v6194
        %6270 = vmatprep.subr.bf16.mxu0 %v6193
        %6271 = vmatpush2.bf16.msra.mxu0 %v6192
        %6272 = vmatprep.mubr.bf16.mxu0 %v6066
        %6273 = vmatmul.mubr.bf16.gmra.mxu0 %v6065
        %v6274 = vpop.f32.mrf.mxu0
        %v6275 = vadd.f32 %v6073, %v6274
        %v6276 = vpop.f32.mrf.mxu0
        %v6277 = vadd.f32 %v6077, %v6276
        %v6278 = vpop.f32.mrf.mxu0
        %v6279 = vadd.f32 %v6073, %v6278
        %v6280 = vpop.f32.mrf.mxu0
        %v6281 = vadd.f32 %v6077, %v6280
        %6282 = vmatprep.mubr.bf16.mxu0 %v6068
        %6283 = vmatmul.mubr.bf16.gmra.mxu0 %v6067
        %v6284 = vpop.f32.mrf.mxu0
        %v6285 = vadd.f32 %v6073, %v6284
        %v6286 = vpop.f32.mrf.mxu0
        %v6287 = vadd.f32 %v6077, %v6286
        %v6288 = vpop.f32.mrf.mxu0
        %v6289 = vadd.f32 %v6073, %v6288
        %v6290 = vpop.f32.mrf.mxu0
        %v6291 = vadd.f32 %v6077, %v6290
        %6292 = vdwg.mxu0
        %v6293 = vpack.c.bf16 %v6026, %v6024
        %v6294 = vpack.c.bf16 %v6027, %v6025
        %v6295 = vpack.c.bf16 %v6030, %v6028
        %v6296 = vpack.c.bf16 %v6031, %v6029
        %6297 = vmatprep.subr.bf16.mxu0 %v6191
        %6298 = vmatpush1.bf16.msra.mxu0 %v6190
        %6299 = vmatprep.subr.bf16.mxu0 %v6189
        %6300 = vmatpush1.bf16.msra.mxu0 %v6188
        %6301 = vmatprep.subr.bf16.mxu0 %v6187
        %6302 = vmatpush1.bf16.msra.mxu0 %v6186
        %6303 = vmatprep.subr.bf16.mxu0 %v6185
        %6304 = vmatpush1.bf16.msra.mxu0 %v6184
        %6305 = vmatprep.subr.bf16.mxu0 %v6183
        %6306 = vmatpush1.bf16.msra.mxu0 %v6182
        %6307 = vmatprep.subr.bf16.mxu0 %v6181
        %6308 = vmatpush1.bf16.msra.mxu0 %v6180
        %6309 = vmatprep.subr.bf16.mxu0 %v6179
        %6310 = vmatpush1.bf16.msra.mxu0 %v6178
        %6311 = vmatprep.subr.bf16.mxu0 %v6177
        %6312 = vmatpush1.bf16.msra.mxu0 %v6176
        %6313 = vmatprep.subr.bf16.mxu0 %v6207
        %6314 = vmatpush2.bf16.msra.mxu0 %v6206
        %6315 = vmatprep.subr.bf16.mxu0 %v6205
        %6316 = vmatpush2.bf16.msra.mxu0 %v6204
        %6317 = vmatprep.subr.bf16.mxu0 %v6203
        %6318 = vmatpush2.bf16.msra.mxu0 %v6202
        %6319 = vmatprep.subr.bf16.mxu0 %v6201
        %6320 = vmatpush2.bf16.msra.mxu0 %v6200
        %6321 = vmatprep.subr.bf16.mxu0 %v6199
        %6322 = vmatpush2.bf16.msra.mxu0 %v6198
        %6323 = vmatprep.subr.bf16.mxu0 %v6197
        %6324 = vmatpush2.bf16.msra.mxu0 %v6196
        %6325 = vmatprep.subr.bf16.mxu0 %v6195
        %6326 = vmatpush2.bf16.msra.mxu0 %v6194
        %6327 = vmatprep.subr.bf16.mxu0 %v6193
        %6328 = vmatpush2.bf16.msra.mxu0 %v6192
        %6329 = vmatprep.mubr.bf16.mxu0 %v6294
        %6330 = vmatmul.mubr.bf16.gmra.mxu0 %v6293
        %v6331 = vpop.f32.mrf.mxu0
        %v6332 = vadd.f32 %v6073, %v6331
        %v6333 = vpop.f32.mrf.mxu0
        %v6334 = vadd.f32 %v6077, %v6333
        %v6335 = vpop.f32.mrf.mxu0
        %v6336 = vadd.f32 %v6073, %v6335
        %v6337 = vpop.f32.mrf.mxu0
        %v6338 = vadd.f32 %v6077, %v6337
        %6339 = vmatprep.mubr.bf16.mxu0 %v6296
        %6340 = vmatmul.mubr.bf16.gmra.mxu0 %v6295
        %v6341 = vpop.f32.mrf.mxu0
        %v6342 = vadd.f32 %v6073, %v6341
        %v6343 = vpop.f32.mrf.mxu0
        %v6344 = vadd.f32 %v6077, %v6343
        %v6345 = vpop.f32.mrf.mxu0
        %v6346 = vadd.f32 %v6073, %v6345
        %v6347 = vpop.f32.mrf.mxu0
        %v6348 = vadd.f32 %v6077, %v6347
        %6349 = vdwg.mxu0
        %p6350 = scmp.eq.s32.totalorder %s19, 0
        // Predicated region
        $region49: #{forward.1} parent=47 // pred_check
          %p6351 = pneg %p6350
        $region50: #{forward.1} parent=47 // pred_check_branch
          %6353 = sbr.rel (%p6351) target = $region52
        $region51: #{forward.1} parent=47 // pred_region
          %6354 = vst [vmem:[#allocation2] sm:$0xff] 0.0
          %6355 = vst [vmem:[#allocation2 + $0x8] sm:$0xff] 0.0
          %6356 = vst [vmem:[#allocation2 + $0x10] sm:$0xff] 0.0
          %6357 = vst [vmem:[#allocation2 + $0x18] sm:$0xff] 0.0
          %6358 = vst [vmem:[#allocation2 + $0x20] sm:$0xff] 0.0
          %6359 = vst [vmem:[#allocation2 + $0x28] sm:$0xff] 0.0
          %6360 = vst [vmem:[#allocation2 + $0x30] sm:$0xff] 0.0
          %6361 = vst [vmem:[#allocation2 + $0x38] sm:$0xff] 0.0
          %6362 = vst [vmem:[#allocation2 + $0x40] sm:$0xff] 0.0
          %6363 = vst [vmem:[#allocation2 + $0x48] sm:$0xff] 0.0
          %6364 = vst [vmem:[#allocation2 + $0x50] sm:$0xff] 0.0
          %6365 = vst [vmem:[#allocation2 + $0x58] sm:$0xff] 0.0
          %6366 = vst [vmem:[#allocation2 + $0x60] sm:$0xff] 0.0
          %6367 = vst [vmem:[#allocation2 + $0x68] sm:$0xff] 0.0
          %6368 = vst [vmem:[#allocation2 + $0x70] sm:$0xff] 0.0
          %6369 = vst [vmem:[#allocation2 + $0x78] sm:$0xff] 0.0
        $region52: #{forward.1} parent=47 // pred_fallthru
          _
        %v6370 = vld [vmem:[#allocation2] sm:$0xff]
        %v6371 = vld [vmem:[#allocation2 + $0x8] sm:$0xff]
        %v6372 = vld [vmem:[#allocation2 + $0x10] sm:$0xff]
        %v6373 = vld [vmem:[#allocation2 + $0x18] sm:$0xff]
        %v6374 = vld [vmem:[#allocation2 + $0x20] sm:$0xff]
        %v6375 = vld [vmem:[#allocation2 + $0x28] sm:$0xff]
        %v6376 = vld [vmem:[#allocation2 + $0x30] sm:$0xff]
        %v6377 = vld [vmem:[#allocation2 + $0x38] sm:$0xff]
        %v6378 = vld [vmem:[#allocation2 + $0x40] sm:$0xff]
        %v6379 = vld [vmem:[#allocation2 + $0x48] sm:$0xff]
        %v6380 = vld [vmem:[#allocation2 + $0x50] sm:$0xff]
        %v6381 = vld [vmem:[#allocation2 + $0x58] sm:$0xff]
        %v6382 = vld [vmem:[#allocation2 + $0x60] sm:$0xff]
        %v6383 = vld [vmem:[#allocation2 + $0x68] sm:$0xff]
        %v6384 = vld [vmem:[#allocation2 + $0x70] sm:$0xff]
        %v6385 = vld [vmem:[#allocation2 + $0x78] sm:$0xff]
        %v6386 = vadd.f32 %v6370, %v6275
        %v6387 = vadd.f32 %v6371, %v6277
        %v6388 = vadd.f32 %v6372, %v6279
        %v6389 = vadd.f32 %v6373, %v6281
        %v6390 = vadd.f32 %v6374, %v6285
        %v6391 = vadd.f32 %v6375, %v6287
        %v6392 = vadd.f32 %v6376, %v6289
        %v6393 = vadd.f32 %v6377, %v6291
        %v6394 = vadd.f32 %v6378, %v6332
        %v6395 = vadd.f32 %v6379, %v6334
        %v6396 = vadd.f32 %v6380, %v6336
        %v6397 = vadd.f32 %v6381, %v6338
        %v6398 = vadd.f32 %v6382, %v6342
        %v6399 = vadd.f32 %v6383, %v6344
        %v6400 = vadd.f32 %v6384, %v6346
        %v6401 = vadd.f32 %v6385, %v6348
        %6402 = vst [vmem:[#allocation2] sm:$0xff] %v6386
        %6403 = vst [vmem:[#allocation2 + $0x8] sm:$0xff] %v6387
        %6404 = vst [vmem:[#allocation2 + $0x10] sm:$0xff] %v6388
        %6405 = vst [vmem:[#allocation2 + $0x18] sm:$0xff] %v6389
        %6406 = vst [vmem:[#allocation2 + $0x20] sm:$0xff] %v6390
        %6407 = vst [vmem:[#allocation2 + $0x28] sm:$0xff] %v6391
        %6408 = vst [vmem:[#allocation2 + $0x30] sm:$0xff] %v6392
        %6409 = vst [vmem:[#allocation2 + $0x38] sm:$0xff] %v6393
        %6410 = vst [vmem:[#allocation2 + $0x40] sm:$0xff] %v6394
        %6411 = vst [vmem:[#allocation2 + $0x48] sm:$0xff] %v6395
        %6412 = vst [vmem:[#allocation2 + $0x50] sm:$0xff] %v6396
        %6413 = vst [vmem:[#allocation2 + $0x58] sm:$0xff] %v6397
        %6414 = vst [vmem:[#allocation2 + $0x60] sm:$0xff] %v6398
        %6415 = vst [vmem:[#allocation2 + $0x68] sm:$0xff] %v6399
        %6416 = vst [vmem:[#allocation2 + $0x70] sm:$0xff] %v6400
        %6417 = vst [vmem:[#allocation2 + $0x78] sm:$0xff] %v6401
        %p6418 = scmp.eq.s32.totalorder %s19, 9
        // Predicated region
        $region53: #{forward.1} parent=47 // pred_check
          %p6419 = pneg %p6418
        $region54: #{forward.1} parent=47 // pred_check_branch
          %6421 = sbr.rel (%p6419) target = $region56
        $region55: #{forward.1} parent=47 // pred_region
          %v6422 = vld [vmem:[#allocation2] sm:$0xff]
          %v6423 = vld [vmem:[#allocation2 + $0x8] sm:$0xff]
          %v6424 = vld [vmem:[#allocation2 + $0x10] sm:$0xff]
          %v6425 = vld [vmem:[#allocation2 + $0x18] sm:$0xff]
          %v6426 = vld [vmem:[#allocation2 + $0x20] sm:$0xff]
          %v6427 = vld [vmem:[#allocation2 + $0x28] sm:$0xff]
          %v6428 = vld [vmem:[#allocation2 + $0x30] sm:$0xff]
          %v6429 = vld [vmem:[#allocation2 + $0x38] sm:$0xff]
          %v6430 = vld [vmem:[#allocation2 + $0x40] sm:$0xff]
          %v6431 = vld [vmem:[#allocation2 + $0x48] sm:$0xff]
          %v6432 = vld [vmem:[#allocation2 + $0x50] sm:$0xff]
          %v6433 = vld [vmem:[#allocation2 + $0x58] sm:$0xff]
          %v6434 = vld [vmem:[#allocation2 + $0x60] sm:$0xff]
          %v6435 = vld [vmem:[#allocation2 + $0x68] sm:$0xff]
          %v6436 = vld [vmem:[#allocation2 + $0x70] sm:$0xff]
          %v6437 = vld [vmem:[#allocation2 + $0x78] sm:$0xff]
          %v6438 = vmul.f32 %v6422, 0.1
          %v6439 = vmul.f32 %v6423, 0.1
          %v6440 = vmul.f32 %v6424, 0.1
          %v6441 = vmul.f32 %v6425, 0.1
          %v6442 = vmul.f32 %v6426, 0.1
          %v6443 = vmul.f32 %v6427, 0.1
          %v6444 = vmul.f32 %v6428, 0.1
          %v6445 = vmul.f32 %v6429, 0.1
          %v6446 = vmul.f32 %v6430, 0.1
          %v6447 = vmul.f32 %v6431, 0.1
          %v6448 = vmul.f32 %v6432, 0.1
          %v6449 = vmul.f32 %v6433, 0.1
          %v6450 = vmul.f32 %v6434, 0.1
          %v6451 = vmul.f32 %v6435, 0.1
          %v6452 = vmul.f32 %v6436, 0.1
          %v6453 = vmul.f32 %v6437, 0.1
          %6454 = vst [vmem:[#allocation2] sm:$0xff] %v6438
          %6455 = vst [vmem:[#allocation2 + $0x8] sm:$0xff] %v6439
          %6456 = vst [vmem:[#allocation2 + $0x10] sm:$0xff] %v6440
          %6457 = vst [vmem:[#allocation2 + $0x18] sm:$0xff] %v6441
          %6458 = vst [vmem:[#allocation2 + $0x20] sm:$0xff] %v6442
          %6459 = vst [vmem:[#allocation2 + $0x28] sm:$0xff] %v6443
          %6460 = vst [vmem:[#allocation2 + $0x30] sm:$0xff] %v6444
          %6461 = vst [vmem:[#allocation2 + $0x38] sm:$0xff] %v6445
          %6462 = vst [vmem:[#allocation2 + $0x40] sm:$0xff] %v6446
          %6463 = vst [vmem:[#allocation2 + $0x48] sm:$0xff] %v6447
          %6464 = vst [vmem:[#allocation2 + $0x50] sm:$0xff] %v6448
          %6465 = vst [vmem:[#allocation2 + $0x58] sm:$0xff] %v6449
          %6466 = vst [vmem:[#allocation2 + $0x60] sm:$0xff] %v6450
          %6467 = vst [vmem:[#allocation2 + $0x68] sm:$0xff] %v6451
          %6468 = vst [vmem:[#allocation2 + $0x70] sm:$0xff] %v6452
          %6469 = vst [vmem:[#allocation2 + $0x78] sm:$0xff] %v6453
        $region56: #{forward.1} parent=47 // pred_fallthru
          _
        // Predicated region
        $region57: #{forward.1} parent=47 // pred_check
          %p6470 = pneg %p209
        $region58: #{forward.1} parent=47 // pred_check_branch
          %6472 = sbr.rel (%p6470) target = $region60
        $region59: #{forward.1} parent=47 // pred_region
          %s6474 = ssub.s32 2048, 2048
          %6475 = vsyncadd [#allocation3], %s6474
          %s6476 = sshll.u32 [#allocation2], 4
          %s6477 = int_to_ptr.vmem [resolvable:$true] %s6476
          %6482 = dma.vmem_to_hbm [thread:$0]  %s6477, 2048, %s7, [#allocation3], 256, 256, 16
        $region60: #{forward.1} parent=47 // pred_fallthru
          _
        // Predicated region
        $region61: #{forward.1} parent=47 // pred_check
          %p6483 = pneg %p209
        $region62: #{forward.1} parent=47 // pred_check_branch
          %6485 = sbr.rel (%p6483) target = $region64
        $region63: #{forward.1} parent=47 // pred_region
          %6486 = dma.done [#allocation3], 2048
        $region64: #{forward.1} parent=47 // pred_fallthru
          _
      $region48: #{forward.1} parent=5 // pred_fallthru
        _
      %p6487 = scmp.le.s32.totalorder 2, %s14
      // Predicated region
      $region65: #{forward.1} parent=5 // pred_check
        %p6488 = pneg %p6487
      $region66: #{forward.1} parent=5 // pred_check_branch
        %6490 = sbr.rel (%p6488) target = $region68
      $region67: #{forward.1} parent=5 // pred_region
        %s6491 = ssub.s32 %s14, 2
      $region68: #{forward.1} parent=5 // pred_fallthru
        _
    $region6: #{forward.1} parent=1 // loop_footer
      %s18 = sadd.s32 1, %s14
    $region7: #{forward.1} parent=1 // loop_footer_branch
      %13 = sbr.rel target = $region3
    $region8: #{forward.1} parent=1 // loop_exit
      _
    %6492 = vsyncpa [#allocation3], 1
    %s6493 = scalar_lea.sflag [#allocation3], 1
    %6494 = vsyncpa %s6493, 1

</llo_original>
